<compile_context>
chip_gen: v5e
topology: v5e:2x2
jax: 0.10.0
libtpu: 0.0.40
codegen_flags: <defaults>
</compile_context>

<pallas_src>
import functools

import jax
import jax.numpy as jnp
from jax.experimental import pallas as pl
from jax.experimental.pallas import tpu as pltpu

# bf16 operands + f32 accumulation is native MXU rate on v5e/v6e/v7x.
_CONV_MATMUL_DTYPE = jnp.bfloat16


def _round_up(n, m):
    return ((n + m - 1) // m) * m


def _tpu_vmem_capacity_bytes():
    try:
        return int(pltpu.get_tpu_info().vmem_capacity_bytes)
    except Exception:
        return 64 * 1024 * 1024  # conservative default (v7x per-TensorCore VMEM)


def _pick_row_strip(H, W, Cp, patch_budget_bytes):
    """Largest divisor of H whose (rows*W, 9*Cp) bf16 patch matrix fits the budget."""
    rows = 1
    for r in range(1, H + 1):
        if H % r == 0 and r * W * 9 * Cp * 2 <= patch_budget_bytes:
            rows = r
    return rows


def _rcab_kernel(x_ref, w1_ref, b1_ref, w2_ref, b2_ref,
                 wdt_ref, bdt_ref, wu_ref, bu_ref, o_ref,
                 pad_ref, y_ref, *, rows):
    # x_ref   : (1, H, W, C)   input block (also provides the residual)
    # w1, w2  : (9*Cp, Cp)     bf16 3x3 conv weights in im2col form (lane-padded)
    # b1, b2  : (1, Cp)        f32 conv biases (lane-padded)
    # wdt, bdt: (Crp, Cp)/(Crp, 1)  f32 CA squeeze weight (transposed) / bias
    # wu, bu  : (Crp, Cp)/(1, Cp)   f32 CA excite weight / bias
    # pad_ref : (H+2, W+2, Cp) persistent bf16 scratch shared by both convs
    # y_ref   : (H, W, Cp)     f32 conv-output scratch (h1, then y)
    H = x_ref.shape[1]
    W = x_ref.shape[2]
    C = x_ref.shape[3]
    Cp = pad_ref.shape[2]
    mmdt = pad_ref.dtype

    # Zero only the 1-pixel halo; the interior is fully rewritten below.
    # Done every step so it stays correct when the parallel batch axis is
    # split across TensorCores (each core has its own scratch).
    zrow = jnp.zeros((1, W + 2, Cp), mmdt)
    zcol = jnp.zeros((H + 2, 1, Cp), mmdt)
    pad_ref[0:1, :, :] = zrow
    pad_ref[H + 1:H + 2, :, :] = zrow
    pad_ref[:, 0:1, :] = zcol
    pad_ref[:, W + 1:W + 2, :] = zcol

    # Write x into the interior, lane-padded to Cp channels, in matmul dtype.
    x_in = x_ref[0]                                           # (H, W, C)
    if Cp == C:
        xp = x_in.astype(mmdt)
    else:
        xp = jnp.concatenate(
            [x_in.astype(mmdt), jnp.zeros((H, W, Cp - C), mmdt)], axis=-1)
    pad_ref[1:H + 1, 1:W + 1, :] = xp                         # (H, W, Cp)

    def conv3x3(w_ref, b_ref, relu, want_pool):
        # Row-strip im2col: per strip build one (rows*W, 9*Cp) bf16 patch
        # matrix and do a single MXU matmul with K = 9*Cp, accumulating in
        # f32.  Tap order dy*3+dx matches the (9*Cp, Cp) weight reshape.
        pool = jnp.zeros((1, Cp), jnp.float32)
        for r0 in range(0, H, rows):                          # static strips
            taps = [pad_ref[r0 + dy:r0 + dy + rows, dx:dx + W, :]
                    for dy in range(3) for dx in range(3)]
            patches = jnp.concatenate(taps, axis=-1).reshape(rows * W, 9 * Cp)
            acc = jnp.dot(patches, w_ref[...],
                          preferred_element_type=jnp.float32)
            acc = acc + b_ref[...]
            if relu:
                acc = jnp.maximum(acc, 0.0)
            if want_pool:
                # Fold the channel-attention global pool into per-strip sums.
                pool = pool + jnp.sum(acc, axis=0, keepdims=True)
            y_ref[r0:r0 + rows, :, :] = acc.reshape(rows, W, Cp)
        return pool

    # ---- conv1 (3x3, pad=1) + ReLU ----------------------------------------
    conv3x3(w1_ref, b1_ref, relu=True, want_pool=False)
    # Re-fill the interior of the shared padded scratch with relu(conv1).
    pad_ref[1:H + 1, 1:W + 1, :] = y_ref[...].astype(mmdt)

    # ---- conv2 (3x3, pad=1), reusing the same padded scratch ---------------
    pool_sum = conv3x3(w2_ref, b2_ref, relu=False, want_pool=True)

    # ---- channel attention: pool -> 1x1 -> relu -> 1x1 -> sigmoid ----------
    # Squeeze/excite as broadcast-multiply + reduce (VPU/XLU), no M=1 MXU ops.
    pooled = pool_sum * (1.0 / (H * W))                       # (1, Cp)
    hid = jnp.sum(wdt_ref[...] * pooled, axis=1, keepdims=True) + bdt_ref[...]
    hid = jnp.maximum(hid, 0.0)                               # (Crp, 1)
    att = jnp.sum(hid * wu_ref[...], axis=0, keepdims=True) + bu_ref[...]
    att = jax.nn.sigmoid(att)                                 # (1, Cp)

    # ---- gate + residual; slice padded lanes back to C only at the store ---
    gated = y_ref[...] * att.reshape(1, 1, Cp)                # (H, W, Cp) f32
    out = x_ref[0].astype(jnp.float32) + gated[:, :, :C]      # (H, W, C)
    o_ref[0] = out.astype(o_ref.dtype)


def _rcab_nhwc(x_nhwc, params):
    w1, b1, w2, b2, wd, bd, wu, bu = params
    N, H, W, C = x_nhwc.shape
    Cr = wd.shape[1]

    Cp = _round_up(C, 128)     # lane-dense channel dim
    Crp = _round_up(Cr, 8)     # sublane-aligned squeeze dim
    mmdt = _CONV_MATMUL_DTYPE
    f32b, mmb = 4, jnp.dtype(mmdt).itemsize

    # --- pad parameters to lane-dense shapes (zeros keep padded channels 0) --
    def pad_conv_w(w):  # HWIO (3,3,C,C) -> (9*Cp, Cp); row = (ky*3+kx)*Cp + ci
        wp = jnp.zeros((3, 3, Cp, Cp), jnp.float32).at[:, :, :C, :C].set(w)
        return wp.reshape(9 * Cp, Cp).astype(mmdt)

    def pad_row(b, n_to):
        return jnp.zeros((1, n_to), jnp.float32).at[:, :b.shape[1]].set(b)

    w1p, w2p = pad_conv_w(w1), pad_conv_w(w2)
    b1p, b2p = pad_row(b1, Cp), pad_row(b2, Cp)
    wdt = jnp.zeros((Crp, Cp), jnp.float32).at[:Cr, :C].set(wd.T)
    bdt = jnp.zeros((Crp, 1), jnp.float32).at[:Cr, :].set(bd.T)
    wup = jnp.zeros((Crp, Cp), jnp.float32).at[:Cr, :C].set(wu)
    bup = pad_row(bu, Cp)

    # --- VMEM sizing: physical capacity of the running chip, with headroom ---
    vmem_cap = _tpu_vmem_capacity_bytes()
    patch_budget = max(1 << 20, vmem_cap // 12)
    rows = _pick_row_strip(H, W, Cp, patch_budget)

    itemsize = x_nhwc.dtype.itemsize
    working = (
        2 * 2 * H * W * C * itemsize                                   # x + out (dbl-buffered)
        + 2 * (2 * 9 * Cp * Cp * mmb                                   # conv weights
               + 2 * Cp * f32b + 2 * Crp * Cp * f32b                   # biases + CA weights
               + Crp * f32b + Cp * f32b)
        + (H + 2) * (W + 2) * Cp * mmb                                 # padded scratch
        + H * W * Cp * f32b                                            # conv-output scratch
        + 2 * rows * W * 9 * Cp * mmb                                  # im2col patches
        + 4 * rows * W * Cp * f32b                                     # matmul acc temps
        + 2 * H * W * Cp * f32b                                        # gating temps
    )
    vmem_limit = int(min(max(2 * working, 32 * 1024 * 1024),
                         int(0.85 * vmem_cap)))

    def full_spec(shape):
        nd = len(shape)
        return pl.BlockSpec(shape, lambda n, _nd=nd: (0,) * _nd)

    kernel = functools.partial(_rcab_kernel, rows=rows)

    return pl.pallas_call(
        kernel,
        out_shape=jax.ShapeDtypeStruct((N, H, W, C), x_nhwc.dtype),
        grid_spec=pltpu.PrefetchScalarGridSpec(
            num_scalar_prefetch=0,
            grid=(N,),
            in_specs=[
                pl.BlockSpec((1, H, W, C), lambda n: (n, 0, 0, 0)),
                full_spec(w1p.shape), full_spec(b1p.shape),
                full_spec(w2p.shape), full_spec(b2p.shape),
                full_spec(wdt.shape), full_spec(bdt.shape),
                full_spec(wup.shape), full_spec(bup.shape),
            ],
            out_specs=pl.BlockSpec((1, H, W, C), lambda n: (n, 0, 0, 0)),
            scratch_shapes=[
                pltpu.VMEM((H + 2, W + 2, Cp), mmdt),      # shared padded input
                pltpu.VMEM((H, W, Cp), jnp.float32),       # conv output (h1, then y)
            ],
        ),
        compiler_params=pltpu.CompilerParams(
            dimension_semantics=("parallel",),
            vmem_limit_bytes=vmem_limit),
    )(x_nhwc, w1p, b1p, w2p, b2p, wdt, bdt, wup, bup)


@jax.jit
def rcab_forward_nhwc(x_nhwc, params):
    """NHWC entry point — use this (and hoist layout conversion) when chaining RCABs."""
    return _rcab_nhwc(x_nhwc, params)


@jax.jit
def rcab_forward(x_nchw, params):
    # PyTorch NCHW at the boundary -> NHWC for the kernel -> back to NCHW.
    # (Hoist these transposes outside a chain of RCABs in a full model, or
    #  fuse them into the pallas_call via CompilerParams.allow_input_fusion.)
    x_nhwc = jnp.transpose(x_nchw, (0, 2, 3, 1))
    out = _rcab_nhwc(x_nhwc, params)
    return jnp.transpose(out, (0, 3, 1, 2))


def rcab_reference(x_nchw, params):
    """Pure-JAX f32 reference (matches the PyTorch module), for correctness only."""
    w1, b1, w2, b2, wd, bd, wu, bu = params
    x = jnp.transpose(x_nchw, (0, 2, 3, 1))
    dn = ('NHWC', 'HWIO', 'NHWC')
    y = jax.lax.conv_general_dilated(x, w1, (1, 1), 'SAME',
                                     dimension_numbers=dn) + b1
    y = jnp.maximum(y, 0.0)
    y = jax.lax.conv_general_dilated(y, w2, (1, 1), 'SAME',
                                     dimension_numbers=dn) + b2
    pooled = jnp.mean(y, axis=(1, 2))                        # (N, C)
    hid = jnp.maximum(pooled @ wd + bd, 0.0)
    att = jax.nn.sigmoid(hid @ wu + bu)[:, None, None, :]
    out = x + y * att
    return jnp.transpose(out, (0, 3, 1, 2))


def init_params(key, num_features, reduction):
    C = num_features
    Cr = num_features // reduction
    ks = jax.random.split(key, 8)
    scale = 0.1
    w1 = scale * jax.random.normal(ks[0], (3, 3, C, C), jnp.float32)   # HWIO
    b1 = scale * jax.random.normal(ks[1], (1, C), jnp.float32)
    w2 = scale * jax.random.normal(ks[2], (3, 3, C, C), jnp.float32)
    b2 = scale * jax.random.normal(ks[3], (1, C), jnp.float32)
    wd = scale * jax.random.normal(ks[4], (C, Cr), jnp.float32)        # 1x1 conv down
    bd = scale * jax.random.normal(ks[5], (1, Cr), jnp.float32)
    wu = scale * jax.random.normal(ks[6], (Cr, C), jnp.float32)        # 1x1 conv up
    bu = scale * jax.random.normal(ks[7], (1, C), jnp.float32)
    return (w1, b1, w2, b2, wd, bd, wu, bu)


if __name__ == "__main__":
    num_features = 4
    reduction = 2
    N, C, H, W = 2, num_features, 16, 16

    key = jax.random.PRNGKey(0)
    k_x, k_p = jax.random.split(key)
    x = jax.random.normal(k_x, (N, C, H, W), jnp.float32)   # PyTorch-style NCHW
    params = init_params(k_p, num_features, reduction)

    out = rcab_forward(x, params)
    out = jax.block_until_ready(out)

    ref = jax.block_until_ready(rcab_reference(x, params))
    assert out.shape == (N, C, H, W)
    # Tolerance is set for bf16 MXU operands with f32 accumulation.
    assert jnp.allclose(out, ref, atol=5e-2, rtol=5e-2), "mismatch vs reference"

    print("KERNEL_OK")
</pallas_src>

<mosaic_0001>
module attributes {stable_mosaic.version = 11 : i64} {
  func.func @_rcab_kernel(%arg0: i32, %arg1: memref<1x16x16x4xf32, #tpu.memory_space<vmem>>, %arg2: memref<1152x128xbf16, #tpu.memory_space<vmem>>, %arg3: memref<1x128xf32, #tpu.memory_space<vmem>>, %arg4: memref<1152x128xbf16, #tpu.memory_space<vmem>>, %arg5: memref<1x128xf32, #tpu.memory_space<vmem>>, %arg6: memref<8x128xf32, #tpu.memory_space<vmem>>, %arg7: memref<8x1xf32, #tpu.memory_space<vmem>>, %arg8: memref<8x128xf32, #tpu.memory_space<vmem>>, %arg9: memref<1x128xf32, #tpu.memory_space<vmem>>, %arg10: memref<1x16x16x4xf32, #tpu.memory_space<vmem>>, %arg11: memref<18x18x128xbf16, #tpu.memory_space<vmem>>, %arg12: memref<16x16x128xf32, #tpu.memory_space<vmem>>) attributes {dimension_semantics = [#tpu.dimension_semantics<parallel>], iteration_bounds = array<i64: 2>, scalar_prefetch = 0 : i64, scratch_operands = 2 : i64, tpu.core_type = #tpu.core_type<tc>, window_params = [{transform_indices = @transform_0, window_bounds = array<i64: 1, 16, 16, 4>}, {pipeline_mode = #tpu.pipeline_mode<synchronous>, transform_indices = @transform_1, window_bounds = array<i64: 1152, 128>}, {pipeline_mode = #tpu.pipeline_mode<synchronous>, transform_indices = @transform_2, window_bounds = array<i64: 1, 128>}, {pipeline_mode = #tpu.pipeline_mode<synchronous>, transform_indices = @transform_3, window_bounds = array<i64: 1152, 128>}, {pipeline_mode = #tpu.pipeline_mode<synchronous>, transform_indices = @transform_4, window_bounds = array<i64: 1, 128>}, {pipeline_mode = #tpu.pipeline_mode<synchronous>, transform_indices = @transform_5, window_bounds = array<i64: 8, 128>}, {pipeline_mode = #tpu.pipeline_mode<synchronous>, transform_indices = @transform_6, window_bounds = array<i64: 8, 1>}, {pipeline_mode = #tpu.pipeline_mode<synchronous>, transform_indices = @transform_7, window_bounds = array<i64: 8, 128>}, {pipeline_mode = #tpu.pipeline_mode<synchronous>, transform_indices = @transform_8, window_bounds = array<i64: 1, 128>}, {transform_indices = @transform_9, window_bounds = array<i64: 1, 16, 16, 4>}]} {
    %cst = arith.constant 0.000000e+00 : bf16
    %0 = vector.broadcast %cst : bf16 to vector<1x18x128xbf16>
    %cst_0 = arith.constant 0.000000e+00 : bf16
    %1 = vector.broadcast %cst_0 : bf16 to vector<18x1x128xbf16>
    %c0 = arith.constant 0 : index
    %c0_1 = arith.constant 0 : index
    %c0_2 = arith.constant 0 : index
    %2 = vector.load %arg11[%c0, %c0_1, %c0_2] : memref<18x18x128xbf16, #tpu.memory_space<vmem>>, vector<1x18x128xbf16>
    tpu.vector_store %arg11[%c0, %c0_1, %c0_2], %0 {strides = array<i32>} : memref<18x18x128xbf16, #tpu.memory_space<vmem>>, vector<1x18x128xbf16>,
    %c17 = arith.constant 17 : index
    %c0_3 = arith.constant 0 : index
    %c0_4 = arith.constant 0 : index
    %3 = vector.load %arg11[%c17, %c0_3, %c0_4] : memref<18x18x128xbf16, #tpu.memory_space<vmem>>, vector<1x18x128xbf16>
    tpu.vector_store %arg11[%c17, %c0_3, %c0_4], %0 {strides = array<i32>} : memref<18x18x128xbf16, #tpu.memory_space<vmem>>, vector<1x18x128xbf16>,
    %c0_5 = arith.constant 0 : index
    %c0_6 = arith.constant 0 : index
    %c0_7 = arith.constant 0 : index
    %4 = vector.load %arg11[%c0_5, %c0_6, %c0_7] : memref<18x18x128xbf16, #tpu.memory_space<vmem>>, vector<18x1x128xbf16>
    tpu.vector_store %arg11[%c0_5, %c0_6, %c0_7], %1 {strides = array<i32>} : memref<18x18x128xbf16, #tpu.memory_space<vmem>>, vector<18x1x128xbf16>,
    %c0_8 = arith.constant 0 : index
    %c17_9 = arith.constant 17 : index
    %c0_10 = arith.constant 0 : index
    %5 = vector.load %arg11[%c0_8, %c17_9, %c0_10] : memref<18x18x128xbf16, #tpu.memory_space<vmem>>, vector<18x1x128xbf16>
    tpu.vector_store %arg11[%c0_8, %c17_9, %c0_10], %1 {strides = array<i32>} : memref<18x18x128xbf16, #tpu.memory_space<vmem>>, vector<18x1x128xbf16>,
    %c0_11 = arith.constant 0 : index
    %c0_12 = arith.constant 0 : index
    %c0_13 = arith.constant 0 : index
    %c0_14 = arith.constant 0 : index
    %6 = vector.load %arg1[%c0_11, %c0_12, %c0_13, %c0_14] : memref<1x16x16x4xf32, #tpu.memory_space<vmem>>, vector<1x16x16x4xf32>
    %7 = vector.shape_cast %6 : vector<1x16x16x4xf32> to vector<16x16x4xf32>
    %8 = arith.truncf %7 : vector<16x16x4xf32> to vector<16x16x4xbf16>
    %cst_15 = arith.constant 0.000000e+00 : bf16
    %9 = vector.broadcast %cst_15 : bf16 to vector<16x16x124xbf16>
    %10 = tpu.concatenate %8, %9 in 2 : vector<16x16x4xbf16>, vector<16x16x124xbf16> -> vector<16x16x128xbf16>
    %c1 = arith.constant 1 : index
    %c1_16 = arith.constant 1 : index
    %c0_17 = arith.constant 0 : index
    %11 = vector.load %arg11[%c1, %c1_16, %c0_17] : memref<18x18x128xbf16, #tpu.memory_space<vmem>>, vector<16x16x128xbf16>
    tpu.vector_store %arg11[%c1, %c1_16, %c0_17], %10 {strides = array<i32>} : memref<18x18x128xbf16, #tpu.memory_space<vmem>>, vector<16x16x128xbf16>,
    %c0_18 = arith.constant 0 : index
    %c0_19 = arith.constant 0 : index
    %c0_20 = arith.constant 0 : index
    %12 = vector.load %arg11[%c0_18, %c0_19, %c0_20] : memref<18x18x128xbf16, #tpu.memory_space<vmem>>, vector<16x16x128xbf16>
    %c0_21 = arith.constant 0 : index
    %c1_22 = arith.constant 1 : index
    %c0_23 = arith.constant 0 : index
    %13 = vector.load %arg11[%c0_21, %c1_22, %c0_23] : memref<18x18x128xbf16, #tpu.memory_space<vmem>>, vector<16x16x128xbf16>
    %c0_24 = arith.constant 0 : index
    %c2 = arith.constant 2 : index
    %c0_25 = arith.constant 0 : index
    %14 = vector.load %arg11[%c0_24, %c2, %c0_25] : memref<18x18x128xbf16, #tpu.memory_space<vmem>>, vector<16x16x128xbf16>
    %c1_26 = arith.constant 1 : index
    %c0_27 = arith.constant 0 : index
    %c0_28 = arith.constant 0 : index
    %15 = vector.load %arg11[%c1_26, %c0_27, %c0_28] : memref<18x18x128xbf16, #tpu.memory_space<vmem>>, vector<16x16x128xbf16>
    %c1_29 = arith.constant 1 : index
    %c1_30 = arith.constant 1 : index
    %c0_31 = arith.constant 0 : index
    %16 = vector.load %arg11[%c1_29, %c1_30, %c0_31] : memref<18x18x128xbf16, #tpu.memory_space<vmem>>, vector<16x16x128xbf16>
    %c1_32 = arith.constant 1 : index
    %c2_33 = arith.constant 2 : index
    %c0_34 = arith.constant 0 : index
    %17 = vector.load %arg11[%c1_32, %c2_33, %c0_34] : memref<18x18x128xbf16, #tpu.memory_space<vmem>>, vector<16x16x128xbf16>
    %c2_35 = arith.constant 2 : index
    %c0_36 = arith.constant 0 : index
    %c0_37 = arith.constant 0 : index
    %18 = vector.load %arg11[%c2_35, %c0_36, %c0_37] : memref<18x18x128xbf16, #tpu.memory_space<vmem>>, vector<16x16x128xbf16>
    %c2_38 = arith.constant 2 : index
    %c1_39 = arith.constant 1 : index
    %c0_40 = arith.constant 0 : index
    %19 = vector.load %arg11[%c2_38, %c1_39, %c0_40] : memref<18x18x128xbf16, #tpu.memory_space<vmem>>, vector<16x16x128xbf16>
    %c2_41 = arith.constant 2 : index
    %c2_42 = arith.constant 2 : index
    %c0_43 = arith.constant 0 : index
    %20 = vector.load %arg11[%c2_41, %c2_42, %c0_43] : memref<18x18x128xbf16, #tpu.memory_space<vmem>>, vector<16x16x128xbf16>
    %21 = tpu.concatenate %12, %13, %14, %15, %16, %17, %18, %19, %20 in 2 : vector<16x16x128xbf16>, vector<16x16x128xbf16>, vector<16x16x128xbf16>, vector<16x16x128xbf16>, vector<16x16x128xbf16>, vector<16x16x128xbf16>, vector<16x16x128xbf16>, vector<16x16x128xbf16>, vector<16x16x128xbf16> -> vector<16x16x1152xbf16>
    %22 = vector.shape_cast %21 : vector<16x16x1152xbf16> to vector<256x1152xbf16>
    %c0_44 = arith.constant 0 : index
    %c0_45 = arith.constant 0 : index
    %23 = vector.load %arg2[%c0_44, %c0_45] : memref<1152x128xbf16, #tpu.memory_space<vmem>>, vector<1152x128xbf16>
    %cst_46 = arith.constant dense<0.000000e+00> : vector<256x128xf32>
    %24 = tpu.matmul %22, %23, %cst_46 {dimension_numbers = #tpu.dot_dimension_numbers<[1], [0], [0], [1], [0, 0, 1, 1], [], []>} : vector<256x1152xbf16>, vector<1152x128xbf16>, vector<256x128xf32> -> vector<256x128xf32>
    %c0_47 = arith.constant 0 : index
    %c0_48 = arith.constant 0 : index
    %25 = vector.load %arg3[%c0_47, %c0_48] : memref<1x128xf32, #tpu.memory_space<vmem>>, vector<1x128xf32>
    %26 = vector.broadcast %25 : vector<1x128xf32> to vector<256x128xf32>
    %27 = arith.addf %24, %26 : vector<256x128xf32>
    %cst_49 = arith.constant 0.000000e+00 : f32
    %28 = vector.broadcast %cst_49 : f32 to vector<256x128xf32>
    %29 = arith.maximumf %27, %28 : vector<256x128xf32>
    %30 = vector.shape_cast %29 : vector<256x128xf32> to vector<16x16x128xf32>
    %c0_50 = arith.constant 0 : index
    %c0_51 = arith.constant 0 : index
    %c0_52 = arith.constant 0 : index
    %31 = vector.load %arg12[%c0_50, %c0_51, %c0_52] : memref<16x16x128xf32, #tpu.memory_space<vmem>>, vector<16x16x128xf32>
    tpu.vector_store %arg12[%c0_50, %c0_51, %c0_52], %30 {strides = array<i32>} : memref<16x16x128xf32, #tpu.memory_space<vmem>>, vector<16x16x128xf32>,
    %c0_53 = arith.constant 0 : index
    %c0_54 = arith.constant 0 : index
    %c0_55 = arith.constant 0 : index
    %32 = vector.load %arg12[%c0_53, %c0_54, %c0_55] : memref<16x16x128xf32, #tpu.memory_space<vmem>>, vector<16x16x128xf32>
    %33 = arith.truncf %32 : vector<16x16x128xf32> to vector<16x16x128xbf16>
    %c1_56 = arith.constant 1 : index
    %c1_57 = arith.constant 1 : index
    %c0_58 = arith.constant 0 : index
    %34 = vector.load %arg11[%c1_56, %c1_57, %c0_58] : memref<18x18x128xbf16, #tpu.memory_space<vmem>>, vector<16x16x128xbf16>
    tpu.vector_store %arg11[%c1_56, %c1_57, %c0_58], %33 {strides = array<i32>} : memref<18x18x128xbf16, #tpu.memory_space<vmem>>, vector<16x16x128xbf16>,
    %cst_59 = arith.constant 0.000000e+00 : f32
    %35 = vector.broadcast %cst_59 : f32 to vector<1x128xf32>
    %c0_60 = arith.constant 0 : index
    %c0_61 = arith.constant 0 : index
    %c0_62 = arith.constant 0 : index
    %36 = vector.load %arg11[%c0_60, %c0_61, %c0_62] : memref<18x18x128xbf16, #tpu.memory_space<vmem>>, vector<16x16x128xbf16>
    %c0_63 = arith.constant 0 : index
    %c1_64 = arith.constant 1 : index
    %c0_65 = arith.constant 0 : index
    %37 = vector.load %arg11[%c0_63, %c1_64, %c0_65] : memref<18x18x128xbf16, #tpu.memory_space<vmem>>, vector<16x16x128xbf16>
    %c0_66 = arith.constant 0 : index
    %c2_67 = arith.constant 2 : index
    %c0_68 = arith.constant 0 : index
    %38 = vector.load %arg11[%c0_66, %c2_67, %c0_68] : memref<18x18x128xbf16, #tpu.memory_space<vmem>>, vector<16x16x128xbf16>
    %c1_69 = arith.constant 1 : index
    %c0_70 = arith.constant 0 : index
    %c0_71 = arith.constant 0 : index
    %39 = vector.load %arg11[%c1_69, %c0_70, %c0_71] : memref<18x18x128xbf16, #tpu.memory_space<vmem>>, vector<16x16x128xbf16>
    %c1_72 = arith.constant 1 : index
    %c1_73 = arith.constant 1 : index
    %c0_74 = arith.constant 0 : index
    %40 = vector.load %arg11[%c1_72, %c1_73, %c0_74] : memref<18x18x128xbf16, #tpu.memory_space<vmem>>, vector<16x16x128xbf16>
    %c1_75 = arith.constant 1 : index
    %c2_76 = arith.constant 2 : index
    %c0_77 = arith.constant 0 : index
    %41 = vector.load %arg11[%c1_75, %c2_76, %c0_77] : memref<18x18x128xbf16, #tpu.memory_space<vmem>>, vector<16x16x128xbf16>
    %c2_78 = arith.constant 2 : index
    %c0_79 = arith.constant 0 : index
    %c0_80 = arith.constant 0 : index
    %42 = vector.load %arg11[%c2_78, %c0_79, %c0_80] : memref<18x18x128xbf16, #tpu.memory_space<vmem>>, vector<16x16x128xbf16>
    %c2_81 = arith.constant 2 : index
    %c1_82 = arith.constant 1 : index
    %c0_83 = arith.constant 0 : index
    %43 = vector.load %arg11[%c2_81, %c1_82, %c0_83] : memref<18x18x128xbf16, #tpu.memory_space<vmem>>, vector<16x16x128xbf16>
    %c2_84 = arith.constant 2 : index
    %c2_85 = arith.constant 2 : index
    %c0_86 = arith.constant 0 : index
    %44 = vector.load %arg11[%c2_84, %c2_85, %c0_86] : memref<18x18x128xbf16, #tpu.memory_space<vmem>>, vector<16x16x128xbf16>
    %45 = tpu.concatenate %36, %37, %38, %39, %40, %41, %42, %43, %44 in 2 : vector<16x16x128xbf16>, vector<16x16x128xbf16>, vector<16x16x128xbf16>, vector<16x16x128xbf16>, vector<16x16x128xbf16>, vector<16x16x128xbf16>, vector<16x16x128xbf16>, vector<16x16x128xbf16>, vector<16x16x128xbf16> -> vector<16x16x1152xbf16>
    %46 = vector.shape_cast %45 : vector<16x16x1152xbf16> to vector<256x1152xbf16>
    %c0_87 = arith.constant 0 : index
    %c0_88 = arith.constant 0 : index
    %47 = vector.load %arg4[%c0_87, %c0_88] : memref<1152x128xbf16, #tpu.memory_space<vmem>>, vector<1152x128xbf16>
    %cst_89 = arith.constant dense<0.000000e+00> : vector<256x128xf32>
    %48 = tpu.matmul %46, %47, %cst_89 {dimension_numbers = #tpu.dot_dimension_numbers<[1], [0], [0], [1], [0, 0, 1, 1], [], []>} : vector<256x1152xbf16>, vector<1152x128xbf16>, vector<256x128xf32> -> vector<256x128xf32>
    %c0_90 = arith.constant 0 : index
    %c0_91 = arith.constant 0 : index
    %49 = vector.load %arg5[%c0_90, %c0_91] : memref<1x128xf32, #tpu.memory_space<vmem>>, vector<1x128xf32>
    %50 = vector.broadcast %49 : vector<1x128xf32> to vector<256x128xf32>
    %51 = arith.addf %48, %50 : vector<256x128xf32>
    %cst_92 = arith.constant dense<0.000000e+00> : vector<128xf32>
    %52 = vector.multi_reduction <add>, %51, %cst_92 [0] : vector<256x128xf32> to vector<128xf32>
    %53 = vector.shape_cast %52 : vector<128xf32> to vector<1x128xf32>
    %54 = arith.addf %35, %53 : vector<1x128xf32>
    %55 = vector.shape_cast %51 : vector<256x128xf32> to vector<16x16x128xf32>
    %c0_93 = arith.constant 0 : index
    %c0_94 = arith.constant 0 : index
    %c0_95 = arith.constant 0 : index
    %56 = vector.load %arg12[%c0_93, %c0_94, %c0_95] : memref<16x16x128xf32, #tpu.memory_space<vmem>>, vector<16x16x128xf32>
    tpu.vector_store %arg12[%c0_93, %c0_94, %c0_95], %55 {strides = array<i32>} : memref<16x16x128xf32, #tpu.memory_space<vmem>>, vector<16x16x128xf32>,
    %cst_96 = arith.constant 3.906250e-03 : f32
    %57 = vector.broadcast %cst_96 : f32 to vector<1x128xf32>
    %58 = arith.mulf %54, %57 : vector<1x128xf32>
    %c0_97 = arith.constant 0 : index
    %c0_98 = arith.constant 0 : index
    %59 = vector.load %arg6[%c0_97, %c0_98] : memref<8x128xf32, #tpu.memory_space<vmem>>, vector<8x128xf32>
    %60 = vector.broadcast %58 : vector<1x128xf32> to vector<8x128xf32>
    %61 = arith.mulf %59, %60 : vector<8x128xf32>
    %cst_99 = arith.constant dense<0.000000e+00> : vector<8xf32>
    %62 = vector.multi_reduction <add>, %61, %cst_99 [1] : vector<8x128xf32> to vector<8xf32>
    %63 = vector.shape_cast %62 : vector<8xf32> to vector<8x1xf32>
    %c0_100 = arith.constant 0 : index
    %c0_101 = arith.constant 0 : index
    %64 = vector.load %arg7[%c0_100, %c0_101] : memref<8x1xf32, #tpu.memory_space<vmem>>, vector<8x1xf32>
    %65 = arith.addf %63, %64 : vector<8x1xf32>
    %cst_102 = arith.constant 0.000000e+00 : f32
    %66 = vector.broadcast %cst_102 : f32 to vector<8x1xf32>
    %67 = arith.maximumf %65, %66 : vector<8x1xf32>
    %c0_103 = arith.constant 0 : index
    %c0_104 = arith.constant 0 : index
    %68 = vector.load %arg8[%c0_103, %c0_104] : memref<8x128xf32, #tpu.memory_space<vmem>>, vector<8x128xf32>
    %69 = vector.broadcast %67 : vector<8x1xf32> to vector<8x128xf32>
    %70 = arith.mulf %69, %68 : vector<8x128xf32>
    %cst_105 = arith.constant dense<0.000000e+00> : vector<128xf32>
    %71 = vector.multi_reduction <add>, %70, %cst_105 [0] : vector<8x128xf32> to vector<128xf32>
    %72 = vector.shape_cast %71 : vector<128xf32> to vector<1x128xf32>
    %c0_106 = arith.constant 0 : index
    %c0_107 = arith.constant 0 : index
    %73 = vector.load %arg9[%c0_106, %c0_107] : memref<1x128xf32, #tpu.memory_space<vmem>>, vector<1x128xf32>
    %74 = arith.addf %72, %73 : vector<1x128xf32>
    %75 = arith.negf %74 : vector<1x128xf32>
    %76 = math.exp %75 : vector<1x128xf32>
    %cst_108 = arith.constant 1.000000e+00 : f32
    %77 = vector.broadcast %cst_108 : f32 to vector<1x128xf32>
    %78 = arith.addf %77, %76 : vector<1x128xf32>
    %79 = arith.divf %77, %78 : vector<1x128xf32>
    %c0_109 = arith.constant 0 : index
    %c0_110 = arith.constant 0 : index
    %c0_111 = arith.constant 0 : index
    %80 = vector.load %arg12[%c0_109, %c0_110, %c0_111] : memref<16x16x128xf32, #tpu.memory_space<vmem>>, vector<16x16x128xf32>
    %81 = vector.shape_cast %79 : vector<1x128xf32> to vector<1x1x128xf32>
    %82 = vector.broadcast %81 : vector<1x1x128xf32> to vector<16x16x128xf32>
    %83 = arith.mulf %80, %82 : vector<16x16x128xf32>
    %c0_112 = arith.constant 0 : index
    %c0_113 = arith.constant 0 : index
    %c0_114 = arith.constant 0 : index
    %c0_115 = arith.constant 0 : index
    %84 = vector.load %arg1[%c0_112, %c0_113, %c0_114, %c0_115] : memref<1x16x16x4xf32, #tpu.memory_space<vmem>>, vector<1x16x16x4xf32>
    %85 = vector.shape_cast %84 : vector<1x16x16x4xf32> to vector<16x16x4xf32>
    %86 = vector.extract_strided_slice %83 {offsets = [0, 0, 0], sizes = [16, 16, 4], strides = [1, 1, 1]} : vector<16x16x128xf32> to vector<16x16x4xf32>
    %87 = arith.addf %85, %86 : vector<16x16x4xf32>
    %c0_116 = arith.constant 0 : index
    %c0_117 = arith.constant 0 : index
    %c0_118 = arith.constant 0 : index
    %c0_119 = arith.constant 0 : index
    %88 = vector.load %arg10[%c0_116, %c0_117, %c0_118, %c0_119] : memref<1x16x16x4xf32, #tpu.memory_space<vmem>>, vector<1x16x16x4xf32>
    %89 = vector.shape_cast %88 : vector<1x16x16x4xf32> to vector<16x16x4xf32>
    %90 = vector.shape_cast %87 : vector<16x16x4xf32> to vector<1x16x16x4xf32>
    tpu.vector_store %arg10[%c0_116, %c0_117, %c0_118, %c0_119], %90 {strides = array<i32>} : memref<1x16x16x4xf32, #tpu.memory_space<vmem>>, vector<1x16x16x4xf32>,
    return
  }
  func.func @transform_0(%arg0: i32) -> (i32, i32, i32, i32) {
    %c0_i32 = arith.constant 0 : i32
    %c0_i32_0 = arith.constant 0 : i32
    %c0_i32_1 = arith.constant 0 : i32
    %c0_i32_2 = arith.constant 0 : i32
    return %arg0, %c0_i32, %c0_i32_0, %c0_i32_1 : i32, i32, i32, i32
  }
  func.func @transform_1(%arg0: i32) -> (i32, i32) {
    %c0_i32 = arith.constant 0 : i32
    %c0_i32_0 = arith.constant 0 : i32
    %c0_i32_1 = arith.constant 0 : i32
    return %c0_i32, %c0_i32_0 : i32, i32
  }
  func.func @transform_2(%arg0: i32) -> (i32, i32) {
    %c0_i32 = arith.constant 0 : i32
    %c0_i32_0 = arith.constant 0 : i32
    %c0_i32_1 = arith.constant 0 : i32
    return %c0_i32, %c0_i32_0 : i32, i32
  }
  func.func @transform_3(%arg0: i32) -> (i32, i32) {
    %c0_i32 = arith.constant 0 : i32
    %c0_i32_0 = arith.constant 0 : i32
    %c0_i32_1 = arith.constant 0 : i32
    return %c0_i32, %c0_i32_0 : i32, i32
  }
  func.func @transform_4(%arg0: i32) -> (i32, i32) {
    %c0_i32 = arith.constant 0 : i32
    %c0_i32_0 = arith.constant 0 : i32
    %c0_i32_1 = arith.constant 0 : i32
    return %c0_i32, %c0_i32_0 : i32, i32
  }
  func.func @transform_5(%arg0: i32) -> (i32, i32) {
    %c0_i32 = arith.constant 0 : i32
    %c0_i32_0 = arith.constant 0 : i32
    %c0_i32_1 = arith.constant 0 : i32
    return %c0_i32, %c0_i32_0 : i32, i32
  }
  func.func @transform_6(%arg0: i32) -> (i32, i32) {
    %c0_i32 = arith.constant 0 : i32
    %c0_i32_0 = arith.constant 0 : i32
    %c0_i32_1 = arith.constant 0 : i32
    return %c0_i32, %c0_i32_0 : i32, i32
  }
  func.func @transform_7(%arg0: i32) -> (i32, i32) {
    %c0_i32 = arith.constant 0 : i32
    %c0_i32_0 = arith.constant 0 : i32
    %c0_i32_1 = arith.constant 0 : i32
    return %c0_i32, %c0_i32_0 : i32, i32
  }
  func.func @transform_8(%arg0: i32) -> (i32, i32) {
    %c0_i32 = arith.constant 0 : i32
    %c0_i32_0 = arith.constant 0 : i32
    %c0_i32_1 = arith.constant 0 : i32
    return %c0_i32, %c0_i32_0 : i32, i32
  }
  func.func @transform_9(%arg0: i32) -> (i32, i32, i32, i32) {
    %c0_i32 = arith.constant 0 : i32
    %c0_i32_0 = arith.constant 0 : i32
    %c0_i32_1 = arith.constant 0 : i32
    %c0_i32_2 = arith.constant 0 : i32
    return %arg0, %c0_i32, %c0_i32_0, %c0_i32_1 : i32, i32, i32, i32
  }
}

</mosaic_0001>

<llo_original>
// kernel: rcab_forward.1
$region0: #{rcab_forward.1}
  #allocation0 [shape = 'u32[]', space=smem, size = 0x4, offset = 0x4, fixed_abs, tag = 'smem constant byte address 0x4 - core index']
  #allocation1 [shape = 'u32[72,128]{1,0:T(1,128)}', space=vmem, size = 0x9000, scoped, tag = 'internal scratch']
  #allocation2 [shape = 'bf16[18,18,128]{2,1,0:T(8,128)(2,1)}', space=vmem, size = 0x1b000, scoped, tag = 'scratch operand']
  #allocation3 [shape = 'f32[16,16,128]{2,1,0:T(8,128)}', space=vmem, size = 0x20000, scoped, tag = 'scratch operand']
  %s0 = inlined_call_operand.vmem [shape: f32[2,16,16,4], index: 0, kind: input, shape index: {}]
  %s1 = inlined_call_operand.vmem [shape: bf16[1152,128], index: 1, kind: input, shape index: {}]
  %s2 = inlined_call_operand.vmem [shape: f32[1,128], index: 2, kind: input, shape index: {}]
  %s3 = inlined_call_operand.vmem [shape: bf16[1152,128], index: 3, kind: input, shape index: {}]
  %s4 = inlined_call_operand.vmem [shape: f32[1,128], index: 4, kind: input, shape index: {}]
  %s5 = inlined_call_operand.vmem [shape: f32[8,128], index: 5, kind: input, shape index: {}]
  %s6 = inlined_call_operand.vmem [shape: f32[8,1], index: 6, kind: input, shape index: {}]
  %s7 = inlined_call_operand.vmem [shape: f32[8,128], index: 7, kind: input, shape index: {}]
  %s8 = inlined_call_operand.vmem [shape: f32[1,128], index: 8, kind: input, shape index: {}]
  %s9 = inlined_call_operand.vmem [shape: f32[2,16,16,4], index: 9, kind: output, shape index: {}]
  %s10 = sld [smem:[#allocation0]]
  $region69: #{rcab_forward.1} parent=0
    _
  %s12 = ssub.s32 1, %s10
  %s13 = scalar_select 0, %s12, %s10
  loop: start=0, step=1, limit=4
  $region2: #{rcab_forward.1} parent=0 // loop_pre_header
    _
  $region3: #{rcab_forward.1} parent=0 // loop_header
    %s15 = sphi 0, %s19
    %p16 = scmp.ge.s32.totalorder %s15, 4
    %s25 = sphi 0, %s27
    %s28 = sphi 0, %s25
    %s29 = sphi 0, %s28
    %s45 = sphi 0, %s29
    %s49 = sphi 0, %s49
    %s51 = sphi 0, %s49
    %s52 = sphi 0, %s51
    %s66 = sphi 0, %s52
    %s70 = sphi 0, %s70
    %s72 = sphi 0, %s70
    %s73 = sphi 0, %s72
    %s87 = sphi 0, %s73
    %s91 = sphi 0, %s91
    %s93 = sphi 0, %s91
    %s94 = sphi 0, %s93
    %s108 = sphi 0, %s94
    %s112 = sphi 0, %s112
    %s114 = sphi 0, %s112
    %s115 = sphi 0, %s114
    %s129 = sphi 0, %s115
    %s133 = sphi 0, %s133
    %s135 = sphi 0, %s133
    %s136 = sphi 0, %s135
    %s150 = sphi 0, %s136
    %s154 = sphi 0, %s154
    %s156 = sphi 0, %s154
    %s157 = sphi 0, %s156
    %s171 = sphi 0, %s157
    %s175 = sphi 0, %s175
    %s177 = sphi 0, %s175
    %s178 = sphi 0, %s177
    %s192 = sphi 0, %s178
    %s196 = sphi 0, %s196
    %s198 = sphi 0, %s196
    %s199 = sphi 0, %s198
    %s213 = sphi 0, %s199
    %s219 = sphi 0, %s221
    %s222 = sphi 0, %s219
    %s223 = sphi 0, %s222
    %s239 = sphi 0, %s223
  $region4: #{rcab_forward.1} parent=0 // loop_header_branch
    %18 = sbr.rel (%p16) target = $region8
  $region5: #{rcab_forward.1} parent=0 // loop_body
    %s20 = ssub.s32 %s15, 1
    %s21 = ssub.s32 %s15, 2
    %s22 = sadd.s32 %s15, 1
    %s23 = ssub.s32 %s15, %s22
    %p24 = scmp.eq.s32.totalorder %s23, 0
    %s26 = sadd.s32 %s25, 1
    %s27 = scalar_select %p24, %s25, %s26
    %p30 = pneg %p24
    %p31 = scmp.eq.s32.totalorder %s15, 1
    %p32 = por %p30, %p31
    %p33 = scmp.ne.s32.totalorder %s25, %s28
    %p34 = scmp.eq.s32.totalorder %s15, 0
    %p35 = por %p33, %p34
    %p36 = scmp.ne.s32.totalorder %s25, %s28
    %p37 = scmp.eq.s32.totalorder %s20, 1
    %p38 = por %p36, %p37
    %p39 = scmp.ne.s32.totalorder %s28, %s29
    %p40 = scmp.eq.s32.totalorder %s20, 0
    %p41 = por %p39, %p40
    %p42 = scmp.ne.s32.totalorder %s28, %s29
    %p43 = scmp.eq.s32.totalorder %s21, 1
    %p44 = por %p42, %p43
    %p46 = scmp.ne.s32.totalorder %s29, %s45
    %p47 = scmp.eq.s32.totalorder %s21, 0
    %p48 = por %p46, %p47
    %s50 = sadd.s32 %s49, 1
    %p53 = scmp.eq.s32.totalorder %s15, 1
    %p54 = scmp.ne.s32.totalorder %s49, %s51
    %p55 = scmp.eq.s32.totalorder %s15, 0
    %p56 = por %p54, %p55
    %p57 = scmp.ne.s32.totalorder %s49, %s51
    %p58 = scmp.eq.s32.totalorder %s20, 1
    %p59 = por %p57, %p58
    %p60 = scmp.ne.s32.totalorder %s51, %s52
    %p61 = scmp.eq.s32.totalorder %s20, 0
    %p62 = por %p60, %p61
    %p63 = scmp.ne.s32.totalorder %s51, %s52
    %p64 = scmp.eq.s32.totalorder %s21, 1
    %p65 = por %p63, %p64
    %p67 = scmp.ne.s32.totalorder %s52, %s66
    %p68 = scmp.eq.s32.totalorder %s21, 0
    %p69 = por %p67, %p68
    %s71 = sadd.s32 %s70, 1
    %p74 = scmp.eq.s32.totalorder %s15, 1
    %p75 = scmp.ne.s32.totalorder %s70, %s72
    %p76 = scmp.eq.s32.totalorder %s15, 0
    %p77 = por %p75, %p76
    %p78 = scmp.ne.s32.totalorder %s70, %s72
    %p79 = scmp.eq.s32.totalorder %s20, 1
    %p80 = por %p78, %p79
    %p81 = scmp.ne.s32.totalorder %s72, %s73
    %p82 = scmp.eq.s32.totalorder %s20, 0
    %p83 = por %p81, %p82
    %p84 = scmp.ne.s32.totalorder %s72, %s73
    %p85 = scmp.eq.s32.totalorder %s21, 1
    %p86 = por %p84, %p85
    %p88 = scmp.ne.s32.totalorder %s73, %s87
    %p89 = scmp.eq.s32.totalorder %s21, 0
    %p90 = por %p88, %p89
    %s92 = sadd.s32 %s91, 1
    %p95 = scmp.eq.s32.totalorder %s15, 1
    %p96 = scmp.ne.s32.totalorder %s91, %s93
    %p97 = scmp.eq.s32.totalorder %s15, 0
    %p98 = por %p96, %p97
    %p99 = scmp.ne.s32.totalorder %s91, %s93
    %p100 = scmp.eq.s32.totalorder %s20, 1
    %p101 = por %p99, %p100
    %p102 = scmp.ne.s32.totalorder %s93, %s94
    %p103 = scmp.eq.s32.totalorder %s20, 0
    %p104 = por %p102, %p103
    %p105 = scmp.ne.s32.totalorder %s93, %s94
    %p106 = scmp.eq.s32.totalorder %s21, 1
    %p107 = por %p105, %p106
    %p109 = scmp.ne.s32.totalorder %s94, %s108
    %p110 = scmp.eq.s32.totalorder %s21, 0
    %p111 = por %p109, %p110
    %s113 = sadd.s32 %s112, 1
    %p116 = scmp.eq.s32.totalorder %s15, 1
    %p117 = scmp.ne.s32.totalorder %s112, %s114
    %p118 = scmp.eq.s32.totalorder %s15, 0
    %p119 = por %p117, %p118
    %p120 = scmp.ne.s32.totalorder %s112, %s114
    %p121 = scmp.eq.s32.totalorder %s20, 1
    %p122 = por %p120, %p121
    %p123 = scmp.ne.s32.totalorder %s114, %s115
    %p124 = scmp.eq.s32.totalorder %s20, 0
    %p125 = por %p123, %p124
    %p126 = scmp.ne.s32.totalorder %s114, %s115
    %p127 = scmp.eq.s32.totalorder %s21, 1
    %p128 = por %p126, %p127
    %p130 = scmp.ne.s32.totalorder %s115, %s129
    %p131 = scmp.eq.s32.totalorder %s21, 0
    %p132 = por %p130, %p131
    %s134 = sadd.s32 %s133, 1
    %p137 = scmp.eq.s32.totalorder %s15, 1
    %p138 = scmp.ne.s32.totalorder %s133, %s135
    %p139 = scmp.eq.s32.totalorder %s15, 0
    %p140 = por %p138, %p139
    %p141 = scmp.ne.s32.totalorder %s133, %s135
    %p142 = scmp.eq.s32.totalorder %s20, 1
    %p143 = por %p141, %p142
    %p144 = scmp.ne.s32.totalorder %s135, %s136
    %p145 = scmp.eq.s32.totalorder %s20, 0
    %p146 = por %p144, %p145
    %p147 = scmp.ne.s32.totalorder %s135, %s136
    %p148 = scmp.eq.s32.totalorder %s21, 1
    %p149 = por %p147, %p148
    %p151 = scmp.ne.s32.totalorder %s136, %s150
    %p152 = scmp.eq.s32.totalorder %s21, 0
    %p153 = por %p151, %p152
    %s155 = sadd.s32 %s154, 1
    %p158 = scmp.eq.s32.totalorder %s15, 1
    %p159 = scmp.ne.s32.totalorder %s154, %s156
    %p160 = scmp.eq.s32.totalorder %s15, 0
    %p161 = por %p159, %p160
    %p162 = scmp.ne.s32.totalorder %s154, %s156
    %p163 = scmp.eq.s32.totalorder %s20, 1
    %p164 = por %p162, %p163
    %p165 = scmp.ne.s32.totalorder %s156, %s157
    %p166 = scmp.eq.s32.totalorder %s20, 0
    %p167 = por %p165, %p166
    %p168 = scmp.ne.s32.totalorder %s156, %s157
    %p169 = scmp.eq.s32.totalorder %s21, 1
    %p170 = por %p168, %p169
    %p172 = scmp.ne.s32.totalorder %s157, %s171
    %p173 = scmp.eq.s32.totalorder %s21, 0
    %p174 = por %p172, %p173
    %s176 = sadd.s32 %s175, 1
    %p179 = scmp.eq.s32.totalorder %s15, 1
    %p180 = scmp.ne.s32.totalorder %s175, %s177
    %p181 = scmp.eq.s32.totalorder %s15, 0
    %p182 = por %p180, %p181
    %p183 = scmp.ne.s32.totalorder %s175, %s177
    %p184 = scmp.eq.s32.totalorder %s20, 1
    %p185 = por %p183, %p184
    %p186 = scmp.ne.s32.totalorder %s177, %s178
    %p187 = scmp.eq.s32.totalorder %s20, 0
    %p188 = por %p186, %p187
    %p189 = scmp.ne.s32.totalorder %s177, %s178
    %p190 = scmp.eq.s32.totalorder %s21, 1
    %p191 = por %p189, %p190
    %p193 = scmp.ne.s32.totalorder %s178, %s192
    %p194 = scmp.eq.s32.totalorder %s21, 0
    %p195 = por %p193, %p194
    %s197 = sadd.s32 %s196, 1
    %p200 = scmp.eq.s32.totalorder %s15, 1
    %p201 = scmp.ne.s32.totalorder %s196, %s198
    %p202 = scmp.eq.s32.totalorder %s15, 0
    %p203 = por %p201, %p202
    %p204 = scmp.ne.s32.totalorder %s196, %s198
    %p205 = scmp.eq.s32.totalorder %s20, 1
    %p206 = por %p204, %p205
    %p207 = scmp.ne.s32.totalorder %s198, %s199
    %p208 = scmp.eq.s32.totalorder %s20, 0
    %p209 = por %p207, %p208
    %p210 = scmp.ne.s32.totalorder %s198, %s199
    %p211 = scmp.eq.s32.totalorder %s21, 1
    %p212 = por %p210, %p211
    %p214 = scmp.ne.s32.totalorder %s199, %s213
    %p215 = scmp.eq.s32.totalorder %s21, 0
    %p216 = por %p214, %p215
    %s217 = ssub.s32 %s15, %s22
    %p218 = scmp.eq.s32.totalorder %s217, 0
    %s220 = sadd.s32 %s219, 1
    %s221 = scalar_select %p218, %s219, %s220
    %p224 = pneg %p218
    %p225 = scmp.eq.s32.totalorder %s15, 1
    %p226 = por %p224, %p225
    %p227 = scmp.ne.s32.totalorder %s219, %s222
    %p228 = scmp.eq.s32.totalorder %s15, 0
    %p229 = por %p227, %p228
    %p230 = scmp.ne.s32.totalorder %s219, %s222
    %p231 = scmp.eq.s32.totalorder %s20, 1
    %p232 = por %p230, %p231
    %p233 = scmp.ne.s32.totalorder %s222, %s223
    %p234 = scmp.eq.s32.totalorder %s20, 0
    %p235 = por %p233, %p234
    %p236 = scmp.ne.s32.totalorder %s222, %s223
    %p237 = scmp.eq.s32.totalorder %s21, 1
    %p238 = por %p236, %p237
    %p240 = scmp.ne.s32.totalorder %s223, %s239
    %p241 = scmp.eq.s32.totalorder %s21, 0
    %p242 = por %p240, %p241
    %p243 = scmp.le.s32.totalorder 1, %s15
    %p244 = scmp.lt.s32.totalorder %s15, 3
    %p245 = pnand %p243, %p244
    %p246 = pneg %p245
    // Predicated region
    $region9: #{rcab_forward.1} parent=5 // pred_check
      _
    $region10: #{rcab_forward.1} parent=5 // pred_check_branch
      %248 = sbr.rel (%p245) target = $region12
    $region11: #{rcab_forward.1} parent=5 // pred_region
      %s249 = ssub.s32 %s15, 1
      // Predicated region
      $region13: #{rcab_forward.1} parent=11 // pred_check
        %p250 = pneg %p62
      $region14: #{rcab_forward.1} parent=11 // pred_check_branch
        %252 = sbr.rel (%p250) target = $region16
      $region15: #{rcab_forward.1} parent=11 // pred_region
        _
      $region16: #{rcab_forward.1} parent=11 // pred_fallthru
        _
      // Predicated region
      $region17: #{rcab_forward.1} parent=11 // pred_check
        %p253 = pneg %p83
      $region18: #{rcab_forward.1} parent=11 // pred_check_branch
        %255 = sbr.rel (%p253) target = $region20
      $region19: #{rcab_forward.1} parent=11 // pred_region
        _
      $region20: #{rcab_forward.1} parent=11 // pred_fallthru
        _
      // Predicated region
      $region21: #{rcab_forward.1} parent=11 // pred_check
        %p256 = pneg %p104
      $region22: #{rcab_forward.1} parent=11 // pred_check_branch
        %258 = sbr.rel (%p256) target = $region24
      $region23: #{rcab_forward.1} parent=11 // pred_region
        _
      $region24: #{rcab_forward.1} parent=11 // pred_fallthru
        _
      // Predicated region
      $region25: #{rcab_forward.1} parent=11 // pred_check
        %p259 = pneg %p125
      $region26: #{rcab_forward.1} parent=11 // pred_check_branch
        %261 = sbr.rel (%p259) target = $region28
      $region27: #{rcab_forward.1} parent=11 // pred_region
        _
      $region28: #{rcab_forward.1} parent=11 // pred_fallthru
        _
      // Predicated region
      $region29: #{rcab_forward.1} parent=11 // pred_check
        %p262 = pneg %p146
      $region30: #{rcab_forward.1} parent=11 // pred_check_branch
        %264 = sbr.rel (%p262) target = $region32
      $region31: #{rcab_forward.1} parent=11 // pred_region
        _
      $region32: #{rcab_forward.1} parent=11 // pred_fallthru
        _
      // Predicated region
      $region33: #{rcab_forward.1} parent=11 // pred_check
        %p265 = pneg %p167
      $region34: #{rcab_forward.1} parent=11 // pred_check_branch
        %267 = sbr.rel (%p265) target = $region36
      $region35: #{rcab_forward.1} parent=11 // pred_region
        _
      $region36: #{rcab_forward.1} parent=11 // pred_fallthru
        _
      // Predicated region
      $region37: #{rcab_forward.1} parent=11 // pred_check
        %p268 = pneg %p188
      $region38: #{rcab_forward.1} parent=11 // pred_check_branch
        %270 = sbr.rel (%p268) target = $region40
      $region39: #{rcab_forward.1} parent=11 // pred_region
        _
      $region40: #{rcab_forward.1} parent=11 // pred_fallthru
        _
      // Predicated region
      $region41: #{rcab_forward.1} parent=11 // pred_check
        %p271 = pneg %p209
      $region42: #{rcab_forward.1} parent=11 // pred_check_branch
        %273 = sbr.rel (%p271) target = $region44
      $region43: #{rcab_forward.1} parent=11 // pred_region
        _
      $region44: #{rcab_forward.1} parent=11 // pred_fallthru
        _
    $region12: #{rcab_forward.1} parent=5 // pred_fallthru
      _
    %p274 = scmp.lt.s32.totalorder %s15, 2
    // Predicated region
    $region45: #{rcab_forward.1} parent=5 // pred_check
      %p275 = pneg %p274
    $region46: #{rcab_forward.1} parent=5 // pred_check_branch
      %277 = sbr.rel (%p275) target = $region48
    $region47: #{rcab_forward.1} parent=5 // pred_region
      // Predicated region
      $region49: #{rcab_forward.1} parent=47 // pred_check
        %p278 = pneg %p35
      $region50: #{rcab_forward.1} parent=47 // pred_check_branch
        %280 = sbr.rel (%p278) target = $region52
      $region51: #{rcab_forward.1} parent=47 // pred_region
        %p281 = scmp.lt.s32.totalorder %s15, 1
        %s282 = scalar_select %p281, %s15, 1
        %s283 = smul.addr %s282, 32
        %s284 = smul.addr %s283, 8
        %s285 = scalar_lea.vmem %s0, %s284
      $region52: #{rcab_forward.1} parent=47 // pred_fallthru
        _
    $region48: #{rcab_forward.1} parent=5 // pred_fallthru
      _
    %p286 = scmp.le.s32.totalorder 1, %s15
    %p287 = scmp.lt.s32.totalorder %s15, 3
    %p288 = pnand %p286, %p287
    %p289 = pneg %p288
    // Predicated region
    $region53: #{rcab_forward.1} parent=5 // pred_check
      _
    $region54: #{rcab_forward.1} parent=5 // pred_check_branch
      %291 = sbr.rel (%p288) target = $region56
    $region55: #{rcab_forward.1} parent=5 // pred_region
      %s292 = ssub.s32 %s15, 1
      %p293 = scmp.lt.s32.totalorder %s20, 1
      %s294 = scalar_select %p293, %s20, 1
      %s295 = smul.addr %s294, 32
      %s296 = smul.addr %s295, 8
      %s297 = scalar_lea.vmem %s0, %s296
      %p298 = pneg %p41
      %p299 = pneg %p38
      %p300 = pneg %p62
      %p301 = pneg %p59
      %p302 = pneg %p83
      %p303 = pneg %p80
      %p304 = pneg %p104
      %p305 = pneg %p101
      %p306 = pneg %p125
      %p307 = pneg %p122
      %p308 = pneg %p146
      %p309 = pneg %p143
      %p310 = pneg %p167
      %p311 = pneg %p164
      %p312 = pneg %p188
      %p313 = pneg %p185
      %p314 = pneg %p209
      %p315 = pneg %p206
      %p316 = pneg %p235
      %p317 = pneg %p232
      %p318 = scmp.lt.s32.totalorder %s20, 1
      %s319 = scalar_select %p318, %s20, 1
      %s320 = smul.addr %s319, 32
      %s321 = smul.addr %s320, 8
      %s322 = scalar_lea.vmem %s9, %s321
      %p323 = scmp.lt.s32.totalorder %s20, 1
      %s324 = scalar_select %p323, %s20, 1
      %s325 = smul.addr %s324, 32
      %s326 = smul.addr %s325, 8
      %s327 = scalar_lea.vmem %s0, %s326
      %p328 = scmp.lt.s32.totalorder %s20, 1
      %s329 = scalar_select %p328, %s20, 1
      %s330 = smul.addr %s329, 32
      %s331 = smul.addr %s330, 8
      %s332 = scalar_lea.vmem %s9, %s331
      %334 = vst [vmem:[#allocation2] sm:$0xf] 0
      %335 = vst [vmem:[#allocation2 + $0x4] sm:$0xf] 0
      %336 = vst [vmem:[#allocation2 + $0x8] sm:$0x1] 0
      %s337 = scalar_lea.vmem [#allocation2], 204
      %338 = vst [vmem:[%s337] sm:$0xf] 0
      %339 = vst [vmem:[%s337 + $0x4] sm:$0xf] 0
      %340 = vst [vmem:[%s337 + $0x8] sm:$0x1] 0
      %vm341 = vcmask 1040384
      %vm342 = vsmask.f32 256
      %vm343 = vmand %vm341, %vm342
      %v344 = vld [vmem:[#allocation2] sm:$0x1]
      %v345 = vsel %vm343, 0, %v344
      %346 = vst [vmem:[#allocation2] sm:$0x1] %v345
      %v347 = vld [vmem:[#allocation2 + $0xc] sm:$0x1]
      %v348 = vsel %vm343, 0, %v347
      %349 = vst [vmem:[#allocation2 + $0xc] sm:$0x1] %v348
      %v350 = vld [vmem:[#allocation2 + $0x18] sm:$0x1]
      %v351 = vsel %vm343, 0, %v350
      %352 = vst [vmem:[#allocation2 + $0x18] sm:$0x1] %v351
      %v353 = vld [vmem:[#allocation2 + $0x24] sm:$0x1]
      %v354 = vsel %vm343, 0, %v353
      %355 = vst [vmem:[#allocation2 + $0x24] sm:$0x1] %v354
      %v356 = vld [vmem:[#allocation2 + $0x30] sm:$0x1]
      %v357 = vsel %vm343, 0, %v356
      %358 = vst [vmem:[#allocation2 + $0x30] sm:$0x1] %v357
      %v359 = vld [vmem:[#allocation2 + $0x3c] sm:$0x1]
      %v360 = vsel %vm343, 0, %v359
      %361 = vst [vmem:[#allocation2 + $0x3c] sm:$0x1] %v360
      %v362 = vld [vmem:[#allocation2 + $0x48] sm:$0x1]
      %v363 = vsel %vm343, 0, %v362
      %364 = vst [vmem:[#allocation2 + $0x48] sm:$0x1] %v363
      %v365 = vld [vmem:[#allocation2 + $0x54] sm:$0x1]
      %v366 = vsel %vm343, 0, %v365
      %367 = vst [vmem:[#allocation2 + $0x54] sm:$0x1] %v366
      %v368 = vld [vmem:[#allocation2 + $0x60] sm:$0x1]
      %v369 = vsel %vm343, 0, %v368
      %370 = vst [vmem:[#allocation2 + $0x60] sm:$0x1] %v369
      %v371 = vld [vmem:[#allocation2 + $0x6c] sm:$0x1]
      %v372 = vsel %vm343, 0, %v371
      %373 = vst [vmem:[#allocation2 + $0x6c] sm:$0x1] %v372
      %v374 = vld [vmem:[#allocation2 + $0x78] sm:$0x1]
      %v375 = vsel %vm343, 0, %v374
      %376 = vst [vmem:[#allocation2 + $0x78] sm:$0x1] %v375
      %v377 = vld [vmem:[#allocation2 + $0x84] sm:$0x1]
      %v378 = vsel %vm343, 0, %v377
      %379 = vst [vmem:[#allocation2 + $0x84] sm:$0x1] %v378
      %v380 = vld [vmem:[#allocation2 + $0x90] sm:$0x1]
      %v381 = vsel %vm343, 0, %v380
      %382 = vst [vmem:[#allocation2 + $0x90] sm:$0x1] %v381
      %v383 = vld [vmem:[#allocation2 + $0x9c] sm:$0x1]
      %v384 = vsel %vm343, 0, %v383
      %385 = vst [vmem:[#allocation2 + $0x9c] sm:$0x1] %v384
      %v386 = vld [vmem:[#allocation2 + $0xa8] sm:$0x1]
      %v387 = vsel %vm343, 0, %v386
      %388 = vst [vmem:[#allocation2 + $0xa8] sm:$0x1] %v387
      %v389 = vld [vmem:[#allocation2 + $0xb4] sm:$0x1]
      %v390 = vsel %vm343, 0, %v389
      %391 = vst [vmem:[#allocation2 + $0xb4] sm:$0x1] %v390
      %v392 = vld [vmem:[#allocation2 + $0xc0] sm:$0x1]
      %v393 = vsel %vm343, 0, %v392
      %394 = vst [vmem:[#allocation2 + $0xc0] sm:$0x1] %v393
      %v395 = vld [vmem:[#allocation2 + $0xcc] sm:$0x1]
      %v396 = vsel %vm343, 0, %v395
      %397 = vst [vmem:[#allocation2 + $0xcc] sm:$0x1] %v396
      %vm398 = vsmask.f32 7938
      %vm399 = vmand %vm341, %vm398
      %v400 = vld [vmem:[#allocation2 + $0x8] sm:$0x1]
      %v401 = vsel %vm399, 0, %v400
      %402 = vst [vmem:[#allocation2 + $0x8] sm:$0x1] %v401
      %v403 = vld [vmem:[#allocation2 + $0x14] sm:$0x1]
      %v404 = vsel %vm399, 0, %v403
      %405 = vst [vmem:[#allocation2 + $0x14] sm:$0x1] %v404
      %v406 = vld [vmem:[#allocation2 + $0x20] sm:$0x1]
      %v407 = vsel %vm399, 0, %v406
      %408 = vst [vmem:[#allocation2 + $0x20] sm:$0x1] %v407
      %v409 = vld [vmem:[#allocation2 + $0x2c] sm:$0x1]
      %v410 = vsel %vm399, 0, %v409
      %411 = vst [vmem:[#allocation2 + $0x2c] sm:$0x1] %v410
      %v412 = vld [vmem:[#allocation2 + $0x38] sm:$0x1]
      %v413 = vsel %vm399, 0, %v412
      %414 = vst [vmem:[#allocation2 + $0x38] sm:$0x1] %v413
      %v415 = vld [vmem:[#allocation2 + $0x44] sm:$0x1]
      %v416 = vsel %vm399, 0, %v415
      %417 = vst [vmem:[#allocation2 + $0x44] sm:$0x1] %v416
      %v418 = vld [vmem:[#allocation2 + $0x50] sm:$0x1]
      %v419 = vsel %vm399, 0, %v418
      %420 = vst [vmem:[#allocation2 + $0x50] sm:$0x1] %v419
      %v421 = vld [vmem:[#allocation2 + $0x5c] sm:$0x1]
      %v422 = vsel %vm399, 0, %v421
      %423 = vst [vmem:[#allocation2 + $0x5c] sm:$0x1] %v422
      %v424 = vld [vmem:[#allocation2 + $0x68] sm:$0x1]
      %v425 = vsel %vm399, 0, %v424
      %426 = vst [vmem:[#allocation2 + $0x68] sm:$0x1] %v425
      %v427 = vld [vmem:[#allocation2 + $0x74] sm:$0x1]
      %v428 = vsel %vm399, 0, %v427
      %429 = vst [vmem:[#allocation2 + $0x74] sm:$0x1] %v428
      %v430 = vld [vmem:[#allocation2 + $0x80] sm:$0x1]
      %v431 = vsel %vm399, 0, %v430
      %432 = vst [vmem:[#allocation2 + $0x80] sm:$0x1] %v431
      %v433 = vld [vmem:[#allocation2 + $0x8c] sm:$0x1]
      %v434 = vsel %vm399, 0, %v433
      %435 = vst [vmem:[#allocation2 + $0x8c] sm:$0x1] %v434
      %v436 = vld [vmem:[#allocation2 + $0x98] sm:$0x1]
      %v437 = vsel %vm399, 0, %v436
      %438 = vst [vmem:[#allocation2 + $0x98] sm:$0x1] %v437
      %v439 = vld [vmem:[#allocation2 + $0xa4] sm:$0x1]
      %v440 = vsel %vm399, 0, %v439
      %441 = vst [vmem:[#allocation2 + $0xa4] sm:$0x1] %v440
      %v442 = vld [vmem:[#allocation2 + $0xb0] sm:$0x1]
      %v443 = vsel %vm399, 0, %v442
      %444 = vst [vmem:[#allocation2 + $0xb0] sm:$0x1] %v443
      %v445 = vld [vmem:[#allocation2 + $0xbc] sm:$0x1]
      %v446 = vsel %vm399, 0, %v445
      %447 = vst [vmem:[#allocation2 + $0xbc] sm:$0x1] %v446
      %v448 = vld [vmem:[#allocation2 + $0xc8] sm:$0x1]
      %v449 = vsel %vm399, 0, %v448
      %450 = vst [vmem:[#allocation2 + $0xc8] sm:$0x1] %v449
      %v451 = vld [vmem:[#allocation2 + $0xd4] sm:$0x1]
      %v452 = vsel %vm399, 0, %v451
      %453 = vst [vmem:[#allocation2 + $0xd4] sm:$0x1] %v452
      %v454 = vld [vmem:[%s327] sm:$0xff]
      %v455 = vld [vmem:[%s327 + $0x8] sm:$0xff]
      %v456 = vld [vmem:[%s327 + $0x10] sm:$0xff]
      %v457 = vld [vmem:[%s327 + $0x18] sm:$0xff]
      %v458 = vld [vmem:[%s327 + $0x20] sm:$0xff]
      %v459 = vld [vmem:[%s327 + $0x28] sm:$0xff]
      %v460 = vld [vmem:[%s327 + $0x30] sm:$0xff]
      %v461 = vld [vmem:[%s327 + $0x38] sm:$0xff]
      %v462 = vld [vmem:[%s327 + $0x40] sm:$0xff]
      %v463 = vld [vmem:[%s327 + $0x48] sm:$0xff]
      %v464 = vld [vmem:[%s327 + $0x50] sm:$0xff]
      %v465 = vld [vmem:[%s327 + $0x58] sm:$0xff]
      %v466 = vld [vmem:[%s327 + $0x60] sm:$0xff]
      %v467 = vld [vmem:[%s327 + $0x68] sm:$0xff]
      %v468 = vld [vmem:[%s327 + $0x70] sm:$0xff]
      %v469 = vld [vmem:[%s327 + $0x78] sm:$0xff]
      %v470 = vld [vmem:[%s327 + $0x80] sm:$0xff]
      %v471 = vld [vmem:[%s327 + $0x88] sm:$0xff]
      %v472 = vld [vmem:[%s327 + $0x90] sm:$0xff]
      %v473 = vld [vmem:[%s327 + $0x98] sm:$0xff]
      %v474 = vld [vmem:[%s327 + $0xa0] sm:$0xff]
      %v475 = vld [vmem:[%s327 + $0xa8] sm:$0xff]
      %v476 = vld [vmem:[%s327 + $0xb0] sm:$0xff]
      %v477 = vld [vmem:[%s327 + $0xb8] sm:$0xff]
      %v478 = vld [vmem:[%s327 + $0xc0] sm:$0xff]
      %v479 = vld [vmem:[%s327 + $0xc8] sm:$0xff]
      %v480 = vld [vmem:[%s327 + $0xd0] sm:$0xff]
      %v481 = vld [vmem:[%s327 + $0xd8] sm:$0xff]
      %v482 = vld [vmem:[%s327 + $0xe0] sm:$0xff]
      %v483 = vld [vmem:[%s327 + $0xe8] sm:$0xff]
      %v484 = vld [vmem:[%s327 + $0xf0] sm:$0xff]
      %v485 = vld [vmem:[%s327 + $0xf8] sm:$0xff]
      %v486 = vpack.c.bf16 %v454, %v454
      %v487 = vpack.c.bf16 %v455, %v455
      %v488 = vpack.c.bf16 %v456, %v456
      %v489 = vpack.c.bf16 %v457, %v457
      %v490 = vpack.c.bf16 %v458, %v458
      %v491 = vpack.c.bf16 %v459, %v459
      %v492 = vpack.c.bf16 %v460, %v460
      %v493 = vpack.c.bf16 %v461, %v461
      %v494 = vpack.c.bf16 %v462, %v462
      %v495 = vpack.c.bf16 %v463, %v463
      %v496 = vpack.c.bf16 %v464, %v464
      %v497 = vpack.c.bf16 %v465, %v465
      %v498 = vpack.c.bf16 %v466, %v466
      %v499 = vpack.c.bf16 %v467, %v467
      %v500 = vpack.c.bf16 %v468, %v468
      %v501 = vpack.c.bf16 %v469, %v469
      %v502 = vpack.c.bf16 %v470, %v470
      %v503 = vpack.c.bf16 %v471, %v471
      %v504 = vpack.c.bf16 %v472, %v472
      %v505 = vpack.c.bf16 %v473, %v473
      %v506 = vpack.c.bf16 %v474, %v474
      %v507 = vpack.c.bf16 %v475, %v475
      %v508 = vpack.c.bf16 %v476, %v476
      %v509 = vpack.c.bf16 %v477, %v477
      %v510 = vpack.c.bf16 %v478, %v478
      %v511 = vpack.c.bf16 %v479, %v479
      %v512 = vpack.c.bf16 %v480, %v480
      %v513 = vpack.c.bf16 %v481, %v481
      %v514 = vpack.c.bf16 %v482, %v482
      %v515 = vpack.c.bf16 %v483, %v483
      %v516 = vpack.c.bf16 %v484, %v484
      %v517 = vpack.c.bf16 %v485, %v485
      %v550 = vunpack.c.l.b16 %v486
      %v551 = vunpack.c.l.b16 %v487
      %v552 = vunpack.c.l.b16 %v488
      %v553 = vunpack.c.l.b16 %v489
      %v554 = vunpack.c.l.b16 %v490
      %v555 = vunpack.c.l.b16 %v491
      %v556 = vunpack.c.l.b16 %v492
      %v557 = vunpack.c.l.b16 %v493
      %v558 = vunpack.c.l.b16 %v494
      %v559 = vunpack.c.l.b16 %v495
      %v560 = vunpack.c.l.b16 %v496
      %v561 = vunpack.c.l.b16 %v497
      %v562 = vunpack.c.l.b16 %v498
      %v563 = vunpack.c.l.b16 %v499
      %v564 = vunpack.c.l.b16 %v500
      %v565 = vunpack.c.l.b16 %v501
      %v566 = vunpack.c.l.b16 %v502
      %v567 = vunpack.c.l.b16 %v503
      %v568 = vunpack.c.l.b16 %v504
      %v569 = vunpack.c.l.b16 %v505
      %v570 = vunpack.c.l.b16 %v506
      %v571 = vunpack.c.l.b16 %v507
      %v572 = vunpack.c.l.b16 %v508
      %v573 = vunpack.c.l.b16 %v509
      %v574 = vunpack.c.l.b16 %v510
      %v575 = vunpack.c.l.b16 %v511
      %v576 = vunpack.c.l.b16 %v512
      %v577 = vunpack.c.l.b16 %v513
      %v578 = vunpack.c.l.b16 %v514
      %v579 = vunpack.c.l.b16 %v515
      %v580 = vunpack.c.l.b16 %v516
      %v581 = vunpack.c.l.b16 %v517
      %v582 = vpack.c.b16 %v551, %v550
      %v583 = vpack.c.b16 %v553, %v552
      %v584 = vpack.c.b16 %v555, %v554
      %v585 = vpack.c.b16 %v557, %v556
      %v586 = vpack.c.b16 %v559, %v558
      %v587 = vpack.c.b16 %v561, %v560
      %v588 = vpack.c.b16 %v563, %v562
      %v589 = vpack.c.b16 %v565, %v564
      %v590 = vpack.c.b16 %v567, %v566
      %v591 = vpack.c.b16 %v569, %v568
      %v592 = vpack.c.b16 %v571, %v570
      %v593 = vpack.c.b16 %v573, %v572
      %v594 = vpack.c.b16 %v575, %v574
      %v595 = vpack.c.b16 %v577, %v576
      %v596 = vpack.c.b16 %v579, %v578
      %v597 = vpack.c.b16 %v581, %v580
      %vm598 = vcmask 31744
      %v601 = vsel %vm598, %v582, 0
      %v603 = vsel %vm598, %v583, 0
      %v605 = vsel %vm598, %v584, 0
      %v607 = vsel %vm598, %v585, 0
      %v609 = vsel %vm598, %v586, 0
      %v611 = vsel %vm598, %v587, 0
      %v613 = vsel %vm598, %v588, 0
      %v615 = vsel %vm598, %v589, 0
      %v617 = vsel %vm598, %v590, 0
      %v619 = vsel %vm598, %v591, 0
      %v621 = vsel %vm598, %v592, 0
      %v623 = vsel %vm598, %v593, 0
      %v625 = vsel %vm598, %v594, 0
      %v627 = vsel %vm598, %v595, 0
      %v629 = vsel %vm598, %v596, 0
      %v631 = vsel %vm598, %v597, 0
      %v648 = vunpack.c.l.b16 %v601
      %v649 = vunpack.c.h.b16 %v601
      %v650 = vunpack.c.l.b16 %v603
      %v651 = vunpack.c.h.b16 %v603
      %v652 = vunpack.c.l.b16 %v605
      %v653 = vunpack.c.h.b16 %v605
      %v654 = vunpack.c.l.b16 %v607
      %v655 = vunpack.c.h.b16 %v607
      %v656 = vunpack.c.l.b16 %v609
      %v657 = vunpack.c.h.b16 %v609
      %v658 = vunpack.c.l.b16 %v611
      %v659 = vunpack.c.h.b16 %v611
      %v660 = vunpack.c.l.b16 %v613
      %v661 = vunpack.c.h.b16 %v613
      %v662 = vunpack.c.l.b16 %v615
      %v663 = vunpack.c.h.b16 %v615
      %v664 = vunpack.c.l.b16 %v617
      %v665 = vunpack.c.h.b16 %v617
      %v666 = vunpack.c.l.b16 %v619
      %v667 = vunpack.c.h.b16 %v619
      %v668 = vunpack.c.l.b16 %v621
      %v669 = vunpack.c.h.b16 %v621
      %v670 = vunpack.c.l.b16 %v623
      %v671 = vunpack.c.h.b16 %v623
      %v672 = vunpack.c.l.b16 %v625
      %v673 = vunpack.c.h.b16 %v625
      %v674 = vunpack.c.l.b16 %v627
      %v675 = vunpack.c.h.b16 %v627
      %v676 = vunpack.c.l.b16 %v629
      %v677 = vunpack.c.h.b16 %v629
      %v678 = vunpack.c.l.b16 %v631
      %v679 = vunpack.c.h.b16 %v631
      %v680 = vpack.c.b16 %v648, %v648
      %v681 = vpack.c.b16 %v649, %v649
      %v682 = vpack.c.b16 %v650, %v650
      %v683 = vpack.c.b16 %v651, %v651
      %v684 = vpack.c.b16 %v652, %v652
      %v685 = vpack.c.b16 %v653, %v653
      %v686 = vpack.c.b16 %v654, %v654
      %v687 = vpack.c.b16 %v655, %v655
      %v688 = vpack.c.b16 %v656, %v656
      %v689 = vpack.c.b16 %v657, %v657
      %v690 = vpack.c.b16 %v658, %v658
      %v691 = vpack.c.b16 %v659, %v659
      %v692 = vpack.c.b16 %v660, %v660
      %v693 = vpack.c.b16 %v661, %v661
      %v694 = vpack.c.b16 %v662, %v662
      %v695 = vpack.c.b16 %v663, %v663
      %v696 = vpack.c.b16 %v664, %v664
      %v697 = vpack.c.b16 %v665, %v665
      %v698 = vpack.c.b16 %v666, %v666
      %v699 = vpack.c.b16 %v667, %v667
      %v700 = vpack.c.b16 %v668, %v668
      %v701 = vpack.c.b16 %v669, %v669
      %v702 = vpack.c.b16 %v670, %v670
      %v703 = vpack.c.b16 %v671, %v671
      %v704 = vpack.c.b16 %v672, %v672
      %v705 = vpack.c.b16 %v673, %v673
      %v706 = vpack.c.b16 %v674, %v674
      %v707 = vpack.c.b16 %v675, %v675
      %v708 = vpack.c.b16 %v676, %v676
      %v709 = vpack.c.b16 %v677, %v677
      %v710 = vpack.c.b16 %v678, %v678
      %v711 = vpack.c.b16 %v679, %v679
      %vm712 = vsmask.f32 4368
      %vm713 = vmor %vm342, %vm712
      %v715 = vshrl.u32 %v680, 16
      %v717 = vrot.slane %v715, 7
      %v718 = vshll.u32 %v680, 16
      %v720 = vor.u32 %v717, %v718
      %v721 = vrot.slane %v717, 4
      %v723 = vshrl.u32 %v681, 16
      %v725 = vrot.slane %v723, 7
      %v726 = vshll.u32 %v681, 16
      %v728 = vor.u32 %v725, %v726
      %v729 = vsel %vm713, %v721, %v728
      %v730 = vrot.slane %v725, 4
      %v732 = vshrl.u32 %v682, 16
      %v734 = vrot.slane %v732, 7
      %v735 = vshll.u32 %v682, 16
      %v737 = vor.u32 %v734, %v735
      %v738 = vrot.slane %v734, 4
      %v740 = vshrl.u32 %v683, 16
      %v742 = vrot.slane %v740, 7
      %v743 = vshll.u32 %v683, 16
      %v745 = vor.u32 %v742, %v743
      %v746 = vsel %vm713, %v738, %v745
      %v747 = vrot.slane %v742, 4
      %v749 = vshrl.u32 %v684, 16
      %v751 = vrot.slane %v749, 7
      %v752 = vshll.u32 %v684, 16
      %v754 = vor.u32 %v751, %v752
      %v755 = vrot.slane %v751, 4
      %v757 = vshrl.u32 %v685, 16
      %v759 = vrot.slane %v757, 7
      %v760 = vshll.u32 %v685, 16
      %v762 = vor.u32 %v759, %v760
      %v763 = vsel %vm713, %v755, %v762
      %v764 = vrot.slane %v759, 4
      %v766 = vshrl.u32 %v686, 16
      %v768 = vrot.slane %v766, 7
      %v769 = vshll.u32 %v686, 16
      %v771 = vor.u32 %v768, %v769
      %v772 = vrot.slane %v768, 4
      %v774 = vshrl.u32 %v687, 16
      %v776 = vrot.slane %v774, 7
      %v777 = vshll.u32 %v687, 16
      %v779 = vor.u32 %v776, %v777
      %v780 = vsel %vm713, %v772, %v779
      %v781 = vrot.slane %v776, 4
      %v783 = vshrl.u32 %v688, 16
      %v785 = vrot.slane %v783, 7
      %v786 = vshll.u32 %v688, 16
      %v788 = vor.u32 %v785, %v786
      %v789 = vrot.slane %v785, 4
      %v791 = vshrl.u32 %v689, 16
      %v793 = vrot.slane %v791, 7
      %v794 = vshll.u32 %v689, 16
      %v796 = vor.u32 %v793, %v794
      %v797 = vsel %vm713, %v789, %v796
      %v798 = vrot.slane %v793, 4
      %v800 = vshrl.u32 %v690, 16
      %v802 = vrot.slane %v800, 7
      %v803 = vshll.u32 %v690, 16
      %v805 = vor.u32 %v802, %v803
      %v806 = vrot.slane %v802, 4
      %v808 = vshrl.u32 %v691, 16
      %v810 = vrot.slane %v808, 7
      %v811 = vshll.u32 %v691, 16
      %v813 = vor.u32 %v810, %v811
      %v814 = vsel %vm713, %v806, %v813
      %v815 = vrot.slane %v810, 4
      %v817 = vshrl.u32 %v692, 16
      %v819 = vrot.slane %v817, 7
      %v820 = vshll.u32 %v692, 16
      %v822 = vor.u32 %v819, %v820
      %v823 = vrot.slane %v819, 4
      %v825 = vshrl.u32 %v693, 16
      %v827 = vrot.slane %v825, 7
      %v828 = vshll.u32 %v693, 16
      %v830 = vor.u32 %v827, %v828
      %v831 = vsel %vm713, %v823, %v830
      %v832 = vrot.slane %v827, 4
      %v834 = vshrl.u32 %v694, 16
      %v836 = vrot.slane %v834, 7
      %v837 = vshll.u32 %v694, 16
      %v839 = vor.u32 %v836, %v837
      %v840 = vrot.slane %v836, 4
      %v842 = vshrl.u32 %v695, 16
      %v844 = vrot.slane %v842, 7
      %v845 = vshll.u32 %v695, 16
      %v847 = vor.u32 %v844, %v845
      %v848 = vsel %vm713, %v840, %v847
      %v849 = vrot.slane %v844, 4
      %v851 = vshrl.u32 %v696, 16
      %v853 = vrot.slane %v851, 7
      %v854 = vshll.u32 %v696, 16
      %v856 = vor.u32 %v853, %v854
      %v857 = vrot.slane %v853, 4
      %v859 = vshrl.u32 %v697, 16
      %v861 = vrot.slane %v859, 7
      %v862 = vshll.u32 %v697, 16
      %v864 = vor.u32 %v861, %v862
      %v865 = vsel %vm713, %v857, %v864
      %v866 = vrot.slane %v861, 4
      %v868 = vshrl.u32 %v698, 16
      %v870 = vrot.slane %v868, 7
      %v871 = vshll.u32 %v698, 16
      %v873 = vor.u32 %v870, %v871
      %v874 = vrot.slane %v870, 4
      %v876 = vshrl.u32 %v699, 16
      %v878 = vrot.slane %v876, 7
      %v879 = vshll.u32 %v699, 16
      %v881 = vor.u32 %v878, %v879
      %v882 = vsel %vm713, %v874, %v881
      %v883 = vrot.slane %v878, 4
      %v885 = vshrl.u32 %v700, 16
      %v887 = vrot.slane %v885, 7
      %v888 = vshll.u32 %v700, 16
      %v890 = vor.u32 %v887, %v888
      %v891 = vrot.slane %v887, 4
      %v893 = vshrl.u32 %v701, 16
      %v895 = vrot.slane %v893, 7
      %v896 = vshll.u32 %v701, 16
      %v898 = vor.u32 %v895, %v896
      %v899 = vsel %vm713, %v891, %v898
      %v900 = vrot.slane %v895, 4
      %v902 = vshrl.u32 %v702, 16
      %v904 = vrot.slane %v902, 7
      %v905 = vshll.u32 %v702, 16
      %v907 = vor.u32 %v904, %v905
      %v908 = vrot.slane %v904, 4
      %v910 = vshrl.u32 %v703, 16
      %v912 = vrot.slane %v910, 7
      %v913 = vshll.u32 %v703, 16
      %v915 = vor.u32 %v912, %v913
      %v916 = vsel %vm713, %v908, %v915
      %v917 = vrot.slane %v912, 4
      %v919 = vshrl.u32 %v704, 16
      %v921 = vrot.slane %v919, 7
      %v922 = vshll.u32 %v704, 16
      %v924 = vor.u32 %v921, %v922
      %v925 = vrot.slane %v921, 4
      %v927 = vshrl.u32 %v705, 16
      %v929 = vrot.slane %v927, 7
      %v930 = vshll.u32 %v705, 16
      %v932 = vor.u32 %v929, %v930
      %v933 = vsel %vm713, %v925, %v932
      %v934 = vrot.slane %v929, 4
      %v936 = vshrl.u32 %v706, 16
      %v938 = vrot.slane %v936, 7
      %v939 = vshll.u32 %v706, 16
      %v941 = vor.u32 %v938, %v939
      %v942 = vrot.slane %v938, 4
      %v944 = vshrl.u32 %v707, 16
      %v946 = vrot.slane %v944, 7
      %v947 = vshll.u32 %v707, 16
      %v949 = vor.u32 %v946, %v947
      %v950 = vsel %vm713, %v942, %v949
      %v951 = vrot.slane %v946, 4
      %v953 = vshrl.u32 %v708, 16
      %v955 = vrot.slane %v953, 7
      %v956 = vshll.u32 %v708, 16
      %v958 = vor.u32 %v955, %v956
      %v959 = vrot.slane %v955, 4
      %v961 = vshrl.u32 %v709, 16
      %v963 = vrot.slane %v961, 7
      %v964 = vshll.u32 %v709, 16
      %v966 = vor.u32 %v963, %v964
      %v967 = vsel %vm713, %v959, %v966
      %v968 = vrot.slane %v963, 4
      %v970 = vshrl.u32 %v710, 16
      %v972 = vrot.slane %v970, 7
      %v973 = vshll.u32 %v710, 16
      %v975 = vor.u32 %v972, %v973
      %v976 = vrot.slane %v972, 4
      %v978 = vshrl.u32 %v711, 16
      %v980 = vrot.slane %v978, 7
      %v981 = vshll.u32 %v711, 16
      %v983 = vor.u32 %v980, %v981
      %v984 = vsel %vm713, %v976, %v983
      %v985 = vrot.slane %v980, 4
      %s1034 = scalar_lea.vmem [#allocation2], 12
      %vm1035 = vcmask 1043456
      %vm1036 = vmand %vm1035, %vm398
      %v1037 = vld [vmem:[%s1034] sm:$0xf]
      %v1038 = vsel %vm1036, %v720, %v1037
      %1039 = vst [vmem:[%s1034] sm:$0xf] %v1038
      %1040 = vst [vmem:[%s1034 + $0x4] sm:$0xf] %v729
      %v1041 = vld [vmem:[%s1034 + $0x8] sm:$0x1]
      %v1042 = vsel %vm343, %v730, %v1041
      %1043 = vst [vmem:[%s1034 + $0x8] sm:$0x1] %v1042
      %v1044 = vld [vmem:[%s1034 + $0xc] sm:$0xf]
      %v1045 = vsel %vm1036, %v737, %v1044
      %1046 = vst [vmem:[%s1034 + $0xc] sm:$0xf] %v1045
      %1047 = vst [vmem:[%s1034 + $0x10] sm:$0xf] %v746
      %v1048 = vld [vmem:[%s1034 + $0x14] sm:$0x1]
      %v1049 = vsel %vm343, %v747, %v1048
      %1050 = vst [vmem:[%s1034 + $0x14] sm:$0x1] %v1049
      %v1051 = vld [vmem:[%s1034 + $0x18] sm:$0xf]
      %v1052 = vsel %vm1036, %v754, %v1051
      %1053 = vst [vmem:[%s1034 + $0x18] sm:$0xf] %v1052
      %1054 = vst [vmem:[%s1034 + $0x1c] sm:$0xf] %v763
      %v1055 = vld [vmem:[%s1034 + $0x20] sm:$0x1]
      %v1056 = vsel %vm343, %v764, %v1055
      %1057 = vst [vmem:[%s1034 + $0x20] sm:$0x1] %v1056
      %v1058 = vld [vmem:[%s1034 + $0x24] sm:$0xf]
      %v1059 = vsel %vm1036, %v771, %v1058
      %1060 = vst [vmem:[%s1034 + $0x24] sm:$0xf] %v1059
      %1061 = vst [vmem:[%s1034 + $0x28] sm:$0xf] %v780
      %v1062 = vld [vmem:[%s1034 + $0x2c] sm:$0x1]
      %v1063 = vsel %vm343, %v781, %v1062
      %1064 = vst [vmem:[%s1034 + $0x2c] sm:$0x1] %v1063
      %v1065 = vld [vmem:[%s1034 + $0x30] sm:$0xf]
      %v1066 = vsel %vm1036, %v788, %v1065
      %1067 = vst [vmem:[%s1034 + $0x30] sm:$0xf] %v1066
      %1068 = vst [vmem:[%s1034 + $0x34] sm:$0xf] %v797
      %v1069 = vld [vmem:[%s1034 + $0x38] sm:$0x1]
      %v1070 = vsel %vm343, %v798, %v1069
      %1071 = vst [vmem:[%s1034 + $0x38] sm:$0x1] %v1070
      %v1072 = vld [vmem:[%s1034 + $0x3c] sm:$0xf]
      %v1073 = vsel %vm1036, %v805, %v1072
      %1074 = vst [vmem:[%s1034 + $0x3c] sm:$0xf] %v1073
      %1075 = vst [vmem:[%s1034 + $0x40] sm:$0xf] %v814
      %v1076 = vld [vmem:[%s1034 + $0x44] sm:$0x1]
      %v1077 = vsel %vm343, %v815, %v1076
      %1078 = vst [vmem:[%s1034 + $0x44] sm:$0x1] %v1077
      %v1079 = vld [vmem:[%s1034 + $0x48] sm:$0xf]
      %v1080 = vsel %vm1036, %v822, %v1079
      %1081 = vst [vmem:[%s1034 + $0x48] sm:$0xf] %v1080
      %1082 = vst [vmem:[%s1034 + $0x4c] sm:$0xf] %v831
      %v1083 = vld [vmem:[%s1034 + $0x50] sm:$0x1]
      %v1084 = vsel %vm343, %v832, %v1083
      %1085 = vst [vmem:[%s1034 + $0x50] sm:$0x1] %v1084
      %v1086 = vld [vmem:[%s1034 + $0x54] sm:$0xf]
      %v1087 = vsel %vm1036, %v839, %v1086
      %1088 = vst [vmem:[%s1034 + $0x54] sm:$0xf] %v1087
      %1089 = vst [vmem:[%s1034 + $0x58] sm:$0xf] %v848
      %v1090 = vld [vmem:[%s1034 + $0x5c] sm:$0x1]
      %v1091 = vsel %vm343, %v849, %v1090
      %1092 = vst [vmem:[%s1034 + $0x5c] sm:$0x1] %v1091
      %v1093 = vld [vmem:[%s1034 + $0x60] sm:$0xf]
      %v1094 = vsel %vm1036, %v856, %v1093
      %1095 = vst [vmem:[%s1034 + $0x60] sm:$0xf] %v1094
      %1096 = vst [vmem:[%s1034 + $0x64] sm:$0xf] %v865
      %v1097 = vld [vmem:[%s1034 + $0x68] sm:$0x1]
      %v1098 = vsel %vm343, %v866, %v1097
      %1099 = vst [vmem:[%s1034 + $0x68] sm:$0x1] %v1098
      %v1100 = vld [vmem:[%s1034 + $0x6c] sm:$0xf]
      %v1101 = vsel %vm1036, %v873, %v1100
      %1102 = vst [vmem:[%s1034 + $0x6c] sm:$0xf] %v1101
      %1103 = vst [vmem:[%s1034 + $0x70] sm:$0xf] %v882
      %v1104 = vld [vmem:[%s1034 + $0x74] sm:$0x1]
      %v1105 = vsel %vm343, %v883, %v1104
      %1106 = vst [vmem:[%s1034 + $0x74] sm:$0x1] %v1105
      %v1107 = vld [vmem:[%s1034 + $0x78] sm:$0xf]
      %v1108 = vsel %vm1036, %v890, %v1107
      %1109 = vst [vmem:[%s1034 + $0x78] sm:$0xf] %v1108
      %1110 = vst [vmem:[%s1034 + $0x7c] sm:$0xf] %v899
      %v1111 = vld [vmem:[%s1034 + $0x80] sm:$0x1]
      %v1112 = vsel %vm343, %v900, %v1111
      %1113 = vst [vmem:[%s1034 + $0x80] sm:$0x1] %v1112
      %v1114 = vld [vmem:[%s1034 + $0x84] sm:$0xf]
      %v1115 = vsel %vm1036, %v907, %v1114
      %1116 = vst [vmem:[%s1034 + $0x84] sm:$0xf] %v1115
      %1117 = vst [vmem:[%s1034 + $0x88] sm:$0xf] %v916
      %v1118 = vld [vmem:[%s1034 + $0x8c] sm:$0x1]
      %v1119 = vsel %vm343, %v917, %v1118
      %1120 = vst [vmem:[%s1034 + $0x8c] sm:$0x1] %v1119
      %v1121 = vld [vmem:[%s1034 + $0x90] sm:$0xf]
      %v1122 = vsel %vm1036, %v924, %v1121
      %1123 = vst [vmem:[%s1034 + $0x90] sm:$0xf] %v1122
      %1124 = vst [vmem:[%s1034 + $0x94] sm:$0xf] %v933
      %v1125 = vld [vmem:[%s1034 + $0x98] sm:$0x1]
      %v1126 = vsel %vm343, %v934, %v1125
      %1127 = vst [vmem:[%s1034 + $0x98] sm:$0x1] %v1126
      %v1128 = vld [vmem:[%s1034 + $0x9c] sm:$0xf]
      %v1129 = vsel %vm1036, %v941, %v1128
      %1130 = vst [vmem:[%s1034 + $0x9c] sm:$0xf] %v1129
      %1131 = vst [vmem:[%s1034 + $0xa0] sm:$0xf] %v950
      %v1132 = vld [vmem:[%s1034 + $0xa4] sm:$0x1]
      %v1133 = vsel %vm343, %v951, %v1132
      %1134 = vst [vmem:[%s1034 + $0xa4] sm:$0x1] %v1133
      %v1135 = vld [vmem:[%s1034 + $0xa8] sm:$0xf]
      %v1136 = vsel %vm1036, %v958, %v1135
      %1137 = vst [vmem:[%s1034 + $0xa8] sm:$0xf] %v1136
      %1138 = vst [vmem:[%s1034 + $0xac] sm:$0xf] %v967
      %v1139 = vld [vmem:[%s1034 + $0xb0] sm:$0x1]
      %v1140 = vsel %vm343, %v968, %v1139
      %1141 = vst [vmem:[%s1034 + $0xb0] sm:$0x1] %v1140
      %v1142 = vld [vmem:[%s1034 + $0xb4] sm:$0xf]
      %v1143 = vsel %vm1036, %v975, %v1142
      %1144 = vst [vmem:[%s1034 + $0xb4] sm:$0xf] %v1143
      %1145 = vst [vmem:[%s1034 + $0xb8] sm:$0xf] %v984
      %v1146 = vld [vmem:[%s1034 + $0xbc] sm:$0x1]
      %v1147 = vsel %vm343, %v985, %v1146
      %1148 = vst [vmem:[%s1034 + $0xbc] sm:$0x1] %v1147
      %v1149 = vld [vmem:[#allocation2] sm:$0xf]
      %v1150 = vld [vmem:[#allocation2 + $0x4] sm:$0xf]
      %v1151 = vld [vmem:[#allocation2 + $0xc] sm:$0xf]
      %v1152 = vld [vmem:[#allocation2 + $0x10] sm:$0xf]
      %v1153 = vld [vmem:[#allocation2 + $0x18] sm:$0xf]
      %v1154 = vld [vmem:[#allocation2 + $0x1c] sm:$0xf]
      %v1155 = vld [vmem:[#allocation2 + $0x24] sm:$0xf]
      %v1156 = vld [vmem:[#allocation2 + $0x28] sm:$0xf]
      %v1157 = vld [vmem:[#allocation2 + $0x30] sm:$0xf]
      %v1158 = vld [vmem:[#allocation2 + $0x34] sm:$0xf]
      %v1159 = vld [vmem:[#allocation2 + $0x3c] sm:$0xf]
      %v1160 = vld [vmem:[#allocation2 + $0x40] sm:$0xf]
      %v1161 = vld [vmem:[#allocation2 + $0x48] sm:$0xf]
      %v1162 = vld [vmem:[#allocation2 + $0x4c] sm:$0xf]
      %v1163 = vld [vmem:[#allocation2 + $0x54] sm:$0xf]
      %v1164 = vld [vmem:[#allocation2 + $0x58] sm:$0xf]
      %v1165 = vld [vmem:[#allocation2 + $0x60] sm:$0xf]
      %v1166 = vld [vmem:[#allocation2 + $0x64] sm:$0xf]
      %v1167 = vld [vmem:[#allocation2 + $0x6c] sm:$0xf]
      %v1168 = vld [vmem:[#allocation2 + $0x70] sm:$0xf]
      %v1169 = vld [vmem:[#allocation2 + $0x78] sm:$0xf]
      %v1170 = vld [vmem:[#allocation2 + $0x7c] sm:$0xf]
      %v1171 = vld [vmem:[#allocation2 + $0x84] sm:$0xf]
      %v1172 = vld [vmem:[#allocation2 + $0x88] sm:$0xf]
      %v1173 = vld [vmem:[#allocation2 + $0x90] sm:$0xf]
      %v1174 = vld [vmem:[#allocation2 + $0x94] sm:$0xf]
      %v1175 = vld [vmem:[#allocation2 + $0x9c] sm:$0xf]
      %v1176 = vld [vmem:[#allocation2 + $0xa0] sm:$0xf]
      %v1177 = vld [vmem:[#allocation2 + $0xa8] sm:$0xf]
      %v1178 = vld [vmem:[#allocation2 + $0xac] sm:$0xf]
      %v1179 = vld [vmem:[#allocation2 + $0xb4] sm:$0xf]
      %v1180 = vld [vmem:[#allocation2 + $0xb8] sm:$0xf]
      %v1181 = vld [vmem:[#allocation2 + $0x8] sm:$0x1]
      %v1182 = vld [vmem:[#allocation2 + $0x14] sm:$0x1]
      %v1183 = vld [vmem:[#allocation2 + $0x20] sm:$0x1]
      %v1184 = vld [vmem:[#allocation2 + $0x2c] sm:$0x1]
      %v1185 = vld [vmem:[#allocation2 + $0x38] sm:$0x1]
      %v1186 = vld [vmem:[#allocation2 + $0x44] sm:$0x1]
      %v1187 = vld [vmem:[#allocation2 + $0x50] sm:$0x1]
      %v1188 = vld [vmem:[#allocation2 + $0x5c] sm:$0x1]
      %v1189 = vld [vmem:[#allocation2 + $0x68] sm:$0x1]
      %v1190 = vld [vmem:[#allocation2 + $0x74] sm:$0x1]
      %v1191 = vld [vmem:[#allocation2 + $0x80] sm:$0x1]
      %v1192 = vld [vmem:[#allocation2 + $0x8c] sm:$0x1]
      %v1193 = vld [vmem:[#allocation2 + $0x98] sm:$0x1]
      %v1194 = vld [vmem:[#allocation2 + $0xa4] sm:$0x1]
      %v1195 = vld [vmem:[#allocation2 + $0xb0] sm:$0x1]
      %v1196 = vld [vmem:[#allocation2 + $0xbc] sm:$0x1]
      %v1197 = vld [vmem:[#allocation2] sm:$0xe]
      %v1198 = vld [vmem:[#allocation2 + $0xc] sm:$0xe]
      %v1199 = vld [vmem:[#allocation2 + $0x18] sm:$0xe]
      %v1200 = vld [vmem:[#allocation2 + $0x24] sm:$0xe]
      %v1201 = vld [vmem:[#allocation2 + $0x30] sm:$0xe]
      %v1202 = vld [vmem:[#allocation2 + $0x3c] sm:$0xe]
      %v1203 = vld [vmem:[#allocation2 + $0x48] sm:$0xe]
      %v1204 = vld [vmem:[#allocation2 + $0x54] sm:$0xe]
      %v1205 = vld [vmem:[#allocation2 + $0x60] sm:$0xe]
      %v1206 = vld [vmem:[#allocation2 + $0x6c] sm:$0xe]
      %v1207 = vld [vmem:[#allocation2 + $0x78] sm:$0xe]
      %v1208 = vld [vmem:[#allocation2 + $0x84] sm:$0xe]
      %v1209 = vld [vmem:[#allocation2 + $0x90] sm:$0xe]
      %v1210 = vld [vmem:[#allocation2 + $0x9c] sm:$0xe]
      %v1211 = vld [vmem:[#allocation2 + $0xa8] sm:$0xe]
      %v1212 = vld [vmem:[#allocation2 + $0xb4] sm:$0xe]
      %v1213 = vld [vmem:[%s1034] sm:$0xf]
      %v1214 = vld [vmem:[%s1034 + $0x4] sm:$0xf]
      %v1215 = vld [vmem:[%s1034 + $0xc] sm:$0xf]
      %v1216 = vld [vmem:[%s1034 + $0x10] sm:$0xf]
      %v1217 = vld [vmem:[%s1034 + $0x18] sm:$0xf]
      %v1218 = vld [vmem:[%s1034 + $0x1c] sm:$0xf]
      %v1219 = vld [vmem:[%s1034 + $0x24] sm:$0xf]
      %v1220 = vld [vmem:[%s1034 + $0x28] sm:$0xf]
      %v1221 = vld [vmem:[%s1034 + $0x30] sm:$0xf]
      %v1222 = vld [vmem:[%s1034 + $0x34] sm:$0xf]
      %v1223 = vld [vmem:[%s1034 + $0x3c] sm:$0xf]
      %v1224 = vld [vmem:[%s1034 + $0x40] sm:$0xf]
      %v1225 = vld [vmem:[%s1034 + $0x48] sm:$0xf]
      %v1226 = vld [vmem:[%s1034 + $0x4c] sm:$0xf]
      %v1227 = vld [vmem:[%s1034 + $0x54] sm:$0xf]
      %v1228 = vld [vmem:[%s1034 + $0x58] sm:$0xf]
      %v1229 = vld [vmem:[%s1034 + $0x60] sm:$0xf]
      %v1230 = vld [vmem:[%s1034 + $0x64] sm:$0xf]
      %v1231 = vld [vmem:[%s1034 + $0x6c] sm:$0xf]
      %v1232 = vld [vmem:[%s1034 + $0x70] sm:$0xf]
      %v1233 = vld [vmem:[%s1034 + $0x78] sm:$0xf]
      %v1234 = vld [vmem:[%s1034 + $0x7c] sm:$0xf]
      %v1235 = vld [vmem:[%s1034 + $0x84] sm:$0xf]
      %v1236 = vld [vmem:[%s1034 + $0x88] sm:$0xf]
      %v1237 = vld [vmem:[%s1034 + $0x90] sm:$0xf]
      %v1238 = vld [vmem:[%s1034 + $0x94] sm:$0xf]
      %v1239 = vld [vmem:[%s1034 + $0x9c] sm:$0xf]
      %v1240 = vld [vmem:[%s1034 + $0xa0] sm:$0xf]
      %v1241 = vld [vmem:[%s1034 + $0xa8] sm:$0xf]
      %v1242 = vld [vmem:[%s1034 + $0xac] sm:$0xf]
      %v1243 = vld [vmem:[%s1034 + $0xb4] sm:$0xf]
      %v1244 = vld [vmem:[%s1034 + $0xb8] sm:$0xf]
      %v1245 = vld [vmem:[%s1034 + $0x8] sm:$0x1]
      %v1246 = vld [vmem:[%s1034 + $0x14] sm:$0x1]
      %v1247 = vld [vmem:[%s1034 + $0x20] sm:$0x1]
      %v1248 = vld [vmem:[%s1034 + $0x2c] sm:$0x1]
      %v1249 = vld [vmem:[%s1034 + $0x38] sm:$0x1]
      %v1250 = vld [vmem:[%s1034 + $0x44] sm:$0x1]
      %v1251 = vld [vmem:[%s1034 + $0x50] sm:$0x1]
      %v1252 = vld [vmem:[%s1034 + $0x5c] sm:$0x1]
      %v1253 = vld [vmem:[%s1034 + $0x68] sm:$0x1]
      %v1254 = vld [vmem:[%s1034 + $0x74] sm:$0x1]
      %v1255 = vld [vmem:[%s1034 + $0x80] sm:$0x1]
      %v1256 = vld [vmem:[%s1034 + $0x8c] sm:$0x1]
      %v1257 = vld [vmem:[%s1034 + $0x98] sm:$0x1]
      %v1258 = vld [vmem:[%s1034 + $0xa4] sm:$0x1]
      %v1259 = vld [vmem:[%s1034 + $0xb0] sm:$0x1]
      %v1260 = vld [vmem:[%s1034 + $0xbc] sm:$0x1]
      %v1261 = vld [vmem:[%s1034] sm:$0xe]
      %v1262 = vld [vmem:[%s1034 + $0xc] sm:$0xe]
      %v1263 = vld [vmem:[%s1034 + $0x18] sm:$0xe]
      %v1264 = vld [vmem:[%s1034 + $0x24] sm:$0xe]
      %v1265 = vld [vmem:[%s1034 + $0x30] sm:$0xe]
      %v1266 = vld [vmem:[%s1034 + $0x3c] sm:$0xe]
      %v1267 = vld [vmem:[%s1034 + $0x48] sm:$0xe]
      %v1268 = vld [vmem:[%s1034 + $0x54] sm:$0xe]
      %v1269 = vld [vmem:[%s1034 + $0x60] sm:$0xe]
      %v1270 = vld [vmem:[%s1034 + $0x6c] sm:$0xe]
      %v1271 = vld [vmem:[%s1034 + $0x78] sm:$0xe]
      %v1272 = vld [vmem:[%s1034 + $0x84] sm:$0xe]
      %v1273 = vld [vmem:[%s1034 + $0x90] sm:$0xe]
      %v1274 = vld [vmem:[%s1034 + $0x9c] sm:$0xe]
      %v1275 = vld [vmem:[%s1034 + $0xa8] sm:$0xe]
      %v1276 = vld [vmem:[%s1034 + $0xb4] sm:$0xe]
      %s1277 = scalar_lea.vmem [#allocation2], 24
      %v1278 = vld [vmem:[%s1277] sm:$0xf]
      %v1279 = vld [vmem:[%s1277 + $0x4] sm:$0xf]
      %v1280 = vld [vmem:[%s1277 + $0xc] sm:$0xf]
      %v1281 = vld [vmem:[%s1277 + $0x10] sm:$0xf]
      %v1282 = vld [vmem:[%s1277 + $0x18] sm:$0xf]
      %v1283 = vld [vmem:[%s1277 + $0x1c] sm:$0xf]
      %v1284 = vld [vmem:[%s1277 + $0x24] sm:$0xf]
      %v1285 = vld [vmem:[%s1277 + $0x28] sm:$0xf]
      %v1286 = vld [vmem:[%s1277 + $0x30] sm:$0xf]
      %v1287 = vld [vmem:[%s1277 + $0x34] sm:$0xf]
      %v1288 = vld [vmem:[%s1277 + $0x3c] sm:$0xf]
      %v1289 = vld [vmem:[%s1277 + $0x40] sm:$0xf]
      %v1290 = vld [vmem:[%s1277 + $0x48] sm:$0xf]
      %v1291 = vld [vmem:[%s1277 + $0x4c] sm:$0xf]
      %v1292 = vld [vmem:[%s1277 + $0x54] sm:$0xf]
      %v1293 = vld [vmem:[%s1277 + $0x58] sm:$0xf]
      %v1294 = vld [vmem:[%s1277 + $0x60] sm:$0xf]
      %v1295 = vld [vmem:[%s1277 + $0x64] sm:$0xf]
      %v1296 = vld [vmem:[%s1277 + $0x6c] sm:$0xf]
      %v1297 = vld [vmem:[%s1277 + $0x70] sm:$0xf]
      %v1298 = vld [vmem:[%s1277 + $0x78] sm:$0xf]
      %v1299 = vld [vmem:[%s1277 + $0x7c] sm:$0xf]
      %v1300 = vld [vmem:[%s1277 + $0x84] sm:$0xf]
      %v1301 = vld [vmem:[%s1277 + $0x88] sm:$0xf]
      %v1302 = vld [vmem:[%s1277 + $0x90] sm:$0xf]
      %v1303 = vld [vmem:[%s1277 + $0x94] sm:$0xf]
      %v1304 = vld [vmem:[%s1277 + $0x9c] sm:$0xf]
      %v1305 = vld [vmem:[%s1277 + $0xa0] sm:$0xf]
      %v1306 = vld [vmem:[%s1277 + $0xa8] sm:$0xf]
      %v1307 = vld [vmem:[%s1277 + $0xac] sm:$0xf]
      %v1308 = vld [vmem:[%s1277 + $0xb4] sm:$0xf]
      %v1309 = vld [vmem:[%s1277 + $0xb8] sm:$0xf]
      %v1310 = vld [vmem:[%s1277 + $0x8] sm:$0x1]
      %v1311 = vld [vmem:[%s1277 + $0x14] sm:$0x1]
      %v1312 = vld [vmem:[%s1277 + $0x20] sm:$0x1]
      %v1313 = vld [vmem:[%s1277 + $0x2c] sm:$0x1]
      %v1314 = vld [vmem:[%s1277 + $0x38] sm:$0x1]
      %v1315 = vld [vmem:[%s1277 + $0x44] sm:$0x1]
      %v1316 = vld [vmem:[%s1277 + $0x50] sm:$0x1]
      %v1317 = vld [vmem:[%s1277 + $0x5c] sm:$0x1]
      %v1318 = vld [vmem:[%s1277 + $0x68] sm:$0x1]
      %v1319 = vld [vmem:[%s1277 + $0x74] sm:$0x1]
      %v1320 = vld [vmem:[%s1277 + $0x80] sm:$0x1]
      %v1321 = vld [vmem:[%s1277 + $0x8c] sm:$0x1]
      %v1322 = vld [vmem:[%s1277 + $0x98] sm:$0x1]
      %v1323 = vld [vmem:[%s1277 + $0xa4] sm:$0x1]
      %v1324 = vld [vmem:[%s1277 + $0xb0] sm:$0x1]
      %v1325 = vld [vmem:[%s1277 + $0xbc] sm:$0x1]
      %v1326 = vld [vmem:[%s1277] sm:$0xe]
      %v1327 = vld [vmem:[%s1277 + $0xc] sm:$0xe]
      %v1328 = vld [vmem:[%s1277 + $0x18] sm:$0xe]
      %v1329 = vld [vmem:[%s1277 + $0x24] sm:$0xe]
      %v1330 = vld [vmem:[%s1277 + $0x30] sm:$0xe]
      %v1331 = vld [vmem:[%s1277 + $0x3c] sm:$0xe]
      %v1332 = vld [vmem:[%s1277 + $0x48] sm:$0xe]
      %v1333 = vld [vmem:[%s1277 + $0x54] sm:$0xe]
      %v1334 = vld [vmem:[%s1277 + $0x60] sm:$0xe]
      %v1335 = vld [vmem:[%s1277 + $0x6c] sm:$0xe]
      %v1336 = vld [vmem:[%s1277 + $0x78] sm:$0xe]
      %v1337 = vld [vmem:[%s1277 + $0x84] sm:$0xe]
      %v1338 = vld [vmem:[%s1277 + $0x90] sm:$0xe]
      %v1339 = vld [vmem:[%s1277 + $0x9c] sm:$0xe]
      %v1340 = vld [vmem:[%s1277 + $0xa8] sm:$0xe]
      %v1341 = vld [vmem:[%s1277 + $0xb4] sm:$0xe]
      %v1374 = vunpack.c.l.b16 %v1149
      %v1375 = vunpack.c.l.b16 %v1150
      %v1376 = vunpack.c.l.b16 %v1151
      %v1377 = vunpack.c.l.b16 %v1152
      %v1378 = vunpack.c.l.b16 %v1153
      %v1379 = vunpack.c.l.b16 %v1154
      %v1380 = vunpack.c.l.b16 %v1155
      %v1381 = vunpack.c.l.b16 %v1156
      %v1382 = vunpack.c.l.b16 %v1157
      %v1383 = vunpack.c.l.b16 %v1158
      %v1384 = vunpack.c.l.b16 %v1159
      %v1385 = vunpack.c.l.b16 %v1160
      %v1386 = vunpack.c.l.b16 %v1161
      %v1387 = vunpack.c.l.b16 %v1162
      %v1388 = vunpack.c.l.b16 %v1163
      %v1389 = vunpack.c.l.b16 %v1164
      %v1390 = vunpack.c.l.b16 %v1165
      %v1391 = vunpack.c.l.b16 %v1166
      %v1392 = vunpack.c.l.b16 %v1167
      %v1393 = vunpack.c.l.b16 %v1168
      %v1394 = vunpack.c.l.b16 %v1169
      %v1395 = vunpack.c.l.b16 %v1170
      %v1396 = vunpack.c.l.b16 %v1171
      %v1397 = vunpack.c.l.b16 %v1172
      %v1398 = vunpack.c.l.b16 %v1173
      %v1399 = vunpack.c.l.b16 %v1174
      %v1400 = vunpack.c.l.b16 %v1175
      %v1401 = vunpack.c.l.b16 %v1176
      %v1402 = vunpack.c.l.b16 %v1177
      %v1403 = vunpack.c.l.b16 %v1178
      %v1404 = vunpack.c.l.b16 %v1179
      %v1405 = vunpack.c.l.b16 %v1180
      %v1406 = vpack.c.b16 %v1375, %v1374
      %v1407 = vpack.c.b16 %v1377, %v1376
      %v1408 = vpack.c.b16 %v1379, %v1378
      %v1409 = vpack.c.b16 %v1381, %v1380
      %v1410 = vpack.c.b16 %v1383, %v1382
      %v1411 = vpack.c.b16 %v1385, %v1384
      %v1412 = vpack.c.b16 %v1387, %v1386
      %v1413 = vpack.c.b16 %v1389, %v1388
      %v1414 = vpack.c.b16 %v1391, %v1390
      %v1415 = vpack.c.b16 %v1393, %v1392
      %v1416 = vpack.c.b16 %v1395, %v1394
      %v1417 = vpack.c.b16 %v1397, %v1396
      %v1418 = vpack.c.b16 %v1399, %v1398
      %v1419 = vpack.c.b16 %v1401, %v1400
      %v1420 = vpack.c.b16 %v1403, %v1402
      %v1421 = vpack.c.b16 %v1405, %v1404
      %v1454 = vunpack.c.l.b16 %v1181
      %v1455 = vunpack.c.l.b16 %v1182
      %v1456 = vunpack.c.l.b16 %v1183
      %v1457 = vunpack.c.l.b16 %v1184
      %v1458 = vunpack.c.l.b16 %v1185
      %v1459 = vunpack.c.l.b16 %v1186
      %v1460 = vunpack.c.l.b16 %v1187
      %v1461 = vunpack.c.l.b16 %v1188
      %v1462 = vunpack.c.l.b16 %v1189
      %v1463 = vunpack.c.l.b16 %v1190
      %v1464 = vunpack.c.l.b16 %v1191
      %v1465 = vunpack.c.l.b16 %v1192
      %v1466 = vunpack.c.l.b16 %v1193
      %v1467 = vunpack.c.l.b16 %v1194
      %v1468 = vunpack.c.l.b16 %v1195
      %v1469 = vunpack.c.l.b16 %v1196
      %v1470 = vpack.c.b16 %v1454, %v1454
      %v1471 = vpack.c.b16 %v1455, %v1455
      %v1472 = vpack.c.b16 %v1456, %v1456
      %v1473 = vpack.c.b16 %v1457, %v1457
      %v1474 = vpack.c.b16 %v1458, %v1458
      %v1475 = vpack.c.b16 %v1459, %v1459
      %v1476 = vpack.c.b16 %v1460, %v1460
      %v1477 = vpack.c.b16 %v1461, %v1461
      %v1478 = vpack.c.b16 %v1462, %v1462
      %v1479 = vpack.c.b16 %v1463, %v1463
      %v1480 = vpack.c.b16 %v1464, %v1464
      %v1481 = vpack.c.b16 %v1465, %v1465
      %v1482 = vpack.c.b16 %v1466, %v1466
      %v1483 = vpack.c.b16 %v1467, %v1467
      %v1484 = vpack.c.b16 %v1468, %v1468
      %v1485 = vpack.c.b16 %v1469, %v1469
      %vm1486 = vsmask.f32 7424
      %v1488 = vshrl.u32 %v1406, 16
      %v1490 = vshll.u32 %v1406, 16
      %v1492 = vrot.slane %v1490, 1
      %v1493 = vor.u32 %v1488, %v1492
      %v1495 = vshll.u32 %v1470, 16
      %v1497 = vrot.slane %v1495, 1
      %v1498 = vsel %vm1486, %v1493, %v1497
      %v1500 = vshrl.u32 %v1407, 16
      %v1502 = vshll.u32 %v1407, 16
      %v1504 = vrot.slane %v1502, 1
      %v1505 = vor.u32 %v1500, %v1504
      %v1507 = vshll.u32 %v1471, 16
      %v1509 = vrot.slane %v1507, 1
      %v1510 = vsel %vm1486, %v1505, %v1509
      %v1512 = vshrl.u32 %v1408, 16
      %v1514 = vshll.u32 %v1408, 16
      %v1516 = vrot.slane %v1514, 1
      %v1517 = vor.u32 %v1512, %v1516
      %v1519 = vshll.u32 %v1472, 16
      %v1521 = vrot.slane %v1519, 1
      %v1522 = vsel %vm1486, %v1517, %v1521
      %v1524 = vshrl.u32 %v1409, 16
      %v1526 = vshll.u32 %v1409, 16
      %v1528 = vrot.slane %v1526, 1
      %v1529 = vor.u32 %v1524, %v1528
      %v1531 = vshll.u32 %v1473, 16
      %v1533 = vrot.slane %v1531, 1
      %v1534 = vsel %vm1486, %v1529, %v1533
      %v1536 = vshrl.u32 %v1410, 16
      %v1538 = vshll.u32 %v1410, 16
      %v1540 = vrot.slane %v1538, 1
      %v1541 = vor.u32 %v1536, %v1540
      %v1543 = vshll.u32 %v1474, 16
      %v1545 = vrot.slane %v1543, 1
      %v1546 = vsel %vm1486, %v1541, %v1545
      %v1548 = vshrl.u32 %v1411, 16
      %v1550 = vshll.u32 %v1411, 16
      %v1552 = vrot.slane %v1550, 1
      %v1553 = vor.u32 %v1548, %v1552
      %v1555 = vshll.u32 %v1475, 16
      %v1557 = vrot.slane %v1555, 1
      %v1558 = vsel %vm1486, %v1553, %v1557
      %v1560 = vshrl.u32 %v1412, 16
      %v1562 = vshll.u32 %v1412, 16
      %v1564 = vrot.slane %v1562, 1
      %v1565 = vor.u32 %v1560, %v1564
      %v1567 = vshll.u32 %v1476, 16
      %v1569 = vrot.slane %v1567, 1
      %v1570 = vsel %vm1486, %v1565, %v1569
      %v1572 = vshrl.u32 %v1413, 16
      %v1574 = vshll.u32 %v1413, 16
      %v1576 = vrot.slane %v1574, 1
      %v1577 = vor.u32 %v1572, %v1576
      %v1579 = vshll.u32 %v1477, 16
      %v1581 = vrot.slane %v1579, 1
      %v1582 = vsel %vm1486, %v1577, %v1581
      %v1584 = vshrl.u32 %v1414, 16
      %v1586 = vshll.u32 %v1414, 16
      %v1588 = vrot.slane %v1586, 1
      %v1589 = vor.u32 %v1584, %v1588
      %v1591 = vshll.u32 %v1478, 16
      %v1593 = vrot.slane %v1591, 1
      %v1594 = vsel %vm1486, %v1589, %v1593
      %v1596 = vshrl.u32 %v1415, 16
      %v1598 = vshll.u32 %v1415, 16
      %v1600 = vrot.slane %v1598, 1
      %v1601 = vor.u32 %v1596, %v1600
      %v1603 = vshll.u32 %v1479, 16
      %v1605 = vrot.slane %v1603, 1
      %v1606 = vsel %vm1486, %v1601, %v1605
      %v1608 = vshrl.u32 %v1416, 16
      %v1610 = vshll.u32 %v1416, 16
      %v1612 = vrot.slane %v1610, 1
      %v1613 = vor.u32 %v1608, %v1612
      %v1615 = vshll.u32 %v1480, 16
      %v1617 = vrot.slane %v1615, 1
      %v1618 = vsel %vm1486, %v1613, %v1617
      %v1620 = vshrl.u32 %v1417, 16
      %v1622 = vshll.u32 %v1417, 16
      %v1624 = vrot.slane %v1622, 1
      %v1625 = vor.u32 %v1620, %v1624
      %v1627 = vshll.u32 %v1481, 16
      %v1629 = vrot.slane %v1627, 1
      %v1630 = vsel %vm1486, %v1625, %v1629
      %v1632 = vshrl.u32 %v1418, 16
      %v1634 = vshll.u32 %v1418, 16
      %v1636 = vrot.slane %v1634, 1
      %v1637 = vor.u32 %v1632, %v1636
      %v1639 = vshll.u32 %v1482, 16
      %v1641 = vrot.slane %v1639, 1
      %v1642 = vsel %vm1486, %v1637, %v1641
      %v1644 = vshrl.u32 %v1419, 16
      %v1646 = vshll.u32 %v1419, 16
      %v1648 = vrot.slane %v1646, 1
      %v1649 = vor.u32 %v1644, %v1648
      %v1651 = vshll.u32 %v1483, 16
      %v1653 = vrot.slane %v1651, 1
      %v1654 = vsel %vm1486, %v1649, %v1653
      %v1656 = vshrl.u32 %v1420, 16
      %v1658 = vshll.u32 %v1420, 16
      %v1660 = vrot.slane %v1658, 1
      %v1661 = vor.u32 %v1656, %v1660
      %v1663 = vshll.u32 %v1484, 16
      %v1665 = vrot.slane %v1663, 1
      %v1666 = vsel %vm1486, %v1661, %v1665
      %v1668 = vshrl.u32 %v1421, 16
      %v1670 = vshll.u32 %v1421, 16
      %v1672 = vrot.slane %v1670, 1
      %v1673 = vor.u32 %v1668, %v1672
      %v1675 = vshll.u32 %v1485, 16
      %v1677 = vrot.slane %v1675, 1
      %v1678 = vsel %vm1486, %v1673, %v1677
      %v1711 = vunpack.c.l.b16 %v1197
      %v1712 = vunpack.c.l.b16 %v1198
      %v1713 = vunpack.c.l.b16 %v1199
      %v1714 = vunpack.c.l.b16 %v1200
      %v1715 = vunpack.c.l.b16 %v1201
      %v1716 = vunpack.c.l.b16 %v1202
      %v1717 = vunpack.c.l.b16 %v1203
      %v1718 = vunpack.c.l.b16 %v1204
      %v1719 = vunpack.c.l.b16 %v1205
      %v1720 = vunpack.c.l.b16 %v1206
      %v1721 = vunpack.c.l.b16 %v1207
      %v1722 = vunpack.c.l.b16 %v1208
      %v1723 = vunpack.c.l.b16 %v1209
      %v1724 = vunpack.c.l.b16 %v1210
      %v1725 = vunpack.c.l.b16 %v1211
      %v1726 = vunpack.c.l.b16 %v1212
      %v1727 = vpack.c.b16 %v1375, %v1711
      %v1728 = vpack.c.b16 %v1377, %v1712
      %v1729 = vpack.c.b16 %v1379, %v1713
      %v1730 = vpack.c.b16 %v1381, %v1714
      %v1731 = vpack.c.b16 %v1383, %v1715
      %v1732 = vpack.c.b16 %v1385, %v1716
      %v1733 = vpack.c.b16 %v1387, %v1717
      %v1734 = vpack.c.b16 %v1389, %v1718
      %v1735 = vpack.c.b16 %v1391, %v1719
      %v1736 = vpack.c.b16 %v1393, %v1720
      %v1737 = vpack.c.b16 %v1395, %v1721
      %v1738 = vpack.c.b16 %v1397, %v1722
      %v1739 = vpack.c.b16 %v1399, %v1723
      %v1740 = vpack.c.b16 %v1401, %v1724
      %v1741 = vpack.c.b16 %v1403, %v1725
      %v1742 = vpack.c.b16 %v1405, %v1726
      %vm1743 = vcmask 1046528
      %v1744 = vrot.slane %v1727, 1
      %v1745 = vrot.slane %v1470, 1
      %v1746 = vsel %vm1743, %v1744, %v1745
      %v1747 = vrot.slane %v1728, 1
      %v1748 = vrot.slane %v1471, 1
      %v1749 = vsel %vm1743, %v1747, %v1748
      %v1750 = vrot.slane %v1729, 1
      %v1751 = vrot.slane %v1472, 1
      %v1752 = vsel %vm1743, %v1750, %v1751
      %v1753 = vrot.slane %v1730, 1
      %v1754 = vrot.slane %v1473, 1
      %v1755 = vsel %vm1743, %v1753, %v1754
      %v1756 = vrot.slane %v1731, 1
      %v1757 = vrot.slane %v1474, 1
      %v1758 = vsel %vm1743, %v1756, %v1757
      %v1759 = vrot.slane %v1732, 1
      %v1760 = vrot.slane %v1475, 1
      %v1761 = vsel %vm1743, %v1759, %v1760
      %v1762 = vrot.slane %v1733, 1
      %v1763 = vrot.slane %v1476, 1
      %v1764 = vsel %vm1743, %v1762, %v1763
      %v1765 = vrot.slane %v1734, 1
      %v1766 = vrot.slane %v1477, 1
      %v1767 = vsel %vm1743, %v1765, %v1766
      %v1768 = vrot.slane %v1735, 1
      %v1769 = vrot.slane %v1478, 1
      %v1770 = vsel %vm1743, %v1768, %v1769
      %v1771 = vrot.slane %v1736, 1
      %v1772 = vrot.slane %v1479, 1
      %v1773 = vsel %vm1743, %v1771, %v1772
      %v1774 = vrot.slane %v1737, 1
      %v1775 = vrot.slane %v1480, 1
      %v1776 = vsel %vm1743, %v1774, %v1775
      %v1777 = vrot.slane %v1738, 1
      %v1778 = vrot.slane %v1481, 1
      %v1779 = vsel %vm1743, %v1777, %v1778
      %v1780 = vrot.slane %v1739, 1
      %v1781 = vrot.slane %v1482, 1
      %v1782 = vsel %vm1743, %v1780, %v1781
      %v1783 = vrot.slane %v1740, 1
      %v1784 = vrot.slane %v1483, 1
      %v1785 = vsel %vm1743, %v1783, %v1784
      %v1786 = vrot.slane %v1741, 1
      %v1787 = vrot.slane %v1484, 1
      %v1788 = vsel %vm1743, %v1786, %v1787
      %v1789 = vrot.slane %v1742, 1
      %v1790 = vrot.slane %v1485, 1
      %v1791 = vsel %vm1743, %v1789, %v1790
      %v1840 = vunpack.c.l.b16 %v1213
      %v1841 = vunpack.c.l.b16 %v1214
      %v1842 = vunpack.c.l.b16 %v1215
      %v1843 = vunpack.c.l.b16 %v1216
      %v1844 = vunpack.c.l.b16 %v1217
      %v1845 = vunpack.c.l.b16 %v1218
      %v1846 = vunpack.c.l.b16 %v1219
      %v1847 = vunpack.c.l.b16 %v1220
      %v1848 = vunpack.c.l.b16 %v1221
      %v1849 = vunpack.c.l.b16 %v1222
      %v1850 = vunpack.c.l.b16 %v1223
      %v1851 = vunpack.c.l.b16 %v1224
      %v1852 = vunpack.c.l.b16 %v1225
      %v1853 = vunpack.c.l.b16 %v1226
      %v1854 = vunpack.c.l.b16 %v1227
      %v1855 = vunpack.c.l.b16 %v1228
      %v1856 = vunpack.c.l.b16 %v1229
      %v1857 = vunpack.c.l.b16 %v1230
      %v1858 = vunpack.c.l.b16 %v1231
      %v1859 = vunpack.c.l.b16 %v1232
      %v1860 = vunpack.c.l.b16 %v1233
      %v1861 = vunpack.c.l.b16 %v1234
      %v1862 = vunpack.c.l.b16 %v1235
      %v1863 = vunpack.c.l.b16 %v1236
      %v1864 = vunpack.c.l.b16 %v1237
      %v1865 = vunpack.c.l.b16 %v1238
      %v1866 = vunpack.c.l.b16 %v1239
      %v1867 = vunpack.c.l.b16 %v1240
      %v1868 = vunpack.c.l.b16 %v1241
      %v1869 = vunpack.c.l.b16 %v1242
      %v1870 = vunpack.c.l.b16 %v1243
      %v1871 = vunpack.c.l.b16 %v1244
      %v1872 = vpack.c.b16 %v1841, %v1840
      %v1873 = vpack.c.b16 %v1843, %v1842
      %v1874 = vpack.c.b16 %v1845, %v1844
      %v1875 = vpack.c.b16 %v1847, %v1846
      %v1876 = vpack.c.b16 %v1849, %v1848
      %v1877 = vpack.c.b16 %v1851, %v1850
      %v1878 = vpack.c.b16 %v1853, %v1852
      %v1879 = vpack.c.b16 %v1855, %v1854
      %v1880 = vpack.c.b16 %v1857, %v1856
      %v1881 = vpack.c.b16 %v1859, %v1858
      %v1882 = vpack.c.b16 %v1861, %v1860
      %v1883 = vpack.c.b16 %v1863, %v1862
      %v1884 = vpack.c.b16 %v1865, %v1864
      %v1885 = vpack.c.b16 %v1867, %v1866
      %v1886 = vpack.c.b16 %v1869, %v1868
      %v1887 = vpack.c.b16 %v1871, %v1870
      %v1920 = vunpack.c.l.b16 %v1245
      %v1921 = vunpack.c.l.b16 %v1246
      %v1922 = vunpack.c.l.b16 %v1247
      %v1923 = vunpack.c.l.b16 %v1248
      %v1924 = vunpack.c.l.b16 %v1249
      %v1925 = vunpack.c.l.b16 %v1250
      %v1926 = vunpack.c.l.b16 %v1251
      %v1927 = vunpack.c.l.b16 %v1252
      %v1928 = vunpack.c.l.b16 %v1253
      %v1929 = vunpack.c.l.b16 %v1254
      %v1930 = vunpack.c.l.b16 %v1255
      %v1931 = vunpack.c.l.b16 %v1256
      %v1932 = vunpack.c.l.b16 %v1257
      %v1933 = vunpack.c.l.b16 %v1258
      %v1934 = vunpack.c.l.b16 %v1259
      %v1935 = vunpack.c.l.b16 %v1260
      %v1936 = vpack.c.b16 %v1920, %v1920
      %v1937 = vpack.c.b16 %v1921, %v1921
      %v1938 = vpack.c.b16 %v1922, %v1922
      %v1939 = vpack.c.b16 %v1923, %v1923
      %v1940 = vpack.c.b16 %v1924, %v1924
      %v1941 = vpack.c.b16 %v1925, %v1925
      %v1942 = vpack.c.b16 %v1926, %v1926
      %v1943 = vpack.c.b16 %v1927, %v1927
      %v1944 = vpack.c.b16 %v1928, %v1928
      %v1945 = vpack.c.b16 %v1929, %v1929
      %v1946 = vpack.c.b16 %v1930, %v1930
      %v1947 = vpack.c.b16 %v1931, %v1931
      %v1948 = vpack.c.b16 %v1932, %v1932
      %v1949 = vpack.c.b16 %v1933, %v1933
      %v1950 = vpack.c.b16 %v1934, %v1934
      %v1951 = vpack.c.b16 %v1935, %v1935
      %v1953 = vshrl.u32 %v1872, 16
      %v1955 = vshll.u32 %v1872, 16
      %v1957 = vrot.slane %v1955, 1
      %v1958 = vor.u32 %v1953, %v1957
      %v1960 = vshll.u32 %v1936, 16
      %v1962 = vrot.slane %v1960, 1
      %v1963 = vsel %vm1486, %v1958, %v1962
      %v1965 = vshrl.u32 %v1873, 16
      %v1967 = vshll.u32 %v1873, 16
      %v1969 = vrot.slane %v1967, 1
      %v1970 = vor.u32 %v1965, %v1969
      %v1972 = vshll.u32 %v1937, 16
      %v1974 = vrot.slane %v1972, 1
      %v1975 = vsel %vm1486, %v1970, %v1974
      %v1977 = vshrl.u32 %v1874, 16
      %v1979 = vshll.u32 %v1874, 16
      %v1981 = vrot.slane %v1979, 1
      %v1982 = vor.u32 %v1977, %v1981
      %v1984 = vshll.u32 %v1938, 16
      %v1986 = vrot.slane %v1984, 1
      %v1987 = vsel %vm1486, %v1982, %v1986
      %v1989 = vshrl.u32 %v1875, 16
      %v1991 = vshll.u32 %v1875, 16
      %v1993 = vrot.slane %v1991, 1
      %v1994 = vor.u32 %v1989, %v1993
      %v1996 = vshll.u32 %v1939, 16
      %v1998 = vrot.slane %v1996, 1
      %v1999 = vsel %vm1486, %v1994, %v1998
      %v2001 = vshrl.u32 %v1876, 16
      %v2003 = vshll.u32 %v1876, 16
      %v2005 = vrot.slane %v2003, 1
      %v2006 = vor.u32 %v2001, %v2005
      %v2008 = vshll.u32 %v1940, 16
      %v2010 = vrot.slane %v2008, 1
      %v2011 = vsel %vm1486, %v2006, %v2010
      %v2013 = vshrl.u32 %v1877, 16
      %v2015 = vshll.u32 %v1877, 16
      %v2017 = vrot.slane %v2015, 1
      %v2018 = vor.u32 %v2013, %v2017
      %v2020 = vshll.u32 %v1941, 16
      %v2022 = vrot.slane %v2020, 1
      %v2023 = vsel %vm1486, %v2018, %v2022
      %v2025 = vshrl.u32 %v1878, 16
      %v2027 = vshll.u32 %v1878, 16
      %v2029 = vrot.slane %v2027, 1
      %v2030 = vor.u32 %v2025, %v2029
      %v2032 = vshll.u32 %v1942, 16
      %v2034 = vrot.slane %v2032, 1
      %v2035 = vsel %vm1486, %v2030, %v2034
      %v2037 = vshrl.u32 %v1879, 16
      %v2039 = vshll.u32 %v1879, 16
      %v2041 = vrot.slane %v2039, 1
      %v2042 = vor.u32 %v2037, %v2041
      %v2044 = vshll.u32 %v1943, 16
      %v2046 = vrot.slane %v2044, 1
      %v2047 = vsel %vm1486, %v2042, %v2046
      %v2049 = vshrl.u32 %v1880, 16
      %v2051 = vshll.u32 %v1880, 16
      %v2053 = vrot.slane %v2051, 1
      %v2054 = vor.u32 %v2049, %v2053
      %v2056 = vshll.u32 %v1944, 16
      %v2058 = vrot.slane %v2056, 1
      %v2059 = vsel %vm1486, %v2054, %v2058
      %v2061 = vshrl.u32 %v1881, 16
      %v2063 = vshll.u32 %v1881, 16
      %v2065 = vrot.slane %v2063, 1
      %v2066 = vor.u32 %v2061, %v2065
      %v2068 = vshll.u32 %v1945, 16
      %v2070 = vrot.slane %v2068, 1
      %v2071 = vsel %vm1486, %v2066, %v2070
      %v2073 = vshrl.u32 %v1882, 16
      %v2075 = vshll.u32 %v1882, 16
      %v2077 = vrot.slane %v2075, 1
      %v2078 = vor.u32 %v2073, %v2077
      %v2080 = vshll.u32 %v1946, 16
      %v2082 = vrot.slane %v2080, 1
      %v2083 = vsel %vm1486, %v2078, %v2082
      %v2085 = vshrl.u32 %v1883, 16
      %v2087 = vshll.u32 %v1883, 16
      %v2089 = vrot.slane %v2087, 1
      %v2090 = vor.u32 %v2085, %v2089
      %v2092 = vshll.u32 %v1947, 16
      %v2094 = vrot.slane %v2092, 1
      %v2095 = vsel %vm1486, %v2090, %v2094
      %v2097 = vshrl.u32 %v1884, 16
      %v2099 = vshll.u32 %v1884, 16
      %v2101 = vrot.slane %v2099, 1
      %v2102 = vor.u32 %v2097, %v2101
      %v2104 = vshll.u32 %v1948, 16
      %v2106 = vrot.slane %v2104, 1
      %v2107 = vsel %vm1486, %v2102, %v2106
      %v2109 = vshrl.u32 %v1885, 16
      %v2111 = vshll.u32 %v1885, 16
      %v2113 = vrot.slane %v2111, 1
      %v2114 = vor.u32 %v2109, %v2113
      %v2116 = vshll.u32 %v1949, 16
      %v2118 = vrot.slane %v2116, 1
      %v2119 = vsel %vm1486, %v2114, %v2118
      %v2121 = vshrl.u32 %v1886, 16
      %v2123 = vshll.u32 %v1886, 16
      %v2125 = vrot.slane %v2123, 1
      %v2126 = vor.u32 %v2121, %v2125
      %v2128 = vshll.u32 %v1950, 16
      %v2130 = vrot.slane %v2128, 1
      %v2131 = vsel %vm1486, %v2126, %v2130
      %v2133 = vshrl.u32 %v1887, 16
      %v2135 = vshll.u32 %v1887, 16
      %v2137 = vrot.slane %v2135, 1
      %v2138 = vor.u32 %v2133, %v2137
      %v2140 = vshll.u32 %v1951, 16
      %v2142 = vrot.slane %v2140, 1
      %v2143 = vsel %vm1486, %v2138, %v2142
      %v2176 = vunpack.c.l.b16 %v1261
      %v2177 = vunpack.c.l.b16 %v1262
      %v2178 = vunpack.c.l.b16 %v1263
      %v2179 = vunpack.c.l.b16 %v1264
      %v2180 = vunpack.c.l.b16 %v1265
      %v2181 = vunpack.c.l.b16 %v1266
      %v2182 = vunpack.c.l.b16 %v1267
      %v2183 = vunpack.c.l.b16 %v1268
      %v2184 = vunpack.c.l.b16 %v1269
      %v2185 = vunpack.c.l.b16 %v1270
      %v2186 = vunpack.c.l.b16 %v1271
      %v2187 = vunpack.c.l.b16 %v1272
      %v2188 = vunpack.c.l.b16 %v1273
      %v2189 = vunpack.c.l.b16 %v1274
      %v2190 = vunpack.c.l.b16 %v1275
      %v2191 = vunpack.c.l.b16 %v1276
      %v2192 = vpack.c.b16 %v1841, %v2176
      %v2193 = vpack.c.b16 %v1843, %v2177
      %v2194 = vpack.c.b16 %v1845, %v2178
      %v2195 = vpack.c.b16 %v1847, %v2179
      %v2196 = vpack.c.b16 %v1849, %v2180
      %v2197 = vpack.c.b16 %v1851, %v2181
      %v2198 = vpack.c.b16 %v1853, %v2182
      %v2199 = vpack.c.b16 %v1855, %v2183
      %v2200 = vpack.c.b16 %v1857, %v2184
      %v2201 = vpack.c.b16 %v1859, %v2185
      %v2202 = vpack.c.b16 %v1861, %v2186
      %v2203 = vpack.c.b16 %v1863, %v2187
      %v2204 = vpack.c.b16 %v1865, %v2188
      %v2205 = vpack.c.b16 %v1867, %v2189
      %v2206 = vpack.c.b16 %v1869, %v2190
      %v2207 = vpack.c.b16 %v1871, %v2191
      %v2208 = vrot.slane %v2192, 1
      %v2209 = vrot.slane %v1936, 1
      %v2210 = vsel %vm1743, %v2208, %v2209
      %v2211 = vrot.slane %v2193, 1
      %v2212 = vrot.slane %v1937, 1
      %v2213 = vsel %vm1743, %v2211, %v2212
      %v2214 = vrot.slane %v2194, 1
      %v2215 = vrot.slane %v1938, 1
      %v2216 = vsel %vm1743, %v2214, %v2215
      %v2217 = vrot.slane %v2195, 1
      %v2218 = vrot.slane %v1939, 1
      %v2219 = vsel %vm1743, %v2217, %v2218
      %v2220 = vrot.slane %v2196, 1
      %v2221 = vrot.slane %v1940, 1
      %v2222 = vsel %vm1743, %v2220, %v2221
      %v2223 = vrot.slane %v2197, 1
      %v2224 = vrot.slane %v1941, 1
      %v2225 = vsel %vm1743, %v2223, %v2224
      %v2226 = vrot.slane %v2198, 1
      %v2227 = vrot.slane %v1942, 1
      %v2228 = vsel %vm1743, %v2226, %v2227
      %v2229 = vrot.slane %v2199, 1
      %v2230 = vrot.slane %v1943, 1
      %v2231 = vsel %vm1743, %v2229, %v2230
      %v2232 = vrot.slane %v2200, 1
      %v2233 = vrot.slane %v1944, 1
      %v2234 = vsel %vm1743, %v2232, %v2233
      %v2235 = vrot.slane %v2201, 1
      %v2236 = vrot.slane %v1945, 1
      %v2237 = vsel %vm1743, %v2235, %v2236
      %v2238 = vrot.slane %v2202, 1
      %v2239 = vrot.slane %v1946, 1
      %v2240 = vsel %vm1743, %v2238, %v2239
      %v2241 = vrot.slane %v2203, 1
      %v2242 = vrot.slane %v1947, 1
      %v2243 = vsel %vm1743, %v2241, %v2242
      %v2244 = vrot.slane %v2204, 1
      %v2245 = vrot.slane %v1948, 1
      %v2246 = vsel %vm1743, %v2244, %v2245
      %v2247 = vrot.slane %v2205, 1
      %v2248 = vrot.slane %v1949, 1
      %v2249 = vsel %vm1743, %v2247, %v2248
      %v2250 = vrot.slane %v2206, 1
      %v2251 = vrot.slane %v1950, 1
      %v2252 = vsel %vm1743, %v2250, %v2251
      %v2253 = vrot.slane %v2207, 1
      %v2254 = vrot.slane %v1951, 1
      %v2255 = vsel %vm1743, %v2253, %v2254
      %v2304 = vunpack.c.l.b16 %v1278
      %v2305 = vunpack.c.l.b16 %v1279
      %v2306 = vunpack.c.l.b16 %v1280
      %v2307 = vunpack.c.l.b16 %v1281
      %v2308 = vunpack.c.l.b16 %v1282
      %v2309 = vunpack.c.l.b16 %v1283
      %v2310 = vunpack.c.l.b16 %v1284
      %v2311 = vunpack.c.l.b16 %v1285
      %v2312 = vunpack.c.l.b16 %v1286
      %v2313 = vunpack.c.l.b16 %v1287
      %v2314 = vunpack.c.l.b16 %v1288
      %v2315 = vunpack.c.l.b16 %v1289
      %v2316 = vunpack.c.l.b16 %v1290
      %v2317 = vunpack.c.l.b16 %v1291
      %v2318 = vunpack.c.l.b16 %v1292
      %v2319 = vunpack.c.l.b16 %v1293
      %v2320 = vunpack.c.l.b16 %v1294
      %v2321 = vunpack.c.l.b16 %v1295
      %v2322 = vunpack.c.l.b16 %v1296
      %v2323 = vunpack.c.l.b16 %v1297
      %v2324 = vunpack.c.l.b16 %v1298
      %v2325 = vunpack.c.l.b16 %v1299
      %v2326 = vunpack.c.l.b16 %v1300
      %v2327 = vunpack.c.l.b16 %v1301
      %v2328 = vunpack.c.l.b16 %v1302
      %v2329 = vunpack.c.l.b16 %v1303
      %v2330 = vunpack.c.l.b16 %v1304
      %v2331 = vunpack.c.l.b16 %v1305
      %v2332 = vunpack.c.l.b16 %v1306
      %v2333 = vunpack.c.l.b16 %v1307
      %v2334 = vunpack.c.l.b16 %v1308
      %v2335 = vunpack.c.l.b16 %v1309
      %v2336 = vpack.c.b16 %v2305, %v2304
      %v2337 = vpack.c.b16 %v2307, %v2306
      %v2338 = vpack.c.b16 %v2309, %v2308
      %v2339 = vpack.c.b16 %v2311, %v2310
      %v2340 = vpack.c.b16 %v2313, %v2312
      %v2341 = vpack.c.b16 %v2315, %v2314
      %v2342 = vpack.c.b16 %v2317, %v2316
      %v2343 = vpack.c.b16 %v2319, %v2318
      %v2344 = vpack.c.b16 %v2321, %v2320
      %v2345 = vpack.c.b16 %v2323, %v2322
      %v2346 = vpack.c.b16 %v2325, %v2324
      %v2347 = vpack.c.b16 %v2327, %v2326
      %v2348 = vpack.c.b16 %v2329, %v2328
      %v2349 = vpack.c.b16 %v2331, %v2330
      %v2350 = vpack.c.b16 %v2333, %v2332
      %v2351 = vpack.c.b16 %v2335, %v2334
      %v2384 = vunpack.c.l.b16 %v1310
      %v2385 = vunpack.c.l.b16 %v1311
      %v2386 = vunpack.c.l.b16 %v1312
      %v2387 = vunpack.c.l.b16 %v1313
      %v2388 = vunpack.c.l.b16 %v1314
      %v2389 = vunpack.c.l.b16 %v1315
      %v2390 = vunpack.c.l.b16 %v1316
      %v2391 = vunpack.c.l.b16 %v1317
      %v2392 = vunpack.c.l.b16 %v1318
      %v2393 = vunpack.c.l.b16 %v1319
      %v2394 = vunpack.c.l.b16 %v1320
      %v2395 = vunpack.c.l.b16 %v1321
      %v2396 = vunpack.c.l.b16 %v1322
      %v2397 = vunpack.c.l.b16 %v1323
      %v2398 = vunpack.c.l.b16 %v1324
      %v2399 = vunpack.c.l.b16 %v1325
      %v2400 = vpack.c.b16 %v2384, %v2384
      %v2401 = vpack.c.b16 %v2385, %v2385
      %v2402 = vpack.c.b16 %v2386, %v2386
      %v2403 = vpack.c.b16 %v2387, %v2387
      %v2404 = vpack.c.b16 %v2388, %v2388
      %v2405 = vpack.c.b16 %v2389, %v2389
      %v2406 = vpack.c.b16 %v2390, %v2390
      %v2407 = vpack.c.b16 %v2391, %v2391
      %v2408 = vpack.c.b16 %v2392, %v2392
      %v2409 = vpack.c.b16 %v2393, %v2393
      %v2410 = vpack.c.b16 %v2394, %v2394
      %v2411 = vpack.c.b16 %v2395, %v2395
      %v2412 = vpack.c.b16 %v2396, %v2396
      %v2413 = vpack.c.b16 %v2397, %v2397
      %v2414 = vpack.c.b16 %v2398, %v2398
      %v2415 = vpack.c.b16 %v2399, %v2399
      %v2417 = vshrl.u32 %v2336, 16
      %v2419 = vshll.u32 %v2336, 16
      %v2421 = vrot.slane %v2419, 1
      %v2422 = vor.u32 %v2417, %v2421
      %v2424 = vshll.u32 %v2400, 16
      %v2426 = vrot.slane %v2424, 1
      %v2427 = vsel %vm1486, %v2422, %v2426
      %v2429 = vshrl.u32 %v2337, 16
      %v2431 = vshll.u32 %v2337, 16
      %v2433 = vrot.slane %v2431, 1
      %v2434 = vor.u32 %v2429, %v2433
      %v2436 = vshll.u32 %v2401, 16
      %v2438 = vrot.slane %v2436, 1
      %v2439 = vsel %vm1486, %v2434, %v2438
      %v2441 = vshrl.u32 %v2338, 16
      %v2443 = vshll.u32 %v2338, 16
      %v2445 = vrot.slane %v2443, 1
      %v2446 = vor.u32 %v2441, %v2445
      %v2448 = vshll.u32 %v2402, 16
      %v2450 = vrot.slane %v2448, 1
      %v2451 = vsel %vm1486, %v2446, %v2450
      %v2453 = vshrl.u32 %v2339, 16
      %v2455 = vshll.u32 %v2339, 16
      %v2457 = vrot.slane %v2455, 1
      %v2458 = vor.u32 %v2453, %v2457
      %v2460 = vshll.u32 %v2403, 16
      %v2462 = vrot.slane %v2460, 1
      %v2463 = vsel %vm1486, %v2458, %v2462
      %v2465 = vshrl.u32 %v2340, 16
      %v2467 = vshll.u32 %v2340, 16
      %v2469 = vrot.slane %v2467, 1
      %v2470 = vor.u32 %v2465, %v2469
      %v2472 = vshll.u32 %v2404, 16
      %v2474 = vrot.slane %v2472, 1
      %v2475 = vsel %vm1486, %v2470, %v2474
      %v2477 = vshrl.u32 %v2341, 16
      %v2479 = vshll.u32 %v2341, 16
      %v2481 = vrot.slane %v2479, 1
      %v2482 = vor.u32 %v2477, %v2481
      %v2484 = vshll.u32 %v2405, 16
      %v2486 = vrot.slane %v2484, 1
      %v2487 = vsel %vm1486, %v2482, %v2486
      %v2489 = vshrl.u32 %v2342, 16
      %v2491 = vshll.u32 %v2342, 16
      %v2493 = vrot.slane %v2491, 1
      %v2494 = vor.u32 %v2489, %v2493
      %v2496 = vshll.u32 %v2406, 16
      %v2498 = vrot.slane %v2496, 1
      %v2499 = vsel %vm1486, %v2494, %v2498
      %v2501 = vshrl.u32 %v2343, 16
      %v2503 = vshll.u32 %v2343, 16
      %v2505 = vrot.slane %v2503, 1
      %v2506 = vor.u32 %v2501, %v2505
      %v2508 = vshll.u32 %v2407, 16
      %v2510 = vrot.slane %v2508, 1
      %v2511 = vsel %vm1486, %v2506, %v2510
      %v2513 = vshrl.u32 %v2344, 16
      %v2515 = vshll.u32 %v2344, 16
      %v2517 = vrot.slane %v2515, 1
      %v2518 = vor.u32 %v2513, %v2517
      %v2520 = vshll.u32 %v2408, 16
      %v2522 = vrot.slane %v2520, 1
      %v2523 = vsel %vm1486, %v2518, %v2522
      %v2525 = vshrl.u32 %v2345, 16
      %v2527 = vshll.u32 %v2345, 16
      %v2529 = vrot.slane %v2527, 1
      %v2530 = vor.u32 %v2525, %v2529
      %v2532 = vshll.u32 %v2409, 16
      %v2534 = vrot.slane %v2532, 1
      %v2535 = vsel %vm1486, %v2530, %v2534
      %v2537 = vshrl.u32 %v2346, 16
      %v2539 = vshll.u32 %v2346, 16
      %v2541 = vrot.slane %v2539, 1
      %v2542 = vor.u32 %v2537, %v2541
      %v2544 = vshll.u32 %v2410, 16
      %v2546 = vrot.slane %v2544, 1
      %v2547 = vsel %vm1486, %v2542, %v2546
      %v2549 = vshrl.u32 %v2347, 16
      %v2551 = vshll.u32 %v2347, 16
      %v2553 = vrot.slane %v2551, 1
      %v2554 = vor.u32 %v2549, %v2553
      %v2556 = vshll.u32 %v2411, 16
      %v2558 = vrot.slane %v2556, 1
      %v2559 = vsel %vm1486, %v2554, %v2558
      %v2561 = vshrl.u32 %v2348, 16
      %v2563 = vshll.u32 %v2348, 16
      %v2565 = vrot.slane %v2563, 1
      %v2566 = vor.u32 %v2561, %v2565
      %v2568 = vshll.u32 %v2412, 16
      %v2570 = vrot.slane %v2568, 1
      %v2571 = vsel %vm1486, %v2566, %v2570
      %v2573 = vshrl.u32 %v2349, 16
      %v2575 = vshll.u32 %v2349, 16
      %v2577 = vrot.slane %v2575, 1
      %v2578 = vor.u32 %v2573, %v2577
      %v2580 = vshll.u32 %v2413, 16
      %v2582 = vrot.slane %v2580, 1
      %v2583 = vsel %vm1486, %v2578, %v2582
      %v2585 = vshrl.u32 %v2350, 16
      %v2587 = vshll.u32 %v2350, 16
      %v2589 = vrot.slane %v2587, 1
      %v2590 = vor.u32 %v2585, %v2589
      %v2592 = vshll.u32 %v2414, 16
      %v2594 = vrot.slane %v2592, 1
      %v2595 = vsel %vm1486, %v2590, %v2594
      %v2597 = vshrl.u32 %v2351, 16
      %v2599 = vshll.u32 %v2351, 16
      %v2601 = vrot.slane %v2599, 1
      %v2602 = vor.u32 %v2597, %v2601
      %v2604 = vshll.u32 %v2415, 16
      %v2606 = vrot.slane %v2604, 1
      %v2607 = vsel %vm1486, %v2602, %v2606
      %v2640 = vunpack.c.l.b16 %v1326
      %v2641 = vunpack.c.l.b16 %v1327
      %v2642 = vunpack.c.l.b16 %v1328
      %v2643 = vunpack.c.l.b16 %v1329
      %v2644 = vunpack.c.l.b16 %v1330
      %v2645 = vunpack.c.l.b16 %v1331
      %v2646 = vunpack.c.l.b16 %v1332
      %v2647 = vunpack.c.l.b16 %v1333
      %v2648 = vunpack.c.l.b16 %v1334
      %v2649 = vunpack.c.l.b16 %v1335
      %v2650 = vunpack.c.l.b16 %v1336
      %v2651 = vunpack.c.l.b16 %v1337
      %v2652 = vunpack.c.l.b16 %v1338
      %v2653 = vunpack.c.l.b16 %v1339
      %v2654 = vunpack.c.l.b16 %v1340
      %v2655 = vunpack.c.l.b16 %v1341
      %v2656 = vpack.c.b16 %v2305, %v2640
      %v2657 = vpack.c.b16 %v2307, %v2641
      %v2658 = vpack.c.b16 %v2309, %v2642
      %v2659 = vpack.c.b16 %v2311, %v2643
      %v2660 = vpack.c.b16 %v2313, %v2644
      %v2661 = vpack.c.b16 %v2315, %v2645
      %v2662 = vpack.c.b16 %v2317, %v2646
      %v2663 = vpack.c.b16 %v2319, %v2647
      %v2664 = vpack.c.b16 %v2321, %v2648
      %v2665 = vpack.c.b16 %v2323, %v2649
      %v2666 = vpack.c.b16 %v2325, %v2650
      %v2667 = vpack.c.b16 %v2327, %v2651
      %v2668 = vpack.c.b16 %v2329, %v2652
      %v2669 = vpack.c.b16 %v2331, %v2653
      %v2670 = vpack.c.b16 %v2333, %v2654
      %v2671 = vpack.c.b16 %v2335, %v2655
      %v2672 = vrot.slane %v2656, 1
      %v2673 = vrot.slane %v2400, 1
      %v2674 = vsel %vm1743, %v2672, %v2673
      %v2675 = vrot.slane %v2657, 1
      %v2676 = vrot.slane %v2401, 1
      %v2677 = vsel %vm1743, %v2675, %v2676
      %v2678 = vrot.slane %v2658, 1
      %v2679 = vrot.slane %v2402, 1
      %v2680 = vsel %vm1743, %v2678, %v2679
      %v2681 = vrot.slane %v2659, 1
      %v2682 = vrot.slane %v2403, 1
      %v2683 = vsel %vm1743, %v2681, %v2682
      %v2684 = vrot.slane %v2660, 1
      %v2685 = vrot.slane %v2404, 1
      %v2686 = vsel %vm1743, %v2684, %v2685
      %v2687 = vrot.slane %v2661, 1
      %v2688 = vrot.slane %v2405, 1
      %v2689 = vsel %vm1743, %v2687, %v2688
      %v2690 = vrot.slane %v2662, 1
      %v2691 = vrot.slane %v2406, 1
      %v2692 = vsel %vm1743, %v2690, %v2691
      %v2693 = vrot.slane %v2663, 1
      %v2694 = vrot.slane %v2407, 1
      %v2695 = vsel %vm1743, %v2693, %v2694
      %v2696 = vrot.slane %v2664, 1
      %v2697 = vrot.slane %v2408, 1
      %v2698 = vsel %vm1743, %v2696, %v2697
      %v2699 = vrot.slane %v2665, 1
      %v2700 = vrot.slane %v2409, 1
      %v2701 = vsel %vm1743, %v2699, %v2700
      %v2702 = vrot.slane %v2666, 1
      %v2703 = vrot.slane %v2410, 1
      %v2704 = vsel %vm1743, %v2702, %v2703
      %v2705 = vrot.slane %v2667, 1
      %v2706 = vrot.slane %v2411, 1
      %v2707 = vsel %vm1743, %v2705, %v2706
      %v2708 = vrot.slane %v2668, 1
      %v2709 = vrot.slane %v2412, 1
      %v2710 = vsel %vm1743, %v2708, %v2709
      %v2711 = vrot.slane %v2669, 1
      %v2712 = vrot.slane %v2413, 1
      %v2713 = vsel %vm1743, %v2711, %v2712
      %v2714 = vrot.slane %v2670, 1
      %v2715 = vrot.slane %v2414, 1
      %v2716 = vsel %vm1743, %v2714, %v2715
      %v2717 = vrot.slane %v2671, 1
      %v2718 = vrot.slane %v2415, 1
      %v2719 = vsel %vm1743, %v2717, %v2718
      %v2736 = vld [vmem:[%s1] sm:$0xf]
      %v2737 = vld [vmem:[%s1 + $0x4] sm:$0xf]
      %v2738 = vld [vmem:[%s1 + $0x8] sm:$0xf]
      %v2739 = vld [vmem:[%s1 + $0xc] sm:$0xf]
      %v2740 = vld [vmem:[%s1 + $0x10] sm:$0xf]
      %v2741 = vld [vmem:[%s1 + $0x14] sm:$0xf]
      %v2742 = vld [vmem:[%s1 + $0x18] sm:$0xf]
      %v2743 = vld [vmem:[%s1 + $0x1c] sm:$0xf]
      %v2744 = vld [vmem:[%s1 + $0x20] sm:$0xf]
      %v2745 = vld [vmem:[%s1 + $0x24] sm:$0xf]
      %v2746 = vld [vmem:[%s1 + $0x28] sm:$0xf]
      %v2747 = vld [vmem:[%s1 + $0x2c] sm:$0xf]
      %v2748 = vld [vmem:[%s1 + $0x30] sm:$0xf]
      %v2749 = vld [vmem:[%s1 + $0x34] sm:$0xf]
      %v2750 = vld [vmem:[%s1 + $0x38] sm:$0xf]
      %v2751 = vld [vmem:[%s1 + $0x3c] sm:$0xf]
      %v2752 = vld [vmem:[%s1 + $0x40] sm:$0xf]
      %v2753 = vld [vmem:[%s1 + $0x44] sm:$0xf]
      %v2754 = vld [vmem:[%s1 + $0x48] sm:$0xf]
      %v2755 = vld [vmem:[%s1 + $0x4c] sm:$0xf]
      %v2756 = vld [vmem:[%s1 + $0x50] sm:$0xf]
      %v2757 = vld [vmem:[%s1 + $0x54] sm:$0xf]
      %v2758 = vld [vmem:[%s1 + $0x58] sm:$0xf]
      %v2759 = vld [vmem:[%s1 + $0x5c] sm:$0xf]
      %v2760 = vld [vmem:[%s1 + $0x60] sm:$0xf]
      %v2761 = vld [vmem:[%s1 + $0x64] sm:$0xf]
      %v2762 = vld [vmem:[%s1 + $0x68] sm:$0xf]
      %v2763 = vld [vmem:[%s1 + $0x6c] sm:$0xf]
      %v2764 = vld [vmem:[%s1 + $0x70] sm:$0xf]
      %v2765 = vld [vmem:[%s1 + $0x74] sm:$0xf]
      %v2766 = vld [vmem:[%s1 + $0x78] sm:$0xf]
      %v2767 = vld [vmem:[%s1 + $0x7c] sm:$0xf]
      %v2768 = vld [vmem:[%s1 + $0x80] sm:$0xf]
      %v2769 = vld [vmem:[%s1 + $0x84] sm:$0xf]
      %v2770 = vld [vmem:[%s1 + $0x88] sm:$0xf]
      %v2771 = vld [vmem:[%s1 + $0x8c] sm:$0xf]
      %v2772 = vld [vmem:[%s1 + $0x90] sm:$0xf]
      %v2773 = vld [vmem:[%s1 + $0x94] sm:$0xf]
      %v2774 = vld [vmem:[%s1 + $0x98] sm:$0xf]
      %v2775 = vld [vmem:[%s1 + $0x9c] sm:$0xf]
      %v2776 = vld [vmem:[%s1 + $0xa0] sm:$0xf]
      %v2777 = vld [vmem:[%s1 + $0xa4] sm:$0xf]
      %v2778 = vld [vmem:[%s1 + $0xa8] sm:$0xf]
      %v2779 = vld [vmem:[%s1 + $0xac] sm:$0xf]
      %v2780 = vld [vmem:[%s1 + $0xb0] sm:$0xf]
      %v2781 = vld [vmem:[%s1 + $0xb4] sm:$0xf]
      %v2782 = vld [vmem:[%s1 + $0xb8] sm:$0xf]
      %v2783 = vld [vmem:[%s1 + $0xbc] sm:$0xf]
      %v2784 = vld [vmem:[%s1 + $0xc0] sm:$0xf]
      %v2785 = vld [vmem:[%s1 + $0xc4] sm:$0xf]
      %v2786 = vld [vmem:[%s1 + $0xc8] sm:$0xf]
      %v2787 = vld [vmem:[%s1 + $0xcc] sm:$0xf]
      %v2788 = vld [vmem:[%s1 + $0xd0] sm:$0xf]
      %v2789 = vld [vmem:[%s1 + $0xd4] sm:$0xf]
      %v2790 = vld [vmem:[%s1 + $0xd8] sm:$0xf]
      %v2791 = vld [vmem:[%s1 + $0xdc] sm:$0xf]
      %v2792 = vld [vmem:[%s1 + $0xe0] sm:$0xf]
      %v2793 = vld [vmem:[%s1 + $0xe4] sm:$0xf]
      %v2794 = vld [vmem:[%s1 + $0xe8] sm:$0xf]
      %v2795 = vld [vmem:[%s1 + $0xec] sm:$0xf]
      %v2796 = vld [vmem:[%s1 + $0xf0] sm:$0xf]
      %v2797 = vld [vmem:[%s1 + $0xf4] sm:$0xf]
      %v2798 = vld [vmem:[%s1 + $0xf8] sm:$0xf]
      %v2799 = vld [vmem:[%s1 + $0xfc] sm:$0xf]
      %v2800 = vld [vmem:[%s1 + $0x100] sm:$0xf]
      %v2801 = vld [vmem:[%s1 + $0x104] sm:$0xf]
      %v2802 = vld [vmem:[%s1 + $0x108] sm:$0xf]
      %v2803 = vld [vmem:[%s1 + $0x10c] sm:$0xf]
      %v2804 = vld [vmem:[%s1 + $0x110] sm:$0xf]
      %v2805 = vld [vmem:[%s1 + $0x114] sm:$0xf]
      %v2806 = vld [vmem:[%s1 + $0x118] sm:$0xf]
      %v2807 = vld [vmem:[%s1 + $0x11c] sm:$0xf]
      %v2808 = vld [vmem:[%s1 + $0x120] sm:$0xf]
      %v2809 = vld [vmem:[%s1 + $0x124] sm:$0xf]
      %v2810 = vld [vmem:[%s1 + $0x128] sm:$0xf]
      %v2811 = vld [vmem:[%s1 + $0x12c] sm:$0xf]
      %v2812 = vld [vmem:[%s1 + $0x130] sm:$0xf]
      %v2813 = vld [vmem:[%s1 + $0x134] sm:$0xf]
      %v2814 = vld [vmem:[%s1 + $0x138] sm:$0xf]
      %v2815 = vld [vmem:[%s1 + $0x13c] sm:$0xf]
      %v2816 = vld [vmem:[%s1 + $0x140] sm:$0xf]
      %v2817 = vld [vmem:[%s1 + $0x144] sm:$0xf]
      %v2818 = vld [vmem:[%s1 + $0x148] sm:$0xf]
      %v2819 = vld [vmem:[%s1 + $0x14c] sm:$0xf]
      %v2820 = vld [vmem:[%s1 + $0x150] sm:$0xf]
      %v2821 = vld [vmem:[%s1 + $0x154] sm:$0xf]
      %v2822 = vld [vmem:[%s1 + $0x158] sm:$0xf]
      %v2823 = vld [vmem:[%s1 + $0x15c] sm:$0xf]
      %v2824 = vld [vmem:[%s1 + $0x160] sm:$0xf]
      %v2825 = vld [vmem:[%s1 + $0x164] sm:$0xf]
      %v2826 = vld [vmem:[%s1 + $0x168] sm:$0xf]
      %v2827 = vld [vmem:[%s1 + $0x16c] sm:$0xf]
      %v2828 = vld [vmem:[%s1 + $0x170] sm:$0xf]
      %v2829 = vld [vmem:[%s1 + $0x174] sm:$0xf]
      %v2830 = vld [vmem:[%s1 + $0x178] sm:$0xf]
      %v2831 = vld [vmem:[%s1 + $0x17c] sm:$0xf]
      %v2832 = vld [vmem:[%s1 + $0x180] sm:$0xf]
      %v2833 = vld [vmem:[%s1 + $0x184] sm:$0xf]
      %v2834 = vld [vmem:[%s1 + $0x188] sm:$0xf]
      %v2835 = vld [vmem:[%s1 + $0x18c] sm:$0xf]
      %v2836 = vld [vmem:[%s1 + $0x190] sm:$0xf]
      %v2837 = vld [vmem:[%s1 + $0x194] sm:$0xf]
      %v2838 = vld [vmem:[%s1 + $0x198] sm:$0xf]
      %v2839 = vld [vmem:[%s1 + $0x19c] sm:$0xf]
      %v2840 = vld [vmem:[%s1 + $0x1a0] sm:$0xf]
      %v2841 = vld [vmem:[%s1 + $0x1a4] sm:$0xf]
      %v2842 = vld [vmem:[%s1 + $0x1a8] sm:$0xf]
      %v2843 = vld [vmem:[%s1 + $0x1ac] sm:$0xf]
      %v2844 = vld [vmem:[%s1 + $0x1b0] sm:$0xf]
      %v2845 = vld [vmem:[%s1 + $0x1b4] sm:$0xf]
      %v2846 = vld [vmem:[%s1 + $0x1b8] sm:$0xf]
      %v2847 = vld [vmem:[%s1 + $0x1bc] sm:$0xf]
      %v2848 = vld [vmem:[%s1 + $0x1c0] sm:$0xf]
      %v2849 = vld [vmem:[%s1 + $0x1c4] sm:$0xf]
      %v2850 = vld [vmem:[%s1 + $0x1c8] sm:$0xf]
      %v2851 = vld [vmem:[%s1 + $0x1cc] sm:$0xf]
      %v2852 = vld [vmem:[%s1 + $0x1d0] sm:$0xf]
      %v2853 = vld [vmem:[%s1 + $0x1d4] sm:$0xf]
      %v2854 = vld [vmem:[%s1 + $0x1d8] sm:$0xf]
      %v2855 = vld [vmem:[%s1 + $0x1dc] sm:$0xf]
      %v2856 = vld [vmem:[%s1 + $0x1e0] sm:$0xf]
      %v2857 = vld [vmem:[%s1 + $0x1e4] sm:$0xf]
      %v2858 = vld [vmem:[%s1 + $0x1e8] sm:$0xf]
      %v2859 = vld [vmem:[%s1 + $0x1ec] sm:$0xf]
      %v2860 = vld [vmem:[%s1 + $0x1f0] sm:$0xf]
      %v2861 = vld [vmem:[%s1 + $0x1f4] sm:$0xf]
      %v2862 = vld [vmem:[%s1 + $0x1f8] sm:$0xf]
      %v2863 = vld [vmem:[%s1 + $0x1fc] sm:$0xf]
      %v2864 = vld [vmem:[%s1 + $0x200] sm:$0xf]
      %v2865 = vld [vmem:[%s1 + $0x204] sm:$0xf]
      %v2866 = vld [vmem:[%s1 + $0x208] sm:$0xf]
      %v2867 = vld [vmem:[%s1 + $0x20c] sm:$0xf]
      %v2868 = vld [vmem:[%s1 + $0x210] sm:$0xf]
      %v2869 = vld [vmem:[%s1 + $0x214] sm:$0xf]
      %v2870 = vld [vmem:[%s1 + $0x218] sm:$0xf]
      %v2871 = vld [vmem:[%s1 + $0x21c] sm:$0xf]
      %v2872 = vld [vmem:[%s1 + $0x220] sm:$0xf]
      %v2873 = vld [vmem:[%s1 + $0x224] sm:$0xf]
      %v2874 = vld [vmem:[%s1 + $0x228] sm:$0xf]
      %v2875 = vld [vmem:[%s1 + $0x22c] sm:$0xf]
      %v2876 = vld [vmem:[%s1 + $0x230] sm:$0xf]
      %v2877 = vld [vmem:[%s1 + $0x234] sm:$0xf]
      %v2878 = vld [vmem:[%s1 + $0x238] sm:$0xf]
      %v2879 = vld [vmem:[%s1 + $0x23c] sm:$0xf]
      %v2880 = vld [vmem:[%s2] sm:$0x1]
      %v2882 = vperm.slane %v2880, 0
      %v3028 = vunpack.c.l.b16 %v2736
      %v3029 = vunpack.c.l.b16 %v2737
      %v3030 = vunpack.c.l.b16 %v2738
      %v3031 = vunpack.c.l.b16 %v2739
      %v3032 = vunpack.c.l.b16 %v2740
      %v3033 = vunpack.c.l.b16 %v2741
      %v3034 = vunpack.c.l.b16 %v2742
      %v3035 = vunpack.c.l.b16 %v2743
      %v3036 = vunpack.c.l.b16 %v2744
      %v3037 = vunpack.c.l.b16 %v2745
      %v3038 = vunpack.c.l.b16 %v2746
      %v3039 = vunpack.c.l.b16 %v2747
      %v3040 = vunpack.c.l.b16 %v2748
      %v3041 = vunpack.c.l.b16 %v2749
      %v3042 = vunpack.c.l.b16 %v2750
      %v3043 = vunpack.c.l.b16 %v2751
      %v3044 = vunpack.c.l.b16 %v2752
      %v3045 = vunpack.c.l.b16 %v2753
      %v3046 = vunpack.c.l.b16 %v2754
      %v3047 = vunpack.c.l.b16 %v2755
      %v3048 = vunpack.c.l.b16 %v2756
      %v3049 = vunpack.c.l.b16 %v2757
      %v3050 = vunpack.c.l.b16 %v2758
      %v3051 = vunpack.c.l.b16 %v2759
      %v3052 = vunpack.c.l.b16 %v2760
      %v3053 = vunpack.c.l.b16 %v2761
      %v3054 = vunpack.c.l.b16 %v2762
      %v3055 = vunpack.c.l.b16 %v2763
      %v3056 = vunpack.c.l.b16 %v2764
      %v3057 = vunpack.c.l.b16 %v2765
      %v3058 = vunpack.c.l.b16 %v2766
      %v3059 = vunpack.c.l.b16 %v2767
      %v3060 = vunpack.c.l.b16 %v2768
      %v3061 = vunpack.c.l.b16 %v2769
      %v3062 = vunpack.c.l.b16 %v2770
      %v3063 = vunpack.c.l.b16 %v2771
      %v3064 = vunpack.c.l.b16 %v2772
      %v3065 = vunpack.c.l.b16 %v2773
      %v3066 = vunpack.c.l.b16 %v2774
      %v3067 = vunpack.c.l.b16 %v2775
      %v3068 = vunpack.c.l.b16 %v2776
      %v3069 = vunpack.c.l.b16 %v2777
      %v3070 = vunpack.c.l.b16 %v2778
      %v3071 = vunpack.c.l.b16 %v2779
      %v3072 = vunpack.c.l.b16 %v2780
      %v3073 = vunpack.c.l.b16 %v2781
      %v3074 = vunpack.c.l.b16 %v2782
      %v3075 = vunpack.c.l.b16 %v2783
      %v3076 = vunpack.c.l.b16 %v2784
      %v3077 = vunpack.c.l.b16 %v2785
      %v3078 = vunpack.c.l.b16 %v2786
      %v3079 = vunpack.c.l.b16 %v2787
      %v3080 = vunpack.c.l.b16 %v2788
      %v3081 = vunpack.c.l.b16 %v2789
      %v3082 = vunpack.c.l.b16 %v2790
      %v3083 = vunpack.c.l.b16 %v2791
      %v3084 = vunpack.c.l.b16 %v2792
      %v3085 = vunpack.c.l.b16 %v2793
      %v3086 = vunpack.c.l.b16 %v2794
      %v3087 = vunpack.c.l.b16 %v2795
      %v3088 = vunpack.c.l.b16 %v2796
      %v3089 = vunpack.c.l.b16 %v2797
      %v3090 = vunpack.c.l.b16 %v2798
      %v3091 = vunpack.c.l.b16 %v2799
      %v3092 = vunpack.c.l.b16 %v2800
      %v3093 = vunpack.c.l.b16 %v2801
      %v3094 = vunpack.c.l.b16 %v2802
      %v3095 = vunpack.c.l.b16 %v2803
      %v3096 = vunpack.c.l.b16 %v2804
      %v3097 = vunpack.c.l.b16 %v2805
      %v3098 = vunpack.c.l.b16 %v2806
      %v3099 = vunpack.c.l.b16 %v2807
      %v3100 = vunpack.c.l.b16 %v2808
      %v3101 = vunpack.c.l.b16 %v2809
      %v3102 = vunpack.c.l.b16 %v2810
      %v3103 = vunpack.c.l.b16 %v2811
      %v3104 = vunpack.c.l.b16 %v2812
      %v3105 = vunpack.c.l.b16 %v2813
      %v3106 = vunpack.c.l.b16 %v2814
      %v3107 = vunpack.c.l.b16 %v2815
      %v3108 = vunpack.c.l.b16 %v2816
      %v3109 = vunpack.c.l.b16 %v2817
      %v3110 = vunpack.c.l.b16 %v2818
      %v3111 = vunpack.c.l.b16 %v2819
      %v3112 = vunpack.c.l.b16 %v2820
      %v3113 = vunpack.c.l.b16 %v2821
      %v3114 = vunpack.c.l.b16 %v2822
      %v3115 = vunpack.c.l.b16 %v2823
      %v3116 = vunpack.c.l.b16 %v2824
      %v3117 = vunpack.c.l.b16 %v2825
      %v3118 = vunpack.c.l.b16 %v2826
      %v3119 = vunpack.c.l.b16 %v2827
      %v3120 = vunpack.c.l.b16 %v2828
      %v3121 = vunpack.c.l.b16 %v2829
      %v3122 = vunpack.c.l.b16 %v2830
      %v3123 = vunpack.c.l.b16 %v2831
      %v3124 = vunpack.c.l.b16 %v2832
      %v3125 = vunpack.c.l.b16 %v2833
      %v3126 = vunpack.c.l.b16 %v2834
      %v3127 = vunpack.c.l.b16 %v2835
      %v3128 = vunpack.c.l.b16 %v2836
      %v3129 = vunpack.c.l.b16 %v2837
      %v3130 = vunpack.c.l.b16 %v2838
      %v3131 = vunpack.c.l.b16 %v2839
      %v3132 = vunpack.c.l.b16 %v2840
      %v3133 = vunpack.c.l.b16 %v2841
      %v3134 = vunpack.c.l.b16 %v2842
      %v3135 = vunpack.c.l.b16 %v2843
      %v3136 = vunpack.c.l.b16 %v2844
      %v3137 = vunpack.c.l.b16 %v2845
      %v3138 = vunpack.c.l.b16 %v2846
      %v3139 = vunpack.c.l.b16 %v2847
      %v3140 = vunpack.c.l.b16 %v2848
      %v3141 = vunpack.c.l.b16 %v2849
      %v3142 = vunpack.c.l.b16 %v2850
      %v3143 = vunpack.c.l.b16 %v2851
      %v3144 = vunpack.c.l.b16 %v2852
      %v3145 = vunpack.c.l.b16 %v2853
      %v3146 = vunpack.c.l.b16 %v2854
      %v3147 = vunpack.c.l.b16 %v2855
      %v3148 = vunpack.c.l.b16 %v2856
      %v3149 = vunpack.c.l.b16 %v2857
      %v3150 = vunpack.c.l.b16 %v2858
      %v3151 = vunpack.c.l.b16 %v2859
      %v3152 = vunpack.c.l.b16 %v2860
      %v3153 = vunpack.c.l.b16 %v2861
      %v3154 = vunpack.c.l.b16 %v2862
      %v3155 = vunpack.c.l.b16 %v2863
      %v3156 = vunpack.c.l.b16 %v2864
      %v3157 = vunpack.c.l.b16 %v2865
      %v3158 = vunpack.c.l.b16 %v2866
      %v3159 = vunpack.c.l.b16 %v2867
      %v3160 = vunpack.c.l.b16 %v2868
      %v3161 = vunpack.c.l.b16 %v2869
      %v3162 = vunpack.c.l.b16 %v2870
      %v3163 = vunpack.c.l.b16 %v2871
      %v3164 = vunpack.c.l.b16 %v2872
      %v3165 = vunpack.c.l.b16 %v2873
      %v3166 = vunpack.c.l.b16 %v2874
      %v3167 = vunpack.c.l.b16 %v2875
      %v3168 = vunpack.c.l.b16 %v2876
      %v3169 = vunpack.c.l.b16 %v2877
      %v3170 = vunpack.c.l.b16 %v2878
      %v3171 = vunpack.c.l.b16 %v2879
      %v3172 = vpack.c.b16 %v3029, %v3028
      %v3173 = vpack.c.b16 %v3031, %v3030
      %v3174 = vpack.c.b16 %v3033, %v3032
      %v3175 = vpack.c.b16 %v3035, %v3034
      %v3176 = vpack.c.b16 %v3037, %v3036
      %v3177 = vpack.c.b16 %v3039, %v3038
      %v3178 = vpack.c.b16 %v3041, %v3040
      %v3179 = vpack.c.b16 %v3043, %v3042
      %v3180 = vpack.c.b16 %v3045, %v3044
      %v3181 = vpack.c.b16 %v3047, %v3046
      %v3182 = vpack.c.b16 %v3049, %v3048
      %v3183 = vpack.c.b16 %v3051, %v3050
      %v3184 = vpack.c.b16 %v3053, %v3052
      %v3185 = vpack.c.b16 %v3055, %v3054
      %v3186 = vpack.c.b16 %v3057, %v3056
      %v3187 = vpack.c.b16 %v3059, %v3058
      %v3188 = vpack.c.b16 %v3061, %v3060
      %v3189 = vpack.c.b16 %v3063, %v3062
      %v3190 = vpack.c.b16 %v3065, %v3064
      %v3191 = vpack.c.b16 %v3067, %v3066
      %v3192 = vpack.c.b16 %v3069, %v3068
      %v3193 = vpack.c.b16 %v3071, %v3070
      %v3194 = vpack.c.b16 %v3073, %v3072
      %v3195 = vpack.c.b16 %v3075, %v3074
      %v3196 = vpack.c.b16 %v3077, %v3076
      %v3197 = vpack.c.b16 %v3079, %v3078
      %v3198 = vpack.c.b16 %v3081, %v3080
      %v3199 = vpack.c.b16 %v3083, %v3082
      %v3200 = vpack.c.b16 %v3085, %v3084
      %v3201 = vpack.c.b16 %v3087, %v3086
      %v3202 = vpack.c.b16 %v3089, %v3088
      %v3203 = vpack.c.b16 %v3091, %v3090
      %v3204 = vpack.c.b16 %v3093, %v3092
      %v3205 = vpack.c.b16 %v3095, %v3094
      %v3206 = vpack.c.b16 %v3097, %v3096
      %v3207 = vpack.c.b16 %v3099, %v3098
      %v3208 = vpack.c.b16 %v3101, %v3100
      %v3209 = vpack.c.b16 %v3103, %v3102
      %v3210 = vpack.c.b16 %v3105, %v3104
      %v3211 = vpack.c.b16 %v3107, %v3106
      %v3212 = vpack.c.b16 %v3109, %v3108
      %v3213 = vpack.c.b16 %v3111, %v3110
      %v3214 = vpack.c.b16 %v3113, %v3112
      %v3215 = vpack.c.b16 %v3115, %v3114
      %v3216 = vpack.c.b16 %v3117, %v3116
      %v3217 = vpack.c.b16 %v3119, %v3118
      %v3218 = vpack.c.b16 %v3121, %v3120
      %v3219 = vpack.c.b16 %v3123, %v3122
      %v3220 = vpack.c.b16 %v3125, %v3124
      %v3221 = vpack.c.b16 %v3127, %v3126
      %v3222 = vpack.c.b16 %v3129, %v3128
      %v3223 = vpack.c.b16 %v3131, %v3130
      %v3224 = vpack.c.b16 %v3133, %v3132
      %v3225 = vpack.c.b16 %v3135, %v3134
      %v3226 = vpack.c.b16 %v3137, %v3136
      %v3227 = vpack.c.b16 %v3139, %v3138
      %v3228 = vpack.c.b16 %v3141, %v3140
      %v3229 = vpack.c.b16 %v3143, %v3142
      %v3230 = vpack.c.b16 %v3145, %v3144
      %v3231 = vpack.c.b16 %v3147, %v3146
      %v3232 = vpack.c.b16 %v3149, %v3148
      %v3233 = vpack.c.b16 %v3151, %v3150
      %v3234 = vpack.c.b16 %v3153, %v3152
      %v3235 = vpack.c.b16 %v3155, %v3154
      %v3236 = vpack.c.b16 %v3157, %v3156
      %v3237 = vpack.c.b16 %v3159, %v3158
      %v3238 = vpack.c.b16 %v3161, %v3160
      %v3239 = vpack.c.b16 %v3163, %v3162
      %v3240 = vpack.c.b16 %v3165, %v3164
      %v3241 = vpack.c.b16 %v3167, %v3166
      %v3242 = vpack.c.b16 %v3169, %v3168
      %v3243 = vpack.c.b16 %v3171, %v3170
      %3316 = vmatpush.bf16.msra.mxu0 %v3179
      %3317 = vmatpush.bf16.msra.mxu0 %v3178
      %3318 = vmatpush.bf16.msra.mxu0 %v3177
      %3319 = vmatpush.bf16.msra.mxu0 %v3176
      %3320 = vmatpush.bf16.msra.mxu0 %v3175
      %3321 = vmatpush.bf16.msra.mxu0 %v3174
      %3322 = vmatpush.bf16.msra.mxu0 %v3173
      %3323 = vmatpush.bf16.msra.mxu0 %v3172
      %3324 = vmatmul.bf16.gmra.mxu0 %v1406
      %v3325 = vpop.f32.mrf.mxu0
      %v3326 = vadd.f32 %v2882, %v3325
      %v3327 = vpop.f32.mrf.mxu0
      %v3328 = vadd.f32 %v2882, %v3327
      %3329 = vmatmul.bf16.gmra.mxu0 %v1407
      %v3330 = vpop.f32.mrf.mxu0
      %v3331 = vadd.f32 %v2882, %v3330
      %v3332 = vpop.f32.mrf.mxu0
      %v3333 = vadd.f32 %v2882, %v3332
      %3334 = vmatmul.bf16.gmra.mxu0 %v1408
      %v3335 = vpop.f32.mrf.mxu0
      %v3336 = vadd.f32 %v2882, %v3335
      %v3337 = vpop.f32.mrf.mxu0
      %v3338 = vadd.f32 %v2882, %v3337
      %3339 = vmatmul.bf16.gmra.mxu0 %v1409
      %v3340 = vpop.f32.mrf.mxu0
      %v3341 = vadd.f32 %v2882, %v3340
      %v3342 = vpop.f32.mrf.mxu0
      %v3343 = vadd.f32 %v2882, %v3342
      %3344 = vmatmul.bf16.gmra.mxu0 %v1410
      %v3345 = vpop.f32.mrf.mxu0
      %v3346 = vadd.f32 %v2882, %v3345
      %v3347 = vpop.f32.mrf.mxu0
      %v3348 = vadd.f32 %v2882, %v3347
      %3349 = vmatmul.bf16.gmra.mxu0 %v1411
      %v3350 = vpop.f32.mrf.mxu0
      %v3351 = vadd.f32 %v2882, %v3350
      %v3352 = vpop.f32.mrf.mxu0
      %v3353 = vadd.f32 %v2882, %v3352
      %3354 = vmatmul.bf16.gmra.mxu0 %v1412
      %v3355 = vpop.f32.mrf.mxu0
      %v3356 = vadd.f32 %v2882, %v3355
      %v3357 = vpop.f32.mrf.mxu0
      %v3358 = vadd.f32 %v2882, %v3357
      %3359 = vmatmul.bf16.gmra.mxu0 %v1413
      %v3360 = vpop.f32.mrf.mxu0
      %v3361 = vadd.f32 %v2882, %v3360
      %v3362 = vpop.f32.mrf.mxu0
      %v3363 = vadd.f32 %v2882, %v3362
      %3364 = vmatmul.bf16.gmra.mxu0 %v1414
      %v3365 = vpop.f32.mrf.mxu0
      %v3366 = vadd.f32 %v2882, %v3365
      %v3367 = vpop.f32.mrf.mxu0
      %v3368 = vadd.f32 %v2882, %v3367
      %3369 = vmatmul.bf16.gmra.mxu0 %v1415
      %v3370 = vpop.f32.mrf.mxu0
      %v3371 = vadd.f32 %v2882, %v3370
      %v3372 = vpop.f32.mrf.mxu0
      %v3373 = vadd.f32 %v2882, %v3372
      %3374 = vmatmul.bf16.gmra.mxu0 %v1416
      %v3375 = vpop.f32.mrf.mxu0
      %v3376 = vadd.f32 %v2882, %v3375
      %v3377 = vpop.f32.mrf.mxu0
      %v3378 = vadd.f32 %v2882, %v3377
      %3379 = vmatmul.bf16.gmra.mxu0 %v1417
      %v3380 = vpop.f32.mrf.mxu0
      %v3381 = vadd.f32 %v2882, %v3380
      %v3382 = vpop.f32.mrf.mxu0
      %v3383 = vadd.f32 %v2882, %v3382
      %3384 = vmatmul.bf16.gmra.mxu0 %v1418
      %v3385 = vpop.f32.mrf.mxu0
      %v3386 = vadd.f32 %v2882, %v3385
      %v3387 = vpop.f32.mrf.mxu0
      %v3388 = vadd.f32 %v2882, %v3387
      %3389 = vmatmul.bf16.gmra.mxu0 %v1419
      %v3390 = vpop.f32.mrf.mxu0
      %v3391 = vadd.f32 %v2882, %v3390
      %v3392 = vpop.f32.mrf.mxu0
      %v3393 = vadd.f32 %v2882, %v3392
      %3394 = vmatmul.bf16.gmra.mxu0 %v1420
      %v3395 = vpop.f32.mrf.mxu0
      %v3396 = vadd.f32 %v2882, %v3395
      %v3397 = vpop.f32.mrf.mxu0
      %v3398 = vadd.f32 %v2882, %v3397
      %3399 = vmatmul.bf16.gmra.mxu0 %v1421
      %v3400 = vpop.f32.mrf.mxu0
      %v3401 = vadd.f32 %v2882, %v3400
      %v3402 = vpop.f32.mrf.mxu0
      %v3403 = vadd.f32 %v2882, %v3402
      %3404 = vdwg.mxu0
      %3405 = vmatpush.bf16.msra.mxu0 %v3187
      %3406 = vmatpush.bf16.msra.mxu0 %v3186
      %3407 = vmatpush.bf16.msra.mxu0 %v3185
      %3408 = vmatpush.bf16.msra.mxu0 %v3184
      %3409 = vmatpush.bf16.msra.mxu0 %v3183
      %3410 = vmatpush.bf16.msra.mxu0 %v3182
      %3411 = vmatpush.bf16.msra.mxu0 %v3181
      %3412 = vmatpush.bf16.msra.mxu0 %v3180
      %3413 = vmatmul.bf16.gmra.mxu0 %v1498
      %v3414 = vpop.f32.mrf.mxu0
      %v3415 = vadd.f32 %v3326, %v3414
      %v3416 = vpop.f32.mrf.mxu0
      %v3417 = vadd.f32 %v3328, %v3416
      %3418 = vmatmul.bf16.gmra.mxu0 %v1510
      %v3419 = vpop.f32.mrf.mxu0
      %v3420 = vadd.f32 %v3331, %v3419
      %v3421 = vpop.f32.mrf.mxu0
      %v3422 = vadd.f32 %v3333, %v3421
      %3423 = vmatmul.bf16.gmra.mxu0 %v1522
      %v3424 = vpop.f32.mrf.mxu0
      %v3425 = vadd.f32 %v3336, %v3424
      %v3426 = vpop.f32.mrf.mxu0
      %v3427 = vadd.f32 %v3338, %v3426
      %3428 = vmatmul.bf16.gmra.mxu0 %v1534
      %v3429 = vpop.f32.mrf.mxu0
      %v3430 = vadd.f32 %v3341, %v3429
      %v3431 = vpop.f32.mrf.mxu0
      %v3432 = vadd.f32 %v3343, %v3431
      %3433 = vmatmul.bf16.gmra.mxu0 %v1546
      %v3434 = vpop.f32.mrf.mxu0
      %v3435 = vadd.f32 %v3346, %v3434
      %v3436 = vpop.f32.mrf.mxu0
      %v3437 = vadd.f32 %v3348, %v3436
      %3438 = vmatmul.bf16.gmra.mxu0 %v1558
      %v3439 = vpop.f32.mrf.mxu0
      %v3440 = vadd.f32 %v3351, %v3439
      %v3441 = vpop.f32.mrf.mxu0
      %v3442 = vadd.f32 %v3353, %v3441
      %3443 = vmatmul.bf16.gmra.mxu0 %v1570
      %v3444 = vpop.f32.mrf.mxu0
      %v3445 = vadd.f32 %v3356, %v3444
      %v3446 = vpop.f32.mrf.mxu0
      %v3447 = vadd.f32 %v3358, %v3446
      %3448 = vmatmul.bf16.gmra.mxu0 %v1582
      %v3449 = vpop.f32.mrf.mxu0
      %v3450 = vadd.f32 %v3361, %v3449
      %v3451 = vpop.f32.mrf.mxu0
      %v3452 = vadd.f32 %v3363, %v3451
      %3453 = vmatmul.bf16.gmra.mxu0 %v1594
      %v3454 = vpop.f32.mrf.mxu0
      %v3455 = vadd.f32 %v3366, %v3454
      %v3456 = vpop.f32.mrf.mxu0
      %v3457 = vadd.f32 %v3368, %v3456
      %3458 = vmatmul.bf16.gmra.mxu0 %v1606
      %v3459 = vpop.f32.mrf.mxu0
      %v3460 = vadd.f32 %v3371, %v3459
      %v3461 = vpop.f32.mrf.mxu0
      %v3462 = vadd.f32 %v3373, %v3461
      %3463 = vmatmul.bf16.gmra.mxu0 %v1618
      %v3464 = vpop.f32.mrf.mxu0
      %v3465 = vadd.f32 %v3376, %v3464
      %v3466 = vpop.f32.mrf.mxu0
      %v3467 = vadd.f32 %v3378, %v3466
      %3468 = vmatmul.bf16.gmra.mxu0 %v1630
      %v3469 = vpop.f32.mrf.mxu0
      %v3470 = vadd.f32 %v3381, %v3469
      %v3471 = vpop.f32.mrf.mxu0
      %v3472 = vadd.f32 %v3383, %v3471
      %3473 = vmatmul.bf16.gmra.mxu0 %v1642
      %v3474 = vpop.f32.mrf.mxu0
      %v3475 = vadd.f32 %v3386, %v3474
      %v3476 = vpop.f32.mrf.mxu0
      %v3477 = vadd.f32 %v3388, %v3476
      %3478 = vmatmul.bf16.gmra.mxu0 %v1654
      %v3479 = vpop.f32.mrf.mxu0
      %v3480 = vadd.f32 %v3391, %v3479
      %v3481 = vpop.f32.mrf.mxu0
      %v3482 = vadd.f32 %v3393, %v3481
      %3483 = vmatmul.bf16.gmra.mxu0 %v1666
      %v3484 = vpop.f32.mrf.mxu0
      %v3485 = vadd.f32 %v3396, %v3484
      %v3486 = vpop.f32.mrf.mxu0
      %v3487 = vadd.f32 %v3398, %v3486
      %3488 = vmatmul.bf16.gmra.mxu0 %v1678
      %v3489 = vpop.f32.mrf.mxu0
      %v3490 = vadd.f32 %v3401, %v3489
      %v3491 = vpop.f32.mrf.mxu0
      %v3492 = vadd.f32 %v3403, %v3491
      %3493 = vdwg.mxu0
      %3494 = vmatpush.bf16.msra.mxu0 %v3195
      %3495 = vmatpush.bf16.msra.mxu0 %v3194
      %3496 = vmatpush.bf16.msra.mxu0 %v3193
      %3497 = vmatpush.bf16.msra.mxu0 %v3192
      %3498 = vmatpush.bf16.msra.mxu0 %v3191
      %3499 = vmatpush.bf16.msra.mxu0 %v3190
      %3500 = vmatpush.bf16.msra.mxu0 %v3189
      %3501 = vmatpush.bf16.msra.mxu0 %v3188
      %3502 = vmatmul.bf16.gmra.mxu0 %v1746
      %v3503 = vpop.f32.mrf.mxu0
      %v3504 = vadd.f32 %v3415, %v3503
      %v3505 = vpop.f32.mrf.mxu0
      %v3506 = vadd.f32 %v3417, %v3505
      %3507 = vmatmul.bf16.gmra.mxu0 %v1749
      %v3508 = vpop.f32.mrf.mxu0
      %v3509 = vadd.f32 %v3420, %v3508
      %v3510 = vpop.f32.mrf.mxu0
      %v3511 = vadd.f32 %v3422, %v3510
      %3512 = vmatmul.bf16.gmra.mxu0 %v1752
      %v3513 = vpop.f32.mrf.mxu0
      %v3514 = vadd.f32 %v3425, %v3513
      %v3515 = vpop.f32.mrf.mxu0
      %v3516 = vadd.f32 %v3427, %v3515
      %3517 = vmatmul.bf16.gmra.mxu0 %v1755
      %v3518 = vpop.f32.mrf.mxu0
      %v3519 = vadd.f32 %v3430, %v3518
      %v3520 = vpop.f32.mrf.mxu0
      %v3521 = vadd.f32 %v3432, %v3520
      %3522 = vmatmul.bf16.gmra.mxu0 %v1758
      %v3523 = vpop.f32.mrf.mxu0
      %v3524 = vadd.f32 %v3435, %v3523
      %v3525 = vpop.f32.mrf.mxu0
      %v3526 = vadd.f32 %v3437, %v3525
      %3527 = vmatmul.bf16.gmra.mxu0 %v1761
      %v3528 = vpop.f32.mrf.mxu0
      %v3529 = vadd.f32 %v3440, %v3528
      %v3530 = vpop.f32.mrf.mxu0
      %v3531 = vadd.f32 %v3442, %v3530
      %3532 = vmatmul.bf16.gmra.mxu0 %v1764
      %v3533 = vpop.f32.mrf.mxu0
      %v3534 = vadd.f32 %v3445, %v3533
      %v3535 = vpop.f32.mrf.mxu0
      %v3536 = vadd.f32 %v3447, %v3535
      %3537 = vmatmul.bf16.gmra.mxu0 %v1767
      %v3538 = vpop.f32.mrf.mxu0
      %v3539 = vadd.f32 %v3450, %v3538
      %v3540 = vpop.f32.mrf.mxu0
      %v3541 = vadd.f32 %v3452, %v3540
      %3542 = vmatmul.bf16.gmra.mxu0 %v1770
      %v3543 = vpop.f32.mrf.mxu0
      %v3544 = vadd.f32 %v3455, %v3543
      %v3545 = vpop.f32.mrf.mxu0
      %v3546 = vadd.f32 %v3457, %v3545
      %3547 = vmatmul.bf16.gmra.mxu0 %v1773
      %v3548 = vpop.f32.mrf.mxu0
      %v3549 = vadd.f32 %v3460, %v3548
      %v3550 = vpop.f32.mrf.mxu0
      %v3551 = vadd.f32 %v3462, %v3550
      %3552 = vmatmul.bf16.gmra.mxu0 %v1776
      %v3553 = vpop.f32.mrf.mxu0
      %v3554 = vadd.f32 %v3465, %v3553
      %v3555 = vpop.f32.mrf.mxu0
      %v3556 = vadd.f32 %v3467, %v3555
      %3557 = vmatmul.bf16.gmra.mxu0 %v1779
      %v3558 = vpop.f32.mrf.mxu0
      %v3559 = vadd.f32 %v3470, %v3558
      %v3560 = vpop.f32.mrf.mxu0
      %v3561 = vadd.f32 %v3472, %v3560
      %3562 = vmatmul.bf16.gmra.mxu0 %v1782
      %v3563 = vpop.f32.mrf.mxu0
      %v3564 = vadd.f32 %v3475, %v3563
      %v3565 = vpop.f32.mrf.mxu0
      %v3566 = vadd.f32 %v3477, %v3565
      %3567 = vmatmul.bf16.gmra.mxu0 %v1785
      %v3568 = vpop.f32.mrf.mxu0
      %v3569 = vadd.f32 %v3480, %v3568
      %v3570 = vpop.f32.mrf.mxu0
      %v3571 = vadd.f32 %v3482, %v3570
      %3572 = vmatmul.bf16.gmra.mxu0 %v1788
      %v3573 = vpop.f32.mrf.mxu0
      %v3574 = vadd.f32 %v3485, %v3573
      %v3575 = vpop.f32.mrf.mxu0
      %v3576 = vadd.f32 %v3487, %v3575
      %3577 = vmatmul.bf16.gmra.mxu0 %v1791
      %v3578 = vpop.f32.mrf.mxu0
      %v3579 = vadd.f32 %v3490, %v3578
      %v3580 = vpop.f32.mrf.mxu0
      %v3581 = vadd.f32 %v3492, %v3580
      %3582 = vdwg.mxu0
      %3583 = vmatpush.bf16.msra.mxu0 %v3203
      %3584 = vmatpush.bf16.msra.mxu0 %v3202
      %3585 = vmatpush.bf16.msra.mxu0 %v3201
      %3586 = vmatpush.bf16.msra.mxu0 %v3200
      %3587 = vmatpush.bf16.msra.mxu0 %v3199
      %3588 = vmatpush.bf16.msra.mxu0 %v3198
      %3589 = vmatpush.bf16.msra.mxu0 %v3197
      %3590 = vmatpush.bf16.msra.mxu0 %v3196
      %3591 = vmatmul.bf16.gmra.mxu0 %v1872
      %v3592 = vpop.f32.mrf.mxu0
      %v3593 = vadd.f32 %v3504, %v3592
      %v3594 = vpop.f32.mrf.mxu0
      %v3595 = vadd.f32 %v3506, %v3594
      %3596 = vmatmul.bf16.gmra.mxu0 %v1873
      %v3597 = vpop.f32.mrf.mxu0
      %v3598 = vadd.f32 %v3509, %v3597
      %v3599 = vpop.f32.mrf.mxu0
      %v3600 = vadd.f32 %v3511, %v3599
      %3601 = vmatmul.bf16.gmra.mxu0 %v1874
      %v3602 = vpop.f32.mrf.mxu0
      %v3603 = vadd.f32 %v3514, %v3602
      %v3604 = vpop.f32.mrf.mxu0
      %v3605 = vadd.f32 %v3516, %v3604
      %3606 = vmatmul.bf16.gmra.mxu0 %v1875
      %v3607 = vpop.f32.mrf.mxu0
      %v3608 = vadd.f32 %v3519, %v3607
      %v3609 = vpop.f32.mrf.mxu0
      %v3610 = vadd.f32 %v3521, %v3609
      %3611 = vmatmul.bf16.gmra.mxu0 %v1876
      %v3612 = vpop.f32.mrf.mxu0
      %v3613 = vadd.f32 %v3524, %v3612
      %v3614 = vpop.f32.mrf.mxu0
      %v3615 = vadd.f32 %v3526, %v3614
      %3616 = vmatmul.bf16.gmra.mxu0 %v1877
      %v3617 = vpop.f32.mrf.mxu0
      %v3618 = vadd.f32 %v3529, %v3617
      %v3619 = vpop.f32.mrf.mxu0
      %v3620 = vadd.f32 %v3531, %v3619
      %3621 = vmatmul.bf16.gmra.mxu0 %v1878
      %v3622 = vpop.f32.mrf.mxu0
      %v3623 = vadd.f32 %v3534, %v3622
      %v3624 = vpop.f32.mrf.mxu0
      %v3625 = vadd.f32 %v3536, %v3624
      %3626 = vmatmul.bf16.gmra.mxu0 %v1879
      %v3627 = vpop.f32.mrf.mxu0
      %v3628 = vadd.f32 %v3539, %v3627
      %v3629 = vpop.f32.mrf.mxu0
      %v3630 = vadd.f32 %v3541, %v3629
      %3631 = vmatmul.bf16.gmra.mxu0 %v1880
      %v3632 = vpop.f32.mrf.mxu0
      %v3633 = vadd.f32 %v3544, %v3632
      %v3634 = vpop.f32.mrf.mxu0
      %v3635 = vadd.f32 %v3546, %v3634
      %3636 = vmatmul.bf16.gmra.mxu0 %v1881
      %v3637 = vpop.f32.mrf.mxu0
      %v3638 = vadd.f32 %v3549, %v3637
      %v3639 = vpop.f32.mrf.mxu0
      %v3640 = vadd.f32 %v3551, %v3639
      %3641 = vmatmul.bf16.gmra.mxu0 %v1882
      %v3642 = vpop.f32.mrf.mxu0
      %v3643 = vadd.f32 %v3554, %v3642
      %v3644 = vpop.f32.mrf.mxu0
      %v3645 = vadd.f32 %v3556, %v3644
      %3646 = vmatmul.bf16.gmra.mxu0 %v1883
      %v3647 = vpop.f32.mrf.mxu0
      %v3648 = vadd.f32 %v3559, %v3647
      %v3649 = vpop.f32.mrf.mxu0
      %v3650 = vadd.f32 %v3561, %v3649
      %3651 = vmatmul.bf16.gmra.mxu0 %v1884
      %v3652 = vpop.f32.mrf.mxu0
      %v3653 = vadd.f32 %v3564, %v3652
      %v3654 = vpop.f32.mrf.mxu0
      %v3655 = vadd.f32 %v3566, %v3654
      %3656 = vmatmul.bf16.gmra.mxu0 %v1885
      %v3657 = vpop.f32.mrf.mxu0
      %v3658 = vadd.f32 %v3569, %v3657
      %v3659 = vpop.f32.mrf.mxu0
      %v3660 = vadd.f32 %v3571, %v3659
      %3661 = vmatmul.bf16.gmra.mxu0 %v1886
      %v3662 = vpop.f32.mrf.mxu0
      %v3663 = vadd.f32 %v3574, %v3662
      %v3664 = vpop.f32.mrf.mxu0
      %v3665 = vadd.f32 %v3576, %v3664
      %3666 = vmatmul.bf16.gmra.mxu0 %v1887
      %v3667 = vpop.f32.mrf.mxu0
      %v3668 = vadd.f32 %v3579, %v3667
      %v3669 = vpop.f32.mrf.mxu0
      %v3670 = vadd.f32 %v3581, %v3669
      %3671 = vdwg.mxu0
      %3672 = vmatpush.bf16.msra.mxu0 %v3211
      %3673 = vmatpush.bf16.msra.mxu0 %v3210
      %3674 = vmatpush.bf16.msra.mxu0 %v3209
      %3675 = vmatpush.bf16.msra.mxu0 %v3208
      %3676 = vmatpush.bf16.msra.mxu0 %v3207
      %3677 = vmatpush.bf16.msra.mxu0 %v3206
      %3678 = vmatpush.bf16.msra.mxu0 %v3205
      %3679 = vmatpush.bf16.msra.mxu0 %v3204
      %3680 = vmatmul.bf16.gmra.mxu0 %v1963
      %v3681 = vpop.f32.mrf.mxu0
      %v3682 = vadd.f32 %v3593, %v3681
      %v3683 = vpop.f32.mrf.mxu0
      %v3684 = vadd.f32 %v3595, %v3683
      %3685 = vmatmul.bf16.gmra.mxu0 %v1975
      %v3686 = vpop.f32.mrf.mxu0
      %v3687 = vadd.f32 %v3598, %v3686
      %v3688 = vpop.f32.mrf.mxu0
      %v3689 = vadd.f32 %v3600, %v3688
      %3690 = vmatmul.bf16.gmra.mxu0 %v1987
      %v3691 = vpop.f32.mrf.mxu0
      %v3692 = vadd.f32 %v3603, %v3691
      %v3693 = vpop.f32.mrf.mxu0
      %v3694 = vadd.f32 %v3605, %v3693
      %3695 = vmatmul.bf16.gmra.mxu0 %v1999
      %v3696 = vpop.f32.mrf.mxu0
      %v3697 = vadd.f32 %v3608, %v3696
      %v3698 = vpop.f32.mrf.mxu0
      %v3699 = vadd.f32 %v3610, %v3698
      %3700 = vmatmul.bf16.gmra.mxu0 %v2011
      %v3701 = vpop.f32.mrf.mxu0
      %v3702 = vadd.f32 %v3613, %v3701
      %v3703 = vpop.f32.mrf.mxu0
      %v3704 = vadd.f32 %v3615, %v3703
      %3705 = vmatmul.bf16.gmra.mxu0 %v2023
      %v3706 = vpop.f32.mrf.mxu0
      %v3707 = vadd.f32 %v3618, %v3706
      %v3708 = vpop.f32.mrf.mxu0
      %v3709 = vadd.f32 %v3620, %v3708
      %3710 = vmatmul.bf16.gmra.mxu0 %v2035
      %v3711 = vpop.f32.mrf.mxu0
      %v3712 = vadd.f32 %v3623, %v3711
      %v3713 = vpop.f32.mrf.mxu0
      %v3714 = vadd.f32 %v3625, %v3713
      %3715 = vmatmul.bf16.gmra.mxu0 %v2047
      %v3716 = vpop.f32.mrf.mxu0
      %v3717 = vadd.f32 %v3628, %v3716
      %v3718 = vpop.f32.mrf.mxu0
      %v3719 = vadd.f32 %v3630, %v3718
      %3720 = vmatmul.bf16.gmra.mxu0 %v2059
      %v3721 = vpop.f32.mrf.mxu0
      %v3722 = vadd.f32 %v3633, %v3721
      %v3723 = vpop.f32.mrf.mxu0
      %v3724 = vadd.f32 %v3635, %v3723
      %3725 = vmatmul.bf16.gmra.mxu0 %v2071
      %v3726 = vpop.f32.mrf.mxu0
      %v3727 = vadd.f32 %v3638, %v3726
      %v3728 = vpop.f32.mrf.mxu0
      %v3729 = vadd.f32 %v3640, %v3728
      %3730 = vmatmul.bf16.gmra.mxu0 %v2083
      %v3731 = vpop.f32.mrf.mxu0
      %v3732 = vadd.f32 %v3643, %v3731
      %v3733 = vpop.f32.mrf.mxu0
      %v3734 = vadd.f32 %v3645, %v3733
      %3735 = vmatmul.bf16.gmra.mxu0 %v2095
      %v3736 = vpop.f32.mrf.mxu0
      %v3737 = vadd.f32 %v3648, %v3736
      %v3738 = vpop.f32.mrf.mxu0
      %v3739 = vadd.f32 %v3650, %v3738
      %3740 = vmatmul.bf16.gmra.mxu0 %v2107
      %v3741 = vpop.f32.mrf.mxu0
      %v3742 = vadd.f32 %v3653, %v3741
      %v3743 = vpop.f32.mrf.mxu0
      %v3744 = vadd.f32 %v3655, %v3743
      %3745 = vmatmul.bf16.gmra.mxu0 %v2119
      %v3746 = vpop.f32.mrf.mxu0
      %v3747 = vadd.f32 %v3658, %v3746
      %v3748 = vpop.f32.mrf.mxu0
      %v3749 = vadd.f32 %v3660, %v3748
      %3750 = vmatmul.bf16.gmra.mxu0 %v2131
      %v3751 = vpop.f32.mrf.mxu0
      %v3752 = vadd.f32 %v3663, %v3751
      %v3753 = vpop.f32.mrf.mxu0
      %v3754 = vadd.f32 %v3665, %v3753
      %3755 = vmatmul.bf16.gmra.mxu0 %v2143
      %v3756 = vpop.f32.mrf.mxu0
      %v3757 = vadd.f32 %v3668, %v3756
      %v3758 = vpop.f32.mrf.mxu0
      %v3759 = vadd.f32 %v3670, %v3758
      %3760 = vdwg.mxu0
      %3761 = vmatpush.bf16.msra.mxu0 %v3219
      %3762 = vmatpush.bf16.msra.mxu0 %v3218
      %3763 = vmatpush.bf16.msra.mxu0 %v3217
      %3764 = vmatpush.bf16.msra.mxu0 %v3216
      %3765 = vmatpush.bf16.msra.mxu0 %v3215
      %3766 = vmatpush.bf16.msra.mxu0 %v3214
      %3767 = vmatpush.bf16.msra.mxu0 %v3213
      %3768 = vmatpush.bf16.msra.mxu0 %v3212
      %3769 = vmatmul.bf16.gmra.mxu0 %v2210
      %v3770 = vpop.f32.mrf.mxu0
      %v3771 = vadd.f32 %v3682, %v3770
      %v3772 = vpop.f32.mrf.mxu0
      %v3773 = vadd.f32 %v3684, %v3772
      %3774 = vmatmul.bf16.gmra.mxu0 %v2213
      %v3775 = vpop.f32.mrf.mxu0
      %v3776 = vadd.f32 %v3687, %v3775
      %v3777 = vpop.f32.mrf.mxu0
      %v3778 = vadd.f32 %v3689, %v3777
      %3779 = vmatmul.bf16.gmra.mxu0 %v2216
      %v3780 = vpop.f32.mrf.mxu0
      %v3781 = vadd.f32 %v3692, %v3780
      %v3782 = vpop.f32.mrf.mxu0
      %v3783 = vadd.f32 %v3694, %v3782
      %3784 = vmatmul.bf16.gmra.mxu0 %v2219
      %v3785 = vpop.f32.mrf.mxu0
      %v3786 = vadd.f32 %v3697, %v3785
      %v3787 = vpop.f32.mrf.mxu0
      %v3788 = vadd.f32 %v3699, %v3787
      %3789 = vmatmul.bf16.gmra.mxu0 %v2222
      %v3790 = vpop.f32.mrf.mxu0
      %v3791 = vadd.f32 %v3702, %v3790
      %v3792 = vpop.f32.mrf.mxu0
      %v3793 = vadd.f32 %v3704, %v3792
      %3794 = vmatmul.bf16.gmra.mxu0 %v2225
      %v3795 = vpop.f32.mrf.mxu0
      %v3796 = vadd.f32 %v3707, %v3795
      %v3797 = vpop.f32.mrf.mxu0
      %v3798 = vadd.f32 %v3709, %v3797
      %3799 = vmatmul.bf16.gmra.mxu0 %v2228
      %v3800 = vpop.f32.mrf.mxu0
      %v3801 = vadd.f32 %v3712, %v3800
      %v3802 = vpop.f32.mrf.mxu0
      %v3803 = vadd.f32 %v3714, %v3802
      %3804 = vmatmul.bf16.gmra.mxu0 %v2231
      %v3805 = vpop.f32.mrf.mxu0
      %v3806 = vadd.f32 %v3717, %v3805
      %v3807 = vpop.f32.mrf.mxu0
      %v3808 = vadd.f32 %v3719, %v3807
      %3809 = vmatmul.bf16.gmra.mxu0 %v2234
      %v3810 = vpop.f32.mrf.mxu0
      %v3811 = vadd.f32 %v3722, %v3810
      %v3812 = vpop.f32.mrf.mxu0
      %v3813 = vadd.f32 %v3724, %v3812
      %3814 = vmatmul.bf16.gmra.mxu0 %v2237
      %v3815 = vpop.f32.mrf.mxu0
      %v3816 = vadd.f32 %v3727, %v3815
      %v3817 = vpop.f32.mrf.mxu0
      %v3818 = vadd.f32 %v3729, %v3817
      %3819 = vmatmul.bf16.gmra.mxu0 %v2240
      %v3820 = vpop.f32.mrf.mxu0
      %v3821 = vadd.f32 %v3732, %v3820
      %v3822 = vpop.f32.mrf.mxu0
      %v3823 = vadd.f32 %v3734, %v3822
      %3824 = vmatmul.bf16.gmra.mxu0 %v2243
      %v3825 = vpop.f32.mrf.mxu0
      %v3826 = vadd.f32 %v3737, %v3825
      %v3827 = vpop.f32.mrf.mxu0
      %v3828 = vadd.f32 %v3739, %v3827
      %3829 = vmatmul.bf16.gmra.mxu0 %v2246
      %v3830 = vpop.f32.mrf.mxu0
      %v3831 = vadd.f32 %v3742, %v3830
      %v3832 = vpop.f32.mrf.mxu0
      %v3833 = vadd.f32 %v3744, %v3832
      %3834 = vmatmul.bf16.gmra.mxu0 %v2249
      %v3835 = vpop.f32.mrf.mxu0
      %v3836 = vadd.f32 %v3747, %v3835
      %v3837 = vpop.f32.mrf.mxu0
      %v3838 = vadd.f32 %v3749, %v3837
      %3839 = vmatmul.bf16.gmra.mxu0 %v2252
      %v3840 = vpop.f32.mrf.mxu0
      %v3841 = vadd.f32 %v3752, %v3840
      %v3842 = vpop.f32.mrf.mxu0
      %v3843 = vadd.f32 %v3754, %v3842
      %3844 = vmatmul.bf16.gmra.mxu0 %v2255
      %v3845 = vpop.f32.mrf.mxu0
      %v3846 = vadd.f32 %v3757, %v3845
      %v3847 = vpop.f32.mrf.mxu0
      %v3848 = vadd.f32 %v3759, %v3847
      %3849 = vdwg.mxu0
      %3850 = vmatpush.bf16.msra.mxu0 %v3227
      %3851 = vmatpush.bf16.msra.mxu0 %v3226
      %3852 = vmatpush.bf16.msra.mxu0 %v3225
      %3853 = vmatpush.bf16.msra.mxu0 %v3224
      %3854 = vmatpush.bf16.msra.mxu0 %v3223
      %3855 = vmatpush.bf16.msra.mxu0 %v3222
      %3856 = vmatpush.bf16.msra.mxu0 %v3221
      %3857 = vmatpush.bf16.msra.mxu0 %v3220
      %3858 = vmatmul.bf16.gmra.mxu0 %v2336
      %v3859 = vpop.f32.mrf.mxu0
      %v3860 = vadd.f32 %v3771, %v3859
      %v3861 = vpop.f32.mrf.mxu0
      %v3862 = vadd.f32 %v3773, %v3861
      %3863 = vmatmul.bf16.gmra.mxu0 %v2337
      %v3864 = vpop.f32.mrf.mxu0
      %v3865 = vadd.f32 %v3776, %v3864
      %v3866 = vpop.f32.mrf.mxu0
      %v3867 = vadd.f32 %v3778, %v3866
      %3868 = vmatmul.bf16.gmra.mxu0 %v2338
      %v3869 = vpop.f32.mrf.mxu0
      %v3870 = vadd.f32 %v3781, %v3869
      %v3871 = vpop.f32.mrf.mxu0
      %v3872 = vadd.f32 %v3783, %v3871
      %3873 = vmatmul.bf16.gmra.mxu0 %v2339
      %v3874 = vpop.f32.mrf.mxu0
      %v3875 = vadd.f32 %v3786, %v3874
      %v3876 = vpop.f32.mrf.mxu0
      %v3877 = vadd.f32 %v3788, %v3876
      %3878 = vmatmul.bf16.gmra.mxu0 %v2340
      %v3879 = vpop.f32.mrf.mxu0
      %v3880 = vadd.f32 %v3791, %v3879
      %v3881 = vpop.f32.mrf.mxu0
      %v3882 = vadd.f32 %v3793, %v3881
      %3883 = vmatmul.bf16.gmra.mxu0 %v2341
      %v3884 = vpop.f32.mrf.mxu0
      %v3885 = vadd.f32 %v3796, %v3884
      %v3886 = vpop.f32.mrf.mxu0
      %v3887 = vadd.f32 %v3798, %v3886
      %3888 = vmatmul.bf16.gmra.mxu0 %v2342
      %v3889 = vpop.f32.mrf.mxu0
      %v3890 = vadd.f32 %v3801, %v3889
      %v3891 = vpop.f32.mrf.mxu0
      %v3892 = vadd.f32 %v3803, %v3891
      %3893 = vmatmul.bf16.gmra.mxu0 %v2343
      %v3894 = vpop.f32.mrf.mxu0
      %v3895 = vadd.f32 %v3806, %v3894
      %v3896 = vpop.f32.mrf.mxu0
      %v3897 = vadd.f32 %v3808, %v3896
      %3898 = vmatmul.bf16.gmra.mxu0 %v2344
      %v3899 = vpop.f32.mrf.mxu0
      %v3900 = vadd.f32 %v3811, %v3899
      %v3901 = vpop.f32.mrf.mxu0
      %v3902 = vadd.f32 %v3813, %v3901
      %3903 = vmatmul.bf16.gmra.mxu0 %v2345
      %v3904 = vpop.f32.mrf.mxu0
      %v3905 = vadd.f32 %v3816, %v3904
      %v3906 = vpop.f32.mrf.mxu0
      %v3907 = vadd.f32 %v3818, %v3906
      %3908 = vmatmul.bf16.gmra.mxu0 %v2346
      %v3909 = vpop.f32.mrf.mxu0
      %v3910 = vadd.f32 %v3821, %v3909
      %v3911 = vpop.f32.mrf.mxu0
      %v3912 = vadd.f32 %v3823, %v3911
      %3913 = vmatmul.bf16.gmra.mxu0 %v2347
      %v3914 = vpop.f32.mrf.mxu0
      %v3915 = vadd.f32 %v3826, %v3914
      %v3916 = vpop.f32.mrf.mxu0
      %v3917 = vadd.f32 %v3828, %v3916
      %3918 = vmatmul.bf16.gmra.mxu0 %v2348
      %v3919 = vpop.f32.mrf.mxu0
      %v3920 = vadd.f32 %v3831, %v3919
      %v3921 = vpop.f32.mrf.mxu0
      %v3922 = vadd.f32 %v3833, %v3921
      %3923 = vmatmul.bf16.gmra.mxu0 %v2349
      %v3924 = vpop.f32.mrf.mxu0
      %v3925 = vadd.f32 %v3836, %v3924
      %v3926 = vpop.f32.mrf.mxu0
      %v3927 = vadd.f32 %v3838, %v3926
      %3928 = vmatmul.bf16.gmra.mxu0 %v2350
      %v3929 = vpop.f32.mrf.mxu0
      %v3930 = vadd.f32 %v3841, %v3929
      %v3931 = vpop.f32.mrf.mxu0
      %v3932 = vadd.f32 %v3843, %v3931
      %3933 = vmatmul.bf16.gmra.mxu0 %v2351
      %v3934 = vpop.f32.mrf.mxu0
      %v3935 = vadd.f32 %v3846, %v3934
      %v3936 = vpop.f32.mrf.mxu0
      %v3937 = vadd.f32 %v3848, %v3936
      %3938 = vdwg.mxu0
      %3939 = vmatpush.bf16.msra.mxu0 %v3235
      %3940 = vmatpush.bf16.msra.mxu0 %v3234
      %3941 = vmatpush.bf16.msra.mxu0 %v3233
      %3942 = vmatpush.bf16.msra.mxu0 %v3232
      %3943 = vmatpush.bf16.msra.mxu0 %v3231
      %3944 = vmatpush.bf16.msra.mxu0 %v3230
      %3945 = vmatpush.bf16.msra.mxu0 %v3229
      %3946 = vmatpush.bf16.msra.mxu0 %v3228
      %3947 = vmatmul.bf16.gmra.mxu0 %v2427
      %v3948 = vpop.f32.mrf.mxu0
      %v3949 = vadd.f32 %v3860, %v3948
      %v3950 = vpop.f32.mrf.mxu0
      %v3951 = vadd.f32 %v3862, %v3950
      %3952 = vmatmul.bf16.gmra.mxu0 %v2439
      %v3953 = vpop.f32.mrf.mxu0
      %v3954 = vadd.f32 %v3865, %v3953
      %v3955 = vpop.f32.mrf.mxu0
      %v3956 = vadd.f32 %v3867, %v3955
      %3957 = vmatmul.bf16.gmra.mxu0 %v2451
      %v3958 = vpop.f32.mrf.mxu0
      %v3959 = vadd.f32 %v3870, %v3958
      %v3960 = vpop.f32.mrf.mxu0
      %v3961 = vadd.f32 %v3872, %v3960
      %3962 = vmatmul.bf16.gmra.mxu0 %v2463
      %v3963 = vpop.f32.mrf.mxu0
      %v3964 = vadd.f32 %v3875, %v3963
      %v3965 = vpop.f32.mrf.mxu0
      %v3966 = vadd.f32 %v3877, %v3965
      %3967 = vmatmul.bf16.gmra.mxu0 %v2475
      %v3968 = vpop.f32.mrf.mxu0
      %v3969 = vadd.f32 %v3880, %v3968
      %v3970 = vpop.f32.mrf.mxu0
      %v3971 = vadd.f32 %v3882, %v3970
      %3972 = vmatmul.bf16.gmra.mxu0 %v2487
      %v3973 = vpop.f32.mrf.mxu0
      %v3974 = vadd.f32 %v3885, %v3973
      %v3975 = vpop.f32.mrf.mxu0
      %v3976 = vadd.f32 %v3887, %v3975
      %3977 = vmatmul.bf16.gmra.mxu0 %v2499
      %v3978 = vpop.f32.mrf.mxu0
      %v3979 = vadd.f32 %v3890, %v3978
      %v3980 = vpop.f32.mrf.mxu0
      %v3981 = vadd.f32 %v3892, %v3980
      %3982 = vmatmul.bf16.gmra.mxu0 %v2511
      %v3983 = vpop.f32.mrf.mxu0
      %v3984 = vadd.f32 %v3895, %v3983
      %v3985 = vpop.f32.mrf.mxu0
      %v3986 = vadd.f32 %v3897, %v3985
      %3987 = vmatmul.bf16.gmra.mxu0 %v2523
      %v3988 = vpop.f32.mrf.mxu0
      %v3989 = vadd.f32 %v3900, %v3988
      %v3990 = vpop.f32.mrf.mxu0
      %v3991 = vadd.f32 %v3902, %v3990
      %3992 = vmatmul.bf16.gmra.mxu0 %v2535
      %v3993 = vpop.f32.mrf.mxu0
      %v3994 = vadd.f32 %v3905, %v3993
      %v3995 = vpop.f32.mrf.mxu0
      %v3996 = vadd.f32 %v3907, %v3995
      %3997 = vmatmul.bf16.gmra.mxu0 %v2547
      %v3998 = vpop.f32.mrf.mxu0
      %v3999 = vadd.f32 %v3910, %v3998
      %v4000 = vpop.f32.mrf.mxu0
      %v4001 = vadd.f32 %v3912, %v4000
      %4002 = vmatmul.bf16.gmra.mxu0 %v2559
      %v4003 = vpop.f32.mrf.mxu0
      %v4004 = vadd.f32 %v3915, %v4003
      %v4005 = vpop.f32.mrf.mxu0
      %v4006 = vadd.f32 %v3917, %v4005
      %4007 = vmatmul.bf16.gmra.mxu0 %v2571
      %v4008 = vpop.f32.mrf.mxu0
      %v4009 = vadd.f32 %v3920, %v4008
      %v4010 = vpop.f32.mrf.mxu0
      %v4011 = vadd.f32 %v3922, %v4010
      %4012 = vmatmul.bf16.gmra.mxu0 %v2583
      %v4013 = vpop.f32.mrf.mxu0
      %v4014 = vadd.f32 %v3925, %v4013
      %v4015 = vpop.f32.mrf.mxu0
      %v4016 = vadd.f32 %v3927, %v4015
      %4017 = vmatmul.bf16.gmra.mxu0 %v2595
      %v4018 = vpop.f32.mrf.mxu0
      %v4019 = vadd.f32 %v3930, %v4018
      %v4020 = vpop.f32.mrf.mxu0
      %v4021 = vadd.f32 %v3932, %v4020
      %4022 = vmatmul.bf16.gmra.mxu0 %v2607
      %v4023 = vpop.f32.mrf.mxu0
      %v4024 = vadd.f32 %v3935, %v4023
      %v4025 = vpop.f32.mrf.mxu0
      %v4026 = vadd.f32 %v3937, %v4025
      %4027 = vdwg.mxu0
      %4028 = vmatpush.bf16.msra.mxu0 %v3243
      %4029 = vmatpush.bf16.msra.mxu0 %v3242
      %4030 = vmatpush.bf16.msra.mxu0 %v3241
      %4031 = vmatpush.bf16.msra.mxu0 %v3240
      %4032 = vmatpush.bf16.msra.mxu0 %v3239
      %4033 = vmatpush.bf16.msra.mxu0 %v3238
      %4034 = vmatpush.bf16.msra.mxu0 %v3237
      %4035 = vmatpush.bf16.msra.mxu0 %v3236
      %4036 = vmatmul.bf16.gmra.mxu0 %v2674
      %v4037 = vpop.f32.mrf.mxu0
      %v4038 = vadd.f32 %v3949, %v4037
      %v4039 = vpop.f32.mrf.mxu0
      %v4040 = vadd.f32 %v3951, %v4039
      %4041 = vmatmul.bf16.gmra.mxu0 %v2677
      %v4042 = vpop.f32.mrf.mxu0
      %v4043 = vadd.f32 %v3954, %v4042
      %v4044 = vpop.f32.mrf.mxu0
      %v4045 = vadd.f32 %v3956, %v4044
      %4046 = vmatmul.bf16.gmra.mxu0 %v2680
      %v4047 = vpop.f32.mrf.mxu0
      %v4048 = vadd.f32 %v3959, %v4047
      %v4049 = vpop.f32.mrf.mxu0
      %v4050 = vadd.f32 %v3961, %v4049
      %4051 = vmatmul.bf16.gmra.mxu0 %v2683
      %v4052 = vpop.f32.mrf.mxu0
      %v4053 = vadd.f32 %v3964, %v4052
      %v4054 = vpop.f32.mrf.mxu0
      %v4055 = vadd.f32 %v3966, %v4054
      %4056 = vmatmul.bf16.gmra.mxu0 %v2686
      %v4057 = vpop.f32.mrf.mxu0
      %v4058 = vadd.f32 %v3969, %v4057
      %v4059 = vpop.f32.mrf.mxu0
      %v4060 = vadd.f32 %v3971, %v4059
      %4061 = vmatmul.bf16.gmra.mxu0 %v2689
      %v4062 = vpop.f32.mrf.mxu0
      %v4063 = vadd.f32 %v3974, %v4062
      %v4064 = vpop.f32.mrf.mxu0
      %v4065 = vadd.f32 %v3976, %v4064
      %4066 = vmatmul.bf16.gmra.mxu0 %v2692
      %v4067 = vpop.f32.mrf.mxu0
      %v4068 = vadd.f32 %v3979, %v4067
      %v4069 = vpop.f32.mrf.mxu0
      %v4070 = vadd.f32 %v3981, %v4069
      %4071 = vmatmul.bf16.gmra.mxu0 %v2695
      %v4072 = vpop.f32.mrf.mxu0
      %v4073 = vadd.f32 %v3984, %v4072
      %v4074 = vpop.f32.mrf.mxu0
      %v4075 = vadd.f32 %v3986, %v4074
      %4076 = vmatmul.bf16.gmra.mxu0 %v2698
      %v4077 = vpop.f32.mrf.mxu0
      %v4078 = vadd.f32 %v3989, %v4077
      %v4079 = vpop.f32.mrf.mxu0
      %v4080 = vadd.f32 %v3991, %v4079
      %4081 = vmatmul.bf16.gmra.mxu0 %v2701
      %v4082 = vpop.f32.mrf.mxu0
      %v4083 = vadd.f32 %v3994, %v4082
      %v4084 = vpop.f32.mrf.mxu0
      %v4085 = vadd.f32 %v3996, %v4084
      %4086 = vmatmul.bf16.gmra.mxu0 %v2704
      %v4087 = vpop.f32.mrf.mxu0
      %v4088 = vadd.f32 %v3999, %v4087
      %v4089 = vpop.f32.mrf.mxu0
      %v4090 = vadd.f32 %v4001, %v4089
      %4091 = vmatmul.bf16.gmra.mxu0 %v2707
      %v4092 = vpop.f32.mrf.mxu0
      %v4093 = vadd.f32 %v4004, %v4092
      %v4094 = vpop.f32.mrf.mxu0
      %v4095 = vadd.f32 %v4006, %v4094
      %4096 = vmatmul.bf16.gmra.mxu0 %v2710
      %v4097 = vpop.f32.mrf.mxu0
      %v4098 = vadd.f32 %v4009, %v4097
      %v4099 = vpop.f32.mrf.mxu0
      %v4100 = vadd.f32 %v4011, %v4099
      %4101 = vmatmul.bf16.gmra.mxu0 %v2713
      %v4102 = vpop.f32.mrf.mxu0
      %v4103 = vadd.f32 %v4014, %v4102
      %v4104 = vpop.f32.mrf.mxu0
      %v4105 = vadd.f32 %v4016, %v4104
      %4106 = vmatmul.bf16.gmra.mxu0 %v2716
      %v4107 = vpop.f32.mrf.mxu0
      %v4108 = vadd.f32 %v4019, %v4107
      %v4109 = vpop.f32.mrf.mxu0
      %v4110 = vadd.f32 %v4021, %v4109
      %4111 = vmatmul.bf16.gmra.mxu0 %v2719
      %v4112 = vpop.f32.mrf.mxu0
      %v4113 = vadd.f32 %v4024, %v4112
      %v4114 = vpop.f32.mrf.mxu0
      %v4115 = vadd.f32 %v4026, %v4114
      %4116 = vdwg.mxu0
      %v4117 = vmax.f32 %v4038, 0.0
      %v4118 = vmax.f32 %v4040, 0.0
      %v4119 = vmax.f32 %v4043, 0.0
      %v4120 = vmax.f32 %v4045, 0.0
      %v4121 = vmax.f32 %v4048, 0.0
      %v4122 = vmax.f32 %v4050, 0.0
      %v4123 = vmax.f32 %v4053, 0.0
      %v4124 = vmax.f32 %v4055, 0.0
      %v4125 = vmax.f32 %v4058, 0.0
      %v4126 = vmax.f32 %v4060, 0.0
      %v4127 = vmax.f32 %v4063, 0.0
      %v4128 = vmax.f32 %v4065, 0.0
      %v4129 = vmax.f32 %v4068, 0.0
      %v4130 = vmax.f32 %v4070, 0.0
      %v4131 = vmax.f32 %v4073, 0.0
      %v4132 = vmax.f32 %v4075, 0.0
      %v4133 = vmax.f32 %v4078, 0.0
      %v4134 = vmax.f32 %v4080, 0.0
      %v4135 = vmax.f32 %v4083, 0.0
      %v4136 = vmax.f32 %v4085, 0.0
      %v4137 = vmax.f32 %v4088, 0.0
      %v4138 = vmax.f32 %v4090, 0.0
      %v4139 = vmax.f32 %v4093, 0.0
      %v4140 = vmax.f32 %v4095, 0.0
      %v4141 = vmax.f32 %v4098, 0.0
      %v4142 = vmax.f32 %v4100, 0.0
      %v4143 = vmax.f32 %v4103, 0.0
      %v4144 = vmax.f32 %v4105, 0.0
      %v4145 = vmax.f32 %v4108, 0.0
      %v4146 = vmax.f32 %v4110, 0.0
      %v4147 = vmax.f32 %v4113, 0.0
      %v4148 = vmax.f32 %v4115, 0.0
      %4149 = vst [vmem:[#allocation3] sm:$0xff] %v4117
      %4150 = vst [vmem:[#allocation3 + $0x8] sm:$0xff] %v4118
      %4151 = vst [vmem:[#allocation3 + $0x10] sm:$0xff] %v4119
      %4152 = vst [vmem:[#allocation3 + $0x18] sm:$0xff] %v4120
      %4153 = vst [vmem:[#allocation3 + $0x20] sm:$0xff] %v4121
      %4154 = vst [vmem:[#allocation3 + $0x28] sm:$0xff] %v4122
      %4155 = vst [vmem:[#allocation3 + $0x30] sm:$0xff] %v4123
      %4156 = vst [vmem:[#allocation3 + $0x38] sm:$0xff] %v4124
      %4157 = vst [vmem:[#allocation3 + $0x40] sm:$0xff] %v4125
      %4158 = vst [vmem:[#allocation3 + $0x48] sm:$0xff] %v4126
      %4159 = vst [vmem:[#allocation3 + $0x50] sm:$0xff] %v4127
      %4160 = vst [vmem:[#allocation3 + $0x58] sm:$0xff] %v4128
      %4161 = vst [vmem:[#allocation3 + $0x60] sm:$0xff] %v4129
      %4162 = vst [vmem:[#allocation3 + $0x68] sm:$0xff] %v4130
      %4163 = vst [vmem:[#allocation3 + $0x70] sm:$0xff] %v4131
      %4164 = vst [vmem:[#allocation3 + $0x78] sm:$0xff] %v4132
      %4165 = vst [vmem:[#allocation3 + $0x80] sm:$0xff] %v4133
      %4166 = vst [vmem:[#allocation3 + $0x88] sm:$0xff] %v4134
      %4167 = vst [vmem:[#allocation3 + $0x90] sm:$0xff] %v4135
      %4168 = vst [vmem:[#allocation3 + $0x98] sm:$0xff] %v4136
      %4169 = vst [vmem:[#allocation3 + $0xa0] sm:$0xff] %v4137
      %4170 = vst [vmem:[#allocation3 + $0xa8] sm:$0xff] %v4138
      %4171 = vst [vmem:[#allocation3 + $0xb0] sm:$0xff] %v4139
      %4172 = vst [vmem:[#allocation3 + $0xb8] sm:$0xff] %v4140
      %4173 = vst [vmem:[#allocation3 + $0xc0] sm:$0xff] %v4141
      %4174 = vst [vmem:[#allocation3 + $0xc8] sm:$0xff] %v4142
      %4175 = vst [vmem:[#allocation3 + $0xd0] sm:$0xff] %v4143
      %4176 = vst [vmem:[#allocation3 + $0xd8] sm:$0xff] %v4144
      %4177 = vst [vmem:[#allocation3 + $0xe0] sm:$0xff] %v4145
      %4178 = vst [vmem:[#allocation3 + $0xe8] sm:$0xff] %v4146
      %4179 = vst [vmem:[#allocation3 + $0xf0] sm:$0xff] %v4147
      %4180 = vst [vmem:[#allocation3 + $0xf8] sm:$0xff] %v4148
      %v4181 = vld [vmem:[#allocation3] sm:$0xff]
      %v4182 = vld [vmem:[#allocation3 + $0x8] sm:$0xff]
      %v4183 = vld [vmem:[#allocation3 + $0x10] sm:$0xff]
      %v4184 = vld [vmem:[#allocation3 + $0x18] sm:$0xff]
      %v4185 = vld [vmem:[#allocation3 + $0x20] sm:$0xff]
      %v4186 = vld [vmem:[#allocation3 + $0x28] sm:$0xff]
      %v4187 = vld [vmem:[#allocation3 + $0x30] sm:$0xff]
      %v4188 = vld [vmem:[#allocation3 + $0x38] sm:$0xff]
      %v4189 = vld [vmem:[#allocation3 + $0x40] sm:$0xff]
      %v4190 = vld [vmem:[#allocation3 + $0x48] sm:$0xff]
      %v4191 = vld [vmem:[#allocation3 + $0x50] sm:$0xff]
      %v4192 = vld [vmem:[#allocation3 + $0x58] sm:$0xff]
      %v4193 = vld [vmem:[#allocation3 + $0x60] sm:$0xff]
      %v4194 = vld [vmem:[#allocation3 + $0x68] sm:$0xff]
      %v4195 = vld [vmem:[#allocation3 + $0x70] sm:$0xff]
      %v4196 = vld [vmem:[#allocation3 + $0x78] sm:$0xff]
      %v4197 = vld [vmem:[#allocation3 + $0x80] sm:$0xff]
      %v4198 = vld [vmem:[#allocation3 + $0x88] sm:$0xff]
      %v4199 = vld [vmem:[#allocation3 + $0x90] sm:$0xff]
      %v4200 = vld [vmem:[#allocation3 + $0x98] sm:$0xff]
      %v4201 = vld [vmem:[#allocation3 + $0xa0] sm:$0xff]
      %v4202 = vld [vmem:[#allocation3 + $0xa8] sm:$0xff]
      %v4203 = vld [vmem:[#allocation3 + $0xb0] sm:$0xff]
      %v4204 = vld [vmem:[#allocation3 + $0xb8] sm:$0xff]
      %v4205 = vld [vmem:[#allocation3 + $0xc0] sm:$0xff]
      %v4206 = vld [vmem:[#allocation3 + $0xc8] sm:$0xff]
      %v4207 = vld [vmem:[#allocation3 + $0xd0] sm:$0xff]
      %v4208 = vld [vmem:[#allocation3 + $0xd8] sm:$0xff]
      %v4209 = vld [vmem:[#allocation3 + $0xe0] sm:$0xff]
      %v4210 = vld [vmem:[#allocation3 + $0xe8] sm:$0xff]
      %v4211 = vld [vmem:[#allocation3 + $0xf0] sm:$0xff]
      %v4212 = vld [vmem:[#allocation3 + $0xf8] sm:$0xff]
      %v4213 = vpack.c.bf16 %v4181, %v4181
      %v4214 = vpack.c.bf16 %v4182, %v4182
      %v4215 = vpack.c.bf16 %v4183, %v4183
      %v4216 = vpack.c.bf16 %v4184, %v4184
      %v4217 = vpack.c.bf16 %v4185, %v4185
      %v4218 = vpack.c.bf16 %v4186, %v4186
      %v4219 = vpack.c.bf16 %v4187, %v4187
      %v4220 = vpack.c.bf16 %v4188, %v4188
      %v4221 = vpack.c.bf16 %v4189, %v4189
      %v4222 = vpack.c.bf16 %v4190, %v4190
      %v4223 = vpack.c.bf16 %v4191, %v4191
      %v4224 = vpack.c.bf16 %v4192, %v4192
      %v4225 = vpack.c.bf16 %v4193, %v4193
      %v4226 = vpack.c.bf16 %v4194, %v4194
      %v4227 = vpack.c.bf16 %v4195, %v4195
      %v4228 = vpack.c.bf16 %v4196, %v4196
      %v4229 = vpack.c.bf16 %v4197, %v4197
      %v4230 = vpack.c.bf16 %v4198, %v4198
      %v4231 = vpack.c.bf16 %v4199, %v4199
      %v4232 = vpack.c.bf16 %v4200, %v4200
      %v4233 = vpack.c.bf16 %v4201, %v4201
      %v4234 = vpack.c.bf16 %v4202, %v4202
      %v4235 = vpack.c.bf16 %v4203, %v4203
      %v4236 = vpack.c.bf16 %v4204, %v4204
      %v4237 = vpack.c.bf16 %v4205, %v4205
      %v4238 = vpack.c.bf16 %v4206, %v4206
      %v4239 = vpack.c.bf16 %v4207, %v4207
      %v4240 = vpack.c.bf16 %v4208, %v4208
      %v4241 = vpack.c.bf16 %v4209, %v4209
      %v4242 = vpack.c.bf16 %v4210, %v4210
      %v4243 = vpack.c.bf16 %v4211, %v4211
      %v4244 = vpack.c.bf16 %v4212, %v4212
      %v4246 = vshrl.u32 %v4213, 16
      %v4248 = vrot.slane %v4246, 7
      %v4249 = vshll.u32 %v4213, 16
      %v4251 = vor.u32 %v4248, %v4249
      %v4252 = vrot.slane %v4248, 4
      %v4254 = vshrl.u32 %v4214, 16
      %v4256 = vrot.slane %v4254, 7
      %v4257 = vshll.u32 %v4214, 16
      %v4259 = vor.u32 %v4256, %v4257
      %v4260 = vsel %vm713, %v4252, %v4259
      %v4261 = vrot.slane %v4256, 4
      %v4263 = vshrl.u32 %v4215, 16
      %v4265 = vrot.slane %v4263, 7
      %v4266 = vshll.u32 %v4215, 16
      %v4268 = vor.u32 %v4265, %v4266
      %v4269 = vrot.slane %v4265, 4
      %v4271 = vshrl.u32 %v4216, 16
      %v4273 = vrot.slane %v4271, 7
      %v4274 = vshll.u32 %v4216, 16
      %v4276 = vor.u32 %v4273, %v4274
      %v4277 = vsel %vm713, %v4269, %v4276
      %v4278 = vrot.slane %v4273, 4
      %v4280 = vshrl.u32 %v4217, 16
      %v4282 = vrot.slane %v4280, 7
      %v4283 = vshll.u32 %v4217, 16
      %v4285 = vor.u32 %v4282, %v4283
      %v4286 = vrot.slane %v4282, 4
      %v4288 = vshrl.u32 %v4218, 16
      %v4290 = vrot.slane %v4288, 7
      %v4291 = vshll.u32 %v4218, 16
      %v4293 = vor.u32 %v4290, %v4291
      %v4294 = vsel %vm713, %v4286, %v4293
      %v4295 = vrot.slane %v4290, 4
      %v4297 = vshrl.u32 %v4219, 16
      %v4299 = vrot.slane %v4297, 7
      %v4300 = vshll.u32 %v4219, 16
      %v4302 = vor.u32 %v4299, %v4300
      %v4303 = vrot.slane %v4299, 4
      %v4305 = vshrl.u32 %v4220, 16
      %v4307 = vrot.slane %v4305, 7
      %v4308 = vshll.u32 %v4220, 16
      %v4310 = vor.u32 %v4307, %v4308
      %v4311 = vsel %vm713, %v4303, %v4310
      %v4312 = vrot.slane %v4307, 4
      %v4314 = vshrl.u32 %v4221, 16
      %v4316 = vrot.slane %v4314, 7
      %v4317 = vshll.u32 %v4221, 16
      %v4319 = vor.u32 %v4316, %v4317
      %v4320 = vrot.slane %v4316, 4
      %v4322 = vshrl.u32 %v4222, 16
      %v4324 = vrot.slane %v4322, 7
      %v4325 = vshll.u32 %v4222, 16
      %v4327 = vor.u32 %v4324, %v4325
      %v4328 = vsel %vm713, %v4320, %v4327
      %v4329 = vrot.slane %v4324, 4
      %v4331 = vshrl.u32 %v4223, 16
      %v4333 = vrot.slane %v4331, 7
      %v4334 = vshll.u32 %v4223, 16
      %v4336 = vor.u32 %v4333, %v4334
      %v4337 = vrot.slane %v4333, 4
      %v4339 = vshrl.u32 %v4224, 16
      %v4341 = vrot.slane %v4339, 7
      %v4342 = vshll.u32 %v4224, 16
      %v4344 = vor.u32 %v4341, %v4342
      %v4345 = vsel %vm713, %v4337, %v4344
      %v4346 = vrot.slane %v4341, 4
      %v4348 = vshrl.u32 %v4225, 16
      %v4350 = vrot.slane %v4348, 7
      %v4351 = vshll.u32 %v4225, 16
      %v4353 = vor.u32 %v4350, %v4351
      %v4354 = vrot.slane %v4350, 4
      %v4356 = vshrl.u32 %v4226, 16
      %v4358 = vrot.slane %v4356, 7
      %v4359 = vshll.u32 %v4226, 16
      %v4361 = vor.u32 %v4358, %v4359
      %v4362 = vsel %vm713, %v4354, %v4361
      %v4363 = vrot.slane %v4358, 4
      %v4365 = vshrl.u32 %v4227, 16
      %v4367 = vrot.slane %v4365, 7
      %v4368 = vshll.u32 %v4227, 16
      %v4370 = vor.u32 %v4367, %v4368
      %v4371 = vrot.slane %v4367, 4
      %v4373 = vshrl.u32 %v4228, 16
      %v4375 = vrot.slane %v4373, 7
      %v4376 = vshll.u32 %v4228, 16
      %v4378 = vor.u32 %v4375, %v4376
      %v4379 = vsel %vm713, %v4371, %v4378
      %v4380 = vrot.slane %v4375, 4
      %v4382 = vshrl.u32 %v4229, 16
      %v4384 = vrot.slane %v4382, 7
      %v4385 = vshll.u32 %v4229, 16
      %v4387 = vor.u32 %v4384, %v4385
      %v4388 = vrot.slane %v4384, 4
      %v4390 = vshrl.u32 %v4230, 16
      %v4392 = vrot.slane %v4390, 7
      %v4393 = vshll.u32 %v4230, 16
      %v4395 = vor.u32 %v4392, %v4393
      %v4396 = vsel %vm713, %v4388, %v4395
      %v4397 = vrot.slane %v4392, 4
      %v4399 = vshrl.u32 %v4231, 16
      %v4401 = vrot.slane %v4399, 7
      %v4402 = vshll.u32 %v4231, 16
      %v4404 = vor.u32 %v4401, %v4402
      %v4405 = vrot.slane %v4401, 4
      %v4407 = vshrl.u32 %v4232, 16
      %v4409 = vrot.slane %v4407, 7
      %v4410 = vshll.u32 %v4232, 16
      %v4412 = vor.u32 %v4409, %v4410
      %v4413 = vsel %vm713, %v4405, %v4412
      %v4414 = vrot.slane %v4409, 4
      %v4416 = vshrl.u32 %v4233, 16
      %v4418 = vrot.slane %v4416, 7
      %v4419 = vshll.u32 %v4233, 16
      %v4421 = vor.u32 %v4418, %v4419
      %v4422 = vrot.slane %v4418, 4
      %v4424 = vshrl.u32 %v4234, 16
      %v4426 = vrot.slane %v4424, 7
      %v4427 = vshll.u32 %v4234, 16
      %v4429 = vor.u32 %v4426, %v4427
      %v4430 = vsel %vm713, %v4422, %v4429
      %v4431 = vrot.slane %v4426, 4
      %v4433 = vshrl.u32 %v4235, 16
      %v4435 = vrot.slane %v4433, 7
      %v4436 = vshll.u32 %v4235, 16
      %v4438 = vor.u32 %v4435, %v4436
      %v4439 = vrot.slane %v4435, 4
      %v4441 = vshrl.u32 %v4236, 16
      %v4443 = vrot.slane %v4441, 7
      %v4444 = vshll.u32 %v4236, 16
      %v4446 = vor.u32 %v4443, %v4444
      %v4447 = vsel %vm713, %v4439, %v4446
      %v4448 = vrot.slane %v4443, 4
      %v4450 = vshrl.u32 %v4237, 16
      %v4452 = vrot.slane %v4450, 7
      %v4453 = vshll.u32 %v4237, 16
      %v4455 = vor.u32 %v4452, %v4453
      %v4456 = vrot.slane %v4452, 4
      %v4458 = vshrl.u32 %v4238, 16
      %v4460 = vrot.slane %v4458, 7
      %v4461 = vshll.u32 %v4238, 16
      %v4463 = vor.u32 %v4460, %v4461
      %v4464 = vsel %vm713, %v4456, %v4463
      %v4465 = vrot.slane %v4460, 4
      %v4467 = vshrl.u32 %v4239, 16
      %v4469 = vrot.slane %v4467, 7
      %v4470 = vshll.u32 %v4239, 16
      %v4472 = vor.u32 %v4469, %v4470
      %v4473 = vrot.slane %v4469, 4
      %v4475 = vshrl.u32 %v4240, 16
      %v4477 = vrot.slane %v4475, 7
      %v4478 = vshll.u32 %v4240, 16
      %v4480 = vor.u32 %v4477, %v4478
      %v4481 = vsel %vm713, %v4473, %v4480
      %v4482 = vrot.slane %v4477, 4
      %v4484 = vshrl.u32 %v4241, 16
      %v4486 = vrot.slane %v4484, 7
      %v4487 = vshll.u32 %v4241, 16
      %v4489 = vor.u32 %v4486, %v4487
      %v4490 = vrot.slane %v4486, 4
      %v4492 = vshrl.u32 %v4242, 16
      %v4494 = vrot.slane %v4492, 7
      %v4495 = vshll.u32 %v4242, 16
      %v4497 = vor.u32 %v4494, %v4495
      %v4498 = vsel %vm713, %v4490, %v4497
      %v4499 = vrot.slane %v4494, 4
      %v4501 = vshrl.u32 %v4243, 16
      %v4503 = vrot.slane %v4501, 7
      %v4504 = vshll.u32 %v4243, 16
      %v4506 = vor.u32 %v4503, %v4504
      %v4507 = vrot.slane %v4503, 4
      %v4509 = vshrl.u32 %v4244, 16
      %v4511 = vrot.slane %v4509, 7
      %v4512 = vshll.u32 %v4244, 16
      %v4514 = vor.u32 %v4511, %v4512
      %v4515 = vsel %vm713, %v4507, %v4514
      %v4516 = vrot.slane %v4511, 4
      %v4565 = vld [vmem:[%s1034] sm:$0xf]
      %v4566 = vsel %vm1036, %v4251, %v4565
      %4567 = vst [vmem:[%s1034] sm:$0xf] %v4566
      %4568 = vst [vmem:[%s1034 + $0x4] sm:$0xf] %v4260
      %v4569 = vld [vmem:[%s1034 + $0x8] sm:$0x1]
      %v4570 = vsel %vm343, %v4261, %v4569
      %4571 = vst [vmem:[%s1034 + $0x8] sm:$0x1] %v4570
      %v4572 = vld [vmem:[%s1034 + $0xc] sm:$0xf]
      %v4573 = vsel %vm1036, %v4268, %v4572
      %4574 = vst [vmem:[%s1034 + $0xc] sm:$0xf] %v4573
      %4575 = vst [vmem:[%s1034 + $0x10] sm:$0xf] %v4277
      %v4576 = vld [vmem:[%s1034 + $0x14] sm:$0x1]
      %v4577 = vsel %vm343, %v4278, %v4576
      %4578 = vst [vmem:[%s1034 + $0x14] sm:$0x1] %v4577
      %v4579 = vld [vmem:[%s1034 + $0x18] sm:$0xf]
      %v4580 = vsel %vm1036, %v4285, %v4579
      %4581 = vst [vmem:[%s1034 + $0x18] sm:$0xf] %v4580
      %4582 = vst [vmem:[%s1034 + $0x1c] sm:$0xf] %v4294
      %v4583 = vld [vmem:[%s1034 + $0x20] sm:$0x1]
      %v4584 = vsel %vm343, %v4295, %v4583
      %4585 = vst [vmem:[%s1034 + $0x20] sm:$0x1] %v4584
      %v4586 = vld [vmem:[%s1034 + $0x24] sm:$0xf]
      %v4587 = vsel %vm1036, %v4302, %v4586
      %4588 = vst [vmem:[%s1034 + $0x24] sm:$0xf] %v4587
      %4589 = vst [vmem:[%s1034 + $0x28] sm:$0xf] %v4311
      %v4590 = vld [vmem:[%s1034 + $0x2c] sm:$0x1]
      %v4591 = vsel %vm343, %v4312, %v4590
      %4592 = vst [vmem:[%s1034 + $0x2c] sm:$0x1] %v4591
      %v4593 = vld [vmem:[%s1034 + $0x30] sm:$0xf]
      %v4594 = vsel %vm1036, %v4319, %v4593
      %4595 = vst [vmem:[%s1034 + $0x30] sm:$0xf] %v4594
      %4596 = vst [vmem:[%s1034 + $0x34] sm:$0xf] %v4328
      %v4597 = vld [vmem:[%s1034 + $0x38] sm:$0x1]
      %v4598 = vsel %vm343, %v4329, %v4597
      %4599 = vst [vmem:[%s1034 + $0x38] sm:$0x1] %v4598
      %v4600 = vld [vmem:[%s1034 + $0x3c] sm:$0xf]
      %v4601 = vsel %vm1036, %v4336, %v4600
      %4602 = vst [vmem:[%s1034 + $0x3c] sm:$0xf] %v4601
      %4603 = vst [vmem:[%s1034 + $0x40] sm:$0xf] %v4345
      %v4604 = vld [vmem:[%s1034 + $0x44] sm:$0x1]
      %v4605 = vsel %vm343, %v4346, %v4604
      %4606 = vst [vmem:[%s1034 + $0x44] sm:$0x1] %v4605
      %v4607 = vld [vmem:[%s1034 + $0x48] sm:$0xf]
      %v4608 = vsel %vm1036, %v4353, %v4607
      %4609 = vst [vmem:[%s1034 + $0x48] sm:$0xf] %v4608
      %4610 = vst [vmem:[%s1034 + $0x4c] sm:$0xf] %v4362
      %v4611 = vld [vmem:[%s1034 + $0x50] sm:$0x1]
      %v4612 = vsel %vm343, %v4363, %v4611
      %4613 = vst [vmem:[%s1034 + $0x50] sm:$0x1] %v4612
      %v4614 = vld [vmem:[%s1034 + $0x54] sm:$0xf]
      %v4615 = vsel %vm1036, %v4370, %v4614
      %4616 = vst [vmem:[%s1034 + $0x54] sm:$0xf] %v4615
      %4617 = vst [vmem:[%s1034 + $0x58] sm:$0xf] %v4379
      %v4618 = vld [vmem:[%s1034 + $0x5c] sm:$0x1]
      %v4619 = vsel %vm343, %v4380, %v4618
      %4620 = vst [vmem:[%s1034 + $0x5c] sm:$0x1] %v4619
      %v4621 = vld [vmem:[%s1034 + $0x60] sm:$0xf]
      %v4622 = vsel %vm1036, %v4387, %v4621
      %4623 = vst [vmem:[%s1034 + $0x60] sm:$0xf] %v4622
      %4624 = vst [vmem:[%s1034 + $0x64] sm:$0xf] %v4396
      %v4625 = vld [vmem:[%s1034 + $0x68] sm:$0x1]
      %v4626 = vsel %vm343, %v4397, %v4625
      %4627 = vst [vmem:[%s1034 + $0x68] sm:$0x1] %v4626
      %v4628 = vld [vmem:[%s1034 + $0x6c] sm:$0xf]
      %v4629 = vsel %vm1036, %v4404, %v4628
      %4630 = vst [vmem:[%s1034 + $0x6c] sm:$0xf] %v4629
      %4631 = vst [vmem:[%s1034 + $0x70] sm:$0xf] %v4413
      %v4632 = vld [vmem:[%s1034 + $0x74] sm:$0x1]
      %v4633 = vsel %vm343, %v4414, %v4632
      %4634 = vst [vmem:[%s1034 + $0x74] sm:$0x1] %v4633
      %v4635 = vld [vmem:[%s1034 + $0x78] sm:$0xf]
      %v4636 = vsel %vm1036, %v4421, %v4635
      %4637 = vst [vmem:[%s1034 + $0x78] sm:$0xf] %v4636
      %4638 = vst [vmem:[%s1034 + $0x7c] sm:$0xf] %v4430
      %v4639 = vld [vmem:[%s1034 + $0x80] sm:$0x1]
      %v4640 = vsel %vm343, %v4431, %v4639
      %4641 = vst [vmem:[%s1034 + $0x80] sm:$0x1] %v4640
      %v4642 = vld [vmem:[%s1034 + $0x84] sm:$0xf]
      %v4643 = vsel %vm1036, %v4438, %v4642
      %4644 = vst [vmem:[%s1034 + $0x84] sm:$0xf] %v4643
      %4645 = vst [vmem:[%s1034 + $0x88] sm:$0xf] %v4447
      %v4646 = vld [vmem:[%s1034 + $0x8c] sm:$0x1]
      %v4647 = vsel %vm343, %v4448, %v4646
      %4648 = vst [vmem:[%s1034 + $0x8c] sm:$0x1] %v4647
      %v4649 = vld [vmem:[%s1034 + $0x90] sm:$0xf]
      %v4650 = vsel %vm1036, %v4455, %v4649
      %4651 = vst [vmem:[%s1034 + $0x90] sm:$0xf] %v4650
      %4652 = vst [vmem:[%s1034 + $0x94] sm:$0xf] %v4464
      %v4653 = vld [vmem:[%s1034 + $0x98] sm:$0x1]
      %v4654 = vsel %vm343, %v4465, %v4653
      %4655 = vst [vmem:[%s1034 + $0x98] sm:$0x1] %v4654
      %v4656 = vld [vmem:[%s1034 + $0x9c] sm:$0xf]
      %v4657 = vsel %vm1036, %v4472, %v4656
      %4658 = vst [vmem:[%s1034 + $0x9c] sm:$0xf] %v4657
      %4659 = vst [vmem:[%s1034 + $0xa0] sm:$0xf] %v4481
      %v4660 = vld [vmem:[%s1034 + $0xa4] sm:$0x1]
      %v4661 = vsel %vm343, %v4482, %v4660
      %4662 = vst [vmem:[%s1034 + $0xa4] sm:$0x1] %v4661
      %v4663 = vld [vmem:[%s1034 + $0xa8] sm:$0xf]
      %v4664 = vsel %vm1036, %v4489, %v4663
      %4665 = vst [vmem:[%s1034 + $0xa8] sm:$0xf] %v4664
      %4666 = vst [vmem:[%s1034 + $0xac] sm:$0xf] %v4498
      %v4667 = vld [vmem:[%s1034 + $0xb0] sm:$0x1]
      %v4668 = vsel %vm343, %v4499, %v4667
      %4669 = vst [vmem:[%s1034 + $0xb0] sm:$0x1] %v4668
      %v4670 = vld [vmem:[%s1034 + $0xb4] sm:$0xf]
      %v4671 = vsel %vm1036, %v4506, %v4670
      %4672 = vst [vmem:[%s1034 + $0xb4] sm:$0xf] %v4671
      %4673 = vst [vmem:[%s1034 + $0xb8] sm:$0xf] %v4515
      %v4674 = vld [vmem:[%s1034 + $0xbc] sm:$0x1]
      %v4675 = vsel %vm343, %v4516, %v4674
      %4676 = vst [vmem:[%s1034 + $0xbc] sm:$0x1] %v4675
      %v4677 = vld [vmem:[#allocation2] sm:$0xf]
      %v4678 = vld [vmem:[#allocation2 + $0x4] sm:$0xf]
      %v4679 = vld [vmem:[#allocation2 + $0xc] sm:$0xf]
      %v4680 = vld [vmem:[#allocation2 + $0x10] sm:$0xf]
      %v4681 = vld [vmem:[#allocation2 + $0x18] sm:$0xf]
      %v4682 = vld [vmem:[#allocation2 + $0x1c] sm:$0xf]
      %v4683 = vld [vmem:[#allocation2 + $0x24] sm:$0xf]
      %v4684 = vld [vmem:[#allocation2 + $0x28] sm:$0xf]
      %v4685 = vld [vmem:[#allocation2 + $0x30] sm:$0xf]
      %v4686 = vld [vmem:[#allocation2 + $0x34] sm:$0xf]
      %v4687 = vld [vmem:[#allocation2 + $0x3c] sm:$0xf]
      %v4688 = vld [vmem:[#allocation2 + $0x40] sm:$0xf]
      %v4689 = vld [vmem:[#allocation2 + $0x48] sm:$0xf]
      %v4690 = vld [vmem:[#allocation2 + $0x4c] sm:$0xf]
      %v4691 = vld [vmem:[#allocation2 + $0x54] sm:$0xf]
      %v4692 = vld [vmem:[#allocation2 + $0x58] sm:$0xf]
      %v4693 = vld [vmem:[#allocation2 + $0x60] sm:$0xf]
      %v4694 = vld [vmem:[#allocation2 + $0x64] sm:$0xf]
      %v4695 = vld [vmem:[#allocation2 + $0x6c] sm:$0xf]
      %v4696 = vld [vmem:[#allocation2 + $0x70] sm:$0xf]
      %v4697 = vld [vmem:[#allocation2 + $0x78] sm:$0xf]
      %v4698 = vld [vmem:[#allocation2 + $0x7c] sm:$0xf]
      %v4699 = vld [vmem:[#allocation2 + $0x84] sm:$0xf]
      %v4700 = vld [vmem:[#allocation2 + $0x88] sm:$0xf]
      %v4701 = vld [vmem:[#allocation2 + $0x90] sm:$0xf]
      %v4702 = vld [vmem:[#allocation2 + $0x94] sm:$0xf]
      %v4703 = vld [vmem:[#allocation2 + $0x9c] sm:$0xf]
      %v4704 = vld [vmem:[#allocation2 + $0xa0] sm:$0xf]
      %v4705 = vld [vmem:[#allocation2 + $0xa8] sm:$0xf]
      %v4706 = vld [vmem:[#allocation2 + $0xac] sm:$0xf]
      %v4707 = vld [vmem:[#allocation2 + $0xb4] sm:$0xf]
      %v4708 = vld [vmem:[#allocation2 + $0xb8] sm:$0xf]
      %v4709 = vld [vmem:[#allocation2 + $0x8] sm:$0x1]
      %v4710 = vld [vmem:[#allocation2 + $0x14] sm:$0x1]
      %v4711 = vld [vmem:[#allocation2 + $0x20] sm:$0x1]
      %v4712 = vld [vmem:[#allocation2 + $0x2c] sm:$0x1]
      %v4713 = vld [vmem:[#allocation2 + $0x38] sm:$0x1]
      %v4714 = vld [vmem:[#allocation2 + $0x44] sm:$0x1]
      %v4715 = vld [vmem:[#allocation2 + $0x50] sm:$0x1]
      %v4716 = vld [vmem:[#allocation2 + $0x5c] sm:$0x1]
      %v4717 = vld [vmem:[#allocation2 + $0x68] sm:$0x1]
      %v4718 = vld [vmem:[#allocation2 + $0x74] sm:$0x1]
      %v4719 = vld [vmem:[#allocation2 + $0x80] sm:$0x1]
      %v4720 = vld [vmem:[#allocation2 + $0x8c] sm:$0x1]
      %v4721 = vld [vmem:[#allocation2 + $0x98] sm:$0x1]
      %v4722 = vld [vmem:[#allocation2 + $0xa4] sm:$0x1]
      %v4723 = vld [vmem:[#allocation2 + $0xb0] sm:$0x1]
      %v4724 = vld [vmem:[#allocation2 + $0xbc] sm:$0x1]
      %v4725 = vld [vmem:[#allocation2] sm:$0xe]
      %v4726 = vld [vmem:[#allocation2 + $0xc] sm:$0xe]
      %v4727 = vld [vmem:[#allocation2 + $0x18] sm:$0xe]
      %v4728 = vld [vmem:[#allocation2 + $0x24] sm:$0xe]
      %v4729 = vld [vmem:[#allocation2 + $0x30] sm:$0xe]
      %v4730 = vld [vmem:[#allocation2 + $0x3c] sm:$0xe]
      %v4731 = vld [vmem:[#allocation2 + $0x48] sm:$0xe]
      %v4732 = vld [vmem:[#allocation2 + $0x54] sm:$0xe]
      %v4733 = vld [vmem:[#allocation2 + $0x60] sm:$0xe]
      %v4734 = vld [vmem:[#allocation2 + $0x6c] sm:$0xe]
      %v4735 = vld [vmem:[#allocation2 + $0x78] sm:$0xe]
      %v4736 = vld [vmem:[#allocation2 + $0x84] sm:$0xe]
      %v4737 = vld [vmem:[#allocation2 + $0x90] sm:$0xe]
      %v4738 = vld [vmem:[#allocation2 + $0x9c] sm:$0xe]
      %v4739 = vld [vmem:[#allocation2 + $0xa8] sm:$0xe]
      %v4740 = vld [vmem:[#allocation2 + $0xb4] sm:$0xe]
      %v4741 = vld [vmem:[%s1034] sm:$0xf]
      %v4742 = vld [vmem:[%s1034 + $0x4] sm:$0xf]
      %v4743 = vld [vmem:[%s1034 + $0xc] sm:$0xf]
      %v4744 = vld [vmem:[%s1034 + $0x10] sm:$0xf]
      %v4745 = vld [vmem:[%s1034 + $0x18] sm:$0xf]
      %v4746 = vld [vmem:[%s1034 + $0x1c] sm:$0xf]
      %v4747 = vld [vmem:[%s1034 + $0x24] sm:$0xf]
      %v4748 = vld [vmem:[%s1034 + $0x28] sm:$0xf]
      %v4749 = vld [vmem:[%s1034 + $0x30] sm:$0xf]
      %v4750 = vld [vmem:[%s1034 + $0x34] sm:$0xf]
      %v4751 = vld [vmem:[%s1034 + $0x3c] sm:$0xf]
      %v4752 = vld [vmem:[%s1034 + $0x40] sm:$0xf]
      %v4753 = vld [vmem:[%s1034 + $0x48] sm:$0xf]
      %v4754 = vld [vmem:[%s1034 + $0x4c] sm:$0xf]
      %v4755 = vld [vmem:[%s1034 + $0x54] sm:$0xf]
      %v4756 = vld [vmem:[%s1034 + $0x58] sm:$0xf]
      %v4757 = vld [vmem:[%s1034 + $0x60] sm:$0xf]
      %v4758 = vld [vmem:[%s1034 + $0x64] sm:$0xf]
      %v4759 = vld [vmem:[%s1034 + $0x6c] sm:$0xf]
      %v4760 = vld [vmem:[%s1034 + $0x70] sm:$0xf]
      %v4761 = vld [vmem:[%s1034 + $0x78] sm:$0xf]
      %v4762 = vld [vmem:[%s1034 + $0x7c] sm:$0xf]
      %v4763 = vld [vmem:[%s1034 + $0x84] sm:$0xf]
      %v4764 = vld [vmem:[%s1034 + $0x88] sm:$0xf]
      %v4765 = vld [vmem:[%s1034 + $0x90] sm:$0xf]
      %v4766 = vld [vmem:[%s1034 + $0x94] sm:$0xf]
      %v4767 = vld [vmem:[%s1034 + $0x9c] sm:$0xf]
      %v4768 = vld [vmem:[%s1034 + $0xa0] sm:$0xf]
      %v4769 = vld [vmem:[%s1034 + $0xa8] sm:$0xf]
      %v4770 = vld [vmem:[%s1034 + $0xac] sm:$0xf]
      %v4771 = vld [vmem:[%s1034 + $0xb4] sm:$0xf]
      %v4772 = vld [vmem:[%s1034 + $0xb8] sm:$0xf]
      %v4773 = vld [vmem:[%s1034 + $0x8] sm:$0x1]
      %v4774 = vld [vmem:[%s1034 + $0x14] sm:$0x1]
      %v4775 = vld [vmem:[%s1034 + $0x20] sm:$0x1]
      %v4776 = vld [vmem:[%s1034 + $0x2c] sm:$0x1]
      %v4777 = vld [vmem:[%s1034 + $0x38] sm:$0x1]
      %v4778 = vld [vmem:[%s1034 + $0x44] sm:$0x1]
      %v4779 = vld [vmem:[%s1034 + $0x50] sm:$0x1]
      %v4780 = vld [vmem:[%s1034 + $0x5c] sm:$0x1]
      %v4781 = vld [vmem:[%s1034 + $0x68] sm:$0x1]
      %v4782 = vld [vmem:[%s1034 + $0x74] sm:$0x1]
      %v4783 = vld [vmem:[%s1034 + $0x80] sm:$0x1]
      %v4784 = vld [vmem:[%s1034 + $0x8c] sm:$0x1]
      %v4785 = vld [vmem:[%s1034 + $0x98] sm:$0x1]
      %v4786 = vld [vmem:[%s1034 + $0xa4] sm:$0x1]
      %v4787 = vld [vmem:[%s1034 + $0xb0] sm:$0x1]
      %v4788 = vld [vmem:[%s1034 + $0xbc] sm:$0x1]
      %v4789 = vld [vmem:[%s1034] sm:$0xe]
      %v4790 = vld [vmem:[%s1034 + $0xc] sm:$0xe]
      %v4791 = vld [vmem:[%s1034 + $0x18] sm:$0xe]
      %v4792 = vld [vmem:[%s1034 + $0x24] sm:$0xe]
      %v4793 = vld [vmem:[%s1034 + $0x30] sm:$0xe]
      %v4794 = vld [vmem:[%s1034 + $0x3c] sm:$0xe]
      %v4795 = vld [vmem:[%s1034 + $0x48] sm:$0xe]
      %v4796 = vld [vmem:[%s1034 + $0x54] sm:$0xe]
      %v4797 = vld [vmem:[%s1034 + $0x60] sm:$0xe]
      %v4798 = vld [vmem:[%s1034 + $0x6c] sm:$0xe]
      %v4799 = vld [vmem:[%s1034 + $0x78] sm:$0xe]
      %v4800 = vld [vmem:[%s1034 + $0x84] sm:$0xe]
      %v4801 = vld [vmem:[%s1034 + $0x90] sm:$0xe]
      %v4802 = vld [vmem:[%s1034 + $0x9c] sm:$0xe]
      %v4803 = vld [vmem:[%s1034 + $0xa8] sm:$0xe]
      %v4804 = vld [vmem:[%s1034 + $0xb4] sm:$0xe]
      %v4805 = vld [vmem:[%s1277] sm:$0xf]
      %v4806 = vld [vmem:[%s1277 + $0x4] sm:$0xf]
      %v4807 = vld [vmem:[%s1277 + $0xc] sm:$0xf]
      %v4808 = vld [vmem:[%s1277 + $0x10] sm:$0xf]
      %v4809 = vld [vmem:[%s1277 + $0x18] sm:$0xf]
      %v4810 = vld [vmem:[%s1277 + $0x1c] sm:$0xf]
      %v4811 = vld [vmem:[%s1277 + $0x24] sm:$0xf]
      %v4812 = vld [vmem:[%s1277 + $0x28] sm:$0xf]
      %v4813 = vld [vmem:[%s1277 + $0x30] sm:$0xf]
      %v4814 = vld [vmem:[%s1277 + $0x34] sm:$0xf]
      %v4815 = vld [vmem:[%s1277 + $0x3c] sm:$0xf]
      %v4816 = vld [vmem:[%s1277 + $0x40] sm:$0xf]
      %v4817 = vld [vmem:[%s1277 + $0x48] sm:$0xf]
      %v4818 = vld [vmem:[%s1277 + $0x4c] sm:$0xf]
      %v4819 = vld [vmem:[%s1277 + $0x54] sm:$0xf]
      %v4820 = vld [vmem:[%s1277 + $0x58] sm:$0xf]
      %v4821 = vld [vmem:[%s1277 + $0x60] sm:$0xf]
      %v4822 = vld [vmem:[%s1277 + $0x64] sm:$0xf]
      %v4823 = vld [vmem:[%s1277 + $0x6c] sm:$0xf]
      %v4824 = vld [vmem:[%s1277 + $0x70] sm:$0xf]
      %v4825 = vld [vmem:[%s1277 + $0x78] sm:$0xf]
      %v4826 = vld [vmem:[%s1277 + $0x7c] sm:$0xf]
      %v4827 = vld [vmem:[%s1277 + $0x84] sm:$0xf]
      %v4828 = vld [vmem:[%s1277 + $0x88] sm:$0xf]
      %v4829 = vld [vmem:[%s1277 + $0x90] sm:$0xf]
      %v4830 = vld [vmem:[%s1277 + $0x94] sm:$0xf]
      %v4831 = vld [vmem:[%s1277 + $0x9c] sm:$0xf]
      %v4832 = vld [vmem:[%s1277 + $0xa0] sm:$0xf]
      %v4833 = vld [vmem:[%s1277 + $0xa8] sm:$0xf]
      %v4834 = vld [vmem:[%s1277 + $0xac] sm:$0xf]
      %v4835 = vld [vmem:[%s1277 + $0xb4] sm:$0xf]
      %v4836 = vld [vmem:[%s1277 + $0xb8] sm:$0xf]
      %v4837 = vld [vmem:[%s1277 + $0x8] sm:$0x1]
      %v4838 = vld [vmem:[%s1277 + $0x14] sm:$0x1]
      %v4839 = vld [vmem:[%s1277 + $0x20] sm:$0x1]
      %v4840 = vld [vmem:[%s1277 + $0x2c] sm:$0x1]
      %v4841 = vld [vmem:[%s1277 + $0x38] sm:$0x1]
      %v4842 = vld [vmem:[%s1277 + $0x44] sm:$0x1]
      %v4843 = vld [vmem:[%s1277 + $0x50] sm:$0x1]
      %v4844 = vld [vmem:[%s1277 + $0x5c] sm:$0x1]
      %v4845 = vld [vmem:[%s1277 + $0x68] sm:$0x1]
      %v4846 = vld [vmem:[%s1277 + $0x74] sm:$0x1]
      %v4847 = vld [vmem:[%s1277 + $0x80] sm:$0x1]
      %v4848 = vld [vmem:[%s1277 + $0x8c] sm:$0x1]
      %v4849 = vld [vmem:[%s1277 + $0x98] sm:$0x1]
      %v4850 = vld [vmem:[%s1277 + $0xa4] sm:$0x1]
      %v4851 = vld [vmem:[%s1277 + $0xb0] sm:$0x1]
      %v4852 = vld [vmem:[%s1277 + $0xbc] sm:$0x1]
      %v4853 = vld [vmem:[%s1277] sm:$0xe]
      %v4854 = vld [vmem:[%s1277 + $0xc] sm:$0xe]
      %v4855 = vld [vmem:[%s1277 + $0x18] sm:$0xe]
      %v4856 = vld [vmem:[%s1277 + $0x24] sm:$0xe]
      %v4857 = vld [vmem:[%s1277 + $0x30] sm:$0xe]
      %v4858 = vld [vmem:[%s1277 + $0x3c] sm:$0xe]
      %v4859 = vld [vmem:[%s1277 + $0x48] sm:$0xe]
      %v4860 = vld [vmem:[%s1277 + $0x54] sm:$0xe]
      %v4861 = vld [vmem:[%s1277 + $0x60] sm:$0xe]
      %v4862 = vld [vmem:[%s1277 + $0x6c] sm:$0xe]
      %v4863 = vld [vmem:[%s1277 + $0x78] sm:$0xe]
      %v4864 = vld [vmem:[%s1277 + $0x84] sm:$0xe]
      %v4865 = vld [vmem:[%s1277 + $0x90] sm:$0xe]
      %v4866 = vld [vmem:[%s1277 + $0x9c] sm:$0xe]
      %v4867 = vld [vmem:[%s1277 + $0xa8] sm:$0xe]
      %v4868 = vld [vmem:[%s1277 + $0xb4] sm:$0xe]
      %v4901 = vunpack.c.l.b16 %v4677
      %v4902 = vunpack.c.l.b16 %v4678
      %v4903 = vunpack.c.l.b16 %v4679
      %v4904 = vunpack.c.l.b16 %v4680
      %v4905 = vunpack.c.l.b16 %v4681
      %v4906 = vunpack.c.l.b16 %v4682
      %v4907 = vunpack.c.l.b16 %v4683
      %v4908 = vunpack.c.l.b16 %v4684
      %v4909 = vunpack.c.l.b16 %v4685
      %v4910 = vunpack.c.l.b16 %v4686
      %v4911 = vunpack.c.l.b16 %v4687
      %v4912 = vunpack.c.l.b16 %v4688
      %v4913 = vunpack.c.l.b16 %v4689
      %v4914 = vunpack.c.l.b16 %v4690
      %v4915 = vunpack.c.l.b16 %v4691
      %v4916 = vunpack.c.l.b16 %v4692
      %v4917 = vunpack.c.l.b16 %v4693
      %v4918 = vunpack.c.l.b16 %v4694
      %v4919 = vunpack.c.l.b16 %v4695
      %v4920 = vunpack.c.l.b16 %v4696
      %v4921 = vunpack.c.l.b16 %v4697
      %v4922 = vunpack.c.l.b16 %v4698
      %v4923 = vunpack.c.l.b16 %v4699
      %v4924 = vunpack.c.l.b16 %v4700
      %v4925 = vunpack.c.l.b16 %v4701
      %v4926 = vunpack.c.l.b16 %v4702
      %v4927 = vunpack.c.l.b16 %v4703
      %v4928 = vunpack.c.l.b16 %v4704
      %v4929 = vunpack.c.l.b16 %v4705
      %v4930 = vunpack.c.l.b16 %v4706
      %v4931 = vunpack.c.l.b16 %v4707
      %v4932 = vunpack.c.l.b16 %v4708
      %v4933 = vpack.c.b16 %v4902, %v4901
      %v4934 = vpack.c.b16 %v4904, %v4903
      %v4935 = vpack.c.b16 %v4906, %v4905
      %v4936 = vpack.c.b16 %v4908, %v4907
      %v4937 = vpack.c.b16 %v4910, %v4909
      %v4938 = vpack.c.b16 %v4912, %v4911
      %v4939 = vpack.c.b16 %v4914, %v4913
      %v4940 = vpack.c.b16 %v4916, %v4915
      %v4941 = vpack.c.b16 %v4918, %v4917
      %v4942 = vpack.c.b16 %v4920, %v4919
      %v4943 = vpack.c.b16 %v4922, %v4921
      %v4944 = vpack.c.b16 %v4924, %v4923
      %v4945 = vpack.c.b16 %v4926, %v4925
      %v4946 = vpack.c.b16 %v4928, %v4927
      %v4947 = vpack.c.b16 %v4930, %v4929
      %v4948 = vpack.c.b16 %v4932, %v4931
      %v4981 = vunpack.c.l.b16 %v4709
      %v4982 = vunpack.c.l.b16 %v4710
      %v4983 = vunpack.c.l.b16 %v4711
      %v4984 = vunpack.c.l.b16 %v4712
      %v4985 = vunpack.c.l.b16 %v4713
      %v4986 = vunpack.c.l.b16 %v4714
      %v4987 = vunpack.c.l.b16 %v4715
      %v4988 = vunpack.c.l.b16 %v4716
      %v4989 = vunpack.c.l.b16 %v4717
      %v4990 = vunpack.c.l.b16 %v4718
      %v4991 = vunpack.c.l.b16 %v4719
      %v4992 = vunpack.c.l.b16 %v4720
      %v4993 = vunpack.c.l.b16 %v4721
      %v4994 = vunpack.c.l.b16 %v4722
      %v4995 = vunpack.c.l.b16 %v4723
      %v4996 = vunpack.c.l.b16 %v4724
      %v4997 = vpack.c.b16 %v4981, %v4981
      %v4998 = vpack.c.b16 %v4982, %v4982
      %v4999 = vpack.c.b16 %v4983, %v4983
      %v5000 = vpack.c.b16 %v4984, %v4984
      %v5001 = vpack.c.b16 %v4985, %v4985
      %v5002 = vpack.c.b16 %v4986, %v4986
      %v5003 = vpack.c.b16 %v4987, %v4987
      %v5004 = vpack.c.b16 %v4988, %v4988
      %v5005 = vpack.c.b16 %v4989, %v4989
      %v5006 = vpack.c.b16 %v4990, %v4990
      %v5007 = vpack.c.b16 %v4991, %v4991
      %v5008 = vpack.c.b16 %v4992, %v4992
      %v5009 = vpack.c.b16 %v4993, %v4993
      %v5010 = vpack.c.b16 %v4994, %v4994
      %v5011 = vpack.c.b16 %v4995, %v4995
      %v5012 = vpack.c.b16 %v4996, %v4996
      %v5014 = vshrl.u32 %v4933, 16
      %v5016 = vshll.u32 %v4933, 16
      %v5018 = vrot.slane %v5016, 1
      %v5019 = vor.u32 %v5014, %v5018
      %v5021 = vshll.u32 %v4997, 16
      %v5023 = vrot.slane %v5021, 1
      %v5024 = vsel %vm1486, %v5019, %v5023
      %v5026 = vshrl.u32 %v4934, 16
      %v5028 = vshll.u32 %v4934, 16
      %v5030 = vrot.slane %v5028, 1
      %v5031 = vor.u32 %v5026, %v5030
      %v5033 = vshll.u32 %v4998, 16
      %v5035 = vrot.slane %v5033, 1
      %v5036 = vsel %vm1486, %v5031, %v5035
      %v5038 = vshrl.u32 %v4935, 16
      %v5040 = vshll.u32 %v4935, 16
      %v5042 = vrot.slane %v5040, 1
      %v5043 = vor.u32 %v5038, %v5042
      %v5045 = vshll.u32 %v4999, 16
      %v5047 = vrot.slane %v5045, 1
      %v5048 = vsel %vm1486, %v5043, %v5047
      %v5050 = vshrl.u32 %v4936, 16
      %v5052 = vshll.u32 %v4936, 16
      %v5054 = vrot.slane %v5052, 1
      %v5055 = vor.u32 %v5050, %v5054
      %v5057 = vshll.u32 %v5000, 16
      %v5059 = vrot.slane %v5057, 1
      %v5060 = vsel %vm1486, %v5055, %v5059
      %v5062 = vshrl.u32 %v4937, 16
      %v5064 = vshll.u32 %v4937, 16
      %v5066 = vrot.slane %v5064, 1
      %v5067 = vor.u32 %v5062, %v5066
      %v5069 = vshll.u32 %v5001, 16
      %v5071 = vrot.slane %v5069, 1
      %v5072 = vsel %vm1486, %v5067, %v5071
      %v5074 = vshrl.u32 %v4938, 16
      %v5076 = vshll.u32 %v4938, 16
      %v5078 = vrot.slane %v5076, 1
      %v5079 = vor.u32 %v5074, %v5078
      %v5081 = vshll.u32 %v5002, 16
      %v5083 = vrot.slane %v5081, 1
      %v5084 = vsel %vm1486, %v5079, %v5083
      %v5086 = vshrl.u32 %v4939, 16
      %v5088 = vshll.u32 %v4939, 16
      %v5090 = vrot.slane %v5088, 1
      %v5091 = vor.u32 %v5086, %v5090
      %v5093 = vshll.u32 %v5003, 16
      %v5095 = vrot.slane %v5093, 1
      %v5096 = vsel %vm1486, %v5091, %v5095
      %v5098 = vshrl.u32 %v4940, 16
      %v5100 = vshll.u32 %v4940, 16
      %v5102 = vrot.slane %v5100, 1
      %v5103 = vor.u32 %v5098, %v5102
      %v5105 = vshll.u32 %v5004, 16
      %v5107 = vrot.slane %v5105, 1
      %v5108 = vsel %vm1486, %v5103, %v5107
      %v5110 = vshrl.u32 %v4941, 16
      %v5112 = vshll.u32 %v4941, 16
      %v5114 = vrot.slane %v5112, 1
      %v5115 = vor.u32 %v5110, %v5114
      %v5117 = vshll.u32 %v5005, 16
      %v5119 = vrot.slane %v5117, 1
      %v5120 = vsel %vm1486, %v5115, %v5119
      %v5122 = vshrl.u32 %v4942, 16
      %v5124 = vshll.u32 %v4942, 16
      %v5126 = vrot.slane %v5124, 1
      %v5127 = vor.u32 %v5122, %v5126
      %v5129 = vshll.u32 %v5006, 16
      %v5131 = vrot.slane %v5129, 1
      %v5132 = vsel %vm1486, %v5127, %v5131
      %v5134 = vshrl.u32 %v4943, 16
      %v5136 = vshll.u32 %v4943, 16
      %v5138 = vrot.slane %v5136, 1
      %v5139 = vor.u32 %v5134, %v5138
      %v5141 = vshll.u32 %v5007, 16
      %v5143 = vrot.slane %v5141, 1
      %v5144 = vsel %vm1486, %v5139, %v5143
      %v5146 = vshrl.u32 %v4944, 16
      %v5148 = vshll.u32 %v4944, 16
      %v5150 = vrot.slane %v5148, 1
      %v5151 = vor.u32 %v5146, %v5150
      %v5153 = vshll.u32 %v5008, 16
      %v5155 = vrot.slane %v5153, 1
      %v5156 = vsel %vm1486, %v5151, %v5155
      %v5158 = vshrl.u32 %v4945, 16
      %v5160 = vshll.u32 %v4945, 16
      %v5162 = vrot.slane %v5160, 1
      %v5163 = vor.u32 %v5158, %v5162
      %v5165 = vshll.u32 %v5009, 16
      %v5167 = vrot.slane %v5165, 1
      %v5168 = vsel %vm1486, %v5163, %v5167
      %v5170 = vshrl.u32 %v4946, 16
      %v5172 = vshll.u32 %v4946, 16
      %v5174 = vrot.slane %v5172, 1
      %v5175 = vor.u32 %v5170, %v5174
      %v5177 = vshll.u32 %v5010, 16
      %v5179 = vrot.slane %v5177, 1
      %v5180 = vsel %vm1486, %v5175, %v5179
      %v5182 = vshrl.u32 %v4947, 16
      %v5184 = vshll.u32 %v4947, 16
      %v5186 = vrot.slane %v5184, 1
      %v5187 = vor.u32 %v5182, %v5186
      %v5189 = vshll.u32 %v5011, 16
      %v5191 = vrot.slane %v5189, 1
      %v5192 = vsel %vm1486, %v5187, %v5191
      %v5194 = vshrl.u32 %v4948, 16
      %v5196 = vshll.u32 %v4948, 16
      %v5198 = vrot.slane %v5196, 1
      %v5199 = vor.u32 %v5194, %v5198
      %v5201 = vshll.u32 %v5012, 16
      %v5203 = vrot.slane %v5201, 1
      %v5204 = vsel %vm1486, %v5199, %v5203
      %v5237 = vunpack.c.l.b16 %v4725
      %v5238 = vunpack.c.l.b16 %v4726
      %v5239 = vunpack.c.l.b16 %v4727
      %v5240 = vunpack.c.l.b16 %v4728
      %v5241 = vunpack.c.l.b16 %v4729
      %v5242 = vunpack.c.l.b16 %v4730
      %v5243 = vunpack.c.l.b16 %v4731
      %v5244 = vunpack.c.l.b16 %v4732
      %v5245 = vunpack.c.l.b16 %v4733
      %v5246 = vunpack.c.l.b16 %v4734
      %v5247 = vunpack.c.l.b16 %v4735
      %v5248 = vunpack.c.l.b16 %v4736
      %v5249 = vunpack.c.l.b16 %v4737
      %v5250 = vunpack.c.l.b16 %v4738
      %v5251 = vunpack.c.l.b16 %v4739
      %v5252 = vunpack.c.l.b16 %v4740
      %v5253 = vpack.c.b16 %v4902, %v5237
      %v5254 = vpack.c.b16 %v4904, %v5238
      %v5255 = vpack.c.b16 %v4906, %v5239
      %v5256 = vpack.c.b16 %v4908, %v5240
      %v5257 = vpack.c.b16 %v4910, %v5241
      %v5258 = vpack.c.b16 %v4912, %v5242
      %v5259 = vpack.c.b16 %v4914, %v5243
      %v5260 = vpack.c.b16 %v4916, %v5244
      %v5261 = vpack.c.b16 %v4918, %v5245
      %v5262 = vpack.c.b16 %v4920, %v5246
      %v5263 = vpack.c.b16 %v4922, %v5247
      %v5264 = vpack.c.b16 %v4924, %v5248
      %v5265 = vpack.c.b16 %v4926, %v5249
      %v5266 = vpack.c.b16 %v4928, %v5250
      %v5267 = vpack.c.b16 %v4930, %v5251
      %v5268 = vpack.c.b16 %v4932, %v5252
      %v5269 = vrot.slane %v5253, 1
      %v5270 = vrot.slane %v4997, 1
      %v5271 = vsel %vm1743, %v5269, %v5270
      %v5272 = vrot.slane %v5254, 1
      %v5273 = vrot.slane %v4998, 1
      %v5274 = vsel %vm1743, %v5272, %v5273
      %v5275 = vrot.slane %v5255, 1
      %v5276 = vrot.slane %v4999, 1
      %v5277 = vsel %vm1743, %v5275, %v5276
      %v5278 = vrot.slane %v5256, 1
      %v5279 = vrot.slane %v5000, 1
      %v5280 = vsel %vm1743, %v5278, %v5279
      %v5281 = vrot.slane %v5257, 1
      %v5282 = vrot.slane %v5001, 1
      %v5283 = vsel %vm1743, %v5281, %v5282
      %v5284 = vrot.slane %v5258, 1
      %v5285 = vrot.slane %v5002, 1
      %v5286 = vsel %vm1743, %v5284, %v5285
      %v5287 = vrot.slane %v5259, 1
      %v5288 = vrot.slane %v5003, 1
      %v5289 = vsel %vm1743, %v5287, %v5288
      %v5290 = vrot.slane %v5260, 1
      %v5291 = vrot.slane %v5004, 1
      %v5292 = vsel %vm1743, %v5290, %v5291
      %v5293 = vrot.slane %v5261, 1
      %v5294 = vrot.slane %v5005, 1
      %v5295 = vsel %vm1743, %v5293, %v5294
      %v5296 = vrot.slane %v5262, 1
      %v5297 = vrot.slane %v5006, 1
      %v5298 = vsel %vm1743, %v5296, %v5297
      %v5299 = vrot.slane %v5263, 1
      %v5300 = vrot.slane %v5007, 1
      %v5301 = vsel %vm1743, %v5299, %v5300
      %v5302 = vrot.slane %v5264, 1
      %v5303 = vrot.slane %v5008, 1
      %v5304 = vsel %vm1743, %v5302, %v5303
      %v5305 = vrot.slane %v5265, 1
      %v5306 = vrot.slane %v5009, 1
      %v5307 = vsel %vm1743, %v5305, %v5306
      %v5308 = vrot.slane %v5266, 1
      %v5309 = vrot.slane %v5010, 1
      %v5310 = vsel %vm1743, %v5308, %v5309
      %v5311 = vrot.slane %v5267, 1
      %v5312 = vrot.slane %v5011, 1
      %v5313 = vsel %vm1743, %v5311, %v5312
      %v5314 = vrot.slane %v5268, 1
      %v5315 = vrot.slane %v5012, 1
      %v5316 = vsel %vm1743, %v5314, %v5315
      %v5365 = vunpack.c.l.b16 %v4741
      %v5366 = vunpack.c.l.b16 %v4742
      %v5367 = vunpack.c.l.b16 %v4743
      %v5368 = vunpack.c.l.b16 %v4744
      %v5369 = vunpack.c.l.b16 %v4745
      %v5370 = vunpack.c.l.b16 %v4746
      %v5371 = vunpack.c.l.b16 %v4747
      %v5372 = vunpack.c.l.b16 %v4748
      %v5373 = vunpack.c.l.b16 %v4749
      %v5374 = vunpack.c.l.b16 %v4750
      %v5375 = vunpack.c.l.b16 %v4751
      %v5376 = vunpack.c.l.b16 %v4752
      %v5377 = vunpack.c.l.b16 %v4753
      %v5378 = vunpack.c.l.b16 %v4754
      %v5379 = vunpack.c.l.b16 %v4755
      %v5380 = vunpack.c.l.b16 %v4756
      %v5381 = vunpack.c.l.b16 %v4757
      %v5382 = vunpack.c.l.b16 %v4758
      %v5383 = vunpack.c.l.b16 %v4759
      %v5384 = vunpack.c.l.b16 %v4760
      %v5385 = vunpack.c.l.b16 %v4761
      %v5386 = vunpack.c.l.b16 %v4762
      %v5387 = vunpack.c.l.b16 %v4763
      %v5388 = vunpack.c.l.b16 %v4764
      %v5389 = vunpack.c.l.b16 %v4765
      %v5390 = vunpack.c.l.b16 %v4766
      %v5391 = vunpack.c.l.b16 %v4767
      %v5392 = vunpack.c.l.b16 %v4768
      %v5393 = vunpack.c.l.b16 %v4769
      %v5394 = vunpack.c.l.b16 %v4770
      %v5395 = vunpack.c.l.b16 %v4771
      %v5396 = vunpack.c.l.b16 %v4772
      %v5397 = vpack.c.b16 %v5366, %v5365
      %v5398 = vpack.c.b16 %v5368, %v5367
      %v5399 = vpack.c.b16 %v5370, %v5369
      %v5400 = vpack.c.b16 %v5372, %v5371
      %v5401 = vpack.c.b16 %v5374, %v5373
      %v5402 = vpack.c.b16 %v5376, %v5375
      %v5403 = vpack.c.b16 %v5378, %v5377
      %v5404 = vpack.c.b16 %v5380, %v5379
      %v5405 = vpack.c.b16 %v5382, %v5381
      %v5406 = vpack.c.b16 %v5384, %v5383
      %v5407 = vpack.c.b16 %v5386, %v5385
      %v5408 = vpack.c.b16 %v5388, %v5387
      %v5409 = vpack.c.b16 %v5390, %v5389
      %v5410 = vpack.c.b16 %v5392, %v5391
      %v5411 = vpack.c.b16 %v5394, %v5393
      %v5412 = vpack.c.b16 %v5396, %v5395
      %v5445 = vunpack.c.l.b16 %v4773
      %v5446 = vunpack.c.l.b16 %v4774
      %v5447 = vunpack.c.l.b16 %v4775
      %v5448 = vunpack.c.l.b16 %v4776
      %v5449 = vunpack.c.l.b16 %v4777
      %v5450 = vunpack.c.l.b16 %v4778
      %v5451 = vunpack.c.l.b16 %v4779
      %v5452 = vunpack.c.l.b16 %v4780
      %v5453 = vunpack.c.l.b16 %v4781
      %v5454 = vunpack.c.l.b16 %v4782
      %v5455 = vunpack.c.l.b16 %v4783
      %v5456 = vunpack.c.l.b16 %v4784
      %v5457 = vunpack.c.l.b16 %v4785
      %v5458 = vunpack.c.l.b16 %v4786
      %v5459 = vunpack.c.l.b16 %v4787
      %v5460 = vunpack.c.l.b16 %v4788
      %v5461 = vpack.c.b16 %v5445, %v5445
      %v5462 = vpack.c.b16 %v5446, %v5446
      %v5463 = vpack.c.b16 %v5447, %v5447
      %v5464 = vpack.c.b16 %v5448, %v5448
      %v5465 = vpack.c.b16 %v5449, %v5449
      %v5466 = vpack.c.b16 %v5450, %v5450
      %v5467 = vpack.c.b16 %v5451, %v5451
      %v5468 = vpack.c.b16 %v5452, %v5452
      %v5469 = vpack.c.b16 %v5453, %v5453
      %v5470 = vpack.c.b16 %v5454, %v5454
      %v5471 = vpack.c.b16 %v5455, %v5455
      %v5472 = vpack.c.b16 %v5456, %v5456
      %v5473 = vpack.c.b16 %v5457, %v5457
      %v5474 = vpack.c.b16 %v5458, %v5458
      %v5475 = vpack.c.b16 %v5459, %v5459
      %v5476 = vpack.c.b16 %v5460, %v5460
      %v5478 = vshrl.u32 %v5397, 16
      %v5480 = vshll.u32 %v5397, 16
      %v5482 = vrot.slane %v5480, 1
      %v5483 = vor.u32 %v5478, %v5482
      %v5485 = vshll.u32 %v5461, 16
      %v5487 = vrot.slane %v5485, 1
      %v5488 = vsel %vm1486, %v5483, %v5487
      %v5490 = vshrl.u32 %v5398, 16
      %v5492 = vshll.u32 %v5398, 16
      %v5494 = vrot.slane %v5492, 1
      %v5495 = vor.u32 %v5490, %v5494
      %v5497 = vshll.u32 %v5462, 16
      %v5499 = vrot.slane %v5497, 1
      %v5500 = vsel %vm1486, %v5495, %v5499
      %v5502 = vshrl.u32 %v5399, 16
      %v5504 = vshll.u32 %v5399, 16
      %v5506 = vrot.slane %v5504, 1
      %v5507 = vor.u32 %v5502, %v5506
      %v5509 = vshll.u32 %v5463, 16
      %v5511 = vrot.slane %v5509, 1
      %v5512 = vsel %vm1486, %v5507, %v5511
      %v5514 = vshrl.u32 %v5400, 16
      %v5516 = vshll.u32 %v5400, 16
      %v5518 = vrot.slane %v5516, 1
      %v5519 = vor.u32 %v5514, %v5518
      %v5521 = vshll.u32 %v5464, 16
      %v5523 = vrot.slane %v5521, 1
      %v5524 = vsel %vm1486, %v5519, %v5523
      %v5526 = vshrl.u32 %v5401, 16
      %v5528 = vshll.u32 %v5401, 16
      %v5530 = vrot.slane %v5528, 1
      %v5531 = vor.u32 %v5526, %v5530
      %v5533 = vshll.u32 %v5465, 16
      %v5535 = vrot.slane %v5533, 1
      %v5536 = vsel %vm1486, %v5531, %v5535
      %v5538 = vshrl.u32 %v5402, 16
      %v5540 = vshll.u32 %v5402, 16
      %v5542 = vrot.slane %v5540, 1
      %v5543 = vor.u32 %v5538, %v5542
      %v5545 = vshll.u32 %v5466, 16
      %v5547 = vrot.slane %v5545, 1
      %v5548 = vsel %vm1486, %v5543, %v5547
      %v5550 = vshrl.u32 %v5403, 16
      %v5552 = vshll.u32 %v5403, 16
      %v5554 = vrot.slane %v5552, 1
      %v5555 = vor.u32 %v5550, %v5554
      %v5557 = vshll.u32 %v5467, 16
      %v5559 = vrot.slane %v5557, 1
      %v5560 = vsel %vm1486, %v5555, %v5559
      %v5562 = vshrl.u32 %v5404, 16
      %v5564 = vshll.u32 %v5404, 16
      %v5566 = vrot.slane %v5564, 1
      %v5567 = vor.u32 %v5562, %v5566
      %v5569 = vshll.u32 %v5468, 16
      %v5571 = vrot.slane %v5569, 1
      %v5572 = vsel %vm1486, %v5567, %v5571
      %v5574 = vshrl.u32 %v5405, 16
      %v5576 = vshll.u32 %v5405, 16
      %v5578 = vrot.slane %v5576, 1
      %v5579 = vor.u32 %v5574, %v5578
      %v5581 = vshll.u32 %v5469, 16
      %v5583 = vrot.slane %v5581, 1
      %v5584 = vsel %vm1486, %v5579, %v5583
      %v5586 = vshrl.u32 %v5406, 16
      %v5588 = vshll.u32 %v5406, 16
      %v5590 = vrot.slane %v5588, 1
      %v5591 = vor.u32 %v5586, %v5590
      %v5593 = vshll.u32 %v5470, 16
      %v5595 = vrot.slane %v5593, 1
      %v5596 = vsel %vm1486, %v5591, %v5595
      %v5598 = vshrl.u32 %v5407, 16
      %v5600 = vshll.u32 %v5407, 16
      %v5602 = vrot.slane %v5600, 1
      %v5603 = vor.u32 %v5598, %v5602
      %v5605 = vshll.u32 %v5471, 16
      %v5607 = vrot.slane %v5605, 1
      %v5608 = vsel %vm1486, %v5603, %v5607
      %v5610 = vshrl.u32 %v5408, 16
      %v5612 = vshll.u32 %v5408, 16
      %v5614 = vrot.slane %v5612, 1
      %v5615 = vor.u32 %v5610, %v5614
      %v5617 = vshll.u32 %v5472, 16
      %v5619 = vrot.slane %v5617, 1
      %v5620 = vsel %vm1486, %v5615, %v5619
      %v5622 = vshrl.u32 %v5409, 16
      %v5624 = vshll.u32 %v5409, 16
      %v5626 = vrot.slane %v5624, 1
      %v5627 = vor.u32 %v5622, %v5626
      %v5629 = vshll.u32 %v5473, 16
      %v5631 = vrot.slane %v5629, 1
      %v5632 = vsel %vm1486, %v5627, %v5631
      %v5634 = vshrl.u32 %v5410, 16
      %v5636 = vshll.u32 %v5410, 16
      %v5638 = vrot.slane %v5636, 1
      %v5639 = vor.u32 %v5634, %v5638
      %v5641 = vshll.u32 %v5474, 16
      %v5643 = vrot.slane %v5641, 1
      %v5644 = vsel %vm1486, %v5639, %v5643
      %v5646 = vshrl.u32 %v5411, 16
      %v5648 = vshll.u32 %v5411, 16
      %v5650 = vrot.slane %v5648, 1
      %v5651 = vor.u32 %v5646, %v5650
      %v5653 = vshll.u32 %v5475, 16
      %v5655 = vrot.slane %v5653, 1
      %v5656 = vsel %vm1486, %v5651, %v5655
      %v5658 = vshrl.u32 %v5412, 16
      %v5660 = vshll.u32 %v5412, 16
      %v5662 = vrot.slane %v5660, 1
      %v5663 = vor.u32 %v5658, %v5662
      %v5665 = vshll.u32 %v5476, 16
      %v5667 = vrot.slane %v5665, 1
      %v5668 = vsel %vm1486, %v5663, %v5667
      %v5701 = vunpack.c.l.b16 %v4789
      %v5702 = vunpack.c.l.b16 %v4790
      %v5703 = vunpack.c.l.b16 %v4791
      %v5704 = vunpack.c.l.b16 %v4792
      %v5705 = vunpack.c.l.b16 %v4793
      %v5706 = vunpack.c.l.b16 %v4794
      %v5707 = vunpack.c.l.b16 %v4795
      %v5708 = vunpack.c.l.b16 %v4796
      %v5709 = vunpack.c.l.b16 %v4797
      %v5710 = vunpack.c.l.b16 %v4798
      %v5711 = vunpack.c.l.b16 %v4799
      %v5712 = vunpack.c.l.b16 %v4800
      %v5713 = vunpack.c.l.b16 %v4801
      %v5714 = vunpack.c.l.b16 %v4802
      %v5715 = vunpack.c.l.b16 %v4803
      %v5716 = vunpack.c.l.b16 %v4804
      %v5717 = vpack.c.b16 %v5366, %v5701
      %v5718 = vpack.c.b16 %v5368, %v5702
      %v5719 = vpack.c.b16 %v5370, %v5703
      %v5720 = vpack.c.b16 %v5372, %v5704
      %v5721 = vpack.c.b16 %v5374, %v5705
      %v5722 = vpack.c.b16 %v5376, %v5706
      %v5723 = vpack.c.b16 %v5378, %v5707
      %v5724 = vpack.c.b16 %v5380, %v5708
      %v5725 = vpack.c.b16 %v5382, %v5709
      %v5726 = vpack.c.b16 %v5384, %v5710
      %v5727 = vpack.c.b16 %v5386, %v5711
      %v5728 = vpack.c.b16 %v5388, %v5712
      %v5729 = vpack.c.b16 %v5390, %v5713
      %v5730 = vpack.c.b16 %v5392, %v5714
      %v5731 = vpack.c.b16 %v5394, %v5715
      %v5732 = vpack.c.b16 %v5396, %v5716
      %v5733 = vrot.slane %v5717, 1
      %v5734 = vrot.slane %v5461, 1
      %v5735 = vsel %vm1743, %v5733, %v5734
      %v5736 = vrot.slane %v5718, 1
      %v5737 = vrot.slane %v5462, 1
      %v5738 = vsel %vm1743, %v5736, %v5737
      %v5739 = vrot.slane %v5719, 1
      %v5740 = vrot.slane %v5463, 1
      %v5741 = vsel %vm1743, %v5739, %v5740
      %v5742 = vrot.slane %v5720, 1
      %v5743 = vrot.slane %v5464, 1
      %v5744 = vsel %vm1743, %v5742, %v5743
      %v5745 = vrot.slane %v5721, 1
      %v5746 = vrot.slane %v5465, 1
      %v5747 = vsel %vm1743, %v5745, %v5746
      %v5748 = vrot.slane %v5722, 1
      %v5749 = vrot.slane %v5466, 1
      %v5750 = vsel %vm1743, %v5748, %v5749
      %v5751 = vrot.slane %v5723, 1
      %v5752 = vrot.slane %v5467, 1
      %v5753 = vsel %vm1743, %v5751, %v5752
      %v5754 = vrot.slane %v5724, 1
      %v5755 = vrot.slane %v5468, 1
      %v5756 = vsel %vm1743, %v5754, %v5755
      %v5757 = vrot.slane %v5725, 1
      %v5758 = vrot.slane %v5469, 1
      %v5759 = vsel %vm1743, %v5757, %v5758
      %v5760 = vrot.slane %v5726, 1
      %v5761 = vrot.slane %v5470, 1
      %v5762 = vsel %vm1743, %v5760, %v5761
      %v5763 = vrot.slane %v5727, 1
      %v5764 = vrot.slane %v5471, 1
      %v5765 = vsel %vm1743, %v5763, %v5764
      %v5766 = vrot.slane %v5728, 1
      %v5767 = vrot.slane %v5472, 1
      %v5768 = vsel %vm1743, %v5766, %v5767
      %v5769 = vrot.slane %v5729, 1
      %v5770 = vrot.slane %v5473, 1
      %v5771 = vsel %vm1743, %v5769, %v5770
      %v5772 = vrot.slane %v5730, 1
      %v5773 = vrot.slane %v5474, 1
      %v5774 = vsel %vm1743, %v5772, %v5773
      %v5775 = vrot.slane %v5731, 1
      %v5776 = vrot.slane %v5475, 1
      %v5777 = vsel %vm1743, %v5775, %v5776
      %v5778 = vrot.slane %v5732, 1
      %v5779 = vrot.slane %v5476, 1
      %v5780 = vsel %vm1743, %v5778, %v5779
      %v5829 = vunpack.c.l.b16 %v4805
      %v5830 = vunpack.c.l.b16 %v4806
      %v5831 = vunpack.c.l.b16 %v4807
      %v5832 = vunpack.c.l.b16 %v4808
      %v5833 = vunpack.c.l.b16 %v4809
      %v5834 = vunpack.c.l.b16 %v4810
      %v5835 = vunpack.c.l.b16 %v4811
      %v5836 = vunpack.c.l.b16 %v4812
      %v5837 = vunpack.c.l.b16 %v4813
      %v5838 = vunpack.c.l.b16 %v4814
      %v5839 = vunpack.c.l.b16 %v4815
      %v5840 = vunpack.c.l.b16 %v4816
      %v5841 = vunpack.c.l.b16 %v4817
      %v5842 = vunpack.c.l.b16 %v4818
      %v5843 = vunpack.c.l.b16 %v4819
      %v5844 = vunpack.c.l.b16 %v4820
      %v5845 = vunpack.c.l.b16 %v4821
      %v5846 = vunpack.c.l.b16 %v4822
      %v5847 = vunpack.c.l.b16 %v4823
      %v5848 = vunpack.c.l.b16 %v4824
      %v5849 = vunpack.c.l.b16 %v4825
      %v5850 = vunpack.c.l.b16 %v4826
      %v5851 = vunpack.c.l.b16 %v4827
      %v5852 = vunpack.c.l.b16 %v4828
      %v5853 = vunpack.c.l.b16 %v4829
      %v5854 = vunpack.c.l.b16 %v4830
      %v5855 = vunpack.c.l.b16 %v4831
      %v5856 = vunpack.c.l.b16 %v4832
      %v5857 = vunpack.c.l.b16 %v4833
      %v5858 = vunpack.c.l.b16 %v4834
      %v5859 = vunpack.c.l.b16 %v4835
      %v5860 = vunpack.c.l.b16 %v4836
      %v5861 = vpack.c.b16 %v5830, %v5829
      %v5862 = vpack.c.b16 %v5832, %v5831
      %v5863 = vpack.c.b16 %v5834, %v5833
      %v5864 = vpack.c.b16 %v5836, %v5835
      %v5865 = vpack.c.b16 %v5838, %v5837
      %v5866 = vpack.c.b16 %v5840, %v5839
      %v5867 = vpack.c.b16 %v5842, %v5841
      %v5868 = vpack.c.b16 %v5844, %v5843
      %v5869 = vpack.c.b16 %v5846, %v5845
      %v5870 = vpack.c.b16 %v5848, %v5847
      %v5871 = vpack.c.b16 %v5850, %v5849
      %v5872 = vpack.c.b16 %v5852, %v5851
      %v5873 = vpack.c.b16 %v5854, %v5853
      %v5874 = vpack.c.b16 %v5856, %v5855
      %v5875 = vpack.c.b16 %v5858, %v5857
      %v5876 = vpack.c.b16 %v5860, %v5859
      %v5909 = vunpack.c.l.b16 %v4837
      %v5910 = vunpack.c.l.b16 %v4838
      %v5911 = vunpack.c.l.b16 %v4839
      %v5912 = vunpack.c.l.b16 %v4840
      %v5913 = vunpack.c.l.b16 %v4841
      %v5914 = vunpack.c.l.b16 %v4842
      %v5915 = vunpack.c.l.b16 %v4843
      %v5916 = vunpack.c.l.b16 %v4844
      %v5917 = vunpack.c.l.b16 %v4845
      %v5918 = vunpack.c.l.b16 %v4846
      %v5919 = vunpack.c.l.b16 %v4847
      %v5920 = vunpack.c.l.b16 %v4848
      %v5921 = vunpack.c.l.b16 %v4849
      %v5922 = vunpack.c.l.b16 %v4850
      %v5923 = vunpack.c.l.b16 %v4851
      %v5924 = vunpack.c.l.b16 %v4852
      %v5925 = vpack.c.b16 %v5909, %v5909
      %v5926 = vpack.c.b16 %v5910, %v5910
      %v5927 = vpack.c.b16 %v5911, %v5911
      %v5928 = vpack.c.b16 %v5912, %v5912
      %v5929 = vpack.c.b16 %v5913, %v5913
      %v5930 = vpack.c.b16 %v5914, %v5914
      %v5931 = vpack.c.b16 %v5915, %v5915
      %v5932 = vpack.c.b16 %v5916, %v5916
      %v5933 = vpack.c.b16 %v5917, %v5917
      %v5934 = vpack.c.b16 %v5918, %v5918
      %v5935 = vpack.c.b16 %v5919, %v5919
      %v5936 = vpack.c.b16 %v5920, %v5920
      %v5937 = vpack.c.b16 %v5921, %v5921
      %v5938 = vpack.c.b16 %v5922, %v5922
      %v5939 = vpack.c.b16 %v5923, %v5923
      %v5940 = vpack.c.b16 %v5924, %v5924
      %v5942 = vshrl.u32 %v5861, 16
      %v5944 = vshll.u32 %v5861, 16
      %v5946 = vrot.slane %v5944, 1
      %v5947 = vor.u32 %v5942, %v5946
      %v5949 = vshll.u32 %v5925, 16
      %v5951 = vrot.slane %v5949, 1
      %v5952 = vsel %vm1486, %v5947, %v5951
      %v5954 = vshrl.u32 %v5862, 16
      %v5956 = vshll.u32 %v5862, 16
      %v5958 = vrot.slane %v5956, 1
      %v5959 = vor.u32 %v5954, %v5958
      %v5961 = vshll.u32 %v5926, 16
      %v5963 = vrot.slane %v5961, 1
      %v5964 = vsel %vm1486, %v5959, %v5963
      %v5966 = vshrl.u32 %v5863, 16
      %v5968 = vshll.u32 %v5863, 16
      %v5970 = vrot.slane %v5968, 1
      %v5971 = vor.u32 %v5966, %v5970
      %v5973 = vshll.u32 %v5927, 16
      %v5975 = vrot.slane %v5973, 1
      %v5976 = vsel %vm1486, %v5971, %v5975
      %v5978 = vshrl.u32 %v5864, 16
      %v5980 = vshll.u32 %v5864, 16
      %v5982 = vrot.slane %v5980, 1
      %v5983 = vor.u32 %v5978, %v5982
      %v5985 = vshll.u32 %v5928, 16
      %v5987 = vrot.slane %v5985, 1
      %v5988 = vsel %vm1486, %v5983, %v5987
      %v5990 = vshrl.u32 %v5865, 16
      %v5992 = vshll.u32 %v5865, 16
      %v5994 = vrot.slane %v5992, 1
      %v5995 = vor.u32 %v5990, %v5994
      %v5997 = vshll.u32 %v5929, 16
      %v5999 = vrot.slane %v5997, 1
      %v6000 = vsel %vm1486, %v5995, %v5999
      %v6002 = vshrl.u32 %v5866, 16
      %v6004 = vshll.u32 %v5866, 16
      %v6006 = vrot.slane %v6004, 1
      %v6007 = vor.u32 %v6002, %v6006
      %v6009 = vshll.u32 %v5930, 16
      %v6011 = vrot.slane %v6009, 1
      %v6012 = vsel %vm1486, %v6007, %v6011
      %v6014 = vshrl.u32 %v5867, 16
      %v6016 = vshll.u32 %v5867, 16
      %v6018 = vrot.slane %v6016, 1
      %v6019 = vor.u32 %v6014, %v6018
      %v6021 = vshll.u32 %v5931, 16
      %v6023 = vrot.slane %v6021, 1
      %v6024 = vsel %vm1486, %v6019, %v6023
      %v6026 = vshrl.u32 %v5868, 16
      %v6028 = vshll.u32 %v5868, 16
      %v6030 = vrot.slane %v6028, 1
      %v6031 = vor.u32 %v6026, %v6030
      %v6033 = vshll.u32 %v5932, 16
      %v6035 = vrot.slane %v6033, 1
      %v6036 = vsel %vm1486, %v6031, %v6035
      %v6038 = vshrl.u32 %v5869, 16
      %v6040 = vshll.u32 %v5869, 16
      %v6042 = vrot.slane %v6040, 1
      %v6043 = vor.u32 %v6038, %v6042
      %v6045 = vshll.u32 %v5933, 16
      %v6047 = vrot.slane %v6045, 1
      %v6048 = vsel %vm1486, %v6043, %v6047
      %v6050 = vshrl.u32 %v5870, 16
      %v6052 = vshll.u32 %v5870, 16
      %v6054 = vrot.slane %v6052, 1
      %v6055 = vor.u32 %v6050, %v6054
      %v6057 = vshll.u32 %v5934, 16
      %v6059 = vrot.slane %v6057, 1
      %v6060 = vsel %vm1486, %v6055, %v6059
      %v6062 = vshrl.u32 %v5871, 16
      %v6064 = vshll.u32 %v5871, 16
      %v6066 = vrot.slane %v6064, 1
      %v6067 = vor.u32 %v6062, %v6066
      %v6069 = vshll.u32 %v5935, 16
      %v6071 = vrot.slane %v6069, 1
      %v6072 = vsel %vm1486, %v6067, %v6071
      %v6074 = vshrl.u32 %v5872, 16
      %v6076 = vshll.u32 %v5872, 16
      %v6078 = vrot.slane %v6076, 1
      %v6079 = vor.u32 %v6074, %v6078
      %v6081 = vshll.u32 %v5936, 16
      %v6083 = vrot.slane %v6081, 1
      %v6084 = vsel %vm1486, %v6079, %v6083
      %v6086 = vshrl.u32 %v5873, 16
      %v6088 = vshll.u32 %v5873, 16
      %v6090 = vrot.slane %v6088, 1
      %v6091 = vor.u32 %v6086, %v6090
      %v6093 = vshll.u32 %v5937, 16
      %v6095 = vrot.slane %v6093, 1
      %v6096 = vsel %vm1486, %v6091, %v6095
      %v6098 = vshrl.u32 %v5874, 16
      %v6100 = vshll.u32 %v5874, 16
      %v6102 = vrot.slane %v6100, 1
      %v6103 = vor.u32 %v6098, %v6102
      %v6105 = vshll.u32 %v5938, 16
      %v6107 = vrot.slane %v6105, 1
      %v6108 = vsel %vm1486, %v6103, %v6107
      %v6110 = vshrl.u32 %v5875, 16
      %v6112 = vshll.u32 %v5875, 16
      %v6114 = vrot.slane %v6112, 1
      %v6115 = vor.u32 %v6110, %v6114
      %v6117 = vshll.u32 %v5939, 16
      %v6119 = vrot.slane %v6117, 1
      %v6120 = vsel %vm1486, %v6115, %v6119
      %v6122 = vshrl.u32 %v5876, 16
      %v6124 = vshll.u32 %v5876, 16
      %v6126 = vrot.slane %v6124, 1
      %v6127 = vor.u32 %v6122, %v6126
      %v6129 = vshll.u32 %v5940, 16
      %v6131 = vrot.slane %v6129, 1
      %v6132 = vsel %vm1486, %v6127, %v6131
      %v6165 = vunpack.c.l.b16 %v4853
      %v6166 = vunpack.c.l.b16 %v4854
      %v6167 = vunpack.c.l.b16 %v4855
      %v6168 = vunpack.c.l.b16 %v4856
      %v6169 = vunpack.c.l.b16 %v4857
      %v6170 = vunpack.c.l.b16 %v4858
      %v6171 = vunpack.c.l.b16 %v4859
      %v6172 = vunpack.c.l.b16 %v4860
      %v6173 = vunpack.c.l.b16 %v4861
      %v6174 = vunpack.c.l.b16 %v4862
      %v6175 = vunpack.c.l.b16 %v4863
      %v6176 = vunpack.c.l.b16 %v4864
      %v6177 = vunpack.c.l.b16 %v4865
      %v6178 = vunpack.c.l.b16 %v4866
      %v6179 = vunpack.c.l.b16 %v4867
      %v6180 = vunpack.c.l.b16 %v4868
      %v6181 = vpack.c.b16 %v5830, %v6165
      %v6182 = vpack.c.b16 %v5832, %v6166
      %v6183 = vpack.c.b16 %v5834, %v6167
      %v6184 = vpack.c.b16 %v5836, %v6168
      %v6185 = vpack.c.b16 %v5838, %v6169
      %v6186 = vpack.c.b16 %v5840, %v6170
      %v6187 = vpack.c.b16 %v5842, %v6171
      %v6188 = vpack.c.b16 %v5844, %v6172
      %v6189 = vpack.c.b16 %v5846, %v6173
      %v6190 = vpack.c.b16 %v5848, %v6174
      %v6191 = vpack.c.b16 %v5850, %v6175
      %v6192 = vpack.c.b16 %v5852, %v6176
      %v6193 = vpack.c.b16 %v5854, %v6177
      %v6194 = vpack.c.b16 %v5856, %v6178
      %v6195 = vpack.c.b16 %v5858, %v6179
      %v6196 = vpack.c.b16 %v5860, %v6180
      %v6197 = vrot.slane %v6181, 1
      %v6198 = vrot.slane %v5925, 1
      %v6199 = vsel %vm1743, %v6197, %v6198
      %v6200 = vrot.slane %v6182, 1
      %v6201 = vrot.slane %v5926, 1
      %v6202 = vsel %vm1743, %v6200, %v6201
      %v6203 = vrot.slane %v6183, 1
      %v6204 = vrot.slane %v5927, 1
      %v6205 = vsel %vm1743, %v6203, %v6204
      %v6206 = vrot.slane %v6184, 1
      %v6207 = vrot.slane %v5928, 1
      %v6208 = vsel %vm1743, %v6206, %v6207
      %v6209 = vrot.slane %v6185, 1
      %v6210 = vrot.slane %v5929, 1
      %v6211 = vsel %vm1743, %v6209, %v6210
      %v6212 = vrot.slane %v6186, 1
      %v6213 = vrot.slane %v5930, 1
      %v6214 = vsel %vm1743, %v6212, %v6213
      %v6215 = vrot.slane %v6187, 1
      %v6216 = vrot.slane %v5931, 1
      %v6217 = vsel %vm1743, %v6215, %v6216
      %v6218 = vrot.slane %v6188, 1
      %v6219 = vrot.slane %v5932, 1
      %v6220 = vsel %vm1743, %v6218, %v6219
      %v6221 = vrot.slane %v6189, 1
      %v6222 = vrot.slane %v5933, 1
      %v6223 = vsel %vm1743, %v6221, %v6222
      %v6224 = vrot.slane %v6190, 1
      %v6225 = vrot.slane %v5934, 1
      %v6226 = vsel %vm1743, %v6224, %v6225
      %v6227 = vrot.slane %v6191, 1
      %v6228 = vrot.slane %v5935, 1
      %v6229 = vsel %vm1743, %v6227, %v6228
      %v6230 = vrot.slane %v6192, 1
      %v6231 = vrot.slane %v5936, 1
      %v6232 = vsel %vm1743, %v6230, %v6231
      %v6233 = vrot.slane %v6193, 1
      %v6234 = vrot.slane %v5937, 1
      %v6235 = vsel %vm1743, %v6233, %v6234
      %v6236 = vrot.slane %v6194, 1
      %v6237 = vrot.slane %v5938, 1
      %v6238 = vsel %vm1743, %v6236, %v6237
      %v6239 = vrot.slane %v6195, 1
      %v6240 = vrot.slane %v5939, 1
      %v6241 = vsel %vm1743, %v6239, %v6240
      %v6242 = vrot.slane %v6196, 1
      %v6243 = vrot.slane %v5940, 1
      %v6244 = vsel %vm1743, %v6242, %v6243
      %v6261 = vld [vmem:[%s3] sm:$0xf]
      %v6262 = vld [vmem:[%s3 + $0x4] sm:$0xf]
      %v6263 = vld [vmem:[%s3 + $0x8] sm:$0xf]
      %v6264 = vld [vmem:[%s3 + $0xc] sm:$0xf]
      %v6265 = vld [vmem:[%s3 + $0x10] sm:$0xf]
      %v6266 = vld [vmem:[%s3 + $0x14] sm:$0xf]
      %v6267 = vld [vmem:[%s3 + $0x18] sm:$0xf]
      %v6268 = vld [vmem:[%s3 + $0x1c] sm:$0xf]
      %v6269 = vld [vmem:[%s3 + $0x20] sm:$0xf]
      %v6270 = vld [vmem:[%s3 + $0x24] sm:$0xf]
      %v6271 = vld [vmem:[%s3 + $0x28] sm:$0xf]
      %v6272 = vld [vmem:[%s3 + $0x2c] sm:$0xf]
      %v6273 = vld [vmem:[%s3 + $0x30] sm:$0xf]
      %v6274 = vld [vmem:[%s3 + $0x34] sm:$0xf]
      %v6275 = vld [vmem:[%s3 + $0x38] sm:$0xf]
      %v6276 = vld [vmem:[%s3 + $0x3c] sm:$0xf]
      %v6277 = vld [vmem:[%s3 + $0x40] sm:$0xf]
      %v6278 = vld [vmem:[%s3 + $0x44] sm:$0xf]
      %v6279 = vld [vmem:[%s3 + $0x48] sm:$0xf]
      %v6280 = vld [vmem:[%s3 + $0x4c] sm:$0xf]
      %v6281 = vld [vmem:[%s3 + $0x50] sm:$0xf]
      %v6282 = vld [vmem:[%s3 + $0x54] sm:$0xf]
      %v6283 = vld [vmem:[%s3 + $0x58] sm:$0xf]
      %v6284 = vld [vmem:[%s3 + $0x5c] sm:$0xf]
      %v6285 = vld [vmem:[%s3 + $0x60] sm:$0xf]
      %v6286 = vld [vmem:[%s3 + $0x64] sm:$0xf]
      %v6287 = vld [vmem:[%s3 + $0x68] sm:$0xf]
      %v6288 = vld [vmem:[%s3 + $0x6c] sm:$0xf]
      %v6289 = vld [vmem:[%s3 + $0x70] sm:$0xf]
      %v6290 = vld [vmem:[%s3 + $0x74] sm:$0xf]
      %v6291 = vld [vmem:[%s3 + $0x78] sm:$0xf]
      %v6292 = vld [vmem:[%s3 + $0x7c] sm:$0xf]
      %v6293 = vld [vmem:[%s3 + $0x80] sm:$0xf]
      %v6294 = vld [vmem:[%s3 + $0x84] sm:$0xf]
      %v6295 = vld [vmem:[%s3 + $0x88] sm:$0xf]
      %v6296 = vld [vmem:[%s3 + $0x8c] sm:$0xf]
      %v6297 = vld [vmem:[%s3 + $0x90] sm:$0xf]
      %v6298 = vld [vmem:[%s3 + $0x94] sm:$0xf]
      %v6299 = vld [vmem:[%s3 + $0x98] sm:$0xf]
      %v6300 = vld [vmem:[%s3 + $0x9c] sm:$0xf]
      %v6301 = vld [vmem:[%s3 + $0xa0] sm:$0xf]
      %v6302 = vld [vmem:[%s3 + $0xa4] sm:$0xf]
      %v6303 = vld [vmem:[%s3 + $0xa8] sm:$0xf]
      %v6304 = vld [vmem:[%s3 + $0xac] sm:$0xf]
      %v6305 = vld [vmem:[%s3 + $0xb0] sm:$0xf]
      %v6306 = vld [vmem:[%s3 + $0xb4] sm:$0xf]
      %v6307 = vld [vmem:[%s3 + $0xb8] sm:$0xf]
      %v6308 = vld [vmem:[%s3 + $0xbc] sm:$0xf]
      %v6309 = vld [vmem:[%s3 + $0xc0] sm:$0xf]
      %v6310 = vld [vmem:[%s3 + $0xc4] sm:$0xf]
      %v6311 = vld [vmem:[%s3 + $0xc8] sm:$0xf]
      %v6312 = vld [vmem:[%s3 + $0xcc] sm:$0xf]
      %v6313 = vld [vmem:[%s3 + $0xd0] sm:$0xf]
      %v6314 = vld [vmem:[%s3 + $0xd4] sm:$0xf]
      %v6315 = vld [vmem:[%s3 + $0xd8] sm:$0xf]
      %v6316 = vld [vmem:[%s3 + $0xdc] sm:$0xf]
      %v6317 = vld [vmem:[%s3 + $0xe0] sm:$0xf]
      %v6318 = vld [vmem:[%s3 + $0xe4] sm:$0xf]
      %v6319 = vld [vmem:[%s3 + $0xe8] sm:$0xf]
      %v6320 = vld [vmem:[%s3 + $0xec] sm:$0xf]
      %v6321 = vld [vmem:[%s3 + $0xf0] sm:$0xf]
      %v6322 = vld [vmem:[%s3 + $0xf4] sm:$0xf]
      %v6323 = vld [vmem:[%s3 + $0xf8] sm:$0xf]
      %v6324 = vld [vmem:[%s3 + $0xfc] sm:$0xf]
      %v6325 = vld [vmem:[%s3 + $0x100] sm:$0xf]
      %v6326 = vld [vmem:[%s3 + $0x104] sm:$0xf]
      %v6327 = vld [vmem:[%s3 + $0x108] sm:$0xf]
      %v6328 = vld [vmem:[%s3 + $0x10c] sm:$0xf]
      %v6329 = vld [vmem:[%s3 + $0x110] sm:$0xf]
      %v6330 = vld [vmem:[%s3 + $0x114] sm:$0xf]
      %v6331 = vld [vmem:[%s3 + $0x118] sm:$0xf]
      %v6332 = vld [vmem:[%s3 + $0x11c] sm:$0xf]
      %v6333 = vld [vmem:[%s3 + $0x120] sm:$0xf]
      %v6334 = vld [vmem:[%s3 + $0x124] sm:$0xf]
      %v6335 = vld [vmem:[%s3 + $0x128] sm:$0xf]
      %v6336 = vld [vmem:[%s3 + $0x12c] sm:$0xf]
      %v6337 = vld [vmem:[%s3 + $0x130] sm:$0xf]
      %v6338 = vld [vmem:[%s3 + $0x134] sm:$0xf]
      %v6339 = vld [vmem:[%s3 + $0x138] sm:$0xf]
      %v6340 = vld [vmem:[%s3 + $0x13c] sm:$0xf]
      %v6341 = vld [vmem:[%s3 + $0x140] sm:$0xf]
      %v6342 = vld [vmem:[%s3 + $0x144] sm:$0xf]
      %v6343 = vld [vmem:[%s3 + $0x148] sm:$0xf]
      %v6344 = vld [vmem:[%s3 + $0x14c] sm:$0xf]
      %v6345 = vld [vmem:[%s3 + $0x150] sm:$0xf]
      %v6346 = vld [vmem:[%s3 + $0x154] sm:$0xf]
      %v6347 = vld [vmem:[%s3 + $0x158] sm:$0xf]
      %v6348 = vld [vmem:[%s3 + $0x15c] sm:$0xf]
      %v6349 = vld [vmem:[%s3 + $0x160] sm:$0xf]
      %v6350 = vld [vmem:[%s3 + $0x164] sm:$0xf]
      %v6351 = vld [vmem:[%s3 + $0x168] sm:$0xf]
      %v6352 = vld [vmem:[%s3 + $0x16c] sm:$0xf]
      %v6353 = vld [vmem:[%s3 + $0x170] sm:$0xf]
      %v6354 = vld [vmem:[%s3 + $0x174] sm:$0xf]
      %v6355 = vld [vmem:[%s3 + $0x178] sm:$0xf]
      %v6356 = vld [vmem:[%s3 + $0x17c] sm:$0xf]
      %v6357 = vld [vmem:[%s3 + $0x180] sm:$0xf]
      %v6358 = vld [vmem:[%s3 + $0x184] sm:$0xf]
      %v6359 = vld [vmem:[%s3 + $0x188] sm:$0xf]
      %v6360 = vld [vmem:[%s3 + $0x18c] sm:$0xf]
      %v6361 = vld [vmem:[%s3 + $0x190] sm:$0xf]
      %v6362 = vld [vmem:[%s3 + $0x194] sm:$0xf]
      %v6363 = vld [vmem:[%s3 + $0x198] sm:$0xf]
      %v6364 = vld [vmem:[%s3 + $0x19c] sm:$0xf]
      %v6365 = vld [vmem:[%s3 + $0x1a0] sm:$0xf]
      %v6366 = vld [vmem:[%s3 + $0x1a4] sm:$0xf]
      %v6367 = vld [vmem:[%s3 + $0x1a8] sm:$0xf]
      %v6368 = vld [vmem:[%s3 + $0x1ac] sm:$0xf]
      %v6369 = vld [vmem:[%s3 + $0x1b0] sm:$0xf]
      %v6370 = vld [vmem:[%s3 + $0x1b4] sm:$0xf]
      %v6371 = vld [vmem:[%s3 + $0x1b8] sm:$0xf]
      %v6372 = vld [vmem:[%s3 + $0x1bc] sm:$0xf]
      %v6373 = vld [vmem:[%s3 + $0x1c0] sm:$0xf]
      %v6374 = vld [vmem:[%s3 + $0x1c4] sm:$0xf]
      %v6375 = vld [vmem:[%s3 + $0x1c8] sm:$0xf]
      %v6376 = vld [vmem:[%s3 + $0x1cc] sm:$0xf]
      %v6377 = vld [vmem:[%s3 + $0x1d0] sm:$0xf]
      %v6378 = vld [vmem:[%s3 + $0x1d4] sm:$0xf]
      %v6379 = vld [vmem:[%s3 + $0x1d8] sm:$0xf]
      %v6380 = vld [vmem:[%s3 + $0x1dc] sm:$0xf]
      %v6381 = vld [vmem:[%s3 + $0x1e0] sm:$0xf]
      %v6382 = vld [vmem:[%s3 + $0x1e4] sm:$0xf]
      %v6383 = vld [vmem:[%s3 + $0x1e8] sm:$0xf]
      %v6384 = vld [vmem:[%s3 + $0x1ec] sm:$0xf]
      %v6385 = vld [vmem:[%s3 + $0x1f0] sm:$0xf]
      %v6386 = vld [vmem:[%s3 + $0x1f4] sm:$0xf]
      %v6387 = vld [vmem:[%s3 + $0x1f8] sm:$0xf]
      %v6388 = vld [vmem:[%s3 + $0x1fc] sm:$0xf]
      %v6389 = vld [vmem:[%s3 + $0x200] sm:$0xf]
      %v6390 = vld [vmem:[%s3 + $0x204] sm:$0xf]
      %v6391 = vld [vmem:[%s3 + $0x208] sm:$0xf]
      %v6392 = vld [vmem:[%s3 + $0x20c] sm:$0xf]
      %v6393 = vld [vmem:[%s3 + $0x210] sm:$0xf]
      %v6394 = vld [vmem:[%s3 + $0x214] sm:$0xf]
      %v6395 = vld [vmem:[%s3 + $0x218] sm:$0xf]
      %v6396 = vld [vmem:[%s3 + $0x21c] sm:$0xf]
      %v6397 = vld [vmem:[%s3 + $0x220] sm:$0xf]
      %v6398 = vld [vmem:[%s3 + $0x224] sm:$0xf]
      %v6399 = vld [vmem:[%s3 + $0x228] sm:$0xf]
      %v6400 = vld [vmem:[%s3 + $0x22c] sm:$0xf]
      %v6401 = vld [vmem:[%s3 + $0x230] sm:$0xf]
      %v6402 = vld [vmem:[%s3 + $0x234] sm:$0xf]
      %v6403 = vld [vmem:[%s3 + $0x238] sm:$0xf]
      %v6404 = vld [vmem:[%s3 + $0x23c] sm:$0xf]
      %v6405 = vld [vmem:[%s4] sm:$0x1]
      %v6407 = vperm.slane %v6405, 0
      %v6553 = vunpack.c.l.b16 %v6261
      %v6554 = vunpack.c.l.b16 %v6262
      %v6555 = vunpack.c.l.b16 %v6263
      %v6556 = vunpack.c.l.b16 %v6264
      %v6557 = vunpack.c.l.b16 %v6265
      %v6558 = vunpack.c.l.b16 %v6266
      %v6559 = vunpack.c.l.b16 %v6267
      %v6560 = vunpack.c.l.b16 %v6268
      %v6561 = vunpack.c.l.b16 %v6269
      %v6562 = vunpack.c.l.b16 %v6270
      %v6563 = vunpack.c.l.b16 %v6271
      %v6564 = vunpack.c.l.b16 %v6272
      %v6565 = vunpack.c.l.b16 %v6273
      %v6566 = vunpack.c.l.b16 %v6274
      %v6567 = vunpack.c.l.b16 %v6275
      %v6568 = vunpack.c.l.b16 %v6276
      %v6569 = vunpack.c.l.b16 %v6277
      %v6570 = vunpack.c.l.b16 %v6278
      %v6571 = vunpack.c.l.b16 %v6279
      %v6572 = vunpack.c.l.b16 %v6280
      %v6573 = vunpack.c.l.b16 %v6281
      %v6574 = vunpack.c.l.b16 %v6282
      %v6575 = vunpack.c.l.b16 %v6283
      %v6576 = vunpack.c.l.b16 %v6284
      %v6577 = vunpack.c.l.b16 %v6285
      %v6578 = vunpack.c.l.b16 %v6286
      %v6579 = vunpack.c.l.b16 %v6287
      %v6580 = vunpack.c.l.b16 %v6288
      %v6581 = vunpack.c.l.b16 %v6289
      %v6582 = vunpack.c.l.b16 %v6290
      %v6583 = vunpack.c.l.b16 %v6291
      %v6584 = vunpack.c.l.b16 %v6292
      %v6585 = vunpack.c.l.b16 %v6293
      %v6586 = vunpack.c.l.b16 %v6294
      %v6587 = vunpack.c.l.b16 %v6295
      %v6588 = vunpack.c.l.b16 %v6296
      %v6589 = vunpack.c.l.b16 %v6297
      %v6590 = vunpack.c.l.b16 %v6298
      %v6591 = vunpack.c.l.b16 %v6299
      %v6592 = vunpack.c.l.b16 %v6300
      %v6593 = vunpack.c.l.b16 %v6301
      %v6594 = vunpack.c.l.b16 %v6302
      %v6595 = vunpack.c.l.b16 %v6303
      %v6596 = vunpack.c.l.b16 %v6304
      %v6597 = vunpack.c.l.b16 %v6305
      %v6598 = vunpack.c.l.b16 %v6306
      %v6599 = vunpack.c.l.b16 %v6307
      %v6600 = vunpack.c.l.b16 %v6308
      %v6601 = vunpack.c.l.b16 %v6309
      %v6602 = vunpack.c.l.b16 %v6310
      %v6603 = vunpack.c.l.b16 %v6311
      %v6604 = vunpack.c.l.b16 %v6312
      %v6605 = vunpack.c.l.b16 %v6313
      %v6606 = vunpack.c.l.b16 %v6314
      %v6607 = vunpack.c.l.b16 %v6315
      %v6608 = vunpack.c.l.b16 %v6316
      %v6609 = vunpack.c.l.b16 %v6317
      %v6610 = vunpack.c.l.b16 %v6318
      %v6611 = vunpack.c.l.b16 %v6319
      %v6612 = vunpack.c.l.b16 %v6320
      %v6613 = vunpack.c.l.b16 %v6321
      %v6614 = vunpack.c.l.b16 %v6322
      %v6615 = vunpack.c.l.b16 %v6323
      %v6616 = vunpack.c.l.b16 %v6324
      %v6617 = vunpack.c.l.b16 %v6325
      %v6618 = vunpack.c.l.b16 %v6326
      %v6619 = vunpack.c.l.b16 %v6327
      %v6620 = vunpack.c.l.b16 %v6328
      %v6621 = vunpack.c.l.b16 %v6329
      %v6622 = vunpack.c.l.b16 %v6330
      %v6623 = vunpack.c.l.b16 %v6331
      %v6624 = vunpack.c.l.b16 %v6332
      %v6625 = vunpack.c.l.b16 %v6333
      %v6626 = vunpack.c.l.b16 %v6334
      %v6627 = vunpack.c.l.b16 %v6335
      %v6628 = vunpack.c.l.b16 %v6336
      %v6629 = vunpack.c.l.b16 %v6337
      %v6630 = vunpack.c.l.b16 %v6338
      %v6631 = vunpack.c.l.b16 %v6339
      %v6632 = vunpack.c.l.b16 %v6340
      %v6633 = vunpack.c.l.b16 %v6341
      %v6634 = vunpack.c.l.b16 %v6342
      %v6635 = vunpack.c.l.b16 %v6343
      %v6636 = vunpack.c.l.b16 %v6344
      %v6637 = vunpack.c.l.b16 %v6345
      %v6638 = vunpack.c.l.b16 %v6346
      %v6639 = vunpack.c.l.b16 %v6347
      %v6640 = vunpack.c.l.b16 %v6348
      %v6641 = vunpack.c.l.b16 %v6349
      %v6642 = vunpack.c.l.b16 %v6350
      %v6643 = vunpack.c.l.b16 %v6351
      %v6644 = vunpack.c.l.b16 %v6352
      %v6645 = vunpack.c.l.b16 %v6353
      %v6646 = vunpack.c.l.b16 %v6354
      %v6647 = vunpack.c.l.b16 %v6355
      %v6648 = vunpack.c.l.b16 %v6356
      %v6649 = vunpack.c.l.b16 %v6357
      %v6650 = vunpack.c.l.b16 %v6358
      %v6651 = vunpack.c.l.b16 %v6359
      %v6652 = vunpack.c.l.b16 %v6360
      %v6653 = vunpack.c.l.b16 %v6361
      %v6654 = vunpack.c.l.b16 %v6362
      %v6655 = vunpack.c.l.b16 %v6363
      %v6656 = vunpack.c.l.b16 %v6364
      %v6657 = vunpack.c.l.b16 %v6365
      %v6658 = vunpack.c.l.b16 %v6366
      %v6659 = vunpack.c.l.b16 %v6367
      %v6660 = vunpack.c.l.b16 %v6368
      %v6661 = vunpack.c.l.b16 %v6369
      %v6662 = vunpack.c.l.b16 %v6370
      %v6663 = vunpack.c.l.b16 %v6371
      %v6664 = vunpack.c.l.b16 %v6372
      %v6665 = vunpack.c.l.b16 %v6373
      %v6666 = vunpack.c.l.b16 %v6374
      %v6667 = vunpack.c.l.b16 %v6375
      %v6668 = vunpack.c.l.b16 %v6376
      %v6669 = vunpack.c.l.b16 %v6377
      %v6670 = vunpack.c.l.b16 %v6378
      %v6671 = vunpack.c.l.b16 %v6379
      %v6672 = vunpack.c.l.b16 %v6380
      %v6673 = vunpack.c.l.b16 %v6381
      %v6674 = vunpack.c.l.b16 %v6382
      %v6675 = vunpack.c.l.b16 %v6383
      %v6676 = vunpack.c.l.b16 %v6384
      %v6677 = vunpack.c.l.b16 %v6385
      %v6678 = vunpack.c.l.b16 %v6386
      %v6679 = vunpack.c.l.b16 %v6387
      %v6680 = vunpack.c.l.b16 %v6388
      %v6681 = vunpack.c.l.b16 %v6389
      %v6682 = vunpack.c.l.b16 %v6390
      %v6683 = vunpack.c.l.b16 %v6391
      %v6684 = vunpack.c.l.b16 %v6392
      %v6685 = vunpack.c.l.b16 %v6393
      %v6686 = vunpack.c.l.b16 %v6394
      %v6687 = vunpack.c.l.b16 %v6395
      %v6688 = vunpack.c.l.b16 %v6396
      %v6689 = vunpack.c.l.b16 %v6397
      %v6690 = vunpack.c.l.b16 %v6398
      %v6691 = vunpack.c.l.b16 %v6399
      %v6692 = vunpack.c.l.b16 %v6400
      %v6693 = vunpack.c.l.b16 %v6401
      %v6694 = vunpack.c.l.b16 %v6402
      %v6695 = vunpack.c.l.b16 %v6403
      %v6696 = vunpack.c.l.b16 %v6404
      %v6697 = vpack.c.b16 %v6554, %v6553
      %v6698 = vpack.c.b16 %v6556, %v6555
      %v6699 = vpack.c.b16 %v6558, %v6557
      %v6700 = vpack.c.b16 %v6560, %v6559
      %v6701 = vpack.c.b16 %v6562, %v6561
      %v6702 = vpack.c.b16 %v6564, %v6563
      %v6703 = vpack.c.b16 %v6566, %v6565
      %v6704 = vpack.c.b16 %v6568, %v6567
      %v6705 = vpack.c.b16 %v6570, %v6569
      %v6706 = vpack.c.b16 %v6572, %v6571
      %v6707 = vpack.c.b16 %v6574, %v6573
      %v6708 = vpack.c.b16 %v6576, %v6575
      %v6709 = vpack.c.b16 %v6578, %v6577
      %v6710 = vpack.c.b16 %v6580, %v6579
      %v6711 = vpack.c.b16 %v6582, %v6581
      %v6712 = vpack.c.b16 %v6584, %v6583
      %v6713 = vpack.c.b16 %v6586, %v6585
      %v6714 = vpack.c.b16 %v6588, %v6587
      %v6715 = vpack.c.b16 %v6590, %v6589
      %v6716 = vpack.c.b16 %v6592, %v6591
      %v6717 = vpack.c.b16 %v6594, %v6593
      %v6718 = vpack.c.b16 %v6596, %v6595
      %v6719 = vpack.c.b16 %v6598, %v6597
      %v6720 = vpack.c.b16 %v6600, %v6599
      %v6721 = vpack.c.b16 %v6602, %v6601
      %v6722 = vpack.c.b16 %v6604, %v6603
      %v6723 = vpack.c.b16 %v6606, %v6605
      %v6724 = vpack.c.b16 %v6608, %v6607
      %v6725 = vpack.c.b16 %v6610, %v6609
      %v6726 = vpack.c.b16 %v6612, %v6611
      %v6727 = vpack.c.b16 %v6614, %v6613
      %v6728 = vpack.c.b16 %v6616, %v6615
      %v6729 = vpack.c.b16 %v6618, %v6617
      %v6730 = vpack.c.b16 %v6620, %v6619
      %v6731 = vpack.c.b16 %v6622, %v6621
      %v6732 = vpack.c.b16 %v6624, %v6623
      %v6733 = vpack.c.b16 %v6626, %v6625
      %v6734 = vpack.c.b16 %v6628, %v6627
      %v6735 = vpack.c.b16 %v6630, %v6629
      %v6736 = vpack.c.b16 %v6632, %v6631
      %v6737 = vpack.c.b16 %v6634, %v6633
      %v6738 = vpack.c.b16 %v6636, %v6635
      %v6739 = vpack.c.b16 %v6638, %v6637
      %v6740 = vpack.c.b16 %v6640, %v6639
      %v6741 = vpack.c.b16 %v6642, %v6641
      %v6742 = vpack.c.b16 %v6644, %v6643
      %v6743 = vpack.c.b16 %v6646, %v6645
      %v6744 = vpack.c.b16 %v6648, %v6647
      %v6745 = vpack.c.b16 %v6650, %v6649
      %v6746 = vpack.c.b16 %v6652, %v6651
      %v6747 = vpack.c.b16 %v6654, %v6653
      %v6748 = vpack.c.b16 %v6656, %v6655
      %v6749 = vpack.c.b16 %v6658, %v6657
      %v6750 = vpack.c.b16 %v6660, %v6659
      %v6751 = vpack.c.b16 %v6662, %v6661
      %v6752 = vpack.c.b16 %v6664, %v6663
      %v6753 = vpack.c.b16 %v6666, %v6665
      %v6754 = vpack.c.b16 %v6668, %v6667
      %v6755 = vpack.c.b16 %v6670, %v6669
      %v6756 = vpack.c.b16 %v6672, %v6671
      %v6757 = vpack.c.b16 %v6674, %v6673
      %v6758 = vpack.c.b16 %v6676, %v6675
      %v6759 = vpack.c.b16 %v6678, %v6677
      %v6760 = vpack.c.b16 %v6680, %v6679
      %v6761 = vpack.c.b16 %v6682, %v6681
      %v6762 = vpack.c.b16 %v6684, %v6683
      %v6763 = vpack.c.b16 %v6686, %v6685
      %v6764 = vpack.c.b16 %v6688, %v6687
      %v6765 = vpack.c.b16 %v6690, %v6689
      %v6766 = vpack.c.b16 %v6692, %v6691
      %v6767 = vpack.c.b16 %v6694, %v6693
      %v6768 = vpack.c.b16 %v6696, %v6695
      %6841 = vmatpush.bf16.msra.mxu0 %v6704
      %6842 = vmatpush.bf16.msra.mxu0 %v6703
      %6843 = vmatpush.bf16.msra.mxu0 %v6702
      %6844 = vmatpush.bf16.msra.mxu0 %v6701
      %6845 = vmatpush.bf16.msra.mxu0 %v6700
      %6846 = vmatpush.bf16.msra.mxu0 %v6699
      %6847 = vmatpush.bf16.msra.mxu0 %v6698
      %6848 = vmatpush.bf16.msra.mxu0 %v6697
      %6849 = vmatmul.bf16.gmra.mxu0 %v4933
      %v6850 = vpop.f32.mrf.mxu0
      %v6851 = vadd.f32 %v6407, %v6850
      %v6852 = vpop.f32.mrf.mxu0
      %v6853 = vadd.f32 %v6407, %v6852
      %6854 = vmatmul.bf16.gmra.mxu0 %v4934
      %v6855 = vpop.f32.mrf.mxu0
      %v6856 = vadd.f32 %v6407, %v6855
      %v6857 = vpop.f32.mrf.mxu0
      %v6858 = vadd.f32 %v6407, %v6857
      %6859 = vmatmul.bf16.gmra.mxu0 %v4935
      %v6860 = vpop.f32.mrf.mxu0
      %v6861 = vadd.f32 %v6407, %v6860
      %v6862 = vpop.f32.mrf.mxu0
      %v6863 = vadd.f32 %v6407, %v6862
      %6864 = vmatmul.bf16.gmra.mxu0 %v4936
      %v6865 = vpop.f32.mrf.mxu0
      %v6866 = vadd.f32 %v6407, %v6865
      %v6867 = vpop.f32.mrf.mxu0
      %v6868 = vadd.f32 %v6407, %v6867
      %6869 = vmatmul.bf16.gmra.mxu0 %v4937
      %v6870 = vpop.f32.mrf.mxu0
      %v6871 = vadd.f32 %v6407, %v6870
      %v6872 = vpop.f32.mrf.mxu0
      %v6873 = vadd.f32 %v6407, %v6872
      %6874 = vmatmul.bf16.gmra.mxu0 %v4938
      %v6875 = vpop.f32.mrf.mxu0
      %v6876 = vadd.f32 %v6407, %v6875
      %v6877 = vpop.f32.mrf.mxu0
      %v6878 = vadd.f32 %v6407, %v6877
      %6879 = vmatmul.bf16.gmra.mxu0 %v4939
      %v6880 = vpop.f32.mrf.mxu0
      %v6881 = vadd.f32 %v6407, %v6880
      %v6882 = vpop.f32.mrf.mxu0
      %v6883 = vadd.f32 %v6407, %v6882
      %6884 = vmatmul.bf16.gmra.mxu0 %v4940
      %v6885 = vpop.f32.mrf.mxu0
      %v6886 = vadd.f32 %v6407, %v6885
      %v6887 = vpop.f32.mrf.mxu0
      %v6888 = vadd.f32 %v6407, %v6887
      %6889 = vmatmul.bf16.gmra.mxu0 %v4941
      %v6890 = vpop.f32.mrf.mxu0
      %v6891 = vadd.f32 %v6407, %v6890
      %v6892 = vpop.f32.mrf.mxu0
      %v6893 = vadd.f32 %v6407, %v6892
      %6894 = vmatmul.bf16.gmra.mxu0 %v4942
      %v6895 = vpop.f32.mrf.mxu0
      %v6896 = vadd.f32 %v6407, %v6895
      %v6897 = vpop.f32.mrf.mxu0
      %v6898 = vadd.f32 %v6407, %v6897
      %6899 = vmatmul.bf16.gmra.mxu0 %v4943
      %v6900 = vpop.f32.mrf.mxu0
      %v6901 = vadd.f32 %v6407, %v6900
      %v6902 = vpop.f32.mrf.mxu0
      %v6903 = vadd.f32 %v6407, %v6902
      %6904 = vmatmul.bf16.gmra.mxu0 %v4944
      %v6905 = vpop.f32.mrf.mxu0
      %v6906 = vadd.f32 %v6407, %v6905
      %v6907 = vpop.f32.mrf.mxu0
      %v6908 = vadd.f32 %v6407, %v6907
      %6909 = vmatmul.bf16.gmra.mxu0 %v4945
      %v6910 = vpop.f32.mrf.mxu0
      %v6911 = vadd.f32 %v6407, %v6910
      %v6912 = vpop.f32.mrf.mxu0
      %v6913 = vadd.f32 %v6407, %v6912
      %6914 = vmatmul.bf16.gmra.mxu0 %v4946
      %v6915 = vpop.f32.mrf.mxu0
      %v6916 = vadd.f32 %v6407, %v6915
      %v6917 = vpop.f32.mrf.mxu0
      %v6918 = vadd.f32 %v6407, %v6917
      %6919 = vmatmul.bf16.gmra.mxu0 %v4947
      %v6920 = vpop.f32.mrf.mxu0
      %v6921 = vadd.f32 %v6407, %v6920
      %v6922 = vpop.f32.mrf.mxu0
      %v6923 = vadd.f32 %v6407, %v6922
      %6924 = vmatmul.bf16.gmra.mxu0 %v4948
      %v6925 = vpop.f32.mrf.mxu0
      %v6926 = vadd.f32 %v6407, %v6925
      %v6927 = vpop.f32.mrf.mxu0
      %v6928 = vadd.f32 %v6407, %v6927
      %6929 = vdwg.mxu0
      %6930 = vmatpush.bf16.msra.mxu0 %v6712
      %6931 = vmatpush.bf16.msra.mxu0 %v6711
      %6932 = vmatpush.bf16.msra.mxu0 %v6710
      %6933 = vmatpush.bf16.msra.mxu0 %v6709
      %6934 = vmatpush.bf16.msra.mxu0 %v6708
      %6935 = vmatpush.bf16.msra.mxu0 %v6707
      %6936 = vmatpush.bf16.msra.mxu0 %v6706
      %6937 = vmatpush.bf16.msra.mxu0 %v6705
      %6938 = vmatmul.bf16.gmra.mxu0 %v5024
      %v6939 = vpop.f32.mrf.mxu0
      %v6940 = vadd.f32 %v6851, %v6939
      %v6941 = vpop.f32.mrf.mxu0
      %v6942 = vadd.f32 %v6853, %v6941
      %6943 = vmatmul.bf16.gmra.mxu0 %v5036
      %v6944 = vpop.f32.mrf.mxu0
      %v6945 = vadd.f32 %v6856, %v6944
      %v6946 = vpop.f32.mrf.mxu0
      %v6947 = vadd.f32 %v6858, %v6946
      %6948 = vmatmul.bf16.gmra.mxu0 %v5048
      %v6949 = vpop.f32.mrf.mxu0
      %v6950 = vadd.f32 %v6861, %v6949
      %v6951 = vpop.f32.mrf.mxu0
      %v6952 = vadd.f32 %v6863, %v6951
      %6953 = vmatmul.bf16.gmra.mxu0 %v5060
      %v6954 = vpop.f32.mrf.mxu0
      %v6955 = vadd.f32 %v6866, %v6954
      %v6956 = vpop.f32.mrf.mxu0
      %v6957 = vadd.f32 %v6868, %v6956
      %6958 = vmatmul.bf16.gmra.mxu0 %v5072
      %v6959 = vpop.f32.mrf.mxu0
      %v6960 = vadd.f32 %v6871, %v6959
      %v6961 = vpop.f32.mrf.mxu0
      %v6962 = vadd.f32 %v6873, %v6961
      %6963 = vmatmul.bf16.gmra.mxu0 %v5084
      %v6964 = vpop.f32.mrf.mxu0
      %v6965 = vadd.f32 %v6876, %v6964
      %v6966 = vpop.f32.mrf.mxu0
      %v6967 = vadd.f32 %v6878, %v6966
      %6968 = vmatmul.bf16.gmra.mxu0 %v5096
      %v6969 = vpop.f32.mrf.mxu0
      %v6970 = vadd.f32 %v6881, %v6969
      %v6971 = vpop.f32.mrf.mxu0
      %v6972 = vadd.f32 %v6883, %v6971
      %6973 = vmatmul.bf16.gmra.mxu0 %v5108
      %v6974 = vpop.f32.mrf.mxu0
      %v6975 = vadd.f32 %v6886, %v6974
      %v6976 = vpop.f32.mrf.mxu0
      %v6977 = vadd.f32 %v6888, %v6976
      %6978 = vmatmul.bf16.gmra.mxu0 %v5120
      %v6979 = vpop.f32.mrf.mxu0
      %v6980 = vadd.f32 %v6891, %v6979
      %v6981 = vpop.f32.mrf.mxu0
      %v6982 = vadd.f32 %v6893, %v6981
      %6983 = vmatmul.bf16.gmra.mxu0 %v5132
      %v6984 = vpop.f32.mrf.mxu0
      %v6985 = vadd.f32 %v6896, %v6984
      %v6986 = vpop.f32.mrf.mxu0
      %v6987 = vadd.f32 %v6898, %v6986
      %6988 = vmatmul.bf16.gmra.mxu0 %v5144
      %v6989 = vpop.f32.mrf.mxu0
      %v6990 = vadd.f32 %v6901, %v6989
      %v6991 = vpop.f32.mrf.mxu0
      %v6992 = vadd.f32 %v6903, %v6991
      %6993 = vmatmul.bf16.gmra.mxu0 %v5156
      %v6994 = vpop.f32.mrf.mxu0
      %v6995 = vadd.f32 %v6906, %v6994
      %v6996 = vpop.f32.mrf.mxu0
      %v6997 = vadd.f32 %v6908, %v6996
      %6998 = vmatmul.bf16.gmra.mxu0 %v5168
      %v6999 = vpop.f32.mrf.mxu0
      %v7000 = vadd.f32 %v6911, %v6999
      %v7001 = vpop.f32.mrf.mxu0
      %v7002 = vadd.f32 %v6913, %v7001
      %7003 = vmatmul.bf16.gmra.mxu0 %v5180
      %v7004 = vpop.f32.mrf.mxu0
      %v7005 = vadd.f32 %v6916, %v7004
      %v7006 = vpop.f32.mrf.mxu0
      %v7007 = vadd.f32 %v6918, %v7006
      %7008 = vmatmul.bf16.gmra.mxu0 %v5192
      %v7009 = vpop.f32.mrf.mxu0
      %v7010 = vadd.f32 %v6921, %v7009
      %v7011 = vpop.f32.mrf.mxu0
      %v7012 = vadd.f32 %v6923, %v7011
      %7013 = vmatmul.bf16.gmra.mxu0 %v5204
      %v7014 = vpop.f32.mrf.mxu0
      %v7015 = vadd.f32 %v6926, %v7014
      %v7016 = vpop.f32.mrf.mxu0
      %v7017 = vadd.f32 %v6928, %v7016
      %7018 = vdwg.mxu0
      %7019 = vmatpush.bf16.msra.mxu0 %v6720
      %7020 = vmatpush.bf16.msra.mxu0 %v6719
      %7021 = vmatpush.bf16.msra.mxu0 %v6718
      %7022 = vmatpush.bf16.msra.mxu0 %v6717
      %7023 = vmatpush.bf16.msra.mxu0 %v6716
      %7024 = vmatpush.bf16.msra.mxu0 %v6715
      %7025 = vmatpush.bf16.msra.mxu0 %v6714
      %7026 = vmatpush.bf16.msra.mxu0 %v6713
      %7027 = vmatmul.bf16.gmra.mxu0 %v5271
      %v7028 = vpop.f32.mrf.mxu0
      %v7029 = vadd.f32 %v6940, %v7028
      %v7030 = vpop.f32.mrf.mxu0
      %v7031 = vadd.f32 %v6942, %v7030
      %7032 = vmatmul.bf16.gmra.mxu0 %v5274
      %v7033 = vpop.f32.mrf.mxu0
      %v7034 = vadd.f32 %v6945, %v7033
      %v7035 = vpop.f32.mrf.mxu0
      %v7036 = vadd.f32 %v6947, %v7035
      %7037 = vmatmul.bf16.gmra.mxu0 %v5277
      %v7038 = vpop.f32.mrf.mxu0
      %v7039 = vadd.f32 %v6950, %v7038
      %v7040 = vpop.f32.mrf.mxu0
      %v7041 = vadd.f32 %v6952, %v7040
      %7042 = vmatmul.bf16.gmra.mxu0 %v5280
      %v7043 = vpop.f32.mrf.mxu0
      %v7044 = vadd.f32 %v6955, %v7043
      %v7045 = vpop.f32.mrf.mxu0
      %v7046 = vadd.f32 %v6957, %v7045
      %7047 = vmatmul.bf16.gmra.mxu0 %v5283
      %v7048 = vpop.f32.mrf.mxu0
      %v7049 = vadd.f32 %v6960, %v7048
      %v7050 = vpop.f32.mrf.mxu0
      %v7051 = vadd.f32 %v6962, %v7050
      %7052 = vmatmul.bf16.gmra.mxu0 %v5286
      %v7053 = vpop.f32.mrf.mxu0
      %v7054 = vadd.f32 %v6965, %v7053
      %v7055 = vpop.f32.mrf.mxu0
      %v7056 = vadd.f32 %v6967, %v7055
      %7057 = vmatmul.bf16.gmra.mxu0 %v5289
      %v7058 = vpop.f32.mrf.mxu0
      %v7059 = vadd.f32 %v6970, %v7058
      %v7060 = vpop.f32.mrf.mxu0
      %v7061 = vadd.f32 %v6972, %v7060
      %7062 = vmatmul.bf16.gmra.mxu0 %v5292
      %v7063 = vpop.f32.mrf.mxu0
      %v7064 = vadd.f32 %v6975, %v7063
      %v7065 = vpop.f32.mrf.mxu0
      %v7066 = vadd.f32 %v6977, %v7065
      %7067 = vmatmul.bf16.gmra.mxu0 %v5295
      %v7068 = vpop.f32.mrf.mxu0
      %v7069 = vadd.f32 %v6980, %v7068
      %v7070 = vpop.f32.mrf.mxu0
      %v7071 = vadd.f32 %v6982, %v7070
      %7072 = vmatmul.bf16.gmra.mxu0 %v5298
      %v7073 = vpop.f32.mrf.mxu0
      %v7074 = vadd.f32 %v6985, %v7073
      %v7075 = vpop.f32.mrf.mxu0
      %v7076 = vadd.f32 %v6987, %v7075
      %7077 = vmatmul.bf16.gmra.mxu0 %v5301
      %v7078 = vpop.f32.mrf.mxu0
      %v7079 = vadd.f32 %v6990, %v7078
      %v7080 = vpop.f32.mrf.mxu0
      %v7081 = vadd.f32 %v6992, %v7080
      %7082 = vmatmul.bf16.gmra.mxu0 %v5304
      %v7083 = vpop.f32.mrf.mxu0
      %v7084 = vadd.f32 %v6995, %v7083
      %v7085 = vpop.f32.mrf.mxu0
      %v7086 = vadd.f32 %v6997, %v7085
      %7087 = vmatmul.bf16.gmra.mxu0 %v5307
      %v7088 = vpop.f32.mrf.mxu0
      %v7089 = vadd.f32 %v7000, %v7088
      %v7090 = vpop.f32.mrf.mxu0
      %v7091 = vadd.f32 %v7002, %v7090
      %7092 = vmatmul.bf16.gmra.mxu0 %v5310
      %v7093 = vpop.f32.mrf.mxu0
      %v7094 = vadd.f32 %v7005, %v7093
      %v7095 = vpop.f32.mrf.mxu0
      %v7096 = vadd.f32 %v7007, %v7095
      %7097 = vmatmul.bf16.gmra.mxu0 %v5313
      %v7098 = vpop.f32.mrf.mxu0
      %v7099 = vadd.f32 %v7010, %v7098
      %v7100 = vpop.f32.mrf.mxu0
      %v7101 = vadd.f32 %v7012, %v7100
      %7102 = vmatmul.bf16.gmra.mxu0 %v5316
      %v7103 = vpop.f32.mrf.mxu0
      %v7104 = vadd.f32 %v7015, %v7103
      %v7105 = vpop.f32.mrf.mxu0
      %v7106 = vadd.f32 %v7017, %v7105
      %7107 = vdwg.mxu0
      %7108 = vmatpush.bf16.msra.mxu0 %v6728
      %7109 = vmatpush.bf16.msra.mxu0 %v6727
      %7110 = vmatpush.bf16.msra.mxu0 %v6726
      %7111 = vmatpush.bf16.msra.mxu0 %v6725
      %7112 = vmatpush.bf16.msra.mxu0 %v6724
      %7113 = vmatpush.bf16.msra.mxu0 %v6723
      %7114 = vmatpush.bf16.msra.mxu0 %v6722
      %7115 = vmatpush.bf16.msra.mxu0 %v6721
      %7116 = vmatmul.bf16.gmra.mxu0 %v5397
      %v7117 = vpop.f32.mrf.mxu0
      %v7118 = vadd.f32 %v7029, %v7117
      %v7119 = vpop.f32.mrf.mxu0
      %v7120 = vadd.f32 %v7031, %v7119
      %7121 = vmatmul.bf16.gmra.mxu0 %v5398
      %v7122 = vpop.f32.mrf.mxu0
      %v7123 = vadd.f32 %v7034, %v7122
      %v7124 = vpop.f32.mrf.mxu0
      %v7125 = vadd.f32 %v7036, %v7124
      %7126 = vmatmul.bf16.gmra.mxu0 %v5399
      %v7127 = vpop.f32.mrf.mxu0
      %v7128 = vadd.f32 %v7039, %v7127
      %v7129 = vpop.f32.mrf.mxu0
      %v7130 = vadd.f32 %v7041, %v7129
      %7131 = vmatmul.bf16.gmra.mxu0 %v5400
      %v7132 = vpop.f32.mrf.mxu0
      %v7133 = vadd.f32 %v7044, %v7132
      %v7134 = vpop.f32.mrf.mxu0
      %v7135 = vadd.f32 %v7046, %v7134
      %7136 = vmatmul.bf16.gmra.mxu0 %v5401
      %v7137 = vpop.f32.mrf.mxu0
      %v7138 = vadd.f32 %v7049, %v7137
      %v7139 = vpop.f32.mrf.mxu0
      %v7140 = vadd.f32 %v7051, %v7139
      %7141 = vmatmul.bf16.gmra.mxu0 %v5402
      %v7142 = vpop.f32.mrf.mxu0
      %v7143 = vadd.f32 %v7054, %v7142
      %v7144 = vpop.f32.mrf.mxu0
      %v7145 = vadd.f32 %v7056, %v7144
      %7146 = vmatmul.bf16.gmra.mxu0 %v5403
      %v7147 = vpop.f32.mrf.mxu0
      %v7148 = vadd.f32 %v7059, %v7147
      %v7149 = vpop.f32.mrf.mxu0
      %v7150 = vadd.f32 %v7061, %v7149
      %7151 = vmatmul.bf16.gmra.mxu0 %v5404
      %v7152 = vpop.f32.mrf.mxu0
      %v7153 = vadd.f32 %v7064, %v7152
      %v7154 = vpop.f32.mrf.mxu0
      %v7155 = vadd.f32 %v7066, %v7154
      %7156 = vmatmul.bf16.gmra.mxu0 %v5405
      %v7157 = vpop.f32.mrf.mxu0
      %v7158 = vadd.f32 %v7069, %v7157
      %v7159 = vpop.f32.mrf.mxu0
      %v7160 = vadd.f32 %v7071, %v7159
      %7161 = vmatmul.bf16.gmra.mxu0 %v5406
      %v7162 = vpop.f32.mrf.mxu0
      %v7163 = vadd.f32 %v7074, %v7162
      %v7164 = vpop.f32.mrf.mxu0
      %v7165 = vadd.f32 %v7076, %v7164
      %7166 = vmatmul.bf16.gmra.mxu0 %v5407
      %v7167 = vpop.f32.mrf.mxu0
      %v7168 = vadd.f32 %v7079, %v7167
      %v7169 = vpop.f32.mrf.mxu0
      %v7170 = vadd.f32 %v7081, %v7169
      %7171 = vmatmul.bf16.gmra.mxu0 %v5408
      %v7172 = vpop.f32.mrf.mxu0
      %v7173 = vadd.f32 %v7084, %v7172
      %v7174 = vpop.f32.mrf.mxu0
      %v7175 = vadd.f32 %v7086, %v7174
      %7176 = vmatmul.bf16.gmra.mxu0 %v5409
      %v7177 = vpop.f32.mrf.mxu0
      %v7178 = vadd.f32 %v7089, %v7177
      %v7179 = vpop.f32.mrf.mxu0
      %v7180 = vadd.f32 %v7091, %v7179
      %7181 = vmatmul.bf16.gmra.mxu0 %v5410
      %v7182 = vpop.f32.mrf.mxu0
      %v7183 = vadd.f32 %v7094, %v7182
      %v7184 = vpop.f32.mrf.mxu0
      %v7185 = vadd.f32 %v7096, %v7184
      %7186 = vmatmul.bf16.gmra.mxu0 %v5411
      %v7187 = vpop.f32.mrf.mxu0
      %v7188 = vadd.f32 %v7099, %v7187
      %v7189 = vpop.f32.mrf.mxu0
      %v7190 = vadd.f32 %v7101, %v7189
      %7191 = vmatmul.bf16.gmra.mxu0 %v5412
      %v7192 = vpop.f32.mrf.mxu0
      %v7193 = vadd.f32 %v7104, %v7192
      %v7194 = vpop.f32.mrf.mxu0
      %v7195 = vadd.f32 %v7106, %v7194
      %7196 = vdwg.mxu0
      %7197 = vmatpush.bf16.msra.mxu0 %v6736
      %7198 = vmatpush.bf16.msra.mxu0 %v6735
      %7199 = vmatpush.bf16.msra.mxu0 %v6734
      %7200 = vmatpush.bf16.msra.mxu0 %v6733
      %7201 = vmatpush.bf16.msra.mxu0 %v6732
      %7202 = vmatpush.bf16.msra.mxu0 %v6731
      %7203 = vmatpush.bf16.msra.mxu0 %v6730
      %7204 = vmatpush.bf16.msra.mxu0 %v6729
      %7205 = vmatmul.bf16.gmra.mxu0 %v5488
      %v7206 = vpop.f32.mrf.mxu0
      %v7207 = vadd.f32 %v7118, %v7206
      %v7208 = vpop.f32.mrf.mxu0
      %v7209 = vadd.f32 %v7120, %v7208
      %7210 = vmatmul.bf16.gmra.mxu0 %v5500
      %v7211 = vpop.f32.mrf.mxu0
      %v7212 = vadd.f32 %v7123, %v7211
      %v7213 = vpop.f32.mrf.mxu0
      %v7214 = vadd.f32 %v7125, %v7213
      %7215 = vmatmul.bf16.gmra.mxu0 %v5512
      %v7216 = vpop.f32.mrf.mxu0
      %v7217 = vadd.f32 %v7128, %v7216
      %v7218 = vpop.f32.mrf.mxu0
      %v7219 = vadd.f32 %v7130, %v7218
      %7220 = vmatmul.bf16.gmra.mxu0 %v5524
      %v7221 = vpop.f32.mrf.mxu0
      %v7222 = vadd.f32 %v7133, %v7221
      %v7223 = vpop.f32.mrf.mxu0
      %v7224 = vadd.f32 %v7135, %v7223
      %7225 = vmatmul.bf16.gmra.mxu0 %v5536
      %v7226 = vpop.f32.mrf.mxu0
      %v7227 = vadd.f32 %v7138, %v7226
      %v7228 = vpop.f32.mrf.mxu0
      %v7229 = vadd.f32 %v7140, %v7228
      %7230 = vmatmul.bf16.gmra.mxu0 %v5548
      %v7231 = vpop.f32.mrf.mxu0
      %v7232 = vadd.f32 %v7143, %v7231
      %v7233 = vpop.f32.mrf.mxu0
      %v7234 = vadd.f32 %v7145, %v7233
      %7235 = vmatmul.bf16.gmra.mxu0 %v5560
      %v7236 = vpop.f32.mrf.mxu0
      %v7237 = vadd.f32 %v7148, %v7236
      %v7238 = vpop.f32.mrf.mxu0
      %v7239 = vadd.f32 %v7150, %v7238
      %7240 = vmatmul.bf16.gmra.mxu0 %v5572
      %v7241 = vpop.f32.mrf.mxu0
      %v7242 = vadd.f32 %v7153, %v7241
      %v7243 = vpop.f32.mrf.mxu0
      %v7244 = vadd.f32 %v7155, %v7243
      %7245 = vmatmul.bf16.gmra.mxu0 %v5584
      %v7246 = vpop.f32.mrf.mxu0
      %v7247 = vadd.f32 %v7158, %v7246
      %v7248 = vpop.f32.mrf.mxu0
      %v7249 = vadd.f32 %v7160, %v7248
      %7250 = vmatmul.bf16.gmra.mxu0 %v5596
      %v7251 = vpop.f32.mrf.mxu0
      %v7252 = vadd.f32 %v7163, %v7251
      %v7253 = vpop.f32.mrf.mxu0
      %v7254 = vadd.f32 %v7165, %v7253
      %7255 = vmatmul.bf16.gmra.mxu0 %v5608
      %v7256 = vpop.f32.mrf.mxu0
      %v7257 = vadd.f32 %v7168, %v7256
      %v7258 = vpop.f32.mrf.mxu0
      %v7259 = vadd.f32 %v7170, %v7258
      %7260 = vmatmul.bf16.gmra.mxu0 %v5620
      %v7261 = vpop.f32.mrf.mxu0
      %v7262 = vadd.f32 %v7173, %v7261
      %v7263 = vpop.f32.mrf.mxu0
      %v7264 = vadd.f32 %v7175, %v7263
      %7265 = vmatmul.bf16.gmra.mxu0 %v5632
      %v7266 = vpop.f32.mrf.mxu0
      %v7267 = vadd.f32 %v7178, %v7266
      %v7268 = vpop.f32.mrf.mxu0
      %v7269 = vadd.f32 %v7180, %v7268
      %7270 = vmatmul.bf16.gmra.mxu0 %v5644
      %v7271 = vpop.f32.mrf.mxu0
      %v7272 = vadd.f32 %v7183, %v7271
      %v7273 = vpop.f32.mrf.mxu0
      %v7274 = vadd.f32 %v7185, %v7273
      %7275 = vmatmul.bf16.gmra.mxu0 %v5656
      %v7276 = vpop.f32.mrf.mxu0
      %v7277 = vadd.f32 %v7188, %v7276
      %v7278 = vpop.f32.mrf.mxu0
      %v7279 = vadd.f32 %v7190, %v7278
      %7280 = vmatmul.bf16.gmra.mxu0 %v5668
      %v7281 = vpop.f32.mrf.mxu0
      %v7282 = vadd.f32 %v7193, %v7281
      %v7283 = vpop.f32.mrf.mxu0
      %v7284 = vadd.f32 %v7195, %v7283
      %7285 = vdwg.mxu0
      %7286 = vmatpush.bf16.msra.mxu0 %v6744
      %7287 = vmatpush.bf16.msra.mxu0 %v6743
      %7288 = vmatpush.bf16.msra.mxu0 %v6742
      %7289 = vmatpush.bf16.msra.mxu0 %v6741
      %7290 = vmatpush.bf16.msra.mxu0 %v6740
      %7291 = vmatpush.bf16.msra.mxu0 %v6739
      %7292 = vmatpush.bf16.msra.mxu0 %v6738
      %7293 = vmatpush.bf16.msra.mxu0 %v6737
      %7294 = vmatmul.bf16.gmra.mxu0 %v5735
      %v7295 = vpop.f32.mrf.mxu0
      %v7296 = vadd.f32 %v7207, %v7295
      %v7297 = vpop.f32.mrf.mxu0
      %v7298 = vadd.f32 %v7209, %v7297
      %7299 = vmatmul.bf16.gmra.mxu0 %v5738
      %v7300 = vpop.f32.mrf.mxu0
      %v7301 = vadd.f32 %v7212, %v7300
      %v7302 = vpop.f32.mrf.mxu0
      %v7303 = vadd.f32 %v7214, %v7302
      %7304 = vmatmul.bf16.gmra.mxu0 %v5741
      %v7305 = vpop.f32.mrf.mxu0
      %v7306 = vadd.f32 %v7217, %v7305
      %v7307 = vpop.f32.mrf.mxu0
      %v7308 = vadd.f32 %v7219, %v7307
      %7309 = vmatmul.bf16.gmra.mxu0 %v5744
      %v7310 = vpop.f32.mrf.mxu0
      %v7311 = vadd.f32 %v7222, %v7310
      %v7312 = vpop.f32.mrf.mxu0
      %v7313 = vadd.f32 %v7224, %v7312
      %7314 = vmatmul.bf16.gmra.mxu0 %v5747
      %v7315 = vpop.f32.mrf.mxu0
      %v7316 = vadd.f32 %v7227, %v7315
      %v7317 = vpop.f32.mrf.mxu0
      %v7318 = vadd.f32 %v7229, %v7317
      %7319 = vmatmul.bf16.gmra.mxu0 %v5750
      %v7320 = vpop.f32.mrf.mxu0
      %v7321 = vadd.f32 %v7232, %v7320
      %v7322 = vpop.f32.mrf.mxu0
      %v7323 = vadd.f32 %v7234, %v7322
      %7324 = vmatmul.bf16.gmra.mxu0 %v5753
      %v7325 = vpop.f32.mrf.mxu0
      %v7326 = vadd.f32 %v7237, %v7325
      %v7327 = vpop.f32.mrf.mxu0
      %v7328 = vadd.f32 %v7239, %v7327
      %7329 = vmatmul.bf16.gmra.mxu0 %v5756
      %v7330 = vpop.f32.mrf.mxu0
      %v7331 = vadd.f32 %v7242, %v7330
      %v7332 = vpop.f32.mrf.mxu0
      %v7333 = vadd.f32 %v7244, %v7332
      %7334 = vmatmul.bf16.gmra.mxu0 %v5759
      %v7335 = vpop.f32.mrf.mxu0
      %v7336 = vadd.f32 %v7247, %v7335
      %v7337 = vpop.f32.mrf.mxu0
      %v7338 = vadd.f32 %v7249, %v7337
      %7339 = vmatmul.bf16.gmra.mxu0 %v5762
      %v7340 = vpop.f32.mrf.mxu0
      %v7341 = vadd.f32 %v7252, %v7340
      %v7342 = vpop.f32.mrf.mxu0
      %v7343 = vadd.f32 %v7254, %v7342
      %7344 = vmatmul.bf16.gmra.mxu0 %v5765
      %v7345 = vpop.f32.mrf.mxu0
      %v7346 = vadd.f32 %v7257, %v7345
      %v7347 = vpop.f32.mrf.mxu0
      %v7348 = vadd.f32 %v7259, %v7347
      %7349 = vmatmul.bf16.gmra.mxu0 %v5768
      %v7350 = vpop.f32.mrf.mxu0
      %v7351 = vadd.f32 %v7262, %v7350
      %v7352 = vpop.f32.mrf.mxu0
      %v7353 = vadd.f32 %v7264, %v7352
      %7354 = vmatmul.bf16.gmra.mxu0 %v5771
      %v7355 = vpop.f32.mrf.mxu0
      %v7356 = vadd.f32 %v7267, %v7355
      %v7357 = vpop.f32.mrf.mxu0
      %v7358 = vadd.f32 %v7269, %v7357
      %7359 = vmatmul.bf16.gmra.mxu0 %v5774
      %v7360 = vpop.f32.mrf.mxu0
      %v7361 = vadd.f32 %v7272, %v7360
      %v7362 = vpop.f32.mrf.mxu0
      %v7363 = vadd.f32 %v7274, %v7362
      %7364 = vmatmul.bf16.gmra.mxu0 %v5777
      %v7365 = vpop.f32.mrf.mxu0
      %v7366 = vadd.f32 %v7277, %v7365
      %v7367 = vpop.f32.mrf.mxu0
      %v7368 = vadd.f32 %v7279, %v7367
      %7369 = vmatmul.bf16.gmra.mxu0 %v5780
      %v7370 = vpop.f32.mrf.mxu0
      %v7371 = vadd.f32 %v7282, %v7370
      %v7372 = vpop.f32.mrf.mxu0
      %v7373 = vadd.f32 %v7284, %v7372
      %7374 = vdwg.mxu0
      %7375 = vmatpush.bf16.msra.mxu0 %v6752
      %7376 = vmatpush.bf16.msra.mxu0 %v6751
      %7377 = vmatpush.bf16.msra.mxu0 %v6750
      %7378 = vmatpush.bf16.msra.mxu0 %v6749
      %7379 = vmatpush.bf16.msra.mxu0 %v6748
      %7380 = vmatpush.bf16.msra.mxu0 %v6747
      %7381 = vmatpush.bf16.msra.mxu0 %v6746
      %7382 = vmatpush.bf16.msra.mxu0 %v6745
      %7383 = vmatmul.bf16.gmra.mxu0 %v5861
      %v7384 = vpop.f32.mrf.mxu0
      %v7385 = vadd.f32 %v7296, %v7384
      %v7386 = vpop.f32.mrf.mxu0
      %v7387 = vadd.f32 %v7298, %v7386
      %7388 = vmatmul.bf16.gmra.mxu0 %v5862
      %v7389 = vpop.f32.mrf.mxu0
      %v7390 = vadd.f32 %v7301, %v7389
      %v7391 = vpop.f32.mrf.mxu0
      %v7392 = vadd.f32 %v7303, %v7391
      %7393 = vmatmul.bf16.gmra.mxu0 %v5863
      %v7394 = vpop.f32.mrf.mxu0
      %v7395 = vadd.f32 %v7306, %v7394
      %v7396 = vpop.f32.mrf.mxu0
      %v7397 = vadd.f32 %v7308, %v7396
      %7398 = vmatmul.bf16.gmra.mxu0 %v5864
      %v7399 = vpop.f32.mrf.mxu0
      %v7400 = vadd.f32 %v7311, %v7399
      %v7401 = vpop.f32.mrf.mxu0
      %v7402 = vadd.f32 %v7313, %v7401
      %7403 = vmatmul.bf16.gmra.mxu0 %v5865
      %v7404 = vpop.f32.mrf.mxu0
      %v7405 = vadd.f32 %v7316, %v7404
      %v7406 = vpop.f32.mrf.mxu0
      %v7407 = vadd.f32 %v7318, %v7406
      %7408 = vmatmul.bf16.gmra.mxu0 %v5866
      %v7409 = vpop.f32.mrf.mxu0
      %v7410 = vadd.f32 %v7321, %v7409
      %v7411 = vpop.f32.mrf.mxu0
      %v7412 = vadd.f32 %v7323, %v7411
      %7413 = vmatmul.bf16.gmra.mxu0 %v5867
      %v7414 = vpop.f32.mrf.mxu0
      %v7415 = vadd.f32 %v7326, %v7414
      %v7416 = vpop.f32.mrf.mxu0
      %v7417 = vadd.f32 %v7328, %v7416
      %7418 = vmatmul.bf16.gmra.mxu0 %v5868
      %v7419 = vpop.f32.mrf.mxu0
      %v7420 = vadd.f32 %v7331, %v7419
      %v7421 = vpop.f32.mrf.mxu0
      %v7422 = vadd.f32 %v7333, %v7421
      %7423 = vmatmul.bf16.gmra.mxu0 %v5869
      %v7424 = vpop.f32.mrf.mxu0
      %v7425 = vadd.f32 %v7336, %v7424
      %v7426 = vpop.f32.mrf.mxu0
      %v7427 = vadd.f32 %v7338, %v7426
      %7428 = vmatmul.bf16.gmra.mxu0 %v5870
      %v7429 = vpop.f32.mrf.mxu0
      %v7430 = vadd.f32 %v7341, %v7429
      %v7431 = vpop.f32.mrf.mxu0
      %v7432 = vadd.f32 %v7343, %v7431
      %7433 = vmatmul.bf16.gmra.mxu0 %v5871
      %v7434 = vpop.f32.mrf.mxu0
      %v7435 = vadd.f32 %v7346, %v7434
      %v7436 = vpop.f32.mrf.mxu0
      %v7437 = vadd.f32 %v7348, %v7436
      %7438 = vmatmul.bf16.gmra.mxu0 %v5872
      %v7439 = vpop.f32.mrf.mxu0
      %v7440 = vadd.f32 %v7351, %v7439
      %v7441 = vpop.f32.mrf.mxu0
      %v7442 = vadd.f32 %v7353, %v7441
      %7443 = vmatmul.bf16.gmra.mxu0 %v5873
      %v7444 = vpop.f32.mrf.mxu0
      %v7445 = vadd.f32 %v7356, %v7444
      %v7446 = vpop.f32.mrf.mxu0
      %v7447 = vadd.f32 %v7358, %v7446
      %7448 = vmatmul.bf16.gmra.mxu0 %v5874
      %v7449 = vpop.f32.mrf.mxu0
      %v7450 = vadd.f32 %v7361, %v7449
      %v7451 = vpop.f32.mrf.mxu0
      %v7452 = vadd.f32 %v7363, %v7451
      %7453 = vmatmul.bf16.gmra.mxu0 %v5875
      %v7454 = vpop.f32.mrf.mxu0
      %v7455 = vadd.f32 %v7366, %v7454
      %v7456 = vpop.f32.mrf.mxu0
      %v7457 = vadd.f32 %v7368, %v7456
      %7458 = vmatmul.bf16.gmra.mxu0 %v5876
      %v7459 = vpop.f32.mrf.mxu0
      %v7460 = vadd.f32 %v7371, %v7459
      %v7461 = vpop.f32.mrf.mxu0
      %v7462 = vadd.f32 %v7373, %v7461
      %7463 = vdwg.mxu0
      %7464 = vmatpush.bf16.msra.mxu0 %v6760
      %7465 = vmatpush.bf16.msra.mxu0 %v6759
      %7466 = vmatpush.bf16.msra.mxu0 %v6758
      %7467 = vmatpush.bf16.msra.mxu0 %v6757
      %7468 = vmatpush.bf16.msra.mxu0 %v6756
      %7469 = vmatpush.bf16.msra.mxu0 %v6755
      %7470 = vmatpush.bf16.msra.mxu0 %v6754
      %7471 = vmatpush.bf16.msra.mxu0 %v6753
      %7472 = vmatmul.bf16.gmra.mxu0 %v5952
      %v7473 = vpop.f32.mrf.mxu0
      %v7474 = vadd.f32 %v7385, %v7473
      %v7475 = vpop.f32.mrf.mxu0
      %v7476 = vadd.f32 %v7387, %v7475
      %7477 = vmatmul.bf16.gmra.mxu0 %v5964
      %v7478 = vpop.f32.mrf.mxu0
      %v7479 = vadd.f32 %v7390, %v7478
      %v7480 = vpop.f32.mrf.mxu0
      %v7481 = vadd.f32 %v7392, %v7480
      %7482 = vmatmul.bf16.gmra.mxu0 %v5976
      %v7483 = vpop.f32.mrf.mxu0
      %v7484 = vadd.f32 %v7395, %v7483
      %v7485 = vpop.f32.mrf.mxu0
      %v7486 = vadd.f32 %v7397, %v7485
      %7487 = vmatmul.bf16.gmra.mxu0 %v5988
      %v7488 = vpop.f32.mrf.mxu0
      %v7489 = vadd.f32 %v7400, %v7488
      %v7490 = vpop.f32.mrf.mxu0
      %v7491 = vadd.f32 %v7402, %v7490
      %7492 = vmatmul.bf16.gmra.mxu0 %v6000
      %v7493 = vpop.f32.mrf.mxu0
      %v7494 = vadd.f32 %v7405, %v7493
      %v7495 = vpop.f32.mrf.mxu0
      %v7496 = vadd.f32 %v7407, %v7495
      %7497 = vmatmul.bf16.gmra.mxu0 %v6012
      %v7498 = vpop.f32.mrf.mxu0
      %v7499 = vadd.f32 %v7410, %v7498
      %v7500 = vpop.f32.mrf.mxu0
      %v7501 = vadd.f32 %v7412, %v7500
      %7502 = vmatmul.bf16.gmra.mxu0 %v6024
      %v7503 = vpop.f32.mrf.mxu0
      %v7504 = vadd.f32 %v7415, %v7503
      %v7505 = vpop.f32.mrf.mxu0
      %v7506 = vadd.f32 %v7417, %v7505
      %7507 = vmatmul.bf16.gmra.mxu0 %v6036
      %v7508 = vpop.f32.mrf.mxu0
      %v7509 = vadd.f32 %v7420, %v7508
      %v7510 = vpop.f32.mrf.mxu0
      %v7511 = vadd.f32 %v7422, %v7510
      %7512 = vmatmul.bf16.gmra.mxu0 %v6048
      %v7513 = vpop.f32.mrf.mxu0
      %v7514 = vadd.f32 %v7425, %v7513
      %v7515 = vpop.f32.mrf.mxu0
      %v7516 = vadd.f32 %v7427, %v7515
      %7517 = vmatmul.bf16.gmra.mxu0 %v6060
      %v7518 = vpop.f32.mrf.mxu0
      %v7519 = vadd.f32 %v7430, %v7518
      %v7520 = vpop.f32.mrf.mxu0
      %v7521 = vadd.f32 %v7432, %v7520
      %7522 = vmatmul.bf16.gmra.mxu0 %v6072
      %v7523 = vpop.f32.mrf.mxu0
      %v7524 = vadd.f32 %v7435, %v7523
      %v7525 = vpop.f32.mrf.mxu0
      %v7526 = vadd.f32 %v7437, %v7525
      %7527 = vmatmul.bf16.gmra.mxu0 %v6084
      %v7528 = vpop.f32.mrf.mxu0
      %v7529 = vadd.f32 %v7440, %v7528
      %v7530 = vpop.f32.mrf.mxu0
      %v7531 = vadd.f32 %v7442, %v7530
      %7532 = vmatmul.bf16.gmra.mxu0 %v6096
      %v7533 = vpop.f32.mrf.mxu0
      %v7534 = vadd.f32 %v7445, %v7533
      %v7535 = vpop.f32.mrf.mxu0
      %v7536 = vadd.f32 %v7447, %v7535
      %7537 = vmatmul.bf16.gmra.mxu0 %v6108
      %v7538 = vpop.f32.mrf.mxu0
      %v7539 = vadd.f32 %v7450, %v7538
      %v7540 = vpop.f32.mrf.mxu0
      %v7541 = vadd.f32 %v7452, %v7540
      %7542 = vmatmul.bf16.gmra.mxu0 %v6120
      %v7543 = vpop.f32.mrf.mxu0
      %v7544 = vadd.f32 %v7455, %v7543
      %v7545 = vpop.f32.mrf.mxu0
      %v7546 = vadd.f32 %v7457, %v7545
      %7547 = vmatmul.bf16.gmra.mxu0 %v6132
      %v7548 = vpop.f32.mrf.mxu0
      %v7549 = vadd.f32 %v7460, %v7548
      %v7550 = vpop.f32.mrf.mxu0
      %v7551 = vadd.f32 %v7462, %v7550
      %7552 = vdwg.mxu0
      %7553 = vmatpush.bf16.msra.mxu0 %v6768
      %7554 = vmatpush.bf16.msra.mxu0 %v6767
      %7555 = vmatpush.bf16.msra.mxu0 %v6766
      %7556 = vmatpush.bf16.msra.mxu0 %v6765
      %7557 = vmatpush.bf16.msra.mxu0 %v6764
      %7558 = vmatpush.bf16.msra.mxu0 %v6763
      %7559 = vmatpush.bf16.msra.mxu0 %v6762
      %7560 = vmatpush.bf16.msra.mxu0 %v6761
      %7561 = vmatmul.bf16.gmra.mxu0 %v6199
      %v7562 = vpop.f32.mrf.mxu0
      %v7563 = vadd.f32 %v7474, %v7562
      %v7564 = vpop.f32.mrf.mxu0
      %v7565 = vadd.f32 %v7476, %v7564
      %7566 = vmatmul.bf16.gmra.mxu0 %v6202
      %v7567 = vpop.f32.mrf.mxu0
      %v7568 = vadd.f32 %v7479, %v7567
      %v7569 = vpop.f32.mrf.mxu0
      %v7570 = vadd.f32 %v7481, %v7569
      %7571 = vmatmul.bf16.gmra.mxu0 %v6205
      %v7572 = vpop.f32.mrf.mxu0
      %v7573 = vadd.f32 %v7484, %v7572
      %v7574 = vpop.f32.mrf.mxu0
      %v7575 = vadd.f32 %v7486, %v7574
      %7576 = vmatmul.bf16.gmra.mxu0 %v6208
      %v7577 = vpop.f32.mrf.mxu0
      %v7578 = vadd.f32 %v7489, %v7577
      %v7579 = vpop.f32.mrf.mxu0
      %v7580 = vadd.f32 %v7491, %v7579
      %7581 = vmatmul.bf16.gmra.mxu0 %v6211
      %v7582 = vpop.f32.mrf.mxu0
      %v7583 = vadd.f32 %v7494, %v7582
      %v7584 = vpop.f32.mrf.mxu0
      %v7585 = vadd.f32 %v7496, %v7584
      %7586 = vmatmul.bf16.gmra.mxu0 %v6214
      %v7587 = vpop.f32.mrf.mxu0
      %v7588 = vadd.f32 %v7499, %v7587
      %v7589 = vpop.f32.mrf.mxu0
      %v7590 = vadd.f32 %v7501, %v7589
      %7591 = vmatmul.bf16.gmra.mxu0 %v6217
      %v7592 = vpop.f32.mrf.mxu0
      %v7593 = vadd.f32 %v7504, %v7592
      %v7594 = vpop.f32.mrf.mxu0
      %v7595 = vadd.f32 %v7506, %v7594
      %7596 = vmatmul.bf16.gmra.mxu0 %v6220
      %v7597 = vpop.f32.mrf.mxu0
      %v7598 = vadd.f32 %v7509, %v7597
      %v7599 = vpop.f32.mrf.mxu0
      %v7600 = vadd.f32 %v7511, %v7599
      %7601 = vmatmul.bf16.gmra.mxu0 %v6223
      %v7602 = vpop.f32.mrf.mxu0
      %v7603 = vadd.f32 %v7514, %v7602
      %v7604 = vpop.f32.mrf.mxu0
      %v7605 = vadd.f32 %v7516, %v7604
      %7606 = vmatmul.bf16.gmra.mxu0 %v6226
      %v7607 = vpop.f32.mrf.mxu0
      %v7608 = vadd.f32 %v7519, %v7607
      %v7609 = vpop.f32.mrf.mxu0
      %v7610 = vadd.f32 %v7521, %v7609
      %7611 = vmatmul.bf16.gmra.mxu0 %v6229
      %v7612 = vpop.f32.mrf.mxu0
      %v7613 = vadd.f32 %v7524, %v7612
      %v7614 = vpop.f32.mrf.mxu0
      %v7615 = vadd.f32 %v7526, %v7614
      %7616 = vmatmul.bf16.gmra.mxu0 %v6232
      %v7617 = vpop.f32.mrf.mxu0
      %v7618 = vadd.f32 %v7529, %v7617
      %v7619 = vpop.f32.mrf.mxu0
      %v7620 = vadd.f32 %v7531, %v7619
      %7621 = vmatmul.bf16.gmra.mxu0 %v6235
      %v7622 = vpop.f32.mrf.mxu0
      %v7623 = vadd.f32 %v7534, %v7622
      %v7624 = vpop.f32.mrf.mxu0
      %v7625 = vadd.f32 %v7536, %v7624
      %7626 = vmatmul.bf16.gmra.mxu0 %v6238
      %v7627 = vpop.f32.mrf.mxu0
      %v7628 = vadd.f32 %v7539, %v7627
      %v7629 = vpop.f32.mrf.mxu0
      %v7630 = vadd.f32 %v7541, %v7629
      %7631 = vmatmul.bf16.gmra.mxu0 %v6241
      %v7632 = vpop.f32.mrf.mxu0
      %v7633 = vadd.f32 %v7544, %v7632
      %v7634 = vpop.f32.mrf.mxu0
      %v7635 = vadd.f32 %v7546, %v7634
      %7636 = vmatmul.bf16.gmra.mxu0 %v6244
      %v7637 = vpop.f32.mrf.mxu0
      %v7638 = vadd.f32 %v7549, %v7637
      %v7639 = vpop.f32.mrf.mxu0
      %v7640 = vadd.f32 %v7551, %v7639
      %7641 = vdwg.mxu0
      %v7642 = vadd.f32 %v7563, %v7565
      %v7643 = vadd.f32 %v7642, %v7568
      %v7644 = vadd.f32 %v7643, %v7570
      %v7645 = vadd.f32 %v7644, %v7573
      %v7646 = vadd.f32 %v7645, %v7575
      %v7647 = vadd.f32 %v7646, %v7578
      %v7648 = vadd.f32 %v7647, %v7580
      %v7649 = vadd.f32 %v7648, %v7583
      %v7650 = vadd.f32 %v7649, %v7585
      %v7651 = vadd.f32 %v7650, %v7588
      %v7652 = vadd.f32 %v7651, %v7590
      %v7653 = vadd.f32 %v7652, %v7593
      %v7654 = vadd.f32 %v7653, %v7595
      %v7655 = vadd.f32 %v7654, %v7598
      %v7656 = vadd.f32 %v7655, %v7600
      %v7657 = vadd.f32 %v7656, %v7603
      %v7658 = vadd.f32 %v7657, %v7605
      %v7659 = vadd.f32 %v7658, %v7608
      %v7660 = vadd.f32 %v7659, %v7610
      %v7661 = vadd.f32 %v7660, %v7613
      %v7662 = vadd.f32 %v7661, %v7615
      %v7663 = vadd.f32 %v7662, %v7618
      %v7664 = vadd.f32 %v7663, %v7620
      %v7665 = vadd.f32 %v7664, %v7623
      %v7666 = vadd.f32 %v7665, %v7625
      %v7667 = vadd.f32 %v7666, %v7628
      %v7668 = vadd.f32 %v7667, %v7630
      %v7669 = vadd.f32 %v7668, %v7633
      %v7670 = vadd.f32 %v7669, %v7635
      %v7671 = vadd.f32 %v7670, %v7638
      %v7672 = vadd.f32 %v7671, %v7640
      %v7673 = vrot.slane %v7672, 4
      %v7674 = vadd.f32 %v7672, %v7673
      %v7675 = vrot.slane %v7674, 2
      %v7676 = vadd.f32 %v7674, %v7675
      %v7677 = vrot.slane %v7676, 1
      %v7678 = vadd.f32 %v7676, %v7677
      %v7679 = vadd.f32 %v7678, 0.0
      %7680 = vst [vmem:[#allocation3] sm:$0xff] %v7563
      %7681 = vst [vmem:[#allocation3 + $0x8] sm:$0xff] %v7565
      %7682 = vst [vmem:[#allocation3 + $0x10] sm:$0xff] %v7568
      %7683 = vst [vmem:[#allocation3 + $0x18] sm:$0xff] %v7570
      %7684 = vst [vmem:[#allocation3 + $0x20] sm:$0xff] %v7573
      %7685 = vst [vmem:[#allocation3 + $0x28] sm:$0xff] %v7575
      %7686 = vst [vmem:[#allocation3 + $0x30] sm:$0xff] %v7578
      %7687 = vst [vmem:[#allocation3 + $0x38] sm:$0xff] %v7580
      %7688 = vst [vmem:[#allocation3 + $0x40] sm:$0xff] %v7583
      %7689 = vst [vmem:[#allocation3 + $0x48] sm:$0xff] %v7585
      %7690 = vst [vmem:[#allocation3 + $0x50] sm:$0xff] %v7588
      %7691 = vst [vmem:[#allocation3 + $0x58] sm:$0xff] %v7590
      %7692 = vst [vmem:[#allocation3 + $0x60] sm:$0xff] %v7593
      %7693 = vst [vmem:[#allocation3 + $0x68] sm:$0xff] %v7595
      %7694 = vst [vmem:[#allocation3 + $0x70] sm:$0xff] %v7598
      %7695 = vst [vmem:[#allocation3 + $0x78] sm:$0xff] %v7600
      %7696 = vst [vmem:[#allocation3 + $0x80] sm:$0xff] %v7603
      %7697 = vst [vmem:[#allocation3 + $0x88] sm:$0xff] %v7605
      %7698 = vst [vmem:[#allocation3 + $0x90] sm:$0xff] %v7608
      %7699 = vst [vmem:[#allocation3 + $0x98] sm:$0xff] %v7610
      %7700 = vst [vmem:[#allocation3 + $0xa0] sm:$0xff] %v7613
      %7701 = vst [vmem:[#allocation3 + $0xa8] sm:$0xff] %v7615
      %7702 = vst [vmem:[#allocation3 + $0xb0] sm:$0xff] %v7618
      %7703 = vst [vmem:[#allocation3 + $0xb8] sm:$0xff] %v7620
      %7704 = vst [vmem:[#allocation3 + $0xc0] sm:$0xff] %v7623
      %7705 = vst [vmem:[#allocation3 + $0xc8] sm:$0xff] %v7625
      %7706 = vst [vmem:[#allocation3 + $0xd0] sm:$0xff] %v7628
      %7707 = vst [vmem:[#allocation3 + $0xd8] sm:$0xff] %v7630
      %7708 = vst [vmem:[#allocation3 + $0xe0] sm:$0xff] %v7633
      %7709 = vst [vmem:[#allocation3 + $0xe8] sm:$0xff] %v7635
      %7710 = vst [vmem:[#allocation3 + $0xf0] sm:$0xff] %v7638
      %7711 = vst [vmem:[#allocation3 + $0xf8] sm:$0xff] %v7640
      %v7712 = vmul.f32 %v7679, 0.00390625
      %v7713 = vld [vmem:[%s5] sm:$0xff]
      %v7714 = vmul.f32 %v7713, %v7712
      %7715 = vadd.xlane.f32.xlu0 %v7714
      %v7716 = vpop.xlane.xlu0 %7715
      %v7717 = vld [vmem:[%s6] sm:$0xff]
      %v7718 = vadd.f32 %v7716, %v7717
      %v7719 = vmax.f32 %v7718, 0.0
      %v7720 = vld [vmem:[%s7] sm:$0xff]
      %7722 = vset.pattern.permute.xlu0 0
      %7723 = vperm.xlu0 %7722, %v7719
      %v7724 = vpop.permute.xlu0 %7723
      %v7726 = vmul.f32 %v7724, %v7720
      %v7727 = vrot.slane %v7726, 4
      %v7728 = vadd.f32 %v7726, %v7727
      %v7729 = vrot.slane %v7728, 2
      %v7730 = vadd.f32 %v7728, %v7729
      %v7731 = vrot.slane %v7730, 1
      %v7732 = vadd.f32 %v7730, %v7731
      %v7733 = vld [vmem:[%s8] sm:$0x1]
      %v7734 = vadd.f32 %v7732, %v7733
      %v7735 = vxor.u32 %v7734, 2147483648
      %v7736 = vmul.f32 %v7735, 1.442695
      %v7737 = vpow.pop %v7736
      %v7738 = vadd.f32 %v7737, 1.0
      %v7739 = vrcp.pop %v7738
      %v7740 = vmul.f32 %v7738, %v7739
      %v7741 = vsub.f32 1.0, %v7740
      %v7742 = vmul.f32 %v7739, %v7741
      %v7743 = vadd.f32 %v7739, %v7742
      %vm7744 = vweird.f32 %v7738
      %vm7745 = vweird.f32 %v7739
      %vm7746 = vmor %vm7744, %vm7745
      %v7747 = vsel %vm7746, %v7739, %v7743
      %v7748 = vand.u32 2147483647, %v7738
      %vm7749 = vcmp.eq.f32.partialorder %v7748, 8.507059e+37
      %v7750 = vand.u32 %v7738, 2147483648
      %v7751 = vor.u32 1.1754944e-38, %v7750
      %v7752 = vsel %vm7749, %v7751, %v7747
      %v7753 = vmul.f32 1.0, %v7752
      %v7754 = vld [vmem:[#allocation3] sm:$0xff]
      %v7755 = vld [vmem:[#allocation3 + $0x8] sm:$0xff]
      %v7756 = vld [vmem:[#allocation3 + $0x10] sm:$0xff]
      %v7757 = vld [vmem:[#allocation3 + $0x18] sm:$0xff]
      %v7758 = vld [vmem:[#allocation3 + $0x20] sm:$0xff]
      %v7759 = vld [vmem:[#allocation3 + $0x28] sm:$0xff]
      %v7760 = vld [vmem:[#allocation3 + $0x30] sm:$0xff]
      %v7761 = vld [vmem:[#allocation3 + $0x38] sm:$0xff]
      %v7762 = vld [vmem:[#allocation3 + $0x40] sm:$0xff]
      %v7763 = vld [vmem:[#allocation3 + $0x48] sm:$0xff]
      %v7764 = vld [vmem:[#allocation3 + $0x50] sm:$0xff]
      %v7765 = vld [vmem:[#allocation3 + $0x58] sm:$0xff]
      %v7766 = vld [vmem:[#allocation3 + $0x60] sm:$0xff]
      %v7767 = vld [vmem:[#allocation3 + $0x68] sm:$0xff]
      %v7768 = vld [vmem:[#allocation3 + $0x70] sm:$0xff]
      %v7769 = vld [vmem:[#allocation3 + $0x78] sm:$0xff]
      %v7770 = vld [vmem:[#allocation3 + $0x80] sm:$0xff]
      %v7771 = vld [vmem:[#allocation3 + $0x88] sm:$0xff]
      %v7772 = vld [vmem:[#allocation3 + $0x90] sm:$0xff]
      %v7773 = vld [vmem:[#allocation3 + $0x98] sm:$0xff]
      %v7774 = vld [vmem:[#allocation3 + $0xa0] sm:$0xff]
      %v7775 = vld [vmem:[#allocation3 + $0xa8] sm:$0xff]
      %v7776 = vld [vmem:[#allocation3 + $0xb0] sm:$0xff]
      %v7777 = vld [vmem:[#allocation3 + $0xb8] sm:$0xff]
      %v7778 = vld [vmem:[#allocation3 + $0xc0] sm:$0xff]
      %v7779 = vld [vmem:[#allocation3 + $0xc8] sm:$0xff]
      %v7780 = vld [vmem:[#allocation3 + $0xd0] sm:$0xff]
      %v7781 = vld [vmem:[#allocation3 + $0xd8] sm:$0xff]
      %v7782 = vld [vmem:[#allocation3 + $0xe0] sm:$0xff]
      %v7783 = vld [vmem:[#allocation3 + $0xe8] sm:$0xff]
      %v7784 = vld [vmem:[#allocation3 + $0xf0] sm:$0xff]
      %v7785 = vld [vmem:[#allocation3 + $0xf8] sm:$0xff]
      %v7786 = vperm.slane %v7753, 0
      %v7787 = vmul.f32 %v7754, %v7786
      %v7788 = vmul.f32 %v7755, %v7786
      %v7789 = vmul.f32 %v7756, %v7786
      %v7790 = vmul.f32 %v7757, %v7786
      %v7791 = vmul.f32 %v7758, %v7786
      %v7792 = vmul.f32 %v7759, %v7786
      %v7793 = vmul.f32 %v7760, %v7786
      %v7794 = vmul.f32 %v7761, %v7786
      %v7795 = vmul.f32 %v7762, %v7786
      %v7796 = vmul.f32 %v7763, %v7786
      %v7797 = vmul.f32 %v7764, %v7786
      %v7798 = vmul.f32 %v7765, %v7786
      %v7799 = vmul.f32 %v7766, %v7786
      %v7800 = vmul.f32 %v7767, %v7786
      %v7801 = vmul.f32 %v7768, %v7786
      %v7802 = vmul.f32 %v7769, %v7786
      %v7803 = vmul.f32 %v7770, %v7786
      %v7804 = vmul.f32 %v7771, %v7786
      %v7805 = vmul.f32 %v7772, %v7786
      %v7806 = vmul.f32 %v7773, %v7786
      %v7807 = vmul.f32 %v7774, %v7786
      %v7808 = vmul.f32 %v7775, %v7786
      %v7809 = vmul.f32 %v7776, %v7786
      %v7810 = vmul.f32 %v7777, %v7786
      %v7811 = vmul.f32 %v7778, %v7786
      %v7812 = vmul.f32 %v7779, %v7786
      %v7813 = vmul.f32 %v7780, %v7786
      %v7814 = vmul.f32 %v7781, %v7786
      %v7815 = vmul.f32 %v7782, %v7786
      %v7816 = vmul.f32 %v7783, %v7786
      %v7817 = vmul.f32 %v7784, %v7786
      %v7818 = vmul.f32 %v7785, %v7786
      %v7819 = vld [vmem:[%s327] sm:$0xff]
      %v7820 = vld [vmem:[%s327 + $0x8] sm:$0xff]
      %v7821 = vld [vmem:[%s327 + $0x10] sm:$0xff]
      %v7822 = vld [vmem:[%s327 + $0x18] sm:$0xff]
      %v7823 = vld [vmem:[%s327 + $0x20] sm:$0xff]
      %v7824 = vld [vmem:[%s327 + $0x28] sm:$0xff]
      %v7825 = vld [vmem:[%s327 + $0x30] sm:$0xff]
      %v7826 = vld [vmem:[%s327 + $0x38] sm:$0xff]
      %v7827 = vld [vmem:[%s327 + $0x40] sm:$0xff]
      %v7828 = vld [vmem:[%s327 + $0x48] sm:$0xff]
      %v7829 = vld [vmem:[%s327 + $0x50] sm:$0xff]
      %v7830 = vld [vmem:[%s327 + $0x58] sm:$0xff]
      %v7831 = vld [vmem:[%s327 + $0x60] sm:$0xff]
      %v7832 = vld [vmem:[%s327 + $0x68] sm:$0xff]
      %v7833 = vld [vmem:[%s327 + $0x70] sm:$0xff]
      %v7834 = vld [vmem:[%s327 + $0x78] sm:$0xff]
      %v7835 = vld [vmem:[%s327 + $0x80] sm:$0xff]
      %v7836 = vld [vmem:[%s327 + $0x88] sm:$0xff]
      %v7837 = vld [vmem:[%s327 + $0x90] sm:$0xff]
      %v7838 = vld [vmem:[%s327 + $0x98] sm:$0xff]
      %v7839 = vld [vmem:[%s327 + $0xa0] sm:$0xff]
      %v7840 = vld [vmem:[%s327 + $0xa8] sm:$0xff]
      %v7841 = vld [vmem:[%s327 + $0xb0] sm:$0xff]
      %v7842 = vld [vmem:[%s327 + $0xb8] sm:$0xff]
      %v7843 = vld [vmem:[%s327 + $0xc0] sm:$0xff]
      %v7844 = vld [vmem:[%s327 + $0xc8] sm:$0xff]
      %v7845 = vld [vmem:[%s327 + $0xd0] sm:$0xff]
      %v7846 = vld [vmem:[%s327 + $0xd8] sm:$0xff]
      %v7847 = vld [vmem:[%s327 + $0xe0] sm:$0xff]
      %v7848 = vld [vmem:[%s327 + $0xe8] sm:$0xff]
      %v7849 = vld [vmem:[%s327 + $0xf0] sm:$0xff]
      %v7850 = vld [vmem:[%s327 + $0xf8] sm:$0xff]
      %v7851 = vadd.f32 %v7819, %v7787
      %v7852 = vadd.f32 %v7820, %v7788
      %v7853 = vadd.f32 %v7821, %v7789
      %v7854 = vadd.f32 %v7822, %v7790
      %v7855 = vadd.f32 %v7823, %v7791
      %v7856 = vadd.f32 %v7824, %v7792
      %v7857 = vadd.f32 %v7825, %v7793
      %v7858 = vadd.f32 %v7826, %v7794
      %v7859 = vadd.f32 %v7827, %v7795
      %v7860 = vadd.f32 %v7828, %v7796
      %v7861 = vadd.f32 %v7829, %v7797
      %v7862 = vadd.f32 %v7830, %v7798
      %v7863 = vadd.f32 %v7831, %v7799
      %v7864 = vadd.f32 %v7832, %v7800
      %v7865 = vadd.f32 %v7833, %v7801
      %v7866 = vadd.f32 %v7834, %v7802
      %v7867 = vadd.f32 %v7835, %v7803
      %v7868 = vadd.f32 %v7836, %v7804
      %v7869 = vadd.f32 %v7837, %v7805
      %v7870 = vadd.f32 %v7838, %v7806
      %v7871 = vadd.f32 %v7839, %v7807
      %v7872 = vadd.f32 %v7840, %v7808
      %v7873 = vadd.f32 %v7841, %v7809
      %v7874 = vadd.f32 %v7842, %v7810
      %v7875 = vadd.f32 %v7843, %v7811
      %v7876 = vadd.f32 %v7844, %v7812
      %v7877 = vadd.f32 %v7845, %v7813
      %v7878 = vadd.f32 %v7846, %v7814
      %v7879 = vadd.f32 %v7847, %v7815
      %v7880 = vadd.f32 %v7848, %v7816
      %v7881 = vadd.f32 %v7849, %v7817
      %v7882 = vadd.f32 %v7850, %v7818
      %7883 = vst.msk [vmem:[%s332] sm:$0xff] %vm598, %v7851
      %7884 = vst.msk [vmem:[%s332 + $0x8] sm:$0xff] %vm598, %v7852
      %7885 = vst.msk [vmem:[%s332 + $0x10] sm:$0xff] %vm598, %v7853
      %7886 = vst.msk [vmem:[%s332 + $0x18] sm:$0xff] %vm598, %v7854
      %7887 = vst.msk [vmem:[%s332 + $0x20] sm:$0xff] %vm598, %v7855
      %7888 = vst.msk [vmem:[%s332 + $0x28] sm:$0xff] %vm598, %v7856
      %7889 = vst.msk [vmem:[%s332 + $0x30] sm:$0xff] %vm598, %v7857
      %7890 = vst.msk [vmem:[%s332 + $0x38] sm:$0xff] %vm598, %v7858
      %7891 = vst.msk [vmem:[%s332 + $0x40] sm:$0xff] %vm598, %v7859
      %7892 = vst.msk [vmem:[%s332 + $0x48] sm:$0xff] %vm598, %v7860
      %7893 = vst.msk [vmem:[%s332 + $0x50] sm:$0xff] %vm598, %v7861
      %7894 = vst.msk [vmem:[%s332 + $0x58] sm:$0xff] %vm598, %v7862
      %7895 = vst.msk [vmem:[%s332 + $0x60] sm:$0xff] %vm598, %v7863
      %7896 = vst.msk [vmem:[%s332 + $0x68] sm:$0xff] %vm598, %v7864
      %7897 = vst.msk [vmem:[%s332 + $0x70] sm:$0xff] %vm598, %v7865
      %7898 = vst.msk [vmem:[%s332 + $0x78] sm:$0xff] %vm598, %v7866
      %7899 = vst.msk [vmem:[%s332 + $0x80] sm:$0xff] %vm598, %v7867
      %7900 = vst.msk [vmem:[%s332 + $0x88] sm:$0xff] %vm598, %v7868
      %7901 = vst.msk [vmem:[%s332 + $0x90] sm:$0xff] %vm598, %v7869
      %7902 = vst.msk [vmem:[%s332 + $0x98] sm:$0xff] %vm598, %v7870
      %7903 = vst.msk [vmem:[%s332 + $0xa0] sm:$0xff] %vm598, %v7871
      %7904 = vst.msk [vmem:[%s332 + $0xa8] sm:$0xff] %vm598, %v7872
      %7905 = vst.msk [vmem:[%s332 + $0xb0] sm:$0xff] %vm598, %v7873
      %7906 = vst.msk [vmem:[%s332 + $0xb8] sm:$0xff] %vm598, %v7874
      %7907 = vst.msk [vmem:[%s332 + $0xc0] sm:$0xff] %vm598, %v7875
      %7908 = vst.msk [vmem:[%s332 + $0xc8] sm:$0xff] %vm598, %v7876
      %7909 = vst.msk [vmem:[%s332 + $0xd0] sm:$0xff] %vm598, %v7877
      %7910 = vst.msk [vmem:[%s332 + $0xd8] sm:$0xff] %vm598, %v7878
      %7911 = vst.msk [vmem:[%s332 + $0xe0] sm:$0xff] %vm598, %v7879
      %7912 = vst.msk [vmem:[%s332 + $0xe8] sm:$0xff] %vm598, %v7880
      %7913 = vst.msk [vmem:[%s332 + $0xf0] sm:$0xff] %vm598, %v7881
      %7914 = vst.msk [vmem:[%s332 + $0xf8] sm:$0xff] %vm598, %v7882
      %p7915 = scmp.lt.s32.totalorder %s20, 1
      %s7916 = scalar_select %p7915, %s20, 1
      %s7917 = smul.addr %s7916, 32
      %s7918 = smul.addr %s7917, 8
      %s7919 = scalar_lea.vmem %s9, %s7918
      // Predicated region
      $region57: #{rcab_forward.1} parent=55 // pred_check
        %p7920 = pneg %p232
      $region58: #{rcab_forward.1} parent=55 // pred_check_branch
        %7922 = sbr.rel (%p7920) target = $region60
      $region59: #{rcab_forward.1} parent=55 // pred_region
        _
      $region60: #{rcab_forward.1} parent=55 // pred_fallthru
        _
    $region56: #{rcab_forward.1} parent=5 // pred_fallthru
      _
    %p7923 = scmp.le.s32.totalorder 2, %s15
    // Predicated region
    $region61: #{rcab_forward.1} parent=5 // pred_check
      %p7924 = pneg %p7923
    $region62: #{rcab_forward.1} parent=5 // pred_check_branch
      %7926 = sbr.rel (%p7924) target = $region64
    $region63: #{rcab_forward.1} parent=5 // pred_region
      %s7927 = ssub.s32 %s15, 2
      // Predicated region
      $region65: #{rcab_forward.1} parent=63 // pred_check
        %p7928 = pneg %p238
      $region66: #{rcab_forward.1} parent=63 // pred_check_branch
        %7930 = sbr.rel (%p7928) target = $region68
      $region67: #{rcab_forward.1} parent=63 // pred_region
        %p7931 = scmp.lt.s32.totalorder %s21, 1
        %s7932 = scalar_select %p7931, %s21, 1
        %s7933 = smul.addr %s7932, 32
        %s7934 = smul.addr %s7933, 8
        %s7935 = scalar_lea.vmem %s9, %s7934
      $region68: #{rcab_forward.1} parent=63 // pred_fallthru
        _
    $region64: #{rcab_forward.1} parent=5 // pred_fallthru
      _
  $region6: #{rcab_forward.1} parent=0 // loop_footer
    %s19 = sadd.s32 1, %s15
  $region7: #{rcab_forward.1} parent=0 // loop_footer_branch
    %14 = sbr.rel target = $region3
  $region8: #{rcab_forward.1} parent=0 // loop_exit
    _

</llo_original>
